<compile_context>
chip_gen: v5e
topology: v5e:2x2
jax: 0.10.0
libtpu: 0.0.40
codegen_flags: <defaults>
</compile_context>

<pallas_src>
import functools

import jax
import jax.numpy as jnp
from jax.experimental import pallas as pl
from jax.experimental.pallas import tpu as pltpu

EPS = 1e-5
C_PAD = 128  # lane width: every channel dim is padded to this


# ----------------------------------------------------------------------------
# Pallas kernels
# ----------------------------------------------------------------------------
def _conv_bn_kernel(*refs, relu, sc_mode):
    """Fused im2col-matmul + folded-BN shift + optional shortcut + ReLU.

    sc_mode: 0 = no shortcut, 1 = identity residual add,
             2 = 1x1-conv+BN shortcut fused as a second dot.
    bf16 MXU operands, f32 accumulation & epilogue, bf16 store.
    """
    if sc_mode == 0:
        p_ref, w_ref, shift_ref, o_ref = refs
    elif sc_mode == 1:
        p_ref, w_ref, shift_ref, res_ref, o_ref = refs
    else:
        p_ref, w_ref, shift_ref, res_ref, scw_ref, scshift_ref, o_ref = refs

    y = jnp.dot(p_ref[...], w_ref[...], preferred_element_type=jnp.float32)
    y = y + shift_ref[...]
    if sc_mode == 1:
        y = y + res_ref[...].astype(jnp.float32)
    elif sc_mode == 2:
        y = y + jnp.dot(res_ref[...], scw_ref[...], preferred_element_type=jnp.float32)
        y = y + scshift_ref[...]
    if relu:
        y = jnp.maximum(y, 0.0)
    o_ref[...] = y.astype(o_ref.dtype)


def pick_tm(M):
    """Largest multiple-of-16 divisor of M, capped so the grid has >= 2 steps
    (v7x has 2 TensorCores) and tiles stay <= 1024 rows."""
    cap = min(1024, max(16, M // 2))
    best = None
    for d in range(16, cap + 1, 16):
        if M % d == 0:
            best = d
    return best if best is not None else M  # fall back to a single full tile


def conv_bn_mm(patches, w2d, shift, *, relu=True, residual=None, sc_w=None, sc_shift=None):
    """y = relu?( patches @ w2d + shift [+ shortcut] ), tiled over M, lane-dense out."""
    M, K = patches.shape
    Co = w2d.shape[1]
    tm = pick_tm(M)
    grid = (pl.cdiv(M, tm),)

    sc_mode = 0
    ins = [patches, w2d, shift]
    specs = [
        pl.BlockSpec((tm, K), lambda i: (i, 0)),
        pl.BlockSpec((K, Co), lambda i: (0, 0)),
        pl.BlockSpec((1, Co), lambda i: (0, 0)),
    ]
    if residual is not None:
        sc_mode = 1
        ins.append(residual)
        specs.append(pl.BlockSpec((tm, Co), lambda i: (i, 0)))
        if sc_w is not None:
            sc_mode = 2
            ins += [sc_w, sc_shift]
            specs += [
                pl.BlockSpec(sc_w.shape, lambda i: (0, 0)),
                pl.BlockSpec((1, Co), lambda i: (0, 0)),
            ]

    kern = functools.partial(_conv_bn_kernel, relu=relu, sc_mode=sc_mode)
    return pl.pallas_call(
        kern,
        out_shape=jax.ShapeDtypeStruct((M, Co), jnp.bfloat16),
        grid=grid,
        in_specs=specs,
        out_specs=pl.BlockSpec((tm, Co), lambda i: (i, 0)),
        compiler_params=pltpu.CompilerParams(dimension_semantics=("parallel",)),
    )(*ins)


def _pool_linear_kernel(f_ref, w_ref, b_ref, o_ref):
    """AdaptiveAvgPool2d(1) over flattened H*W axis fused with the Linear layer."""
    pooled = jnp.mean(f_ref[...].astype(jnp.float32), axis=1)        # (N, C) f32
    y = jnp.dot(pooled.astype(jnp.bfloat16), w_ref[...],
                preferred_element_type=jnp.float32)
    o_ref[...] = (y + b_ref[...]).astype(o_ref.dtype)


def pool_linear(feat, w, b):
    N, HW, C = feat.shape
    NC = w.shape[1]
    return pl.pallas_call(
        _pool_linear_kernel,
        out_shape=jax.ShapeDtypeStruct((N, NC), jnp.float32),
        grid=(1,),
        in_specs=[
            pl.BlockSpec((N, HW, C), lambda i: (0, 0, 0)),
            pl.BlockSpec((C, NC), lambda i: (0, 0)),
            pl.BlockSpec((1, NC), lambda i: (0, 0)),
        ],
        out_specs=pl.BlockSpec((N, NC), lambda i: (0, 0)),
    )(feat, w, b)


# ----------------------------------------------------------------------------
# JAX glue: im2col, BN folding / channel padding, parameter construction
# ----------------------------------------------------------------------------
def im2col_3x3(x, stride):
    """x: (N, H, W, C) NHWC, 3x3 kernel, padding=1 -> (N*Ho*Wo, 9*C) patches."""
    N, H, W, C = x.shape
    Ho, Wo = H // stride, W // stride
    xp = jnp.pad(x, ((0, 0), (1, 1), (1, 1), (0, 0)))
    cols = [xp[:, kh:kh + H:stride, kw:kw + W:stride, :]
            for kh in range(3) for kw in range(3)]            # kh major, kw minor
    patches = jnp.concatenate(cols, axis=-1)                  # (N, Ho, Wo, 9*C)
    return patches.reshape(N * Ho * Wo, 9 * C), (N, Ho, Wo)


def fold_conv_bn(w4, bn, cin_pad, cout_pad=C_PAD):
    """PyTorch conv weight (Cout,Cin,KH,KW) + eval BN -> bf16 (KH*KW*cin_pad, cout_pad)
    with the BN scale folded in, plus f32 shift (1, cout_pad)."""
    Cout, Cin, KH, KW = w4.shape
    scale = bn["gamma"] / jnp.sqrt(bn["var"] + EPS)
    shift = bn["beta"] - bn["mean"] * scale
    w = w4 * scale[:, None, None, None]
    w = jnp.transpose(w, (2, 3, 1, 0))                        # (KH, KW, Cin, Cout)
    w = jnp.pad(w, ((0, 0), (0, 0), (0, cin_pad - Cin), (0, cout_pad - Cout)))
    w2d = w.reshape(KH * KW * cin_pad, cout_pad).astype(jnp.bfloat16)
    shift = jnp.pad(shift, (0, cout_pad - Cout)).reshape(1, cout_pad).astype(jnp.float32)
    return w2d, shift


def fold_sc_bn(w4, bn, cin_pad, cout_pad=C_PAD):
    """1x1 shortcut conv (Cout,Cin,1,1) + eval BN -> bf16 (cin_pad, cout_pad) + f32 shift."""
    Cout, Cin = w4.shape[:2]
    scale = bn["gamma"] / jnp.sqrt(bn["var"] + EPS)
    shift = bn["beta"] - bn["mean"] * scale
    w = (w4[:, :, 0, 0] * scale[:, None]).T                   # (Cin, Cout)
    w = jnp.pad(w, ((0, cin_pad - Cin), (0, cout_pad - Cout))).astype(jnp.bfloat16)
    shift = jnp.pad(shift, (0, cout_pad - Cout)).reshape(1, cout_pad).astype(jnp.float32)
    return w, shift


def basic_block(x, p):
    """CIFAR BasicBlock (EXPANSION=1) on channel-padded NHWC bf16 activations."""
    stride = p["stride"]
    N = x.shape[0]

    patches1, (N, Ho, Wo) = im2col_3x3(x, stride)
    out = conv_bn_mm(patches1, p["w1"], p["b1"], relu=True)   # relu(bn1(conv1(x)))
    out_img = out.reshape(N, Ho, Wo, C_PAD)

    patches2, _ = im2col_3x3(out_img, 1)
    if "sc_w" in p:
        # Downsampling block: 1x1-conv+BN shortcut and residual add fused into conv2's kernel.
        xs = x[:, ::stride, ::stride, :].reshape(N * Ho * Wo, C_PAD)
        out = conv_bn_mm(patches2, p["w2"], p["b2"], relu=True,
                         residual=xs, sc_w=p["sc_w"], sc_shift=p["sc_b"])
    else:
        # Identity shortcut: residual added inside the conv2 kernel epilogue.
        res = x.reshape(N * Ho * Wo, C_PAD)
        out = conv_bn_mm(patches2, p["w2"], p["b2"], relu=True, residual=res)
    return out.reshape(N, Ho, Wo, C_PAD)


def init_params(key, num_blocks=(1, 1, 1), num_class=10):
    """Raw PyTorch-layout parameters (Conv2d weights, BatchNorm running stats, Linear)."""
    keys = iter(jax.random.split(key, 256))

    def conv_w(cout, cin, k):
        fan_in = cin * k * k
        return jax.random.normal(next(keys), (cout, cin, k, k), jnp.float32) / jnp.sqrt(fan_in)

    def bn_p(c):
        return dict(
            gamma=jax.random.uniform(next(keys), (c,), jnp.float32, 0.5, 1.5),
            beta=jax.random.normal(next(keys), (c,), jnp.float32) * 0.1,
            mean=jax.random.normal(next(keys), (c,), jnp.float32) * 0.1,
            var=jax.random.uniform(next(keys), (c,), jnp.float32, 0.5, 1.5),
        )

    params = dict(conv1_w=conv_w(16, 3, 3), bn1=bn_p(16), layers=[])

    in_ch = 16
    for ou, nb, stride in ((16, num_blocks[0], 1), (32, num_blocks[1], 2), (64, num_blocks[2], 2)):
        strides = [stride] + [1] * (nb - 1)
        for s in strides:
            blk = dict(
                stride=s,
                conv1_w=conv_w(ou, in_ch, 3),
                bn1=bn_p(ou),
                conv2_w=conv_w(ou, ou, 3),
                bn2=bn_p(ou),
            )
            if s != 1 or in_ch != ou:
                blk["sc_w"] = conv_w(ou, in_ch, 1)
                blk["sc_bn"] = bn_p(ou)
            params["layers"].append(blk)
            in_ch = ou

    params["linear_w"] = jax.random.normal(next(keys), (num_class, 64), jnp.float32) / jnp.sqrt(64.0)
    params["linear_b"] = jax.random.normal(next(keys), (num_class,), jnp.float32) * 0.1
    return params


def prepare_params(raw):
    """Fold eval-mode BN into weights, pad all channel dims to 128, cast weights to bf16."""
    pp = {"num_class": raw["linear_w"].shape[0]}
    pp["stem_w"], pp["stem_b"] = fold_conv_bn(raw["conv1_w"], raw["bn1"], cin_pad=3)
    layers = []
    for blk in raw["layers"]:
        d = {"stride": blk["stride"]}
        d["w1"], d["b1"] = fold_conv_bn(blk["conv1_w"], blk["bn1"], cin_pad=C_PAD)
        d["w2"], d["b2"] = fold_conv_bn(blk["conv2_w"], blk["bn2"], cin_pad=C_PAD)
        if "sc_w" in blk:
            d["sc_w"], d["sc_b"] = fold_sc_bn(blk["sc_w"], blk["sc_bn"], cin_pad=C_PAD)
        layers.append(d)
    pp["layers"] = layers
    nc, cfeat = raw["linear_w"].shape
    pp["lin_w"] = jnp.pad(raw["linear_w"].T,
                          ((0, C_PAD - cfeat), (0, C_PAD - nc))).astype(jnp.bfloat16)
    pp["lin_b"] = jnp.pad(raw["linear_b"], (0, C_PAD - nc)).reshape(1, C_PAD).astype(jnp.float32)
    return pp


def resnet_forward(x_nchw, pp):
    # NCHW (PyTorch) -> NHWC bf16 internal
    x = jnp.transpose(x_nchw, (0, 2, 3, 1)).astype(jnp.bfloat16)

    # stem: relu(bn1(conv1(x))); output channels padded to 128 lanes
    patches, (N, Ho, Wo) = im2col_3x3(x, 1)
    out = conv_bn_mm(patches, pp["stem_w"], pp["stem_b"], relu=True)
    out = out.reshape(N, Ho, Wo, C_PAD)

    # layer1 / layer2 / layer3
    for blk in pp["layers"]:
        out = basic_block(out, blk)

    # avgpool(1) + flatten + linear (classes padded to 128), one fused kernel
    N, H, W, C = out.shape
    logits = pool_linear(out.reshape(N, H * W, C), pp["lin_w"], pp["lin_b"])
    return logits[:, :pp["num_class"]]


if __name__ == "__main__":
    key = jax.random.PRNGKey(0)
    kp, kx = jax.random.split(key)
    raw_params = init_params(kp, num_blocks=(1, 1, 1), num_class=10)
    prepped = prepare_params(raw_params)
    x = jax.random.normal(kx, (2, 3, 16, 16), jnp.float32)  # NCHW like PyTorch

    fwd = jax.jit(lambda inp: resnet_forward(inp, prepped))
    logits = fwd(x)
    jax.block_until_ready(logits)
    assert logits.shape == (2, 10)
    print("KERNEL_OK")
</pallas_src>

<mosaic_0001>
module attributes {stable_mosaic.version = 11 : i64} {
  func.func @_conv_bn_kernel(%arg0: i32, %arg1: memref<256x27xbf16, #tpu.memory_space<vmem>>, %arg2: memref<27x128xbf16, #tpu.memory_space<vmem>>, %arg3: memref<1x128xf32, #tpu.memory_space<vmem>>, %arg4: memref<256x128xbf16, #tpu.memory_space<vmem>>) attributes {dimension_semantics = [#tpu.dimension_semantics<parallel>], iteration_bounds = array<i64: 2>, scalar_prefetch = 0 : i64, scratch_operands = 0 : i64, tpu.core_type = #tpu.core_type<tc>, window_params = [{transform_indices = @transform_0, window_bounds = array<i64: 256, 27>}, {pipeline_mode = #tpu.pipeline_mode<synchronous>, transform_indices = @transform_1, window_bounds = array<i64: 27, 128>}, {pipeline_mode = #tpu.pipeline_mode<synchronous>, transform_indices = @transform_2, window_bounds = array<i64: 1, 128>}, {transform_indices = @transform_3, window_bounds = array<i64: 256, 128>}]} {
    %c0 = arith.constant 0 : index
    %c0_0 = arith.constant 0 : index
    %0 = vector.load %arg1[%c0, %c0_0] : memref<256x27xbf16, #tpu.memory_space<vmem>>, vector<256x27xbf16>
    %c0_1 = arith.constant 0 : index
    %c0_2 = arith.constant 0 : index
    %1 = vector.load %arg2[%c0_1, %c0_2] : memref<27x128xbf16, #tpu.memory_space<vmem>>, vector<27x128xbf16>
    %cst = arith.constant dense<0.000000e+00> : vector<256x128xf32>
    %2 = tpu.matmul %0, %1, %cst {dimension_numbers = #tpu.dot_dimension_numbers<[1], [0], [0], [1], [0, 0, 1, 1], [], []>} : vector<256x27xbf16>, vector<27x128xbf16>, vector<256x128xf32> -> vector<256x128xf32>
    %c0_3 = arith.constant 0 : index
    %c0_4 = arith.constant 0 : index
    %3 = vector.load %arg3[%c0_3, %c0_4] : memref<1x128xf32, #tpu.memory_space<vmem>>, vector<1x128xf32>
    %4 = vector.broadcast %3 : vector<1x128xf32> to vector<256x128xf32>
    %5 = arith.addf %2, %4 : vector<256x128xf32>
    %cst_5 = arith.constant 0.000000e+00 : f32
    %6 = vector.broadcast %cst_5 : f32 to vector<256x128xf32>
    %7 = arith.maximumf %5, %6 : vector<256x128xf32>
    %8 = arith.truncf %7 : vector<256x128xf32> to vector<256x128xbf16>
    %c0_6 = arith.constant 0 : index
    %c0_7 = arith.constant 0 : index
    %9 = vector.load %arg4[%c0_6, %c0_7] : memref<256x128xbf16, #tpu.memory_space<vmem>>, vector<256x128xbf16>
    tpu.vector_store %arg4[%c0_6, %c0_7], %8 {strides = array<i32>} : memref<256x128xbf16, #tpu.memory_space<vmem>>, vector<256x128xbf16>,
    return
  }
  func.func @transform_0(%arg0: i32) -> (i32, i32) {
    %c0_i32 = arith.constant 0 : i32
    %c0_i32_0 = arith.constant 0 : i32
    return %arg0, %c0_i32 : i32, i32
  }
  func.func @transform_1(%arg0: i32) -> (i32, i32) {
    %c0_i32 = arith.constant 0 : i32
    %c0_i32_0 = arith.constant 0 : i32
    %c0_i32_1 = arith.constant 0 : i32
    return %c0_i32, %c0_i32_0 : i32, i32
  }
  func.func @transform_2(%arg0: i32) -> (i32, i32) {
    %c0_i32 = arith.constant 0 : i32
    %c0_i32_0 = arith.constant 0 : i32
    %c0_i32_1 = arith.constant 0 : i32
    return %c0_i32, %c0_i32_0 : i32, i32
  }
  func.func @transform_3(%arg0: i32) -> (i32, i32) {
    %c0_i32 = arith.constant 0 : i32
    %c0_i32_0 = arith.constant 0 : i32
    return %arg0, %c0_i32 : i32, i32
  }
}

module attributes {stable_mosaic.version = 11 : i64} {
  func.func @_conv_bn_kernel(%arg0: i32, %arg1: memref<256x1152xbf16, #tpu.memory_space<vmem>>, %arg2: memref<1152x128xbf16, #tpu.memory_space<vmem>>, %arg3: memref<1x128xf32, #tpu.memory_space<vmem>>, %arg4: memref<256x128xbf16, #tpu.memory_space<vmem>>) attributes {dimension_semantics = [#tpu.dimension_semantics<parallel>], iteration_bounds = array<i64: 2>, scalar_prefetch = 0 : i64, scratch_operands = 0 : i64, tpu.core_type = #tpu.core_type<tc>, window_params = [{transform_indices = @transform_0, window_bounds = array<i64: 256, 1152>}, {pipeline_mode = #tpu.pipeline_mode<synchronous>, transform_indices = @transform_1, window_bounds = array<i64: 1152, 128>}, {pipeline_mode = #tpu.pipeline_mode<synchronous>, transform_indices = @transform_2, window_bounds = array<i64: 1, 128>}, {transform_indices = @transform_3, window_bounds = array<i64: 256, 128>}]} {
    %c0 = arith.constant 0 : index
    %c0_0 = arith.constant 0 : index
    %0 = vector.load %arg1[%c0, %c0_0] : memref<256x1152xbf16, #tpu.memory_space<vmem>>, vector<256x1152xbf16>
    %c0_1 = arith.constant 0 : index
    %c0_2 = arith.constant 0 : index
    %1 = vector.load %arg2[%c0_1, %c0_2] : memref<1152x128xbf16, #tpu.memory_space<vmem>>, vector<1152x128xbf16>
    %cst = arith.constant dense<0.000000e+00> : vector<256x128xf32>
    %2 = tpu.matmul %0, %1, %cst {dimension_numbers = #tpu.dot_dimension_numbers<[1], [0], [0], [1], [0, 0, 1, 1], [], []>} : vector<256x1152xbf16>, vector<1152x128xbf16>, vector<256x128xf32> -> vector<256x128xf32>
    %c0_3 = arith.constant 0 : index
    %c0_4 = arith.constant 0 : index
    %3 = vector.load %arg3[%c0_3, %c0_4] : memref<1x128xf32, #tpu.memory_space<vmem>>, vector<1x128xf32>
    %4 = vector.broadcast %3 : vector<1x128xf32> to vector<256x128xf32>
    %5 = arith.addf %2, %4 : vector<256x128xf32>
    %cst_5 = arith.constant 0.000000e+00 : f32
    %6 = vector.broadcast %cst_5 : f32 to vector<256x128xf32>
    %7 = arith.maximumf %5, %6 : vector<256x128xf32>
    %8 = arith.truncf %7 : vector<256x128xf32> to vector<256x128xbf16>
    %c0_6 = arith.constant 0 : index
    %c0_7 = arith.constant 0 : index
    %9 = vector.load %arg4[%c0_6, %c0_7] : memref<256x128xbf16, #tpu.memory_space<vmem>>, vector<256x128xbf16>
    tpu.vector_store %arg4[%c0_6, %c0_7], %8 {strides = array<i32>} : memref<256x128xbf16, #tpu.memory_space<vmem>>, vector<256x128xbf16>,
    return
  }
  func.func @transform_0(%arg0: i32) -> (i32, i32) {
    %c0_i32 = arith.constant 0 : i32
    %c0_i32_0 = arith.constant 0 : i32
    return %arg0, %c0_i32 : i32, i32
  }
  func.func @transform_1(%arg0: i32) -> (i32, i32) {
    %c0_i32 = arith.constant 0 : i32
    %c0_i32_0 = arith.constant 0 : i32
    %c0_i32_1 = arith.constant 0 : i32
    return %c0_i32, %c0_i32_0 : i32, i32
  }
  func.func @transform_2(%arg0: i32) -> (i32, i32) {
    %c0_i32 = arith.constant 0 : i32
    %c0_i32_0 = arith.constant 0 : i32
    %c0_i32_1 = arith.constant 0 : i32
    return %c0_i32, %c0_i32_0 : i32, i32
  }
  func.func @transform_3(%arg0: i32) -> (i32, i32) {
    %c0_i32 = arith.constant 0 : i32
    %c0_i32_0 = arith.constant 0 : i32
    return %arg0, %c0_i32 : i32, i32
  }
}

module attributes {stable_mosaic.version = 11 : i64} {
  func.func @_conv_bn_kernel(%arg0: i32, %arg1: memref<256x1152xbf16, #tpu.memory_space<vmem>>, %arg2: memref<1152x128xbf16, #tpu.memory_space<vmem>>, %arg3: memref<1x128xf32, #tpu.memory_space<vmem>>, %arg4: memref<256x128xbf16, #tpu.memory_space<vmem>>, %arg5: memref<256x128xbf16, #tpu.memory_space<vmem>>) attributes {dimension_semantics = [#tpu.dimension_semantics<parallel>], iteration_bounds = array<i64: 2>, scalar_prefetch = 0 : i64, scratch_operands = 0 : i64, tpu.core_type = #tpu.core_type<tc>, window_params = [{transform_indices = @transform_0, window_bounds = array<i64: 256, 1152>}, {pipeline_mode = #tpu.pipeline_mode<synchronous>, transform_indices = @transform_1, window_bounds = array<i64: 1152, 128>}, {pipeline_mode = #tpu.pipeline_mode<synchronous>, transform_indices = @transform_2, window_bounds = array<i64: 1, 128>}, {transform_indices = @transform_3, window_bounds = array<i64: 256, 128>}, {transform_indices = @transform_4, window_bounds = array<i64: 256, 128>}]} {
    %c0 = arith.constant 0 : index
    %c0_0 = arith.constant 0 : index
    %0 = vector.load %arg1[%c0, %c0_0] : memref<256x1152xbf16, #tpu.memory_space<vmem>>, vector<256x1152xbf16>
    %c0_1 = arith.constant 0 : index
    %c0_2 = arith.constant 0 : index
    %1 = vector.load %arg2[%c0_1, %c0_2] : memref<1152x128xbf16, #tpu.memory_space<vmem>>, vector<1152x128xbf16>
    %cst = arith.constant dense<0.000000e+00> : vector<256x128xf32>
    %2 = tpu.matmul %0, %1, %cst {dimension_numbers = #tpu.dot_dimension_numbers<[1], [0], [0], [1], [0, 0, 1, 1], [], []>} : vector<256x1152xbf16>, vector<1152x128xbf16>, vector<256x128xf32> -> vector<256x128xf32>
    %c0_3 = arith.constant 0 : index
    %c0_4 = arith.constant 0 : index
    %3 = vector.load %arg3[%c0_3, %c0_4] : memref<1x128xf32, #tpu.memory_space<vmem>>, vector<1x128xf32>
    %4 = vector.broadcast %3 : vector<1x128xf32> to vector<256x128xf32>
    %5 = arith.addf %2, %4 : vector<256x128xf32>
    %c0_5 = arith.constant 0 : index
    %c0_6 = arith.constant 0 : index
    %6 = vector.load %arg4[%c0_5, %c0_6] : memref<256x128xbf16, #tpu.memory_space<vmem>>, vector<256x128xbf16>
    %7 = arith.extf %6 : vector<256x128xbf16> to vector<256x128xf32>
    %8 = arith.addf %5, %7 : vector<256x128xf32>
    %cst_7 = arith.constant 0.000000e+00 : f32
    %9 = vector.broadcast %cst_7 : f32 to vector<256x128xf32>
    %10 = arith.maximumf %8, %9 : vector<256x128xf32>
    %11 = arith.truncf %10 : vector<256x128xf32> to vector<256x128xbf16>
    %c0_8 = arith.constant 0 : index
    %c0_9 = arith.constant 0 : index
    %12 = vector.load %arg5[%c0_8, %c0_9] : memref<256x128xbf16, #tpu.memory_space<vmem>>, vector<256x128xbf16>
    tpu.vector_store %arg5[%c0_8, %c0_9], %11 {strides = array<i32>} : memref<256x128xbf16, #tpu.memory_space<vmem>>, vector<256x128xbf16>,
    return
  }
  func.func @transform_0(%arg0: i32) -> (i32, i32) {
    %c0_i32 = arith.constant 0 : i32
    %c0_i32_0 = arith.constant 0 : i32
    return %arg0, %c0_i32 : i32, i32
  }
  func.func @transform_1(%arg0: i32) -> (i32, i32) {
    %c0_i32 = arith.constant 0 : i32
    %c0_i32_0 = arith.constant 0 : i32
    %c0_i32_1 = arith.constant 0 : i32
    return %c0_i32, %c0_i32_0 : i32, i32
  }
  func.func @transform_2(%arg0: i32) -> (i32, i32) {
    %c0_i32 = arith.constant 0 : i32
    %c0_i32_0 = arith.constant 0 : i32
    %c0_i32_1 = arith.constant 0 : i32
    return %c0_i32, %c0_i32_0 : i32, i32
  }
  func.func @transform_3(%arg0: i32) -> (i32, i32) {
    %c0_i32 = arith.constant 0 : i32
    %c0_i32_0 = arith.constant 0 : i32
    return %arg0, %c0_i32 : i32, i32
  }
  func.func @transform_4(%arg0: i32) -> (i32, i32) {
    %c0_i32 = arith.constant 0 : i32
    %c0_i32_0 = arith.constant 0 : i32
    return %arg0, %c0_i32 : i32, i32
  }
}

module attributes {stable_mosaic.version = 11 : i64} {
  func.func @_conv_bn_kernel(%arg0: i32, %arg1: memref<64x1152xbf16, #tpu.memory_space<vmem>>, %arg2: memref<1152x128xbf16, #tpu.memory_space<vmem>>, %arg3: memref<1x128xf32, #tpu.memory_space<vmem>>, %arg4: memref<64x128xbf16, #tpu.memory_space<vmem>>) attributes {dimension_semantics = [#tpu.dimension_semantics<parallel>], iteration_bounds = array<i64: 2>, scalar_prefetch = 0 : i64, scratch_operands = 0 : i64, tpu.core_type = #tpu.core_type<tc>, window_params = [{transform_indices = @transform_0, window_bounds = array<i64: 64, 1152>}, {pipeline_mode = #tpu.pipeline_mode<synchronous>, transform_indices = @transform_1, window_bounds = array<i64: 1152, 128>}, {pipeline_mode = #tpu.pipeline_mode<synchronous>, transform_indices = @transform_2, window_bounds = array<i64: 1, 128>}, {transform_indices = @transform_3, window_bounds = array<i64: 64, 128>}]} {
    %c0 = arith.constant 0 : index
    %c0_0 = arith.constant 0 : index
    %0 = vector.load %arg1[%c0, %c0_0] : memref<64x1152xbf16, #tpu.memory_space<vmem>>, vector<64x1152xbf16>
    %c0_1 = arith.constant 0 : index
    %c0_2 = arith.constant 0 : index
    %1 = vector.load %arg2[%c0_1, %c0_2] : memref<1152x128xbf16, #tpu.memory_space<vmem>>, vector<1152x128xbf16>
    %cst = arith.constant dense<0.000000e+00> : vector<64x128xf32>
    %2 = tpu.matmul %0, %1, %cst {dimension_numbers = #tpu.dot_dimension_numbers<[1], [0], [0], [1], [0, 0, 1, 1], [], []>} : vector<64x1152xbf16>, vector<1152x128xbf16>, vector<64x128xf32> -> vector<64x128xf32>
    %c0_3 = arith.constant 0 : index
    %c0_4 = arith.constant 0 : index
    %3 = vector.load %arg3[%c0_3, %c0_4] : memref<1x128xf32, #tpu.memory_space<vmem>>, vector<1x128xf32>
    %4 = vector.broadcast %3 : vector<1x128xf32> to vector<64x128xf32>
    %5 = arith.addf %2, %4 : vector<64x128xf32>
    %cst_5 = arith.constant 0.000000e+00 : f32
    %6 = vector.broadcast %cst_5 : f32 to vector<64x128xf32>
    %7 = arith.maximumf %5, %6 : vector<64x128xf32>
    %8 = arith.truncf %7 : vector<64x128xf32> to vector<64x128xbf16>
    %c0_6 = arith.constant 0 : index
    %c0_7 = arith.constant 0 : index
    %9 = vector.load %arg4[%c0_6, %c0_7] : memref<64x128xbf16, #tpu.memory_space<vmem>>, vector<64x128xbf16>
    tpu.vector_store %arg4[%c0_6, %c0_7], %8 {strides = array<i32>} : memref<64x128xbf16, #tpu.memory_space<vmem>>, vector<64x128xbf16>,
    return
  }
  func.func @transform_0(%arg0: i32) -> (i32, i32) {
    %c0_i32 = arith.constant 0 : i32
    %c0_i32_0 = arith.constant 0 : i32
    return %arg0, %c0_i32 : i32, i32
  }
  func.func @transform_1(%arg0: i32) -> (i32, i32) {
    %c0_i32 = arith.constant 0 : i32
    %c0_i32_0 = arith.constant 0 : i32
    %c0_i32_1 = arith.constant 0 : i32
    return %c0_i32, %c0_i32_0 : i32, i32
  }
  func.func @transform_2(%arg0: i32) -> (i32, i32) {
    %c0_i32 = arith.constant 0 : i32
    %c0_i32_0 = arith.constant 0 : i32
    %c0_i32_1 = arith.constant 0 : i32
    return %c0_i32, %c0_i32_0 : i32, i32
  }
  func.func @transform_3(%arg0: i32) -> (i32, i32) {
    %c0_i32 = arith.constant 0 : i32
    %c0_i32_0 = arith.constant 0 : i32
    return %arg0, %c0_i32 : i32, i32
  }
}

module attributes {stable_mosaic.version = 11 : i64} {
  func.func @_conv_bn_kernel(%arg0: i32, %arg1: memref<64x1152xbf16, #tpu.memory_space<vmem>>, %arg2: memref<1152x128xbf16, #tpu.memory_space<vmem>>, %arg3: memref<1x128xf32, #tpu.memory_space<vmem>>, %arg4: memref<64x128xbf16, #tpu.memory_space<vmem>>, %arg5: memref<128x128xbf16, #tpu.memory_space<vmem>>, %arg6: memref<1x128xf32, #tpu.memory_space<vmem>>, %arg7: memref<64x128xbf16, #tpu.memory_space<vmem>>) attributes {dimension_semantics = [#tpu.dimension_semantics<parallel>], iteration_bounds = array<i64: 2>, scalar_prefetch = 0 : i64, scratch_operands = 0 : i64, tpu.core_type = #tpu.core_type<tc>, window_params = [{transform_indices = @transform_0, window_bounds = array<i64: 64, 1152>}, {pipeline_mode = #tpu.pipeline_mode<synchronous>, transform_indices = @transform_1, window_bounds = array<i64: 1152, 128>}, {pipeline_mode = #tpu.pipeline_mode<synchronous>, transform_indices = @transform_2, window_bounds = array<i64: 1, 128>}, {transform_indices = @transform_3, window_bounds = array<i64: 64, 128>}, {pipeline_mode = #tpu.pipeline_mode<synchronous>, transform_indices = @transform_4, window_bounds = array<i64: 128, 128>}, {pipeline_mode = #tpu.pipeline_mode<synchronous>, transform_indices = @transform_5, window_bounds = array<i64: 1, 128>}, {transform_indices = @transform_6, window_bounds = array<i64: 64, 128>}]} {
    %c0 = arith.constant 0 : index
    %c0_0 = arith.constant 0 : index
    %0 = vector.load %arg1[%c0, %c0_0] : memref<64x1152xbf16, #tpu.memory_space<vmem>>, vector<64x1152xbf16>
    %c0_1 = arith.constant 0 : index
    %c0_2 = arith.constant 0 : index
    %1 = vector.load %arg2[%c0_1, %c0_2] : memref<1152x128xbf16, #tpu.memory_space<vmem>>, vector<1152x128xbf16>
    %cst = arith.constant dense<0.000000e+00> : vector<64x128xf32>
    %2 = tpu.matmul %0, %1, %cst {dimension_numbers = #tpu.dot_dimension_numbers<[1], [0], [0], [1], [0, 0, 1, 1], [], []>} : vector<64x1152xbf16>, vector<1152x128xbf16>, vector<64x128xf32> -> vector<64x128xf32>
    %c0_3 = arith.constant 0 : index
    %c0_4 = arith.constant 0 : index
    %3 = vector.load %arg3[%c0_3, %c0_4] : memref<1x128xf32, #tpu.memory_space<vmem>>, vector<1x128xf32>
    %4 = vector.broadcast %3 : vector<1x128xf32> to vector<64x128xf32>
    %5 = arith.addf %2, %4 : vector<64x128xf32>
    %c0_5 = arith.constant 0 : index
    %c0_6 = arith.constant 0 : index
    %6 = vector.load %arg4[%c0_5, %c0_6] : memref<64x128xbf16, #tpu.memory_space<vmem>>, vector<64x128xbf16>
    %c0_7 = arith.constant 0 : index
    %c0_8 = arith.constant 0 : index
    %7 = vector.load %arg5[%c0_7, %c0_8] : memref<128x128xbf16, #tpu.memory_space<vmem>>, vector<128x128xbf16>
    %cst_9 = arith.constant dense<0.000000e+00> : vector<64x128xf32>
    %8 = tpu.matmul %6, %7, %cst_9 {dimension_numbers = #tpu.dot_dimension_numbers<[1], [0], [0], [1], [0, 0, 1, 1], [], []>} : vector<64x128xbf16>, vector<128x128xbf16>, vector<64x128xf32> -> vector<64x128xf32>
    %9 = arith.addf %5, %8 : vector<64x128xf32>
    %c0_10 = arith.constant 0 : index
    %c0_11 = arith.constant 0 : index
    %10 = vector.load %arg6[%c0_10, %c0_11] : memref<1x128xf32, #tpu.memory_space<vmem>>, vector<1x128xf32>
    %11 = vector.broadcast %10 : vector<1x128xf32> to vector<64x128xf32>
    %12 = arith.addf %9, %11 : vector<64x128xf32>
    %cst_12 = arith.constant 0.000000e+00 : f32
    %13 = vector.broadcast %cst_12 : f32 to vector<64x128xf32>
    %14 = arith.maximumf %12, %13 : vector<64x128xf32>
    %15 = arith.truncf %14 : vector<64x128xf32> to vector<64x128xbf16>
    %c0_13 = arith.constant 0 : index
    %c0_14 = arith.constant 0 : index
    %16 = vector.load %arg7[%c0_13, %c0_14] : memref<64x128xbf16, #tpu.memory_space<vmem>>, vector<64x128xbf16>
    tpu.vector_store %arg7[%c0_13, %c0_14], %15 {strides = array<i32>} : memref<64x128xbf16, #tpu.memory_space<vmem>>, vector<64x128xbf16>,
    return
  }
  func.func @transform_0(%arg0: i32) -> (i32, i32) {
    %c0_i32 = arith.constant 0 : i32
    %c0_i32_0 = arith.constant 0 : i32
    return %arg0, %c0_i32 : i32, i32
  }
  func.func @transform_1(%arg0: i32) -> (i32, i32) {
    %c0_i32 = arith.constant 0 : i32
    %c0_i32_0 = arith.constant 0 : i32
    %c0_i32_1 = arith.constant 0 : i32
    return %c0_i32, %c0_i32_0 : i32, i32
  }
  func.func @transform_2(%arg0: i32) -> (i32, i32) {
    %c0_i32 = arith.constant 0 : i32
    %c0_i32_0 = arith.constant 0 : i32
    %c0_i32_1 = arith.constant 0 : i32
    return %c0_i32, %c0_i32_0 : i32, i32
  }
  func.func @transform_3(%arg0: i32) -> (i32, i32) {
    %c0_i32 = arith.constant 0 : i32
    %c0_i32_0 = arith.constant 0 : i32
    return %arg0, %c0_i32 : i32, i32
  }
  func.func @transform_4(%arg0: i32) -> (i32, i32) {
    %c0_i32 = arith.constant 0 : i32
    %c0_i32_0 = arith.constant 0 : i32
    %c0_i32_1 = arith.constant 0 : i32
    return %c0_i32, %c0_i32_0 : i32, i32
  }
  func.func @transform_5(%arg0: i32) -> (i32, i32) {
    %c0_i32 = arith.constant 0 : i32
    %c0_i32_0 = arith.constant 0 : i32
    %c0_i32_1 = arith.constant 0 : i32
    return %c0_i32, %c0_i32_0 : i32, i32
  }
  func.func @transform_6(%arg0: i32) -> (i32, i32) {
    %c0_i32 = arith.constant 0 : i32
    %c0_i32_0 = arith.constant 0 : i32
    return %arg0, %c0_i32 : i32, i32
  }
}

module attributes {stable_mosaic.version = 11 : i64} {
  func.func @_conv_bn_kernel(%arg0: i32, %arg1: memref<16x1152xbf16, #tpu.memory_space<vmem>>, %arg2: memref<1152x128xbf16, #tpu.memory_space<vmem>>, %arg3: memref<1x128xf32, #tpu.memory_space<vmem>>, %arg4: memref<16x128xbf16, #tpu.memory_space<vmem>>) attributes {dimension_semantics = [#tpu.dimension_semantics<parallel>], iteration_bounds = array<i64: 2>, scalar_prefetch = 0 : i64, scratch_operands = 0 : i64, tpu.core_type = #tpu.core_type<tc>, window_params = [{transform_indices = @transform_0, window_bounds = array<i64: 16, 1152>}, {pipeline_mode = #tpu.pipeline_mode<synchronous>, transform_indices = @transform_1, window_bounds = array<i64: 1152, 128>}, {pipeline_mode = #tpu.pipeline_mode<synchronous>, transform_indices = @transform_2, window_bounds = array<i64: 1, 128>}, {transform_indices = @transform_3, window_bounds = array<i64: 16, 128>}]} {
    %c0 = arith.constant 0 : index
    %c0_0 = arith.constant 0 : index
    %0 = vector.load %arg1[%c0, %c0_0] : memref<16x1152xbf16, #tpu.memory_space<vmem>>, vector<16x1152xbf16>
    %c0_1 = arith.constant 0 : index
    %c0_2 = arith.constant 0 : index
    %1 = vector.load %arg2[%c0_1, %c0_2] : memref<1152x128xbf16, #tpu.memory_space<vmem>>, vector<1152x128xbf16>
    %cst = arith.constant dense<0.000000e+00> : vector<16x128xf32>
    %2 = tpu.matmul %0, %1, %cst {dimension_numbers = #tpu.dot_dimension_numbers<[1], [0], [0], [1], [0, 0, 1, 1], [], []>} : vector<16x1152xbf16>, vector<1152x128xbf16>, vector<16x128xf32> -> vector<16x128xf32>
    %c0_3 = arith.constant 0 : index
    %c0_4 = arith.constant 0 : index
    %3 = vector.load %arg3[%c0_3, %c0_4] : memref<1x128xf32, #tpu.memory_space<vmem>>, vector<1x128xf32>
    %4 = vector.broadcast %3 : vector<1x128xf32> to vector<16x128xf32>
    %5 = arith.addf %2, %4 : vector<16x128xf32>
    %cst_5 = arith.constant 0.000000e+00 : f32
    %6 = vector.broadcast %cst_5 : f32 to vector<16x128xf32>
    %7 = arith.maximumf %5, %6 : vector<16x128xf32>
    %8 = arith.truncf %7 : vector<16x128xf32> to vector<16x128xbf16>
    %c0_6 = arith.constant 0 : index
    %c0_7 = arith.constant 0 : index
    %9 = vector.load %arg4[%c0_6, %c0_7] : memref<16x128xbf16, #tpu.memory_space<vmem>>, vector<16x128xbf16>
    tpu.vector_store %arg4[%c0_6, %c0_7], %8 {strides = array<i32>} : memref<16x128xbf16, #tpu.memory_space<vmem>>, vector<16x128xbf16>,
    return
  }
  func.func @transform_0(%arg0: i32) -> (i32, i32) {
    %c0_i32 = arith.constant 0 : i32
    %c0_i32_0 = arith.constant 0 : i32
    return %arg0, %c0_i32 : i32, i32
  }
  func.func @transform_1(%arg0: i32) -> (i32, i32) {
    %c0_i32 = arith.constant 0 : i32
    %c0_i32_0 = arith.constant 0 : i32
    %c0_i32_1 = arith.constant 0 : i32
    return %c0_i32, %c0_i32_0 : i32, i32
  }
  func.func @transform_2(%arg0: i32) -> (i32, i32) {
    %c0_i32 = arith.constant 0 : i32
    %c0_i32_0 = arith.constant 0 : i32
    %c0_i32_1 = arith.constant 0 : i32
    return %c0_i32, %c0_i32_0 : i32, i32
  }
  func.func @transform_3(%arg0: i32) -> (i32, i32) {
    %c0_i32 = arith.constant 0 : i32
    %c0_i32_0 = arith.constant 0 : i32
    return %arg0, %c0_i32 : i32, i32
  }
}

module attributes {stable_mosaic.version = 11 : i64} {
  func.func @_pool_linear_kernel(%arg0: i32, %arg1: memref<2x16x128xbf16, #tpu.memory_space<vmem>>, %arg2: memref<128x128xbf16, #tpu.memory_space<vmem>>, %arg3: memref<1x128xf32, #tpu.memory_space<vmem>>, %arg4: memref<2x128xf32, #tpu.memory_space<vmem>>) attributes {dimension_semantics = [#tpu.dimension_semantics<arbitrary>], iteration_bounds = array<i64: 1>, scalar_prefetch = 0 : i64, scratch_operands = 0 : i64, tpu.core_type = #tpu.core_type<tc>, window_params = [{pipeline_mode = #tpu.pipeline_mode<synchronous>, transform_indices = @transform_0, window_bounds = array<i64: 2, 16, 128>}, {pipeline_mode = #tpu.pipeline_mode<synchronous>, transform_indices = @transform_1, window_bounds = array<i64: 128, 128>}, {pipeline_mode = #tpu.pipeline_mode<synchronous>, transform_indices = @transform_2, window_bounds = array<i64: 1, 128>}, {pipeline_mode = #tpu.pipeline_mode<synchronous>, transform_indices = @transform_3, window_bounds = array<i64: 2, 128>}]} {
    %c0 = arith.constant 0 : index
    %c0_0 = arith.constant 0 : index
    %c0_1 = arith.constant 0 : index
    %0 = vector.load %arg1[%c0, %c0_0, %c0_1] : memref<2x16x128xbf16, #tpu.memory_space<vmem>>, vector<2x16x128xbf16>
    %1 = arith.extf %0 : vector<2x16x128xbf16> to vector<2x16x128xf32>
    %cst = arith.constant dense<0.000000e+00> : vector<2x128xf32>
    %2 = vector.multi_reduction <add>, %1, %cst [1] : vector<2x16x128xf32> to vector<2x128xf32>
    %cst_2 = arith.constant 1.600000e+01 : f32
    %3 = vector.broadcast %cst_2 : f32 to vector<2x128xf32>
    %4 = arith.divf %2, %3 : vector<2x128xf32>
    %5 = arith.truncf %4 : vector<2x128xf32> to vector<2x128xbf16>
    %c0_3 = arith.constant 0 : index
    %c0_4 = arith.constant 0 : index
    %6 = vector.load %arg2[%c0_3, %c0_4] : memref<128x128xbf16, #tpu.memory_space<vmem>>, vector<128x128xbf16>
    %cst_5 = arith.constant dense<0.000000e+00> : vector<2x128xf32>
    %7 = tpu.matmul %5, %6, %cst_5 {dimension_numbers = #tpu.dot_dimension_numbers<[1], [0], [0], [1], [0, 0, 1, 1], [], []>} : vector<2x128xbf16>, vector<128x128xbf16>, vector<2x128xf32> -> vector<2x128xf32>
    %c0_6 = arith.constant 0 : index
    %c0_7 = arith.constant 0 : index
    %8 = vector.load %arg3[%c0_6, %c0_7] : memref<1x128xf32, #tpu.memory_space<vmem>>, vector<1x128xf32>
    %9 = vector.broadcast %8 : vector<1x128xf32> to vector<2x128xf32>
    %10 = arith.addf %7, %9 : vector<2x128xf32>
    %c0_8 = arith.constant 0 : index
    %c0_9 = arith.constant 0 : index
    %11 = vector.load %arg4[%c0_8, %c0_9] : memref<2x128xf32, #tpu.memory_space<vmem>>, vector<2x128xf32>
    tpu.vector_store %arg4[%c0_8, %c0_9], %10 {strides = array<i32>} : memref<2x128xf32, #tpu.memory_space<vmem>>, vector<2x128xf32>,
    return
  }
  func.func @transform_0(%arg0: i32) -> (i32, i32, i32) {
    %c0_i32 = arith.constant 0 : i32
    %c0_i32_0 = arith.constant 0 : i32
    %c0_i32_1 = arith.constant 0 : i32
    %c0_i32_2 = arith.constant 0 : i32
    return %c0_i32, %c0_i32_0, %c0_i32_1 : i32, i32, i32
  }
  func.func @transform_1(%arg0: i32) -> (i32, i32) {
    %c0_i32 = arith.constant 0 : i32
    %c0_i32_0 = arith.constant 0 : i32
    %c0_i32_1 = arith.constant 0 : i32
    return %c0_i32, %c0_i32_0 : i32, i32
  }
  func.func @transform_2(%arg0: i32) -> (i32, i32) {
    %c0_i32 = arith.constant 0 : i32
    %c0_i32_0 = arith.constant 0 : i32
    %c0_i32_1 = arith.constant 0 : i32
    return %c0_i32, %c0_i32_0 : i32, i32
  }
  func.func @transform_3(%arg0: i32) -> (i32, i32) {
    %c0_i32 = arith.constant 0 : i32
    %c0_i32_0 = arith.constant 0 : i32
    %c0_i32_1 = arith.constant 0 : i32
    return %c0_i32, %c0_i32_0 : i32, i32
  }
}

module attributes {stable_mosaic.version = 11 : i64} {
  func.func @_conv_bn_kernel(%arg0: i32, %arg1: memref<16x1152xbf16, #tpu.memory_space<vmem>>, %arg2: memref<1152x128xbf16, #tpu.memory_space<vmem>>, %arg3: memref<1x128xf32, #tpu.memory_space<vmem>>, %arg4: memref<16x128xbf16, #tpu.memory_space<vmem>>, %arg5: memref<128x128xbf16, #tpu.memory_space<vmem>>, %arg6: memref<1x128xf32, #tpu.memory_space<vmem>>, %arg7: memref<16x128xbf16, #tpu.memory_space<vmem>>) attributes {dimension_semantics = [#tpu.dimension_semantics<parallel>], iteration_bounds = array<i64: 2>, scalar_prefetch = 0 : i64, scratch_operands = 0 : i64, tpu.core_type = #tpu.core_type<tc>, window_params = [{transform_indices = @transform_0, window_bounds = array<i64: 16, 1152>}, {pipeline_mode = #tpu.pipeline_mode<synchronous>, transform_indices = @transform_1, window_bounds = array<i64: 1152, 128>}, {pipeline_mode = #tpu.pipeline_mode<synchronous>, transform_indices = @transform_2, window_bounds = array<i64: 1, 128>}, {transform_indices = @transform_3, window_bounds = array<i64: 16, 128>}, {pipeline_mode = #tpu.pipeline_mode<synchronous>, transform_indices = @transform_4, window_bounds = array<i64: 128, 128>}, {pipeline_mode = #tpu.pipeline_mode<synchronous>, transform_indices = @transform_5, window_bounds = array<i64: 1, 128>}, {transform_indices = @transform_6, window_bounds = array<i64: 16, 128>}]} {
    %c0 = arith.constant 0 : index
    %c0_0 = arith.constant 0 : index
    %0 = vector.load %arg1[%c0, %c0_0] : memref<16x1152xbf16, #tpu.memory_space<vmem>>, vector<16x1152xbf16>
    %c0_1 = arith.constant 0 : index
    %c0_2 = arith.constant 0 : index
    %1 = vector.load %arg2[%c0_1, %c0_2] : memref<1152x128xbf16, #tpu.memory_space<vmem>>, vector<1152x128xbf16>
    %cst = arith.constant dense<0.000000e+00> : vector<16x128xf32>
    %2 = tpu.matmul %0, %1, %cst {dimension_numbers = #tpu.dot_dimension_numbers<[1], [0], [0], [1], [0, 0, 1, 1], [], []>} : vector<16x1152xbf16>, vector<1152x128xbf16>, vector<16x128xf32> -> vector<16x128xf32>
    %c0_3 = arith.constant 0 : index
    %c0_4 = arith.constant 0 : index
    %3 = vector.load %arg3[%c0_3, %c0_4] : memref<1x128xf32, #tpu.memory_space<vmem>>, vector<1x128xf32>
    %4 = vector.broadcast %3 : vector<1x128xf32> to vector<16x128xf32>
    %5 = arith.addf %2, %4 : vector<16x128xf32>
    %c0_5 = arith.constant 0 : index
    %c0_6 = arith.constant 0 : index
    %6 = vector.load %arg4[%c0_5, %c0_6] : memref<16x128xbf16, #tpu.memory_space<vmem>>, vector<16x128xbf16>
    %c0_7 = arith.constant 0 : index
    %c0_8 = arith.constant 0 : index
    %7 = vector.load %arg5[%c0_7, %c0_8] : memref<128x128xbf16, #tpu.memory_space<vmem>>, vector<128x128xbf16>
    %cst_9 = arith.constant dense<0.000000e+00> : vector<16x128xf32>
    %8 = tpu.matmul %6, %7, %cst_9 {dimension_numbers = #tpu.dot_dimension_numbers<[1], [0], [0], [1], [0, 0, 1, 1], [], []>} : vector<16x128xbf16>, vector<128x128xbf16>, vector<16x128xf32> -> vector<16x128xf32>
    %9 = arith.addf %5, %8 : vector<16x128xf32>
    %c0_10 = arith.constant 0 : index
    %c0_11 = arith.constant 0 : index
    %10 = vector.load %arg6[%c0_10, %c0_11] : memref<1x128xf32, #tpu.memory_space<vmem>>, vector<1x128xf32>
    %11 = vector.broadcast %10 : vector<1x128xf32> to vector<16x128xf32>
    %12 = arith.addf %9, %11 : vector<16x128xf32>
    %cst_12 = arith.constant 0.000000e+00 : f32
    %13 = vector.broadcast %cst_12 : f32 to vector<16x128xf32>
    %14 = arith.maximumf %12, %13 : vector<16x128xf32>
    %15 = arith.truncf %14 : vector<16x128xf32> to vector<16x128xbf16>
    %c0_13 = arith.constant 0 : index
    %c0_14 = arith.constant 0 : index
    %16 = vector.load %arg7[%c0_13, %c0_14] : memref<16x128xbf16, #tpu.memory_space<vmem>>, vector<16x128xbf16>
    tpu.vector_store %arg7[%c0_13, %c0_14], %15 {strides = array<i32>} : memref<16x128xbf16, #tpu.memory_space<vmem>>, vector<16x128xbf16>,
    return
  }
  func.func @transform_0(%arg0: i32) -> (i32, i32) {
    %c0_i32 = arith.constant 0 : i32
    %c0_i32_0 = arith.constant 0 : i32
    return %arg0, %c0_i32 : i32, i32
  }
  func.func @transform_1(%arg0: i32) -> (i32, i32) {
    %c0_i32 = arith.constant 0 : i32
    %c0_i32_0 = arith.constant 0 : i32
    %c0_i32_1 = arith.constant 0 : i32
    return %c0_i32, %c0_i32_0 : i32, i32
  }
  func.func @transform_2(%arg0: i32) -> (i32, i32) {
    %c0_i32 = arith.constant 0 : i32
    %c0_i32_0 = arith.constant 0 : i32
    %c0_i32_1 = arith.constant 0 : i32
    return %c0_i32, %c0_i32_0 : i32, i32
  }
  func.func @transform_3(%arg0: i32) -> (i32, i32) {
    %c0_i32 = arith.constant 0 : i32
    %c0_i32_0 = arith.constant 0 : i32
    return %arg0, %c0_i32 : i32, i32
  }
  func.func @transform_4(%arg0: i32) -> (i32, i32) {
    %c0_i32 = arith.constant 0 : i32
    %c0_i32_0 = arith.constant 0 : i32
    %c0_i32_1 = arith.constant 0 : i32
    return %c0_i32, %c0_i32_0 : i32, i32
  }
  func.func @transform_5(%arg0: i32) -> (i32, i32) {
    %c0_i32 = arith.constant 0 : i32
    %c0_i32_0 = arith.constant 0 : i32
    %c0_i32_1 = arith.constant 0 : i32
    return %c0_i32, %c0_i32_0 : i32, i32
  }
  func.func @transform_6(%arg0: i32) -> (i32, i32) {
    %c0_i32 = arith.constant 0 : i32
    %c0_i32_0 = arith.constant 0 : i32
    return %arg0, %c0_i32 : i32, i32
  }
}

</mosaic_0001>

<llo_original>
// kernel: _lambda_.8
$region0: #{_lambda_.8}
  #allocation0 [shape = 'u32[]', space=smem, size = 0x4, offset = 0x4, fixed_abs, tag = 'smem constant byte address 0x4 - core index']
  #allocation1 [shape = 'u32[72,128]{1,0:T(1,128)}', space=vmem, size = 0x9000, scoped, tag = 'internal scratch']
  %s0 = inlined_call_operand.vmem [shape: bf16[512,27], index: 0, kind: input, shape index: {}]
  %s1 = inlined_call_operand.hbm [shape: bf16[27,128], index: 1, kind: input, shape index: {}]
  %s2 = inlined_call_operand.hbm [shape: f32[1,128], index: 2, kind: input, shape index: {}]
  %s3 = inlined_call_operand.vmem [shape: bf16[512,128], index: 3, kind: output, shape index: {}]
  %s4 = sld [smem:[#allocation0]]
  $region53: #{_lambda_.8} parent=0
    _
  %s6 = ssub.s32 1, %s4
  %s7 = scalar_select 0, %s6, %s4
  $region1: #{_lambda_.8} parent=0
    #allocation2 [shape = 'u8[8192]{0}', space=vmem, size = 0x2000, scoped, tag = 'input window, operand 1, single buffered']
    #allocation3 [shape = 's32[2]{0}', space=sflag, size = 0x8, scoped, tag = 'scoped memory for _lambda_.8']
    #allocation4 [shape = 'u8[512]{0}', space=vmem, size = 0x400, scoped, tag = 'input window, operand 2, single buffered']
    #allocation5 [shape = 's32[1]{0}', space=sflag, size = 0x4, scoped, tag = 'scoped memory for _lambda_.8']
    %8 = vsyncpa [#allocation3], 0
    %9 = vsyncpa [#allocation5], 0
    loop: start=0, step=1, limit=4
    $region2: #{_lambda_.8} parent=1 // loop_pre_header
      _
    $region3: #{_lambda_.8} parent=1 // loop_header
      %s11 = sphi 0, %s15
      %p12 = scmp.ge.s32.totalorder %s11, 4
      %s21 = sphi 0, %s23
      %s24 = sphi 0, %s21
      %s25 = sphi 0, %s24
      %s41 = sphi 0, %s25
      %s45 = sphi 0, %s45
      %s47 = sphi 0, %s45
      %s48 = sphi 0, %s47
      %s62 = sphi 0, %s48
      %s66 = sphi 0, %s66
      %s68 = sphi 0, %s66
      %s69 = sphi 0, %s68
      %s83 = sphi 0, %s69
      %s89 = sphi 0, %s91
      %s92 = sphi 0, %s89
      %s93 = sphi 0, %s92
      %s109 = sphi 0, %s93
    $region4: #{_lambda_.8} parent=1 // loop_header_branch
      %14 = sbr.rel (%p12) target = $region8
    $region5: #{_lambda_.8} parent=1 // loop_body
      %s16 = ssub.s32 %s11, 1
      %s17 = ssub.s32 %s11, 2
      %s18 = sadd.s32 %s11, 1
      %s19 = ssub.s32 %s11, %s18
      %p20 = scmp.eq.s32.totalorder %s19, 0
      %s22 = sadd.s32 %s21, 1
      %s23 = scalar_select %p20, %s21, %s22
      %p26 = pneg %p20
      %p27 = scmp.eq.s32.totalorder %s11, 1
      %p28 = por %p26, %p27
      %p29 = scmp.ne.s32.totalorder %s21, %s24
      %p30 = scmp.eq.s32.totalorder %s11, 0
      %p31 = por %p29, %p30
      %p32 = scmp.ne.s32.totalorder %s21, %s24
      %p33 = scmp.eq.s32.totalorder %s16, 1
      %p34 = por %p32, %p33
      %p35 = scmp.ne.s32.totalorder %s24, %s25
      %p36 = scmp.eq.s32.totalorder %s16, 0
      %p37 = por %p35, %p36
      %p38 = scmp.ne.s32.totalorder %s24, %s25
      %p39 = scmp.eq.s32.totalorder %s17, 1
      %p40 = por %p38, %p39
      %p42 = scmp.ne.s32.totalorder %s25, %s41
      %p43 = scmp.eq.s32.totalorder %s17, 0
      %p44 = por %p42, %p43
      %s46 = sadd.s32 %s45, 1
      %p49 = scmp.eq.s32.totalorder %s11, 1
      %p50 = scmp.ne.s32.totalorder %s45, %s47
      %p51 = scmp.eq.s32.totalorder %s11, 0
      %p52 = por %p50, %p51
      %p53 = scmp.ne.s32.totalorder %s45, %s47
      %p54 = scmp.eq.s32.totalorder %s16, 1
      %p55 = por %p53, %p54
      %p56 = scmp.ne.s32.totalorder %s47, %s48
      %p57 = scmp.eq.s32.totalorder %s16, 0
      %p58 = por %p56, %p57
      %p59 = scmp.ne.s32.totalorder %s47, %s48
      %p60 = scmp.eq.s32.totalorder %s17, 1
      %p61 = por %p59, %p60
      %p63 = scmp.ne.s32.totalorder %s48, %s62
      %p64 = scmp.eq.s32.totalorder %s17, 0
      %p65 = por %p63, %p64
      %s67 = sadd.s32 %s66, 1
      %p70 = scmp.eq.s32.totalorder %s11, 1
      %p71 = scmp.ne.s32.totalorder %s66, %s68
      %p72 = scmp.eq.s32.totalorder %s11, 0
      %p73 = por %p71, %p72
      %p74 = scmp.ne.s32.totalorder %s66, %s68
      %p75 = scmp.eq.s32.totalorder %s16, 1
      %p76 = por %p74, %p75
      %p77 = scmp.ne.s32.totalorder %s68, %s69
      %p78 = scmp.eq.s32.totalorder %s16, 0
      %p79 = por %p77, %p78
      %p80 = scmp.ne.s32.totalorder %s68, %s69
      %p81 = scmp.eq.s32.totalorder %s17, 1
      %p82 = por %p80, %p81
      %p84 = scmp.ne.s32.totalorder %s69, %s83
      %p85 = scmp.eq.s32.totalorder %s17, 0
      %p86 = por %p84, %p85
      %s87 = ssub.s32 %s11, %s18
      %p88 = scmp.eq.s32.totalorder %s87, 0
      %s90 = sadd.s32 %s89, 1
      %s91 = scalar_select %p88, %s89, %s90
      %p94 = pneg %p88
      %p95 = scmp.eq.s32.totalorder %s11, 1
      %p96 = por %p94, %p95
      %p97 = scmp.ne.s32.totalorder %s89, %s92
      %p98 = scmp.eq.s32.totalorder %s11, 0
      %p99 = por %p97, %p98
      %p100 = scmp.ne.s32.totalorder %s89, %s92
      %p101 = scmp.eq.s32.totalorder %s16, 1
      %p102 = por %p100, %p101
      %p103 = scmp.ne.s32.totalorder %s92, %s93
      %p104 = scmp.eq.s32.totalorder %s16, 0
      %p105 = por %p103, %p104
      %p106 = scmp.ne.s32.totalorder %s92, %s93
      %p107 = scmp.eq.s32.totalorder %s17, 1
      %p108 = por %p106, %p107
      %p110 = scmp.ne.s32.totalorder %s93, %s109
      %p111 = scmp.eq.s32.totalorder %s17, 0
      %p112 = por %p110, %p111
      %p113 = scmp.le.s32.totalorder 1, %s11
      %p114 = scmp.lt.s32.totalorder %s11, 3
      %p115 = pnand %p113, %p114
      %p116 = pneg %p115
      // Predicated region
      $region9: #{_lambda_.8} parent=5 // pred_check
        _
      $region10: #{_lambda_.8} parent=5 // pred_check_branch
        %118 = sbr.rel (%p115) target = $region12
      $region11: #{_lambda_.8} parent=5 // pred_region
        %s119 = ssub.s32 %s11, 1
        // Predicated region
        $region13: #{_lambda_.8} parent=11 // pred_check
          %p120 = pneg %p58
        $region14: #{_lambda_.8} parent=11 // pred_check_branch
          %122 = sbr.rel (%p120) target = $region16
        $region15: #{_lambda_.8} parent=11 // pred_region
          %124 = vsyncadd [#allocation3], 0
          %s125 = sshll.u32 %s1, 4
          %s126 = int_to_ptr.hbm [resolvable:$true] %s125
          %s127 = sshll.u32 [#allocation2], 4
          %s128 = int_to_ptr.vmem [resolvable:$true] %s127
          %133 = dma.hbm_to_vmem [thread:$0]  %s126, 256, %s128, [#allocation3], 64, 64, 4
        $region16: #{_lambda_.8} parent=11 // pred_fallthru
          _
        // Predicated region
        $region17: #{_lambda_.8} parent=11 // pred_check
          %p134 = pneg %p79
        $region18: #{_lambda_.8} parent=11 // pred_check_branch
          %136 = sbr.rel (%p134) target = $region20
        $region19: #{_lambda_.8} parent=11 // pred_region
          %138 = vsyncadd [#allocation5], 0
          %s140 = sshll.u32 %s2, 4
          %s141 = int_to_ptr.hbm [resolvable:$true] %s140
          %s142 = sshll.u32 [#allocation4], 4
          %s143 = int_to_ptr.vmem [resolvable:$true] %s142
          %145 = dma.hbm_to_vmem [thread:$0]  %s141, 16, %s143, [#allocation5]
        $region20: #{_lambda_.8} parent=11 // pred_fallthru
          _
      $region12: #{_lambda_.8} parent=5 // pred_fallthru
        _
      %p146 = scmp.lt.s32.totalorder %s11, 2
      // Predicated region
      $region21: #{_lambda_.8} parent=5 // pred_check
        %p147 = pneg %p146
      $region22: #{_lambda_.8} parent=5 // pred_check_branch
        %149 = sbr.rel (%p147) target = $region24
      $region23: #{_lambda_.8} parent=5 // pred_region
        // Predicated region
        $region25: #{_lambda_.8} parent=23 // pred_check
          %p150 = pneg %p31
        $region26: #{_lambda_.8} parent=23 // pred_check_branch
          %152 = sbr.rel (%p150) target = $region28
        $region27: #{_lambda_.8} parent=23 // pred_region
          %s153 = smul.u32 32, %s11
          %p154 = scmp.lt.s32.totalorder %s153, 63
          %s155 = scalar_select %p154, %s153, 63
          %s156 = smul.addr %s155, 4
          %s157 = scalar_lea.vmem %s0, %s156
          %s158 = smul.u32 32, %s11
        $region28: #{_lambda_.8} parent=23 // pred_fallthru
          _
      $region24: #{_lambda_.8} parent=5 // pred_fallthru
        _
      %p159 = scmp.le.s32.totalorder 1, %s11
      %p160 = scmp.lt.s32.totalorder %s11, 3
      %p161 = pnand %p159, %p160
      %p162 = pneg %p161
      // Predicated region
      $region29: #{_lambda_.8} parent=5 // pred_check
        _
      $region30: #{_lambda_.8} parent=5 // pred_check_branch
        %164 = sbr.rel (%p161) target = $region32
      $region31: #{_lambda_.8} parent=5 // pred_region
        %s165 = ssub.s32 %s11, 1
        // Predicated region
        $region33: #{_lambda_.8} parent=31 // pred_check
          %p166 = pneg %p58
        $region34: #{_lambda_.8} parent=31 // pred_check_branch
          %168 = sbr.rel (%p166) target = $region36
        $region35: #{_lambda_.8} parent=31 // pred_region
          %170 = dma.done [#allocation3], 256
        $region36: #{_lambda_.8} parent=31 // pred_fallthru
          _
        // Predicated region
        $region37: #{_lambda_.8} parent=31 // pred_check
          %p171 = pneg %p79
        $region38: #{_lambda_.8} parent=31 // pred_check_branch
          %173 = sbr.rel (%p171) target = $region40
        $region39: #{_lambda_.8} parent=31 // pred_region
          %175 = dma.done [#allocation5], 16
        $region40: #{_lambda_.8} parent=31 // pred_fallthru
          _
        %s176 = smul.u32 32, %s16
        %p177 = scmp.lt.s32.totalorder %s176, 63
        %s178 = scalar_select %p177, %s176, 63
        %s179 = smul.addr %s178, 4
        %s180 = scalar_lea.vmem %s0, %s179
        %p181 = pneg %p37
        %p182 = pneg %p34
        %p183 = pneg %p58
        %p184 = pneg %p55
        %p185 = pneg %p79
        %p186 = pneg %p76
        %p187 = pneg %p105
        %p188 = pneg %p102
        %s189 = smul.u32 32, %s16
        %p190 = scmp.lt.s32.totalorder %s189, 63
        %s191 = scalar_select %p190, %s189, 63
        %s192 = smul.addr %s191, 4
        %s193 = scalar_lea.vmem %s3, %s192
        %s194 = smul.u32 32, %s16
        %p195 = scmp.lt.s32.totalorder %s194, 63
        %s196 = scalar_select %p195, %s194, 63
        %s197 = smul.addr %s196, 4
        %s198 = scalar_lea.vmem %s0, %s197
        %s199 = smul.u32 32, %s16
        %s200 = smul.u32 32, %s16
        %p201 = scmp.lt.s32.totalorder %s200, 63
        %s202 = scalar_select %p201, %s200, 63
        %s203 = smul.addr %s202, 4
        %s204 = scalar_lea.vmem %s3, %s203
        %s205 = smul.u32 32, %s16
        %v207 = vld [vmem:[%s198] sm:$0xf]
        %v208 = vld [vmem:[%s198 + $0x4] sm:$0xf]
        %v209 = vld [vmem:[%s198 + $0x8] sm:$0xf]
        %v210 = vld [vmem:[%s198 + $0xc] sm:$0xf]
        %v211 = vld [vmem:[%s198 + $0x10] sm:$0xf]
        %v212 = vld [vmem:[%s198 + $0x14] sm:$0xf]
        %v213 = vld [vmem:[%s198 + $0x18] sm:$0xf]
        %v214 = vld [vmem:[%s198 + $0x1c] sm:$0xf]
        %v215 = vld [vmem:[%s198 + $0x20] sm:$0xf]
        %v216 = vld [vmem:[%s198 + $0x24] sm:$0xf]
        %v217 = vld [vmem:[%s198 + $0x28] sm:$0xf]
        %v218 = vld [vmem:[%s198 + $0x2c] sm:$0xf]
        %v219 = vld [vmem:[%s198 + $0x30] sm:$0xf]
        %v220 = vld [vmem:[%s198 + $0x34] sm:$0xf]
        %v221 = vld [vmem:[%s198 + $0x38] sm:$0xf]
        %v222 = vld [vmem:[%s198 + $0x3c] sm:$0xf]
        %v223 = vld [vmem:[%s198 + $0x40] sm:$0xf]
        %v224 = vld [vmem:[%s198 + $0x44] sm:$0xf]
        %v225 = vld [vmem:[%s198 + $0x48] sm:$0xf]
        %v226 = vld [vmem:[%s198 + $0x4c] sm:$0xf]
        %v227 = vld [vmem:[%s198 + $0x50] sm:$0xf]
        %v228 = vld [vmem:[%s198 + $0x54] sm:$0xf]
        %v229 = vld [vmem:[%s198 + $0x58] sm:$0xf]
        %v230 = vld [vmem:[%s198 + $0x5c] sm:$0xf]
        %v231 = vld [vmem:[%s198 + $0x60] sm:$0xf]
        %v232 = vld [vmem:[%s198 + $0x64] sm:$0xf]
        %v233 = vld [vmem:[%s198 + $0x68] sm:$0xf]
        %v234 = vld [vmem:[%s198 + $0x6c] sm:$0xf]
        %v235 = vld [vmem:[%s198 + $0x70] sm:$0xf]
        %v236 = vld [vmem:[%s198 + $0x74] sm:$0xf]
        %v237 = vld [vmem:[%s198 + $0x78] sm:$0xf]
        %v238 = vld [vmem:[%s198 + $0x7c] sm:$0xf]
        %v239 = vld [vmem:[#allocation2] sm:$0xf]
        %v240 = vld [vmem:[#allocation2 + $0x4] sm:$0xf]
        %v241 = vld [vmem:[#allocation2 + $0x8] sm:$0xf]
        %v242 = vld [vmem:[#allocation2 + $0xc] sm:$0x3]
        %v243 = vld [vmem:[#allocation4] sm:$0x1]
        %v245 = vperm.slane %v243, 0
        %v279 = vunpack.c.l.b16 %v207
        %v280 = vunpack.c.l.b16 %v208
        %v281 = vunpack.c.l.b16 %v209
        %v282 = vunpack.c.l.b16 %v210
        %v283 = vunpack.c.l.b16 %v211
        %v284 = vunpack.c.l.b16 %v212
        %v285 = vunpack.c.l.b16 %v213
        %v286 = vunpack.c.l.b16 %v214
        %v287 = vunpack.c.l.b16 %v215
        %v288 = vunpack.c.l.b16 %v216
        %v289 = vunpack.c.l.b16 %v217
        %v290 = vunpack.c.l.b16 %v218
        %v291 = vunpack.c.l.b16 %v219
        %v292 = vunpack.c.l.b16 %v220
        %v293 = vunpack.c.l.b16 %v221
        %v294 = vunpack.c.l.b16 %v222
        %v295 = vunpack.c.l.b16 %v223
        %v296 = vunpack.c.l.b16 %v224
        %v297 = vunpack.c.l.b16 %v225
        %v298 = vunpack.c.l.b16 %v226
        %v299 = vunpack.c.l.b16 %v227
        %v300 = vunpack.c.l.b16 %v228
        %v301 = vunpack.c.l.b16 %v229
        %v302 = vunpack.c.l.b16 %v230
        %v303 = vunpack.c.l.b16 %v231
        %v304 = vunpack.c.l.b16 %v232
        %v305 = vunpack.c.l.b16 %v233
        %v306 = vunpack.c.l.b16 %v234
        %v307 = vunpack.c.l.b16 %v235
        %v308 = vunpack.c.l.b16 %v236
        %v309 = vunpack.c.l.b16 %v237
        %v310 = vunpack.c.l.b16 %v238
        %v311 = vpack.c.b16 %v280, %v279
        %v312 = vpack.c.b16 %v282, %v281
        %v313 = vpack.c.b16 %v284, %v283
        %v314 = vpack.c.b16 %v286, %v285
        %v315 = vpack.c.b16 %v288, %v287
        %v316 = vpack.c.b16 %v290, %v289
        %v317 = vpack.c.b16 %v292, %v291
        %v318 = vpack.c.b16 %v294, %v293
        %v319 = vpack.c.b16 %v296, %v295
        %v320 = vpack.c.b16 %v298, %v297
        %v321 = vpack.c.b16 %v300, %v299
        %v322 = vpack.c.b16 %v302, %v301
        %v323 = vpack.c.b16 %v304, %v303
        %v324 = vpack.c.b16 %v306, %v305
        %v325 = vpack.c.b16 %v308, %v307
        %v326 = vpack.c.b16 %v310, %v309
        %v331 = vunpack.c.l.b16 %v239
        %v332 = vunpack.c.l.b16 %v240
        %v333 = vunpack.c.l.b16 %v241
        %v334 = vunpack.c.l.b16 %v242
        %v335 = vpack.c.b16 %v332, %v331
        %v336 = vpack.c.b16 %v334, %v333
        %vm338 = vcmask 220160
        %v340 = vsel %vm338, %v311, 0
        %v343 = vsel %vm338, %v312, 0
        %v346 = vsel %vm338, %v313, 0
        %v349 = vsel %vm338, %v314, 0
        %v352 = vsel %vm338, %v315, 0
        %v355 = vsel %vm338, %v316, 0
        %v358 = vsel %vm338, %v317, 0
        %v361 = vsel %vm338, %v318, 0
        %v364 = vsel %vm338, %v319, 0
        %v367 = vsel %vm338, %v320, 0
        %v370 = vsel %vm338, %v321, 0
        %v373 = vsel %vm338, %v322, 0
        %v376 = vsel %vm338, %v323, 0
        %v379 = vsel %vm338, %v324, 0
        %v382 = vsel %vm338, %v325, 0
        %v385 = vsel %vm338, %v326, 0
        %vm387 = vcmask 1044480
        %vm388 = vcmask 1045504
        %v389 = vsel %vm387, 4294967295, 65535
        %v390 = vsel %vm388, %v389, 0
        %v392 = vand.u32 %v336, %v390
        %394 = vmatpush.bf16.msra.mxu0 0
        %395 = vmatpush.bf16.msra.mxu0 0
        %396 = vmatpush.bf16.msra.mxu0 0
        %397 = vmatpush.bf16.msra.mxu0 0
        %398 = vmatpush.bf16.msra.mxu0 0
        %399 = vmatpush.bf16.msra.mxu0 0
        %400 = vmatpush.bf16.msra.mxu0 %v392
        %401 = vmatpush.bf16.msra.mxu0 %v335
        %402 = vmatmul.bf16.gmra.mxu0 %v340
        %v403 = vpop.f32.mrf.mxu0
        %v404 = vadd.f32 %v245, %v403
        %v405 = vpop.f32.mrf.mxu0
        %v406 = vadd.f32 %v245, %v405
        %407 = vmatmul.bf16.gmra.mxu0 %v343
        %v408 = vpop.f32.mrf.mxu0
        %v409 = vadd.f32 %v245, %v408
        %v410 = vpop.f32.mrf.mxu0
        %v411 = vadd.f32 %v245, %v410
        %412 = vmatmul.bf16.gmra.mxu0 %v346
        %v413 = vpop.f32.mrf.mxu0
        %v414 = vadd.f32 %v245, %v413
        %v415 = vpop.f32.mrf.mxu0
        %v416 = vadd.f32 %v245, %v415
        %417 = vmatmul.bf16.gmra.mxu0 %v349
        %v418 = vpop.f32.mrf.mxu0
        %v419 = vadd.f32 %v245, %v418
        %v420 = vpop.f32.mrf.mxu0
        %v421 = vadd.f32 %v245, %v420
        %422 = vmatmul.bf16.gmra.mxu0 %v352
        %v423 = vpop.f32.mrf.mxu0
        %v424 = vadd.f32 %v245, %v423
        %v425 = vpop.f32.mrf.mxu0
        %v426 = vadd.f32 %v245, %v425
        %427 = vmatmul.bf16.gmra.mxu0 %v355
        %v428 = vpop.f32.mrf.mxu0
        %v429 = vadd.f32 %v245, %v428
        %v430 = vpop.f32.mrf.mxu0
        %v431 = vadd.f32 %v245, %v430
        %432 = vmatmul.bf16.gmra.mxu0 %v358
        %v433 = vpop.f32.mrf.mxu0
        %v434 = vadd.f32 %v245, %v433
        %v435 = vpop.f32.mrf.mxu0
        %v436 = vadd.f32 %v245, %v435
        %437 = vmatmul.bf16.gmra.mxu0 %v361
        %v438 = vpop.f32.mrf.mxu0
        %v439 = vadd.f32 %v245, %v438
        %v440 = vpop.f32.mrf.mxu0
        %v441 = vadd.f32 %v245, %v440
        %442 = vmatmul.bf16.gmra.mxu0 %v364
        %v443 = vpop.f32.mrf.mxu0
        %v444 = vadd.f32 %v245, %v443
        %v445 = vpop.f32.mrf.mxu0
        %v446 = vadd.f32 %v245, %v445
        %447 = vmatmul.bf16.gmra.mxu0 %v367
        %v448 = vpop.f32.mrf.mxu0
        %v449 = vadd.f32 %v245, %v448
        %v450 = vpop.f32.mrf.mxu0
        %v451 = vadd.f32 %v245, %v450
        %452 = vmatmul.bf16.gmra.mxu0 %v370
        %v453 = vpop.f32.mrf.mxu0
        %v454 = vadd.f32 %v245, %v453
        %v455 = vpop.f32.mrf.mxu0
        %v456 = vadd.f32 %v245, %v455
        %457 = vmatmul.bf16.gmra.mxu0 %v373
        %v458 = vpop.f32.mrf.mxu0
        %v459 = vadd.f32 %v245, %v458
        %v460 = vpop.f32.mrf.mxu0
        %v461 = vadd.f32 %v245, %v460
        %462 = vmatmul.bf16.gmra.mxu0 %v376
        %v463 = vpop.f32.mrf.mxu0
        %v464 = vadd.f32 %v245, %v463
        %v465 = vpop.f32.mrf.mxu0
        %v466 = vadd.f32 %v245, %v465
        %467 = vmatmul.bf16.gmra.mxu0 %v379
        %v468 = vpop.f32.mrf.mxu0
        %v469 = vadd.f32 %v245, %v468
        %v470 = vpop.f32.mrf.mxu0
        %v471 = vadd.f32 %v245, %v470
        %472 = vmatmul.bf16.gmra.mxu0 %v382
        %v473 = vpop.f32.mrf.mxu0
        %v474 = vadd.f32 %v245, %v473
        %v475 = vpop.f32.mrf.mxu0
        %v476 = vadd.f32 %v245, %v475
        %477 = vmatmul.bf16.gmra.mxu0 %v385
        %v478 = vpop.f32.mrf.mxu0
        %v479 = vadd.f32 %v245, %v478
        %v480 = vpop.f32.mrf.mxu0
        %v481 = vadd.f32 %v245, %v480
        %482 = vdwg.mxu0
        %v483 = vmax.f32 %v404, 0.0
        %v484 = vmax.f32 %v406, 0.0
        %v485 = vmax.f32 %v409, 0.0
        %v486 = vmax.f32 %v411, 0.0
        %v487 = vmax.f32 %v414, 0.0
        %v488 = vmax.f32 %v416, 0.0
        %v489 = vmax.f32 %v419, 0.0
        %v490 = vmax.f32 %v421, 0.0
        %v491 = vmax.f32 %v424, 0.0
        %v492 = vmax.f32 %v426, 0.0
        %v493 = vmax.f32 %v429, 0.0
        %v494 = vmax.f32 %v431, 0.0
        %v495 = vmax.f32 %v434, 0.0
        %v496 = vmax.f32 %v436, 0.0
        %v497 = vmax.f32 %v439, 0.0
        %v498 = vmax.f32 %v441, 0.0
        %v499 = vmax.f32 %v444, 0.0
        %v500 = vmax.f32 %v446, 0.0
        %v501 = vmax.f32 %v449, 0.0
        %v502 = vmax.f32 %v451, 0.0
        %v503 = vmax.f32 %v454, 0.0
        %v504 = vmax.f32 %v456, 0.0
        %v505 = vmax.f32 %v459, 0.0
        %v506 = vmax.f32 %v461, 0.0
        %v507 = vmax.f32 %v464, 0.0
        %v508 = vmax.f32 %v466, 0.0
        %v509 = vmax.f32 %v469, 0.0
        %v510 = vmax.f32 %v471, 0.0
        %v511 = vmax.f32 %v474, 0.0
        %v512 = vmax.f32 %v476, 0.0
        %v513 = vmax.f32 %v479, 0.0
        %v514 = vmax.f32 %v481, 0.0
        %v515 = vpack.c.bf16 %v483, %v483
        %v516 = vpack.c.bf16 %v484, %v484
        %v517 = vpack.c.bf16 %v485, %v485
        %v518 = vpack.c.bf16 %v486, %v486
        %v519 = vpack.c.bf16 %v487, %v487
        %v520 = vpack.c.bf16 %v488, %v488
        %v521 = vpack.c.bf16 %v489, %v489
        %v522 = vpack.c.bf16 %v490, %v490
        %v523 = vpack.c.bf16 %v491, %v491
        %v524 = vpack.c.bf16 %v492, %v492
        %v525 = vpack.c.bf16 %v493, %v493
        %v526 = vpack.c.bf16 %v494, %v494
        %v527 = vpack.c.bf16 %v495, %v495
        %v528 = vpack.c.bf16 %v496, %v496
        %v529 = vpack.c.bf16 %v497, %v497
        %v530 = vpack.c.bf16 %v498, %v498
        %v531 = vpack.c.bf16 %v499, %v499
        %v532 = vpack.c.bf16 %v500, %v500
        %v533 = vpack.c.bf16 %v501, %v501
        %v534 = vpack.c.bf16 %v502, %v502
        %v535 = vpack.c.bf16 %v503, %v503
        %v536 = vpack.c.bf16 %v504, %v504
        %v537 = vpack.c.bf16 %v505, %v505
        %v538 = vpack.c.bf16 %v506, %v506
        %v539 = vpack.c.bf16 %v507, %v507
        %v540 = vpack.c.bf16 %v508, %v508
        %v541 = vpack.c.bf16 %v509, %v509
        %v542 = vpack.c.bf16 %v510, %v510
        %v543 = vpack.c.bf16 %v511, %v511
        %v544 = vpack.c.bf16 %v512, %v512
        %v545 = vpack.c.bf16 %v513, %v513
        %v546 = vpack.c.bf16 %v514, %v514
        %547 = vst [vmem:[%s204] sm:$0xf] %v515
        %548 = vst [vmem:[%s204 + $0x4] sm:$0xf] %v516
        %549 = vst [vmem:[%s204 + $0x8] sm:$0xf] %v517
        %550 = vst [vmem:[%s204 + $0xc] sm:$0xf] %v518
        %551 = vst [vmem:[%s204 + $0x10] sm:$0xf] %v519
        %552 = vst [vmem:[%s204 + $0x14] sm:$0xf] %v520
        %553 = vst [vmem:[%s204 + $0x18] sm:$0xf] %v521
        %554 = vst [vmem:[%s204 + $0x1c] sm:$0xf] %v522
        %555 = vst [vmem:[%s204 + $0x20] sm:$0xf] %v523
        %556 = vst [vmem:[%s204 + $0x24] sm:$0xf] %v524
        %557 = vst [vmem:[%s204 + $0x28] sm:$0xf] %v525
        %558 = vst [vmem:[%s204 + $0x2c] sm:$0xf] %v526
        %559 = vst [vmem:[%s204 + $0x30] sm:$0xf] %v527
        %560 = vst [vmem:[%s204 + $0x34] sm:$0xf] %v528
        %561 = vst [vmem:[%s204 + $0x38] sm:$0xf] %v529
        %562 = vst [vmem:[%s204 + $0x3c] sm:$0xf] %v530
        %563 = vst [vmem:[%s204 + $0x40] sm:$0xf] %v531
        %564 = vst [vmem:[%s204 + $0x44] sm:$0xf] %v532
        %565 = vst [vmem:[%s204 + $0x48] sm:$0xf] %v533
        %566 = vst [vmem:[%s204 + $0x4c] sm:$0xf] %v534
        %567 = vst [vmem:[%s204 + $0x50] sm:$0xf] %v535
        %568 = vst [vmem:[%s204 + $0x54] sm:$0xf] %v536
        %569 = vst [vmem:[%s204 + $0x58] sm:$0xf] %v537
        %570 = vst [vmem:[%s204 + $0x5c] sm:$0xf] %v538
        %571 = vst [vmem:[%s204 + $0x60] sm:$0xf] %v539
        %572 = vst [vmem:[%s204 + $0x64] sm:$0xf] %v540
        %573 = vst [vmem:[%s204 + $0x68] sm:$0xf] %v541
        %574 = vst [vmem:[%s204 + $0x6c] sm:$0xf] %v542
        %575 = vst [vmem:[%s204 + $0x70] sm:$0xf] %v543
        %576 = vst [vmem:[%s204 + $0x74] sm:$0xf] %v544
        %577 = vst [vmem:[%s204 + $0x78] sm:$0xf] %v545
        %578 = vst [vmem:[%s204 + $0x7c] sm:$0xf] %v546
        %s579 = smul.u32 32, %s16
        %p580 = scmp.lt.s32.totalorder %s579, 63
        %s581 = scalar_select %p580, %s579, 63
        %s582 = smul.addr %s581, 4
        %s583 = scalar_lea.vmem %s3, %s582
        // Predicated region
        $region41: #{_lambda_.8} parent=31 // pred_check
          %p584 = pneg %p102
        $region42: #{_lambda_.8} parent=31 // pred_check_branch
          %586 = sbr.rel (%p584) target = $region44
        $region43: #{_lambda_.8} parent=31 // pred_region
          %s587 = smul.u32 32, %s16
        $region44: #{_lambda_.8} parent=31 // pred_fallthru
          _
      $region32: #{_lambda_.8} parent=5 // pred_fallthru
        _
      %p588 = scmp.le.s32.totalorder 2, %s11
      // Predicated region
      $region45: #{_lambda_.8} parent=5 // pred_check
        %p589 = pneg %p588
      $region46: #{_lambda_.8} parent=5 // pred_check_branch
        %591 = sbr.rel (%p589) target = $region48
      $region47: #{_lambda_.8} parent=5 // pred_region
        %s592 = ssub.s32 %s11, 2
        // Predicated region
        $region49: #{_lambda_.8} parent=47 // pred_check
          %p593 = pneg %p108
        $region50: #{_lambda_.8} parent=47 // pred_check_branch
          %595 = sbr.rel (%p593) target = $region52
        $region51: #{_lambda_.8} parent=47 // pred_region
          %s596 = smul.u32 32, %s17
          %p597 = scmp.lt.s32.totalorder %s596, 63
          %s598 = scalar_select %p597, %s596, 63
          %s599 = smul.addr %s598, 4
          %s600 = scalar_lea.vmem %s3, %s599
        $region52: #{_lambda_.8} parent=47 // pred_fallthru
          _
      $region48: #{_lambda_.8} parent=5 // pred_fallthru
        _
    $region6: #{_lambda_.8} parent=1 // loop_footer
      %s15 = sadd.s32 1, %s11
    $region7: #{_lambda_.8} parent=1 // loop_footer_branch
      %10 = sbr.rel target = $region3
    $region8: #{_lambda_.8} parent=1 // loop_exit
      _
    %601 = vsyncpa [#allocation3], 1
    %s602 = scalar_lea.sflag [#allocation3], 1
    %603 = vsyncpa %s602, 1
    %604 = vsyncpa [#allocation5], 1

// kernel: _lambda_.9
$region0: #{_lambda_.9}
  #allocation0 [shape = 'u32[]', space=smem, size = 0x4, offset = 0x4, fixed_abs, tag = 'smem constant byte address 0x4 - core index']
  #allocation1 [shape = 'u32[72,128]{1,0:T(1,128)}', space=vmem, size = 0x9000, scoped, tag = 'internal scratch']
  %s0 = inlined_call_operand.vmem [shape: bf16[512,1152], index: 0, kind: input, shape index: {}]
  %s1 = inlined_call_operand.vmem [shape: bf16[1152,128], index: 1, kind: input, shape index: {}]
  %s2 = inlined_call_operand.vmem [shape: f32[1,128], index: 2, kind: input, shape index: {}]
  %s3 = inlined_call_operand.vmem [shape: bf16[512,128], index: 3, kind: output, shape index: {}]
  %s4 = sld [smem:[#allocation0]]
  $region45: #{_lambda_.9} parent=0
    _
  %s6 = ssub.s32 1, %s4
  %s7 = scalar_select 0, %s6, %s4
  loop: start=0, step=1, limit=4
  $region2: #{_lambda_.9} parent=0 // loop_pre_header
    _
  $region3: #{_lambda_.9} parent=0 // loop_header
    %s9 = sphi 0, %s13
    %p10 = scmp.ge.s32.totalorder %s9, 4
    %s19 = sphi 0, %s21
    %s22 = sphi 0, %s19
    %s23 = sphi 0, %s22
    %s39 = sphi 0, %s23
    %s43 = sphi 0, %s43
    %s45 = sphi 0, %s43
    %s46 = sphi 0, %s45
    %s60 = sphi 0, %s46
    %s64 = sphi 0, %s64
    %s66 = sphi 0, %s64
    %s67 = sphi 0, %s66
    %s81 = sphi 0, %s67
    %s87 = sphi 0, %s89
    %s90 = sphi 0, %s87
    %s91 = sphi 0, %s90
    %s107 = sphi 0, %s91
  $region4: #{_lambda_.9} parent=0 // loop_header_branch
    %12 = sbr.rel (%p10) target = $region8
  $region5: #{_lambda_.9} parent=0 // loop_body
    %s14 = ssub.s32 %s9, 1
    %s15 = ssub.s32 %s9, 2
    %s16 = sadd.s32 %s9, 1
    %s17 = ssub.s32 %s9, %s16
    %p18 = scmp.eq.s32.totalorder %s17, 0
    %s20 = sadd.s32 %s19, 1
    %s21 = scalar_select %p18, %s19, %s20
    %p24 = pneg %p18
    %p25 = scmp.eq.s32.totalorder %s9, 1
    %p26 = por %p24, %p25
    %p27 = scmp.ne.s32.totalorder %s19, %s22
    %p28 = scmp.eq.s32.totalorder %s9, 0
    %p29 = por %p27, %p28
    %p30 = scmp.ne.s32.totalorder %s19, %s22
    %p31 = scmp.eq.s32.totalorder %s14, 1
    %p32 = por %p30, %p31
    %p33 = scmp.ne.s32.totalorder %s22, %s23
    %p34 = scmp.eq.s32.totalorder %s14, 0
    %p35 = por %p33, %p34
    %p36 = scmp.ne.s32.totalorder %s22, %s23
    %p37 = scmp.eq.s32.totalorder %s15, 1
    %p38 = por %p36, %p37
    %p40 = scmp.ne.s32.totalorder %s23, %s39
    %p41 = scmp.eq.s32.totalorder %s15, 0
    %p42 = por %p40, %p41
    %s44 = sadd.s32 %s43, 1
    %p47 = scmp.eq.s32.totalorder %s9, 1
    %p48 = scmp.ne.s32.totalorder %s43, %s45
    %p49 = scmp.eq.s32.totalorder %s9, 0
    %p50 = por %p48, %p49
    %p51 = scmp.ne.s32.totalorder %s43, %s45
    %p52 = scmp.eq.s32.totalorder %s14, 1
    %p53 = por %p51, %p52
    %p54 = scmp.ne.s32.totalorder %s45, %s46
    %p55 = scmp.eq.s32.totalorder %s14, 0
    %p56 = por %p54, %p55
    %p57 = scmp.ne.s32.totalorder %s45, %s46
    %p58 = scmp.eq.s32.totalorder %s15, 1
    %p59 = por %p57, %p58
    %p61 = scmp.ne.s32.totalorder %s46, %s60
    %p62 = scmp.eq.s32.totalorder %s15, 0
    %p63 = por %p61, %p62
    %s65 = sadd.s32 %s64, 1
    %p68 = scmp.eq.s32.totalorder %s9, 1
    %p69 = scmp.ne.s32.totalorder %s64, %s66
    %p70 = scmp.eq.s32.totalorder %s9, 0
    %p71 = por %p69, %p70
    %p72 = scmp.ne.s32.totalorder %s64, %s66
    %p73 = scmp.eq.s32.totalorder %s14, 1
    %p74 = por %p72, %p73
    %p75 = scmp.ne.s32.totalorder %s66, %s67
    %p76 = scmp.eq.s32.totalorder %s14, 0
    %p77 = por %p75, %p76
    %p78 = scmp.ne.s32.totalorder %s66, %s67
    %p79 = scmp.eq.s32.totalorder %s15, 1
    %p80 = por %p78, %p79
    %p82 = scmp.ne.s32.totalorder %s67, %s81
    %p83 = scmp.eq.s32.totalorder %s15, 0
    %p84 = por %p82, %p83
    %s85 = ssub.s32 %s9, %s16
    %p86 = scmp.eq.s32.totalorder %s85, 0
    %s88 = sadd.s32 %s87, 1
    %s89 = scalar_select %p86, %s87, %s88
    %p92 = pneg %p86
    %p93 = scmp.eq.s32.totalorder %s9, 1
    %p94 = por %p92, %p93
    %p95 = scmp.ne.s32.totalorder %s87, %s90
    %p96 = scmp.eq.s32.totalorder %s9, 0
    %p97 = por %p95, %p96
    %p98 = scmp.ne.s32.totalorder %s87, %s90
    %p99 = scmp.eq.s32.totalorder %s14, 1
    %p100 = por %p98, %p99
    %p101 = scmp.ne.s32.totalorder %s90, %s91
    %p102 = scmp.eq.s32.totalorder %s14, 0
    %p103 = por %p101, %p102
    %p104 = scmp.ne.s32.totalorder %s90, %s91
    %p105 = scmp.eq.s32.totalorder %s15, 1
    %p106 = por %p104, %p105
    %p108 = scmp.ne.s32.totalorder %s91, %s107
    %p109 = scmp.eq.s32.totalorder %s15, 0
    %p110 = por %p108, %p109
    %p111 = scmp.le.s32.totalorder 1, %s9
    %p112 = scmp.lt.s32.totalorder %s9, 3
    %p113 = pnand %p111, %p112
    %p114 = pneg %p113
    // Predicated region
    $region9: #{_lambda_.9} parent=5 // pred_check
      _
    $region10: #{_lambda_.9} parent=5 // pred_check_branch
      %116 = sbr.rel (%p113) target = $region12
    $region11: #{_lambda_.9} parent=5 // pred_region
      %s117 = ssub.s32 %s9, 1
      // Predicated region
      $region13: #{_lambda_.9} parent=11 // pred_check
        %p118 = pneg %p56
      $region14: #{_lambda_.9} parent=11 // pred_check_branch
        %120 = sbr.rel (%p118) target = $region16
      $region15: #{_lambda_.9} parent=11 // pred_region
        _
      $region16: #{_lambda_.9} parent=11 // pred_fallthru
        _
      // Predicated region
      $region17: #{_lambda_.9} parent=11 // pred_check
        %p121 = pneg %p77
      $region18: #{_lambda_.9} parent=11 // pred_check_branch
        %123 = sbr.rel (%p121) target = $region20
      $region19: #{_lambda_.9} parent=11 // pred_region
        _
      $region20: #{_lambda_.9} parent=11 // pred_fallthru
        _
    $region12: #{_lambda_.9} parent=5 // pred_fallthru
      _
    %p124 = scmp.lt.s32.totalorder %s9, 2
    // Predicated region
    $region21: #{_lambda_.9} parent=5 // pred_check
      %p125 = pneg %p124
    $region22: #{_lambda_.9} parent=5 // pred_check_branch
      %127 = sbr.rel (%p125) target = $region24
    $region23: #{_lambda_.9} parent=5 // pred_region
      // Predicated region
      $region25: #{_lambda_.9} parent=23 // pred_check
        %p128 = pneg %p29
      $region26: #{_lambda_.9} parent=23 // pred_check_branch
        %130 = sbr.rel (%p128) target = $region28
      $region27: #{_lambda_.9} parent=23 // pred_region
        %s131 = smul.u32 32, %s9
        %p132 = scmp.lt.s32.totalorder %s131, 63
        %s133 = scalar_select %p132, %s131, 63
        %s134 = smul.addr %s133, 9
        %s135 = smul.addr %s134, 4
        %s136 = scalar_lea.vmem %s0, %s135
        %s137 = smul.u32 32, %s9
      $region28: #{_lambda_.9} parent=23 // pred_fallthru
        _
    $region24: #{_lambda_.9} parent=5 // pred_fallthru
      _
    %p138 = scmp.le.s32.totalorder 1, %s9
    %p139 = scmp.lt.s32.totalorder %s9, 3
    %p140 = pnand %p138, %p139
    %p141 = pneg %p140
    // Predicated region
    $region29: #{_lambda_.9} parent=5 // pred_check
      _
    $region30: #{_lambda_.9} parent=5 // pred_check_branch
      %143 = sbr.rel (%p140) target = $region32
    $region31: #{_lambda_.9} parent=5 // pred_region
      %s144 = ssub.s32 %s9, 1
      %s145 = smul.u32 32, %s14
      %p146 = scmp.lt.s32.totalorder %s145, 63
      %s147 = scalar_select %p146, %s145, 63
      %s148 = smul.addr %s147, 9
      %s149 = smul.addr %s148, 4
      %s150 = scalar_lea.vmem %s0, %s149
      %p151 = pneg %p35
      %p152 = pneg %p32
      %p153 = pneg %p56
      %p154 = pneg %p53
      %p155 = pneg %p77
      %p156 = pneg %p74
      %p157 = pneg %p103
      %p158 = pneg %p100
      %s159 = smul.u32 32, %s14
      %p160 = scmp.lt.s32.totalorder %s159, 63
      %s161 = scalar_select %p160, %s159, 63
      %s162 = smul.addr %s161, 4
      %s163 = scalar_lea.vmem %s3, %s162
      %s164 = smul.u32 32, %s14
      %p165 = scmp.lt.s32.totalorder %s164, 63
      %s166 = scalar_select %p165, %s164, 63
      %s167 = smul.addr %s166, 9
      %s168 = smul.addr %s167, 4
      %s169 = scalar_lea.vmem %s0, %s168
      %s170 = smul.u32 32, %s14
      %s171 = smul.u32 32, %s14
      %p172 = scmp.lt.s32.totalorder %s171, 63
      %s173 = scalar_select %p172, %s171, 63
      %s174 = smul.addr %s173, 4
      %s175 = scalar_lea.vmem %s3, %s174
      %s176 = smul.u32 32, %s14
      %v177 = vld [vmem:[%s169] sm:$0xff]
      %v178 = vld [vmem:[%s169 + $0x8] sm:$0xff]
      %v179 = vld [vmem:[%s169 + $0x10] sm:$0xff]
      %v180 = vld [vmem:[%s169 + $0x18] sm:$0xff]
      %v181 = vld [vmem:[%s169 + $0x20] sm:$0xf]
      %v182 = vld [vmem:[%s169 + $0x24] sm:$0xff]
      %v183 = vld [vmem:[%s169 + $0x2c] sm:$0xff]
      %v184 = vld [vmem:[%s169 + $0x34] sm:$0xff]
      %v185 = vld [vmem:[%s169 + $0x3c] sm:$0xff]
      %v186 = vld [vmem:[%s169 + $0x44] sm:$0xf]
      %v187 = vld [vmem:[%s169 + $0x48] sm:$0xff]
      %v188 = vld [vmem:[%s169 + $0x50] sm:$0xff]
      %v189 = vld [vmem:[%s169 + $0x58] sm:$0xff]
      %v190 = vld [vmem:[%s169 + $0x60] sm:$0xff]
      %v191 = vld [vmem:[%s169 + $0x68] sm:$0xf]
      %v192 = vld [vmem:[%s169 + $0x6c] sm:$0xff]
      %v193 = vld [vmem:[%s169 + $0x74] sm:$0xff]
      %v194 = vld [vmem:[%s169 + $0x7c] sm:$0xff]
      %v195 = vld [vmem:[%s169 + $0x84] sm:$0xff]
      %v196 = vld [vmem:[%s169 + $0x8c] sm:$0xf]
      %v197 = vld [vmem:[%s169 + $0x90] sm:$0xff]
      %v198 = vld [vmem:[%s169 + $0x98] sm:$0xff]
      %v199 = vld [vmem:[%s169 + $0xa0] sm:$0xff]
      %v200 = vld [vmem:[%s169 + $0xa8] sm:$0xff]
      %v201 = vld [vmem:[%s169 + $0xb0] sm:$0xf]
      %v202 = vld [vmem:[%s169 + $0xb4] sm:$0xff]
      %v203 = vld [vmem:[%s169 + $0xbc] sm:$0xff]
      %v204 = vld [vmem:[%s169 + $0xc4] sm:$0xff]
      %v205 = vld [vmem:[%s169 + $0xcc] sm:$0xff]
      %v206 = vld [vmem:[%s169 + $0xd4] sm:$0xf]
      %v207 = vld [vmem:[%s169 + $0xd8] sm:$0xff]
      %v208 = vld [vmem:[%s169 + $0xe0] sm:$0xff]
      %v209 = vld [vmem:[%s169 + $0xe8] sm:$0xff]
      %v210 = vld [vmem:[%s169 + $0xf0] sm:$0xff]
      %v211 = vld [vmem:[%s169 + $0xf8] sm:$0xf]
      %v212 = vld [vmem:[%s169 + $0xfc] sm:$0xff]
      %v213 = vld [vmem:[%s169 + $0x104] sm:$0xff]
      %v214 = vld [vmem:[%s169 + $0x10c] sm:$0xff]
      %v215 = vld [vmem:[%s169 + $0x114] sm:$0xff]
      %v216 = vld [vmem:[%s169 + $0x11c] sm:$0xf]
      %v217 = vld [vmem:[%s169 + $0x120] sm:$0xff]
      %v218 = vld [vmem:[%s169 + $0x128] sm:$0xff]
      %v219 = vld [vmem:[%s169 + $0x130] sm:$0xff]
      %v220 = vld [vmem:[%s169 + $0x138] sm:$0xff]
      %v221 = vld [vmem:[%s169 + $0x140] sm:$0xf]
      %v222 = vld [vmem:[%s169 + $0x144] sm:$0xff]
      %v223 = vld [vmem:[%s169 + $0x14c] sm:$0xff]
      %v224 = vld [vmem:[%s169 + $0x154] sm:$0xff]
      %v225 = vld [vmem:[%s169 + $0x15c] sm:$0xff]
      %v226 = vld [vmem:[%s169 + $0x164] sm:$0xf]
      %v227 = vld [vmem:[%s169 + $0x168] sm:$0xff]
      %v228 = vld [vmem:[%s169 + $0x170] sm:$0xff]
      %v229 = vld [vmem:[%s169 + $0x178] sm:$0xff]
      %v230 = vld [vmem:[%s169 + $0x180] sm:$0xff]
      %v231 = vld [vmem:[%s169 + $0x188] sm:$0xf]
      %v232 = vld [vmem:[%s169 + $0x18c] sm:$0xff]
      %v233 = vld [vmem:[%s169 + $0x194] sm:$0xff]
      %v234 = vld [vmem:[%s169 + $0x19c] sm:$0xff]
      %v235 = vld [vmem:[%s169 + $0x1a4] sm:$0xff]
      %v236 = vld [vmem:[%s169 + $0x1ac] sm:$0xf]
      %v237 = vld [vmem:[%s169 + $0x1b0] sm:$0xff]
      %v238 = vld [vmem:[%s169 + $0x1b8] sm:$0xff]
      %v239 = vld [vmem:[%s169 + $0x1c0] sm:$0xff]
      %v240 = vld [vmem:[%s169 + $0x1c8] sm:$0xff]
      %v241 = vld [vmem:[%s169 + $0x1d0] sm:$0xf]
      %v242 = vld [vmem:[%s169 + $0x1d4] sm:$0xff]
      %v243 = vld [vmem:[%s169 + $0x1dc] sm:$0xff]
      %v244 = vld [vmem:[%s169 + $0x1e4] sm:$0xff]
      %v245 = vld [vmem:[%s169 + $0x1ec] sm:$0xff]
      %v246 = vld [vmem:[%s169 + $0x1f4] sm:$0xf]
      %v247 = vld [vmem:[%s169 + $0x1f8] sm:$0xff]
      %v248 = vld [vmem:[%s169 + $0x200] sm:$0xff]
      %v249 = vld [vmem:[%s169 + $0x208] sm:$0xff]
      %v250 = vld [vmem:[%s169 + $0x210] sm:$0xff]
      %v251 = vld [vmem:[%s169 + $0x218] sm:$0xf]
      %v252 = vld [vmem:[%s169 + $0x21c] sm:$0xff]
      %v253 = vld [vmem:[%s169 + $0x224] sm:$0xff]
      %v254 = vld [vmem:[%s169 + $0x22c] sm:$0xff]
      %v255 = vld [vmem:[%s169 + $0x234] sm:$0xff]
      %v256 = vld [vmem:[%s169 + $0x23c] sm:$0xf]
      %v257 = vld [vmem:[%s169 + $0x240] sm:$0xff]
      %v258 = vld [vmem:[%s169 + $0x248] sm:$0xff]
      %v259 = vld [vmem:[%s169 + $0x250] sm:$0xff]
      %v260 = vld [vmem:[%s169 + $0x258] sm:$0xff]
      %v261 = vld [vmem:[%s169 + $0x260] sm:$0xf]
      %v262 = vld [vmem:[%s169 + $0x264] sm:$0xff]
      %v263 = vld [vmem:[%s169 + $0x26c] sm:$0xff]
      %v264 = vld [vmem:[%s169 + $0x274] sm:$0xff]
      %v265 = vld [vmem:[%s169 + $0x27c] sm:$0xff]
      %v266 = vld [vmem:[%s169 + $0x284] sm:$0xf]
      %v267 = vld [vmem:[%s169 + $0x288] sm:$0xff]
      %v268 = vld [vmem:[%s169 + $0x290] sm:$0xff]
      %v269 = vld [vmem:[%s169 + $0x298] sm:$0xff]
      %v270 = vld [vmem:[%s169 + $0x2a0] sm:$0xff]
      %v271 = vld [vmem:[%s169 + $0x2a8] sm:$0xf]
      %v272 = vld [vmem:[%s169 + $0x2ac] sm:$0xff]
      %v273 = vld [vmem:[%s169 + $0x2b4] sm:$0xff]
      %v274 = vld [vmem:[%s169 + $0x2bc] sm:$0xff]
      %v275 = vld [vmem:[%s169 + $0x2c4] sm:$0xff]
      %v276 = vld [vmem:[%s169 + $0x2cc] sm:$0xf]
      %v277 = vld [vmem:[%s169 + $0x2d0] sm:$0xff]
      %v278 = vld [vmem:[%s169 + $0x2d8] sm:$0xff]
      %v279 = vld [vmem:[%s169 + $0x2e0] sm:$0xff]
      %v280 = vld [vmem:[%s169 + $0x2e8] sm:$0xff]
      %v281 = vld [vmem:[%s169 + $0x2f0] sm:$0xf]
      %v282 = vld [vmem:[%s169 + $0x2f4] sm:$0xff]
      %v283 = vld [vmem:[%s169 + $0x2fc] sm:$0xff]
      %v284 = vld [vmem:[%s169 + $0x304] sm:$0xff]
      %v285 = vld [vmem:[%s169 + $0x30c] sm:$0xff]
      %v286 = vld [vmem:[%s169 + $0x314] sm:$0xf]
      %v287 = vld [vmem:[%s169 + $0x318] sm:$0xff]
      %v288 = vld [vmem:[%s169 + $0x320] sm:$0xff]
      %v289 = vld [vmem:[%s169 + $0x328] sm:$0xff]
      %v290 = vld [vmem:[%s169 + $0x330] sm:$0xff]
      %v291 = vld [vmem:[%s169 + $0x338] sm:$0xf]
      %v292 = vld [vmem:[%s169 + $0x33c] sm:$0xff]
      %v293 = vld [vmem:[%s169 + $0x344] sm:$0xff]
      %v294 = vld [vmem:[%s169 + $0x34c] sm:$0xff]
      %v295 = vld [vmem:[%s169 + $0x354] sm:$0xff]
      %v296 = vld [vmem:[%s169 + $0x35c] sm:$0xf]
      %v297 = vld [vmem:[%s169 + $0x360] sm:$0xff]
      %v298 = vld [vmem:[%s169 + $0x368] sm:$0xff]
      %v299 = vld [vmem:[%s169 + $0x370] sm:$0xff]
      %v300 = vld [vmem:[%s169 + $0x378] sm:$0xff]
      %v301 = vld [vmem:[%s169 + $0x380] sm:$0xf]
      %v302 = vld [vmem:[%s169 + $0x384] sm:$0xff]
      %v303 = vld [vmem:[%s169 + $0x38c] sm:$0xff]
      %v304 = vld [vmem:[%s169 + $0x394] sm:$0xff]
      %v305 = vld [vmem:[%s169 + $0x39c] sm:$0xff]
      %v306 = vld [vmem:[%s169 + $0x3a4] sm:$0xf]
      %v307 = vld [vmem:[%s169 + $0x3a8] sm:$0xff]
      %v308 = vld [vmem:[%s169 + $0x3b0] sm:$0xff]
      %v309 = vld [vmem:[%s169 + $0x3b8] sm:$0xff]
      %v310 = vld [vmem:[%s169 + $0x3c0] sm:$0xff]
      %v311 = vld [vmem:[%s169 + $0x3c8] sm:$0xf]
      %v312 = vld [vmem:[%s169 + $0x3cc] sm:$0xff]
      %v313 = vld [vmem:[%s169 + $0x3d4] sm:$0xff]
      %v314 = vld [vmem:[%s169 + $0x3dc] sm:$0xff]
      %v315 = vld [vmem:[%s169 + $0x3e4] sm:$0xff]
      %v316 = vld [vmem:[%s169 + $0x3ec] sm:$0xf]
      %v317 = vld [vmem:[%s169 + $0x3f0] sm:$0xff]
      %v318 = vld [vmem:[%s169 + $0x3f8] sm:$0xff]
      %v319 = vld [vmem:[%s169 + $0x400] sm:$0xff]
      %v320 = vld [vmem:[%s169 + $0x408] sm:$0xff]
      %v321 = vld [vmem:[%s169 + $0x410] sm:$0xf]
      %v322 = vld [vmem:[%s169 + $0x414] sm:$0xff]
      %v323 = vld [vmem:[%s169 + $0x41c] sm:$0xff]
      %v324 = vld [vmem:[%s169 + $0x424] sm:$0xff]
      %v325 = vld [vmem:[%s169 + $0x42c] sm:$0xff]
      %v326 = vld [vmem:[%s169 + $0x434] sm:$0xf]
      %v327 = vld [vmem:[%s169 + $0x438] sm:$0xff]
      %v328 = vld [vmem:[%s169 + $0x440] sm:$0xff]
      %v329 = vld [vmem:[%s169 + $0x448] sm:$0xff]
      %v330 = vld [vmem:[%s169 + $0x450] sm:$0xff]
      %v331 = vld [vmem:[%s169 + $0x458] sm:$0xf]
      %v332 = vld [vmem:[%s169 + $0x45c] sm:$0xff]
      %v333 = vld [vmem:[%s169 + $0x464] sm:$0xff]
      %v334 = vld [vmem:[%s169 + $0x46c] sm:$0xff]
      %v335 = vld [vmem:[%s169 + $0x474] sm:$0xff]
      %v336 = vld [vmem:[%s169 + $0x47c] sm:$0xf]
      %v337 = vld [vmem:[%s1] sm:$0xf]
      %v338 = vld [vmem:[%s1 + $0x4] sm:$0xf]
      %v339 = vld [vmem:[%s1 + $0x8] sm:$0xf]
      %v340 = vld [vmem:[%s1 + $0xc] sm:$0xf]
      %v341 = vld [vmem:[%s1 + $0x10] sm:$0xf]
      %v342 = vld [vmem:[%s1 + $0x14] sm:$0xf]
      %v343 = vld [vmem:[%s1 + $0x18] sm:$0xf]
      %v344 = vld [vmem:[%s1 + $0x1c] sm:$0xf]
      %v345 = vld [vmem:[%s1 + $0x20] sm:$0xf]
      %v346 = vld [vmem:[%s1 + $0x24] sm:$0xf]
      %v347 = vld [vmem:[%s1 + $0x28] sm:$0xf]
      %v348 = vld [vmem:[%s1 + $0x2c] sm:$0xf]
      %v349 = vld [vmem:[%s1 + $0x30] sm:$0xf]
      %v350 = vld [vmem:[%s1 + $0x34] sm:$0xf]
      %v351 = vld [vmem:[%s1 + $0x38] sm:$0xf]
      %v352 = vld [vmem:[%s1 + $0x3c] sm:$0xf]
      %v353 = vld [vmem:[%s1 + $0x40] sm:$0xf]
      %v354 = vld [vmem:[%s1 + $0x44] sm:$0xf]
      %v355 = vld [vmem:[%s1 + $0x48] sm:$0xf]
      %v356 = vld [vmem:[%s1 + $0x4c] sm:$0xf]
      %v357 = vld [vmem:[%s1 + $0x50] sm:$0xf]
      %v358 = vld [vmem:[%s1 + $0x54] sm:$0xf]
      %v359 = vld [vmem:[%s1 + $0x58] sm:$0xf]
      %v360 = vld [vmem:[%s1 + $0x5c] sm:$0xf]
      %v361 = vld [vmem:[%s1 + $0x60] sm:$0xf]
      %v362 = vld [vmem:[%s1 + $0x64] sm:$0xf]
      %v363 = vld [vmem:[%s1 + $0x68] sm:$0xf]
      %v364 = vld [vmem:[%s1 + $0x6c] sm:$0xf]
      %v365 = vld [vmem:[%s1 + $0x70] sm:$0xf]
      %v366 = vld [vmem:[%s1 + $0x74] sm:$0xf]
      %v367 = vld [vmem:[%s1 + $0x78] sm:$0xf]
      %v368 = vld [vmem:[%s1 + $0x7c] sm:$0xf]
      %v369 = vld [vmem:[%s1 + $0x80] sm:$0xf]
      %v370 = vld [vmem:[%s1 + $0x84] sm:$0xf]
      %v371 = vld [vmem:[%s1 + $0x88] sm:$0xf]
      %v372 = vld [vmem:[%s1 + $0x8c] sm:$0xf]
      %v373 = vld [vmem:[%s1 + $0x90] sm:$0xf]
      %v374 = vld [vmem:[%s1 + $0x94] sm:$0xf]
      %v375 = vld [vmem:[%s1 + $0x98] sm:$0xf]
      %v376 = vld [vmem:[%s1 + $0x9c] sm:$0xf]
      %v377 = vld [vmem:[%s1 + $0xa0] sm:$0xf]
      %v378 = vld [vmem:[%s1 + $0xa4] sm:$0xf]
      %v379 = vld [vmem:[%s1 + $0xa8] sm:$0xf]
      %v380 = vld [vmem:[%s1 + $0xac] sm:$0xf]
      %v381 = vld [vmem:[%s1 + $0xb0] sm:$0xf]
      %v382 = vld [vmem:[%s1 + $0xb4] sm:$0xf]
      %v383 = vld [vmem:[%s1 + $0xb8] sm:$0xf]
      %v384 = vld [vmem:[%s1 + $0xbc] sm:$0xf]
      %v385 = vld [vmem:[%s1 + $0xc0] sm:$0xf]
      %v386 = vld [vmem:[%s1 + $0xc4] sm:$0xf]
      %v387 = vld [vmem:[%s1 + $0xc8] sm:$0xf]
      %v388 = vld [vmem:[%s1 + $0xcc] sm:$0xf]
      %v389 = vld [vmem:[%s1 + $0xd0] sm:$0xf]
      %v390 = vld [vmem:[%s1 + $0xd4] sm:$0xf]
      %v391 = vld [vmem:[%s1 + $0xd8] sm:$0xf]
      %v392 = vld [vmem:[%s1 + $0xdc] sm:$0xf]
      %v393 = vld [vmem:[%s1 + $0xe0] sm:$0xf]
      %v394 = vld [vmem:[%s1 + $0xe4] sm:$0xf]
      %v395 = vld [vmem:[%s1 + $0xe8] sm:$0xf]
      %v396 = vld [vmem:[%s1 + $0xec] sm:$0xf]
      %v397 = vld [vmem:[%s1 + $0xf0] sm:$0xf]
      %v398 = vld [vmem:[%s1 + $0xf4] sm:$0xf]
      %v399 = vld [vmem:[%s1 + $0xf8] sm:$0xf]
      %v400 = vld [vmem:[%s1 + $0xfc] sm:$0xf]
      %v401 = vld [vmem:[%s1 + $0x100] sm:$0xf]
      %v402 = vld [vmem:[%s1 + $0x104] sm:$0xf]
      %v403 = vld [vmem:[%s1 + $0x108] sm:$0xf]
      %v404 = vld [vmem:[%s1 + $0x10c] sm:$0xf]
      %v405 = vld [vmem:[%s1 + $0x110] sm:$0xf]
      %v406 = vld [vmem:[%s1 + $0x114] sm:$0xf]
      %v407 = vld [vmem:[%s1 + $0x118] sm:$0xf]
      %v408 = vld [vmem:[%s1 + $0x11c] sm:$0xf]
      %v409 = vld [vmem:[%s1 + $0x120] sm:$0xf]
      %v410 = vld [vmem:[%s1 + $0x124] sm:$0xf]
      %v411 = vld [vmem:[%s1 + $0x128] sm:$0xf]
      %v412 = vld [vmem:[%s1 + $0x12c] sm:$0xf]
      %v413 = vld [vmem:[%s1 + $0x130] sm:$0xf]
      %v414 = vld [vmem:[%s1 + $0x134] sm:$0xf]
      %v415 = vld [vmem:[%s1 + $0x138] sm:$0xf]
      %v416 = vld [vmem:[%s1 + $0x13c] sm:$0xf]
      %v417 = vld [vmem:[%s1 + $0x140] sm:$0xf]
      %v418 = vld [vmem:[%s1 + $0x144] sm:$0xf]
      %v419 = vld [vmem:[%s1 + $0x148] sm:$0xf]
      %v420 = vld [vmem:[%s1 + $0x14c] sm:$0xf]
      %v421 = vld [vmem:[%s1 + $0x150] sm:$0xf]
      %v422 = vld [vmem:[%s1 + $0x154] sm:$0xf]
      %v423 = vld [vmem:[%s1 + $0x158] sm:$0xf]
      %v424 = vld [vmem:[%s1 + $0x15c] sm:$0xf]
      %v425 = vld [vmem:[%s1 + $0x160] sm:$0xf]
      %v426 = vld [vmem:[%s1 + $0x164] sm:$0xf]
      %v427 = vld [vmem:[%s1 + $0x168] sm:$0xf]
      %v428 = vld [vmem:[%s1 + $0x16c] sm:$0xf]
      %v429 = vld [vmem:[%s1 + $0x170] sm:$0xf]
      %v430 = vld [vmem:[%s1 + $0x174] sm:$0xf]
      %v431 = vld [vmem:[%s1 + $0x178] sm:$0xf]
      %v432 = vld [vmem:[%s1 + $0x17c] sm:$0xf]
      %v433 = vld [vmem:[%s1 + $0x180] sm:$0xf]
      %v434 = vld [vmem:[%s1 + $0x184] sm:$0xf]
      %v435 = vld [vmem:[%s1 + $0x188] sm:$0xf]
      %v436 = vld [vmem:[%s1 + $0x18c] sm:$0xf]
      %v437 = vld [vmem:[%s1 + $0x190] sm:$0xf]
      %v438 = vld [vmem:[%s1 + $0x194] sm:$0xf]
      %v439 = vld [vmem:[%s1 + $0x198] sm:$0xf]
      %v440 = vld [vmem:[%s1 + $0x19c] sm:$0xf]
      %v441 = vld [vmem:[%s1 + $0x1a0] sm:$0xf]
      %v442 = vld [vmem:[%s1 + $0x1a4] sm:$0xf]
      %v443 = vld [vmem:[%s1 + $0x1a8] sm:$0xf]
      %v444 = vld [vmem:[%s1 + $0x1ac] sm:$0xf]
      %v445 = vld [vmem:[%s1 + $0x1b0] sm:$0xf]
      %v446 = vld [vmem:[%s1 + $0x1b4] sm:$0xf]
      %v447 = vld [vmem:[%s1 + $0x1b8] sm:$0xf]
      %v448 = vld [vmem:[%s1 + $0x1bc] sm:$0xf]
      %v449 = vld [vmem:[%s1 + $0x1c0] sm:$0xf]
      %v450 = vld [vmem:[%s1 + $0x1c4] sm:$0xf]
      %v451 = vld [vmem:[%s1 + $0x1c8] sm:$0xf]
      %v452 = vld [vmem:[%s1 + $0x1cc] sm:$0xf]
      %v453 = vld [vmem:[%s1 + $0x1d0] sm:$0xf]
      %v454 = vld [vmem:[%s1 + $0x1d4] sm:$0xf]
      %v455 = vld [vmem:[%s1 + $0x1d8] sm:$0xf]
      %v456 = vld [vmem:[%s1 + $0x1dc] sm:$0xf]
      %v457 = vld [vmem:[%s1 + $0x1e0] sm:$0xf]
      %v458 = vld [vmem:[%s1 + $0x1e4] sm:$0xf]
      %v459 = vld [vmem:[%s1 + $0x1e8] sm:$0xf]
      %v460 = vld [vmem:[%s1 + $0x1ec] sm:$0xf]
      %v461 = vld [vmem:[%s1 + $0x1f0] sm:$0xf]
      %v462 = vld [vmem:[%s1 + $0x1f4] sm:$0xf]
      %v463 = vld [vmem:[%s1 + $0x1f8] sm:$0xf]
      %v464 = vld [vmem:[%s1 + $0x1fc] sm:$0xf]
      %v465 = vld [vmem:[%s1 + $0x200] sm:$0xf]
      %v466 = vld [vmem:[%s1 + $0x204] sm:$0xf]
      %v467 = vld [vmem:[%s1 + $0x208] sm:$0xf]
      %v468 = vld [vmem:[%s1 + $0x20c] sm:$0xf]
      %v469 = vld [vmem:[%s1 + $0x210] sm:$0xf]
      %v470 = vld [vmem:[%s1 + $0x214] sm:$0xf]
      %v471 = vld [vmem:[%s1 + $0x218] sm:$0xf]
      %v472 = vld [vmem:[%s1 + $0x21c] sm:$0xf]
      %v473 = vld [vmem:[%s1 + $0x220] sm:$0xf]
      %v474 = vld [vmem:[%s1 + $0x224] sm:$0xf]
      %v475 = vld [vmem:[%s1 + $0x228] sm:$0xf]
      %v476 = vld [vmem:[%s1 + $0x22c] sm:$0xf]
      %v477 = vld [vmem:[%s1 + $0x230] sm:$0xf]
      %v478 = vld [vmem:[%s1 + $0x234] sm:$0xf]
      %v479 = vld [vmem:[%s1 + $0x238] sm:$0xf]
      %v480 = vld [vmem:[%s1 + $0x23c] sm:$0xf]
      %v481 = vld [vmem:[%s2] sm:$0x1]
      %v483 = vperm.slane %v481, 0
      %v645 = vunpack.c.l.b16 %v177
      %v646 = vunpack.c.h.b16 %v177
      %v647 = vunpack.c.l.b16 %v178
      %v648 = vunpack.c.h.b16 %v178
      %v649 = vunpack.c.l.b16 %v179
      %v650 = vunpack.c.h.b16 %v179
      %v651 = vunpack.c.l.b16 %v180
      %v652 = vunpack.c.h.b16 %v180
      %v653 = vunpack.c.l.b16 %v181
      %v654 = vunpack.c.l.b16 %v182
      %v655 = vunpack.c.h.b16 %v182
      %v656 = vunpack.c.l.b16 %v183
      %v657 = vunpack.c.h.b16 %v183
      %v658 = vunpack.c.l.b16 %v184
      %v659 = vunpack.c.h.b16 %v184
      %v660 = vunpack.c.l.b16 %v185
      %v661 = vunpack.c.h.b16 %v185
      %v662 = vunpack.c.l.b16 %v186
      %v663 = vunpack.c.l.b16 %v187
      %v664 = vunpack.c.h.b16 %v187
      %v665 = vunpack.c.l.b16 %v188
      %v666 = vunpack.c.h.b16 %v188
      %v667 = vunpack.c.l.b16 %v189
      %v668 = vunpack.c.h.b16 %v189
      %v669 = vunpack.c.l.b16 %v190
      %v670 = vunpack.c.h.b16 %v190
      %v671 = vunpack.c.l.b16 %v191
      %v672 = vunpack.c.l.b16 %v192
      %v673 = vunpack.c.h.b16 %v192
      %v674 = vunpack.c.l.b16 %v193
      %v675 = vunpack.c.h.b16 %v193
      %v676 = vunpack.c.l.b16 %v194
      %v677 = vunpack.c.h.b16 %v194
      %v678 = vunpack.c.l.b16 %v195
      %v679 = vunpack.c.h.b16 %v195
      %v680 = vunpack.c.l.b16 %v196
      %v681 = vunpack.c.l.b16 %v197
      %v682 = vunpack.c.h.b16 %v197
      %v683 = vunpack.c.l.b16 %v198
      %v684 = vunpack.c.h.b16 %v198
      %v685 = vunpack.c.l.b16 %v199
      %v686 = vunpack.c.h.b16 %v199
      %v687 = vunpack.c.l.b16 %v200
      %v688 = vunpack.c.h.b16 %v200
      %v689 = vunpack.c.l.b16 %v201
      %v690 = vunpack.c.l.b16 %v202
      %v691 = vunpack.c.h.b16 %v202
      %v692 = vunpack.c.l.b16 %v203
      %v693 = vunpack.c.h.b16 %v203
      %v694 = vunpack.c.l.b16 %v204
      %v695 = vunpack.c.h.b16 %v204
      %v696 = vunpack.c.l.b16 %v205
      %v697 = vunpack.c.h.b16 %v205
      %v698 = vunpack.c.l.b16 %v206
      %v699 = vunpack.c.l.b16 %v207
      %v700 = vunpack.c.h.b16 %v207
      %v701 = vunpack.c.l.b16 %v208
      %v702 = vunpack.c.h.b16 %v208
      %v703 = vunpack.c.l.b16 %v209
      %v704 = vunpack.c.h.b16 %v209
      %v705 = vunpack.c.l.b16 %v210
      %v706 = vunpack.c.h.b16 %v210
      %v707 = vunpack.c.l.b16 %v211
      %v708 = vunpack.c.l.b16 %v212
      %v709 = vunpack.c.h.b16 %v212
      %v710 = vunpack.c.l.b16 %v213
      %v711 = vunpack.c.h.b16 %v213
      %v712 = vunpack.c.l.b16 %v214
      %v713 = vunpack.c.h.b16 %v214
      %v714 = vunpack.c.l.b16 %v215
      %v715 = vunpack.c.h.b16 %v215
      %v716 = vunpack.c.l.b16 %v216
      %v717 = vunpack.c.l.b16 %v217
      %v718 = vunpack.c.h.b16 %v217
      %v719 = vunpack.c.l.b16 %v218
      %v720 = vunpack.c.h.b16 %v218
      %v721 = vunpack.c.l.b16 %v219
      %v722 = vunpack.c.h.b16 %v219
      %v723 = vunpack.c.l.b16 %v220
      %v724 = vunpack.c.h.b16 %v220
      %v725 = vunpack.c.l.b16 %v221
      %v726 = vunpack.c.l.b16 %v222
      %v727 = vunpack.c.h.b16 %v222
      %v728 = vunpack.c.l.b16 %v223
      %v729 = vunpack.c.h.b16 %v223
      %v730 = vunpack.c.l.b16 %v224
      %v731 = vunpack.c.h.b16 %v224
      %v732 = vunpack.c.l.b16 %v225
      %v733 = vunpack.c.h.b16 %v225
      %v734 = vunpack.c.l.b16 %v226
      %v735 = vunpack.c.l.b16 %v227
      %v736 = vunpack.c.h.b16 %v227
      %v737 = vunpack.c.l.b16 %v228
      %v738 = vunpack.c.h.b16 %v228
      %v739 = vunpack.c.l.b16 %v229
      %v740 = vunpack.c.h.b16 %v229
      %v741 = vunpack.c.l.b16 %v230
      %v742 = vunpack.c.h.b16 %v230
      %v743 = vunpack.c.l.b16 %v231
      %v744 = vunpack.c.l.b16 %v232
      %v745 = vunpack.c.h.b16 %v232
      %v746 = vunpack.c.l.b16 %v233
      %v747 = vunpack.c.h.b16 %v233
      %v748 = vunpack.c.l.b16 %v234
      %v749 = vunpack.c.h.b16 %v234
      %v750 = vunpack.c.l.b16 %v235
      %v751 = vunpack.c.h.b16 %v235
      %v752 = vunpack.c.l.b16 %v236
      %v753 = vunpack.c.l.b16 %v237
      %v754 = vunpack.c.h.b16 %v237
      %v755 = vunpack.c.l.b16 %v238
      %v756 = vunpack.c.h.b16 %v238
      %v757 = vunpack.c.l.b16 %v239
      %v758 = vunpack.c.h.b16 %v239
      %v759 = vunpack.c.l.b16 %v240
      %v760 = vunpack.c.h.b16 %v240
      %v761 = vunpack.c.l.b16 %v241
      %v762 = vunpack.c.l.b16 %v242
      %v763 = vunpack.c.h.b16 %v242
      %v764 = vunpack.c.l.b16 %v243
      %v765 = vunpack.c.h.b16 %v243
      %v766 = vunpack.c.l.b16 %v244
      %v767 = vunpack.c.h.b16 %v244
      %v768 = vunpack.c.l.b16 %v245
      %v769 = vunpack.c.h.b16 %v245
      %v770 = vunpack.c.l.b16 %v246
      %v771 = vunpack.c.l.b16 %v247
      %v772 = vunpack.c.h.b16 %v247
      %v773 = vunpack.c.l.b16 %v248
      %v774 = vunpack.c.h.b16 %v248
      %v775 = vunpack.c.l.b16 %v249
      %v776 = vunpack.c.h.b16 %v249
      %v777 = vunpack.c.l.b16 %v250
      %v778 = vunpack.c.h.b16 %v250
      %v779 = vunpack.c.l.b16 %v251
      %v780 = vunpack.c.l.b16 %v252
      %v781 = vunpack.c.h.b16 %v252
      %v782 = vunpack.c.l.b16 %v253
      %v783 = vunpack.c.h.b16 %v253
      %v784 = vunpack.c.l.b16 %v254
      %v785 = vunpack.c.h.b16 %v254
      %v786 = vunpack.c.l.b16 %v255
      %v787 = vunpack.c.h.b16 %v255
      %v788 = vunpack.c.l.b16 %v256
      %v789 = vunpack.c.l.b16 %v257
      %v790 = vunpack.c.h.b16 %v257
      %v791 = vunpack.c.l.b16 %v258
      %v792 = vunpack.c.h.b16 %v258
      %v793 = vunpack.c.l.b16 %v259
      %v794 = vunpack.c.h.b16 %v259
      %v795 = vunpack.c.l.b16 %v260
      %v796 = vunpack.c.h.b16 %v260
      %v797 = vunpack.c.l.b16 %v261
      %v798 = vunpack.c.l.b16 %v262
      %v799 = vunpack.c.h.b16 %v262
      %v800 = vunpack.c.l.b16 %v263
      %v801 = vunpack.c.h.b16 %v263
      %v802 = vunpack.c.l.b16 %v264
      %v803 = vunpack.c.h.b16 %v264
      %v804 = vunpack.c.l.b16 %v265
      %v805 = vunpack.c.h.b16 %v265
      %v806 = vunpack.c.l.b16 %v266
      %v807 = vunpack.c.l.b16 %v267
      %v808 = vunpack.c.h.b16 %v267
      %v809 = vunpack.c.l.b16 %v268
      %v810 = vunpack.c.h.b16 %v268
      %v811 = vunpack.c.l.b16 %v269
      %v812 = vunpack.c.h.b16 %v269
      %v813 = vunpack.c.l.b16 %v270
      %v814 = vunpack.c.h.b16 %v270
      %v815 = vunpack.c.l.b16 %v271
      %v816 = vunpack.c.l.b16 %v272
      %v817 = vunpack.c.h.b16 %v272
      %v818 = vunpack.c.l.b16 %v273
      %v819 = vunpack.c.h.b16 %v273
      %v820 = vunpack.c.l.b16 %v274
      %v821 = vunpack.c.h.b16 %v274
      %v822 = vunpack.c.l.b16 %v275
      %v823 = vunpack.c.h.b16 %v275
      %v824 = vunpack.c.l.b16 %v276
      %v825 = vunpack.c.l.b16 %v277
      %v826 = vunpack.c.h.b16 %v277
      %v827 = vunpack.c.l.b16 %v278
      %v828 = vunpack.c.h.b16 %v278
      %v829 = vunpack.c.l.b16 %v279
      %v830 = vunpack.c.h.b16 %v279
      %v831 = vunpack.c.l.b16 %v280
      %v832 = vunpack.c.h.b16 %v280
      %v833 = vunpack.c.l.b16 %v281
      %v834 = vunpack.c.l.b16 %v282
      %v835 = vunpack.c.h.b16 %v282
      %v836 = vunpack.c.l.b16 %v283
      %v837 = vunpack.c.h.b16 %v283
      %v838 = vunpack.c.l.b16 %v284
      %v839 = vunpack.c.h.b16 %v284
      %v840 = vunpack.c.l.b16 %v285
      %v841 = vunpack.c.h.b16 %v285
      %v842 = vunpack.c.l.b16 %v286
      %v843 = vunpack.c.l.b16 %v287
      %v844 = vunpack.c.h.b16 %v287
      %v845 = vunpack.c.l.b16 %v288
      %v846 = vunpack.c.h.b16 %v288
      %v847 = vunpack.c.l.b16 %v289
      %v848 = vunpack.c.h.b16 %v289
      %v849 = vunpack.c.l.b16 %v290
      %v850 = vunpack.c.h.b16 %v290
      %v851 = vunpack.c.l.b16 %v291
      %v852 = vunpack.c.l.b16 %v292
      %v853 = vunpack.c.h.b16 %v292
      %v854 = vunpack.c.l.b16 %v293
      %v855 = vunpack.c.h.b16 %v293
      %v856 = vunpack.c.l.b16 %v294
      %v857 = vunpack.c.h.b16 %v294
      %v858 = vunpack.c.l.b16 %v295
      %v859 = vunpack.c.h.b16 %v295
      %v860 = vunpack.c.l.b16 %v296
      %v861 = vunpack.c.l.b16 %v297
      %v862 = vunpack.c.h.b16 %v297
      %v863 = vunpack.c.l.b16 %v298
      %v864 = vunpack.c.h.b16 %v298
      %v865 = vunpack.c.l.b16 %v299
      %v866 = vunpack.c.h.b16 %v299
      %v867 = vunpack.c.l.b16 %v300
      %v868 = vunpack.c.h.b16 %v300
      %v869 = vunpack.c.l.b16 %v301
      %v870 = vunpack.c.l.b16 %v302
      %v871 = vunpack.c.h.b16 %v302
      %v872 = vunpack.c.l.b16 %v303
      %v873 = vunpack.c.h.b16 %v303
      %v874 = vunpack.c.l.b16 %v304
      %v875 = vunpack.c.h.b16 %v304
      %v876 = vunpack.c.l.b16 %v305
      %v877 = vunpack.c.h.b16 %v305
      %v878 = vunpack.c.l.b16 %v306
      %v879 = vunpack.c.l.b16 %v307
      %v880 = vunpack.c.h.b16 %v307
      %v881 = vunpack.c.l.b16 %v308
      %v882 = vunpack.c.h.b16 %v308
      %v883 = vunpack.c.l.b16 %v309
      %v884 = vunpack.c.h.b16 %v309
      %v885 = vunpack.c.l.b16 %v310
      %v886 = vunpack.c.h.b16 %v310
      %v887 = vunpack.c.l.b16 %v311
      %v888 = vunpack.c.l.b16 %v312
      %v889 = vunpack.c.h.b16 %v312
      %v890 = vunpack.c.l.b16 %v313
      %v891 = vunpack.c.h.b16 %v313
      %v892 = vunpack.c.l.b16 %v314
      %v893 = vunpack.c.h.b16 %v314
      %v894 = vunpack.c.l.b16 %v315
      %v895 = vunpack.c.h.b16 %v315
      %v896 = vunpack.c.l.b16 %v316
      %v897 = vunpack.c.l.b16 %v317
      %v898 = vunpack.c.h.b16 %v317
      %v899 = vunpack.c.l.b16 %v318
      %v900 = vunpack.c.h.b16 %v318
      %v901 = vunpack.c.l.b16 %v319
      %v902 = vunpack.c.h.b16 %v319
      %v903 = vunpack.c.l.b16 %v320
      %v904 = vunpack.c.h.b16 %v320
      %v905 = vunpack.c.l.b16 %v321
      %v906 = vunpack.c.l.b16 %v322
      %v907 = vunpack.c.h.b16 %v322
      %v908 = vunpack.c.l.b16 %v323
      %v909 = vunpack.c.h.b16 %v323
      %v910 = vunpack.c.l.b16 %v324
      %v911 = vunpack.c.h.b16 %v324
      %v912 = vunpack.c.l.b16 %v325
      %v913 = vunpack.c.h.b16 %v325
      %v914 = vunpack.c.l.b16 %v326
      %v915 = vunpack.c.l.b16 %v327
      %v916 = vunpack.c.h.b16 %v327
      %v917 = vunpack.c.l.b16 %v328
      %v918 = vunpack.c.h.b16 %v328
      %v919 = vunpack.c.l.b16 %v329
      %v920 = vunpack.c.h.b16 %v329
      %v921 = vunpack.c.l.b16 %v330
      %v922 = vunpack.c.h.b16 %v330
      %v923 = vunpack.c.l.b16 %v331
      %v924 = vunpack.c.l.b16 %v332
      %v925 = vunpack.c.h.b16 %v332
      %v926 = vunpack.c.l.b16 %v333
      %v927 = vunpack.c.h.b16 %v333
      %v928 = vunpack.c.l.b16 %v334
      %v929 = vunpack.c.h.b16 %v334
      %v930 = vunpack.c.l.b16 %v335
      %v931 = vunpack.c.h.b16 %v335
      %v932 = vunpack.c.l.b16 %v336
      %v933 = vpack.c.b16 %v654, %v645
      %v934 = vpack.c.b16 %v655, %v646
      %v935 = vpack.c.b16 %v656, %v647
      %v936 = vpack.c.b16 %v657, %v648
      %v937 = vpack.c.b16 %v658, %v649
      %v938 = vpack.c.b16 %v659, %v650
      %v939 = vpack.c.b16 %v660, %v651
      %v940 = vpack.c.b16 %v661, %v652
      %v941 = vpack.c.b16 %v662, %v653
      %v942 = vpack.c.b16 %v672, %v663
      %v943 = vpack.c.b16 %v673, %v664
      %v944 = vpack.c.b16 %v674, %v665
      %v945 = vpack.c.b16 %v675, %v666
      %v946 = vpack.c.b16 %v676, %v667
      %v947 = vpack.c.b16 %v677, %v668
      %v948 = vpack.c.b16 %v678, %v669
      %v949 = vpack.c.b16 %v679, %v670
      %v950 = vpack.c.b16 %v680, %v671
      %v951 = vpack.c.b16 %v690, %v681
      %v952 = vpack.c.b16 %v691, %v682
      %v953 = vpack.c.b16 %v692, %v683
      %v954 = vpack.c.b16 %v693, %v684
      %v955 = vpack.c.b16 %v694, %v685
      %v956 = vpack.c.b16 %v695, %v686
      %v957 = vpack.c.b16 %v696, %v687
      %v958 = vpack.c.b16 %v697, %v688
      %v959 = vpack.c.b16 %v698, %v689
      %v960 = vpack.c.b16 %v708, %v699
      %v961 = vpack.c.b16 %v709, %v700
      %v962 = vpack.c.b16 %v710, %v701
      %v963 = vpack.c.b16 %v711, %v702
      %v964 = vpack.c.b16 %v712, %v703
      %v965 = vpack.c.b16 %v713, %v704
      %v966 = vpack.c.b16 %v714, %v705
      %v967 = vpack.c.b16 %v715, %v706
      %v968 = vpack.c.b16 %v716, %v707
      %v969 = vpack.c.b16 %v726, %v717
      %v970 = vpack.c.b16 %v727, %v718
      %v971 = vpack.c.b16 %v728, %v719
      %v972 = vpack.c.b16 %v729, %v720
      %v973 = vpack.c.b16 %v730, %v721
      %v974 = vpack.c.b16 %v731, %v722
      %v975 = vpack.c.b16 %v732, %v723
      %v976 = vpack.c.b16 %v733, %v724
      %v977 = vpack.c.b16 %v734, %v725
      %v978 = vpack.c.b16 %v744, %v735
      %v979 = vpack.c.b16 %v745, %v736
      %v980 = vpack.c.b16 %v746, %v737
      %v981 = vpack.c.b16 %v747, %v738
      %v982 = vpack.c.b16 %v748, %v739
      %v983 = vpack.c.b16 %v749, %v740
      %v984 = vpack.c.b16 %v750, %v741
      %v985 = vpack.c.b16 %v751, %v742
      %v986 = vpack.c.b16 %v752, %v743
      %v987 = vpack.c.b16 %v762, %v753
      %v988 = vpack.c.b16 %v763, %v754
      %v989 = vpack.c.b16 %v764, %v755
      %v990 = vpack.c.b16 %v765, %v756
      %v991 = vpack.c.b16 %v766, %v757
      %v992 = vpack.c.b16 %v767, %v758
      %v993 = vpack.c.b16 %v768, %v759
      %v994 = vpack.c.b16 %v769, %v760
      %v995 = vpack.c.b16 %v770, %v761
      %v996 = vpack.c.b16 %v780, %v771
      %v997 = vpack.c.b16 %v781, %v772
      %v998 = vpack.c.b16 %v782, %v773
      %v999 = vpack.c.b16 %v783, %v774
      %v1000 = vpack.c.b16 %v784, %v775
      %v1001 = vpack.c.b16 %v785, %v776
      %v1002 = vpack.c.b16 %v786, %v777
      %v1003 = vpack.c.b16 %v787, %v778
      %v1004 = vpack.c.b16 %v788, %v779
      %v1005 = vpack.c.b16 %v798, %v789
      %v1006 = vpack.c.b16 %v799, %v790
      %v1007 = vpack.c.b16 %v800, %v791
      %v1008 = vpack.c.b16 %v801, %v792
      %v1009 = vpack.c.b16 %v802, %v793
      %v1010 = vpack.c.b16 %v803, %v794
      %v1011 = vpack.c.b16 %v804, %v795
      %v1012 = vpack.c.b16 %v805, %v796
      %v1013 = vpack.c.b16 %v806, %v797
      %v1014 = vpack.c.b16 %v816, %v807
      %v1015 = vpack.c.b16 %v817, %v808
      %v1016 = vpack.c.b16 %v818, %v809
      %v1017 = vpack.c.b16 %v819, %v810
      %v1018 = vpack.c.b16 %v820, %v811
      %v1019 = vpack.c.b16 %v821, %v812
      %v1020 = vpack.c.b16 %v822, %v813
      %v1021 = vpack.c.b16 %v823, %v814
      %v1022 = vpack.c.b16 %v824, %v815
      %v1023 = vpack.c.b16 %v834, %v825
      %v1024 = vpack.c.b16 %v835, %v826
      %v1025 = vpack.c.b16 %v836, %v827
      %v1026 = vpack.c.b16 %v837, %v828
      %v1027 = vpack.c.b16 %v838, %v829
      %v1028 = vpack.c.b16 %v839, %v830
      %v1029 = vpack.c.b16 %v840, %v831
      %v1030 = vpack.c.b16 %v841, %v832
      %v1031 = vpack.c.b16 %v842, %v833
      %v1032 = vpack.c.b16 %v852, %v843
      %v1033 = vpack.c.b16 %v853, %v844
      %v1034 = vpack.c.b16 %v854, %v845
      %v1035 = vpack.c.b16 %v855, %v846
      %v1036 = vpack.c.b16 %v856, %v847
      %v1037 = vpack.c.b16 %v857, %v848
      %v1038 = vpack.c.b16 %v858, %v849
      %v1039 = vpack.c.b16 %v859, %v850
      %v1040 = vpack.c.b16 %v860, %v851
      %v1041 = vpack.c.b16 %v870, %v861
      %v1042 = vpack.c.b16 %v871, %v862
      %v1043 = vpack.c.b16 %v872, %v863
      %v1044 = vpack.c.b16 %v873, %v864
      %v1045 = vpack.c.b16 %v874, %v865
      %v1046 = vpack.c.b16 %v875, %v866
      %v1047 = vpack.c.b16 %v876, %v867
      %v1048 = vpack.c.b16 %v877, %v868
      %v1049 = vpack.c.b16 %v878, %v869
      %v1050 = vpack.c.b16 %v888, %v879
      %v1051 = vpack.c.b16 %v889, %v880
      %v1052 = vpack.c.b16 %v890, %v881
      %v1053 = vpack.c.b16 %v891, %v882
      %v1054 = vpack.c.b16 %v892, %v883
      %v1055 = vpack.c.b16 %v893, %v884
      %v1056 = vpack.c.b16 %v894, %v885
      %v1057 = vpack.c.b16 %v895, %v886
      %v1058 = vpack.c.b16 %v896, %v887
      %v1059 = vpack.c.b16 %v906, %v897
      %v1060 = vpack.c.b16 %v907, %v898
      %v1061 = vpack.c.b16 %v908, %v899
      %v1062 = vpack.c.b16 %v909, %v900
      %v1063 = vpack.c.b16 %v910, %v901
      %v1064 = vpack.c.b16 %v911, %v902
      %v1065 = vpack.c.b16 %v912, %v903
      %v1066 = vpack.c.b16 %v913, %v904
      %v1067 = vpack.c.b16 %v914, %v905
      %v1068 = vpack.c.b16 %v924, %v915
      %v1069 = vpack.c.b16 %v925, %v916
      %v1070 = vpack.c.b16 %v926, %v917
      %v1071 = vpack.c.b16 %v927, %v918
      %v1072 = vpack.c.b16 %v928, %v919
      %v1073 = vpack.c.b16 %v929, %v920
      %v1074 = vpack.c.b16 %v930, %v921
      %v1075 = vpack.c.b16 %v931, %v922
      %v1076 = vpack.c.b16 %v932, %v923
      %v1365 = vunpack.c.l.b16 %v337
      %v1366 = vunpack.c.l.b16 %v338
      %v1367 = vunpack.c.l.b16 %v339
      %v1368 = vunpack.c.l.b16 %v340
      %v1369 = vunpack.c.l.b16 %v341
      %v1370 = vunpack.c.l.b16 %v342
      %v1371 = vunpack.c.l.b16 %v343
      %v1372 = vunpack.c.l.b16 %v344
      %v1373 = vunpack.c.l.b16 %v345
      %v1374 = vunpack.c.l.b16 %v346
      %v1375 = vunpack.c.l.b16 %v347
      %v1376 = vunpack.c.l.b16 %v348
      %v1377 = vunpack.c.l.b16 %v349
      %v1378 = vunpack.c.l.b16 %v350
      %v1379 = vunpack.c.l.b16 %v351
      %v1380 = vunpack.c.l.b16 %v352
      %v1381 = vunpack.c.l.b16 %v353
      %v1382 = vunpack.c.l.b16 %v354
      %v1383 = vunpack.c.l.b16 %v355
      %v1384 = vunpack.c.l.b16 %v356
      %v1385 = vunpack.c.l.b16 %v357
      %v1386 = vunpack.c.l.b16 %v358
      %v1387 = vunpack.c.l.b16 %v359
      %v1388 = vunpack.c.l.b16 %v360
      %v1389 = vunpack.c.l.b16 %v361
      %v1390 = vunpack.c.l.b16 %v362
      %v1391 = vunpack.c.l.b16 %v363
      %v1392 = vunpack.c.l.b16 %v364
      %v1393 = vunpack.c.l.b16 %v365
      %v1394 = vunpack.c.l.b16 %v366
      %v1395 = vunpack.c.l.b16 %v367
      %v1396 = vunpack.c.l.b16 %v368
      %v1397 = vunpack.c.l.b16 %v369
      %v1398 = vunpack.c.l.b16 %v370
      %v1399 = vunpack.c.l.b16 %v371
      %v1400 = vunpack.c.l.b16 %v372
      %v1401 = vunpack.c.l.b16 %v373
      %v1402 = vunpack.c.l.b16 %v374
      %v1403 = vunpack.c.l.b16 %v375
      %v1404 = vunpack.c.l.b16 %v376
      %v1405 = vunpack.c.l.b16 %v377
      %v1406 = vunpack.c.l.b16 %v378
      %v1407 = vunpack.c.l.b16 %v379
      %v1408 = vunpack.c.l.b16 %v380
      %v1409 = vunpack.c.l.b16 %v381
      %v1410 = vunpack.c.l.b16 %v382
      %v1411 = vunpack.c.l.b16 %v383
      %v1412 = vunpack.c.l.b16 %v384
      %v1413 = vunpack.c.l.b16 %v385
      %v1414 = vunpack.c.l.b16 %v386
      %v1415 = vunpack.c.l.b16 %v387
      %v1416 = vunpack.c.l.b16 %v388
      %v1417 = vunpack.c.l.b16 %v389
      %v1418 = vunpack.c.l.b16 %v390
      %v1419 = vunpack.c.l.b16 %v391
      %v1420 = vunpack.c.l.b16 %v392
      %v1421 = vunpack.c.l.b16 %v393
      %v1422 = vunpack.c.l.b16 %v394
      %v1423 = vunpack.c.l.b16 %v395
      %v1424 = vunpack.c.l.b16 %v396
      %v1425 = vunpack.c.l.b16 %v397
      %v1426 = vunpack.c.l.b16 %v398
      %v1427 = vunpack.c.l.b16 %v399
      %v1428 = vunpack.c.l.b16 %v400
      %v1429 = vunpack.c.l.b16 %v401
      %v1430 = vunpack.c.l.b16 %v402
      %v1431 = vunpack.c.l.b16 %v403
      %v1432 = vunpack.c.l.b16 %v404
      %v1433 = vunpack.c.l.b16 %v405
      %v1434 = vunpack.c.l.b16 %v406
      %v1435 = vunpack.c.l.b16 %v407
      %v1436 = vunpack.c.l.b16 %v408
      %v1437 = vunpack.c.l.b16 %v409
      %v1438 = vunpack.c.l.b16 %v410
      %v1439 = vunpack.c.l.b16 %v411
      %v1440 = vunpack.c.l.b16 %v412
      %v1441 = vunpack.c.l.b16 %v413
      %v1442 = vunpack.c.l.b16 %v414
      %v1443 = vunpack.c.l.b16 %v415
      %v1444 = vunpack.c.l.b16 %v416
      %v1445 = vunpack.c.l.b16 %v417
      %v1446 = vunpack.c.l.b16 %v418
      %v1447 = vunpack.c.l.b16 %v419
      %v1448 = vunpack.c.l.b16 %v420
      %v1449 = vunpack.c.l.b16 %v421
      %v1450 = vunpack.c.l.b16 %v422
      %v1451 = vunpack.c.l.b16 %v423
      %v1452 = vunpack.c.l.b16 %v424
      %v1453 = vunpack.c.l.b16 %v425
      %v1454 = vunpack.c.l.b16 %v426
      %v1455 = vunpack.c.l.b16 %v427
      %v1456 = vunpack.c.l.b16 %v428
      %v1457 = vunpack.c.l.b16 %v429
      %v1458 = vunpack.c.l.b16 %v430
      %v1459 = vunpack.c.l.b16 %v431
      %v1460 = vunpack.c.l.b16 %v432
      %v1461 = vunpack.c.l.b16 %v433
      %v1462 = vunpack.c.l.b16 %v434
      %v1463 = vunpack.c.l.b16 %v435
      %v1464 = vunpack.c.l.b16 %v436
      %v1465 = vunpack.c.l.b16 %v437
      %v1466 = vunpack.c.l.b16 %v438
      %v1467 = vunpack.c.l.b16 %v439
      %v1468 = vunpack.c.l.b16 %v440
      %v1469 = vunpack.c.l.b16 %v441
      %v1470 = vunpack.c.l.b16 %v442
      %v1471 = vunpack.c.l.b16 %v443
      %v1472 = vunpack.c.l.b16 %v444
      %v1473 = vunpack.c.l.b16 %v445
      %v1474 = vunpack.c.l.b16 %v446
      %v1475 = vunpack.c.l.b16 %v447
      %v1476 = vunpack.c.l.b16 %v448
      %v1477 = vunpack.c.l.b16 %v449
      %v1478 = vunpack.c.l.b16 %v450
      %v1479 = vunpack.c.l.b16 %v451
      %v1480 = vunpack.c.l.b16 %v452
      %v1481 = vunpack.c.l.b16 %v453
      %v1482 = vunpack.c.l.b16 %v454
      %v1483 = vunpack.c.l.b16 %v455
      %v1484 = vunpack.c.l.b16 %v456
      %v1485 = vunpack.c.l.b16 %v457
      %v1486 = vunpack.c.l.b16 %v458
      %v1487 = vunpack.c.l.b16 %v459
      %v1488 = vunpack.c.l.b16 %v460
      %v1489 = vunpack.c.l.b16 %v461
      %v1490 = vunpack.c.l.b16 %v462
      %v1491 = vunpack.c.l.b16 %v463
      %v1492 = vunpack.c.l.b16 %v464
      %v1493 = vunpack.c.l.b16 %v465
      %v1494 = vunpack.c.l.b16 %v466
      %v1495 = vunpack.c.l.b16 %v467
      %v1496 = vunpack.c.l.b16 %v468
      %v1497 = vunpack.c.l.b16 %v469
      %v1498 = vunpack.c.l.b16 %v470
      %v1499 = vunpack.c.l.b16 %v471
      %v1500 = vunpack.c.l.b16 %v472
      %v1501 = vunpack.c.l.b16 %v473
      %v1502 = vunpack.c.l.b16 %v474
      %v1503 = vunpack.c.l.b16 %v475
      %v1504 = vunpack.c.l.b16 %v476
      %v1505 = vunpack.c.l.b16 %v477
      %v1506 = vunpack.c.l.b16 %v478
      %v1507 = vunpack.c.l.b16 %v479
      %v1508 = vunpack.c.l.b16 %v480
      %v1509 = vpack.c.b16 %v1366, %v1365
      %v1510 = vpack.c.b16 %v1368, %v1367
      %v1511 = vpack.c.b16 %v1370, %v1369
      %v1512 = vpack.c.b16 %v1372, %v1371
      %v1513 = vpack.c.b16 %v1374, %v1373
      %v1514 = vpack.c.b16 %v1376, %v1375
      %v1515 = vpack.c.b16 %v1378, %v1377
      %v1516 = vpack.c.b16 %v1380, %v1379
      %v1517 = vpack.c.b16 %v1382, %v1381
      %v1518 = vpack.c.b16 %v1384, %v1383
      %v1519 = vpack.c.b16 %v1386, %v1385
      %v1520 = vpack.c.b16 %v1388, %v1387
      %v1521 = vpack.c.b16 %v1390, %v1389
      %v1522 = vpack.c.b16 %v1392, %v1391
      %v1523 = vpack.c.b16 %v1394, %v1393
      %v1524 = vpack.c.b16 %v1396, %v1395
      %v1525 = vpack.c.b16 %v1398, %v1397
      %v1526 = vpack.c.b16 %v1400, %v1399
      %v1527 = vpack.c.b16 %v1402, %v1401
      %v1528 = vpack.c.b16 %v1404, %v1403
      %v1529 = vpack.c.b16 %v1406, %v1405
      %v1530 = vpack.c.b16 %v1408, %v1407
      %v1531 = vpack.c.b16 %v1410, %v1409
      %v1532 = vpack.c.b16 %v1412, %v1411
      %v1533 = vpack.c.b16 %v1414, %v1413
      %v1534 = vpack.c.b16 %v1416, %v1415
      %v1535 = vpack.c.b16 %v1418, %v1417
      %v1536 = vpack.c.b16 %v1420, %v1419
      %v1537 = vpack.c.b16 %v1422, %v1421
      %v1538 = vpack.c.b16 %v1424, %v1423
      %v1539 = vpack.c.b16 %v1426, %v1425
      %v1540 = vpack.c.b16 %v1428, %v1427
      %v1541 = vpack.c.b16 %v1430, %v1429
      %v1542 = vpack.c.b16 %v1432, %v1431
      %v1543 = vpack.c.b16 %v1434, %v1433
      %v1544 = vpack.c.b16 %v1436, %v1435
      %v1545 = vpack.c.b16 %v1438, %v1437
      %v1546 = vpack.c.b16 %v1440, %v1439
      %v1547 = vpack.c.b16 %v1442, %v1441
      %v1548 = vpack.c.b16 %v1444, %v1443
      %v1549 = vpack.c.b16 %v1446, %v1445
      %v1550 = vpack.c.b16 %v1448, %v1447
      %v1551 = vpack.c.b16 %v1450, %v1449
      %v1552 = vpack.c.b16 %v1452, %v1451
      %v1553 = vpack.c.b16 %v1454, %v1453
      %v1554 = vpack.c.b16 %v1456, %v1455
      %v1555 = vpack.c.b16 %v1458, %v1457
      %v1556 = vpack.c.b16 %v1460, %v1459
      %v1557 = vpack.c.b16 %v1462, %v1461
      %v1558 = vpack.c.b16 %v1464, %v1463
      %v1559 = vpack.c.b16 %v1466, %v1465
      %v1560 = vpack.c.b16 %v1468, %v1467
      %v1561 = vpack.c.b16 %v1470, %v1469
      %v1562 = vpack.c.b16 %v1472, %v1471
      %v1563 = vpack.c.b16 %v1474, %v1473
      %v1564 = vpack.c.b16 %v1476, %v1475
      %v1565 = vpack.c.b16 %v1478, %v1477
      %v1566 = vpack.c.b16 %v1480, %v1479
      %v1567 = vpack.c.b16 %v1482, %v1481
      %v1568 = vpack.c.b16 %v1484, %v1483
      %v1569 = vpack.c.b16 %v1486, %v1485
      %v1570 = vpack.c.b16 %v1488, %v1487
      %v1571 = vpack.c.b16 %v1490, %v1489
      %v1572 = vpack.c.b16 %v1492, %v1491
      %v1573 = vpack.c.b16 %v1494, %v1493
      %v1574 = vpack.c.b16 %v1496, %v1495
      %v1575 = vpack.c.b16 %v1498, %v1497
      %v1576 = vpack.c.b16 %v1500, %v1499
      %v1577 = vpack.c.b16 %v1502, %v1501
      %v1578 = vpack.c.b16 %v1504, %v1503
      %v1579 = vpack.c.b16 %v1506, %v1505
      %v1580 = vpack.c.b16 %v1508, %v1507
      %1653 = vmatpush.bf16.msra.mxu0 %v1516
      %1654 = vmatpush.bf16.msra.mxu0 %v1515
      %1655 = vmatpush.bf16.msra.mxu0 %v1514
      %1656 = vmatpush.bf16.msra.mxu0 %v1513
      %1657 = vmatpush.bf16.msra.mxu0 %v1512
      %1658 = vmatpush.bf16.msra.mxu0 %v1511
      %1659 = vmatpush.bf16.msra.mxu0 %v1510
      %1660 = vmatpush.bf16.msra.mxu0 %v1509
      %1661 = vmatmul.bf16.gmra.mxu0 %v933
      %v1662 = vpop.f32.mrf.mxu0
      %v1663 = vadd.f32 %v483, %v1662
      %v1664 = vpop.f32.mrf.mxu0
      %v1665 = vadd.f32 %v483, %v1664
      %1666 = vmatmul.bf16.gmra.mxu0 %v942
      %v1667 = vpop.f32.mrf.mxu0
      %v1668 = vadd.f32 %v483, %v1667
      %v1669 = vpop.f32.mrf.mxu0
      %v1670 = vadd.f32 %v483, %v1669
      %1671 = vmatmul.bf16.gmra.mxu0 %v951
      %v1672 = vpop.f32.mrf.mxu0
      %v1673 = vadd.f32 %v483, %v1672
      %v1674 = vpop.f32.mrf.mxu0
      %v1675 = vadd.f32 %v483, %v1674
      %1676 = vmatmul.bf16.gmra.mxu0 %v960
      %v1677 = vpop.f32.mrf.mxu0
      %v1678 = vadd.f32 %v483, %v1677
      %v1679 = vpop.f32.mrf.mxu0
      %v1680 = vadd.f32 %v483, %v1679
      %1681 = vmatmul.bf16.gmra.mxu0 %v969
      %v1682 = vpop.f32.mrf.mxu0
      %v1683 = vadd.f32 %v483, %v1682
      %v1684 = vpop.f32.mrf.mxu0
      %v1685 = vadd.f32 %v483, %v1684
      %1686 = vmatmul.bf16.gmra.mxu0 %v978
      %v1687 = vpop.f32.mrf.mxu0
      %v1688 = vadd.f32 %v483, %v1687
      %v1689 = vpop.f32.mrf.mxu0
      %v1690 = vadd.f32 %v483, %v1689
      %1691 = vmatmul.bf16.gmra.mxu0 %v987
      %v1692 = vpop.f32.mrf.mxu0
      %v1693 = vadd.f32 %v483, %v1692
      %v1694 = vpop.f32.mrf.mxu0
      %v1695 = vadd.f32 %v483, %v1694
      %1696 = vmatmul.bf16.gmra.mxu0 %v996
      %v1697 = vpop.f32.mrf.mxu0
      %v1698 = vadd.f32 %v483, %v1697
      %v1699 = vpop.f32.mrf.mxu0
      %v1700 = vadd.f32 %v483, %v1699
      %1701 = vmatmul.bf16.gmra.mxu0 %v1005
      %v1702 = vpop.f32.mrf.mxu0
      %v1703 = vadd.f32 %v483, %v1702
      %v1704 = vpop.f32.mrf.mxu0
      %v1705 = vadd.f32 %v483, %v1704
      %1706 = vmatmul.bf16.gmra.mxu0 %v1014
      %v1707 = vpop.f32.mrf.mxu0
      %v1708 = vadd.f32 %v483, %v1707
      %v1709 = vpop.f32.mrf.mxu0
      %v1710 = vadd.f32 %v483, %v1709
      %1711 = vmatmul.bf16.gmra.mxu0 %v1023
      %v1712 = vpop.f32.mrf.mxu0
      %v1713 = vadd.f32 %v483, %v1712
      %v1714 = vpop.f32.mrf.mxu0
      %v1715 = vadd.f32 %v483, %v1714
      %1716 = vmatmul.bf16.gmra.mxu0 %v1032
      %v1717 = vpop.f32.mrf.mxu0
      %v1718 = vadd.f32 %v483, %v1717
      %v1719 = vpop.f32.mrf.mxu0
      %v1720 = vadd.f32 %v483, %v1719
      %1721 = vmatmul.bf16.gmra.mxu0 %v1041
      %v1722 = vpop.f32.mrf.mxu0
      %v1723 = vadd.f32 %v483, %v1722
      %v1724 = vpop.f32.mrf.mxu0
      %v1725 = vadd.f32 %v483, %v1724
      %1726 = vmatmul.bf16.gmra.mxu0 %v1050
      %v1727 = vpop.f32.mrf.mxu0
      %v1728 = vadd.f32 %v483, %v1727
      %v1729 = vpop.f32.mrf.mxu0
      %v1730 = vadd.f32 %v483, %v1729
      %1731 = vmatmul.bf16.gmra.mxu0 %v1059
      %v1732 = vpop.f32.mrf.mxu0
      %v1733 = vadd.f32 %v483, %v1732
      %v1734 = vpop.f32.mrf.mxu0
      %v1735 = vadd.f32 %v483, %v1734
      %1736 = vmatmul.bf16.gmra.mxu0 %v1068
      %v1737 = vpop.f32.mrf.mxu0
      %v1738 = vadd.f32 %v483, %v1737
      %v1739 = vpop.f32.mrf.mxu0
      %v1740 = vadd.f32 %v483, %v1739
      %1741 = vdwg.mxu0
      %1742 = vmatpush.bf16.msra.mxu0 %v1524
      %1743 = vmatpush.bf16.msra.mxu0 %v1523
      %1744 = vmatpush.bf16.msra.mxu0 %v1522
      %1745 = vmatpush.bf16.msra.mxu0 %v1521
      %1746 = vmatpush.bf16.msra.mxu0 %v1520
      %1747 = vmatpush.bf16.msra.mxu0 %v1519
      %1748 = vmatpush.bf16.msra.mxu0 %v1518
      %1749 = vmatpush.bf16.msra.mxu0 %v1517
      %1750 = vmatmul.bf16.gmra.mxu0 %v934
      %v1751 = vpop.f32.mrf.mxu0
      %v1752 = vadd.f32 %v1663, %v1751
      %v1753 = vpop.f32.mrf.mxu0
      %v1754 = vadd.f32 %v1665, %v1753
      %1755 = vmatmul.bf16.gmra.mxu0 %v943
      %v1756 = vpop.f32.mrf.mxu0
      %v1757 = vadd.f32 %v1668, %v1756
      %v1758 = vpop.f32.mrf.mxu0
      %v1759 = vadd.f32 %v1670, %v1758
      %1760 = vmatmul.bf16.gmra.mxu0 %v952
      %v1761 = vpop.f32.mrf.mxu0
      %v1762 = vadd.f32 %v1673, %v1761
      %v1763 = vpop.f32.mrf.mxu0
      %v1764 = vadd.f32 %v1675, %v1763
      %1765 = vmatmul.bf16.gmra.mxu0 %v961
      %v1766 = vpop.f32.mrf.mxu0
      %v1767 = vadd.f32 %v1678, %v1766
      %v1768 = vpop.f32.mrf.mxu0
      %v1769 = vadd.f32 %v1680, %v1768
      %1770 = vmatmul.bf16.gmra.mxu0 %v970
      %v1771 = vpop.f32.mrf.mxu0
      %v1772 = vadd.f32 %v1683, %v1771
      %v1773 = vpop.f32.mrf.mxu0
      %v1774 = vadd.f32 %v1685, %v1773
      %1775 = vmatmul.bf16.gmra.mxu0 %v979
      %v1776 = vpop.f32.mrf.mxu0
      %v1777 = vadd.f32 %v1688, %v1776
      %v1778 = vpop.f32.mrf.mxu0
      %v1779 = vadd.f32 %v1690, %v1778
      %1780 = vmatmul.bf16.gmra.mxu0 %v988
      %v1781 = vpop.f32.mrf.mxu0
      %v1782 = vadd.f32 %v1693, %v1781
      %v1783 = vpop.f32.mrf.mxu0
      %v1784 = vadd.f32 %v1695, %v1783
      %1785 = vmatmul.bf16.gmra.mxu0 %v997
      %v1786 = vpop.f32.mrf.mxu0
      %v1787 = vadd.f32 %v1698, %v1786
      %v1788 = vpop.f32.mrf.mxu0
      %v1789 = vadd.f32 %v1700, %v1788
      %1790 = vmatmul.bf16.gmra.mxu0 %v1006
      %v1791 = vpop.f32.mrf.mxu0
      %v1792 = vadd.f32 %v1703, %v1791
      %v1793 = vpop.f32.mrf.mxu0
      %v1794 = vadd.f32 %v1705, %v1793
      %1795 = vmatmul.bf16.gmra.mxu0 %v1015
      %v1796 = vpop.f32.mrf.mxu0
      %v1797 = vadd.f32 %v1708, %v1796
      %v1798 = vpop.f32.mrf.mxu0
      %v1799 = vadd.f32 %v1710, %v1798
      %1800 = vmatmul.bf16.gmra.mxu0 %v1024
      %v1801 = vpop.f32.mrf.mxu0
      %v1802 = vadd.f32 %v1713, %v1801
      %v1803 = vpop.f32.mrf.mxu0
      %v1804 = vadd.f32 %v1715, %v1803
      %1805 = vmatmul.bf16.gmra.mxu0 %v1033
      %v1806 = vpop.f32.mrf.mxu0
      %v1807 = vadd.f32 %v1718, %v1806
      %v1808 = vpop.f32.mrf.mxu0
      %v1809 = vadd.f32 %v1720, %v1808
      %1810 = vmatmul.bf16.gmra.mxu0 %v1042
      %v1811 = vpop.f32.mrf.mxu0
      %v1812 = vadd.f32 %v1723, %v1811
      %v1813 = vpop.f32.mrf.mxu0
      %v1814 = vadd.f32 %v1725, %v1813
      %1815 = vmatmul.bf16.gmra.mxu0 %v1051
      %v1816 = vpop.f32.mrf.mxu0
      %v1817 = vadd.f32 %v1728, %v1816
      %v1818 = vpop.f32.mrf.mxu0
      %v1819 = vadd.f32 %v1730, %v1818
      %1820 = vmatmul.bf16.gmra.mxu0 %v1060
      %v1821 = vpop.f32.mrf.mxu0
      %v1822 = vadd.f32 %v1733, %v1821
      %v1823 = vpop.f32.mrf.mxu0
      %v1824 = vadd.f32 %v1735, %v1823
      %1825 = vmatmul.bf16.gmra.mxu0 %v1069
      %v1826 = vpop.f32.mrf.mxu0
      %v1827 = vadd.f32 %v1738, %v1826
      %v1828 = vpop.f32.mrf.mxu0
      %v1829 = vadd.f32 %v1740, %v1828
      %1830 = vdwg.mxu0
      %1831 = vmatpush.bf16.msra.mxu0 %v1532
      %1832 = vmatpush.bf16.msra.mxu0 %v1531
      %1833 = vmatpush.bf16.msra.mxu0 %v1530
      %1834 = vmatpush.bf16.msra.mxu0 %v1529
      %1835 = vmatpush.bf16.msra.mxu0 %v1528
      %1836 = vmatpush.bf16.msra.mxu0 %v1527
      %1837 = vmatpush.bf16.msra.mxu0 %v1526
      %1838 = vmatpush.bf16.msra.mxu0 %v1525
      %1839 = vmatmul.bf16.gmra.mxu0 %v935
      %v1840 = vpop.f32.mrf.mxu0
      %v1841 = vadd.f32 %v1752, %v1840
      %v1842 = vpop.f32.mrf.mxu0
      %v1843 = vadd.f32 %v1754, %v1842
      %1844 = vmatmul.bf16.gmra.mxu0 %v944
      %v1845 = vpop.f32.mrf.mxu0
      %v1846 = vadd.f32 %v1757, %v1845
      %v1847 = vpop.f32.mrf.mxu0
      %v1848 = vadd.f32 %v1759, %v1847
      %1849 = vmatmul.bf16.gmra.mxu0 %v953
      %v1850 = vpop.f32.mrf.mxu0
      %v1851 = vadd.f32 %v1762, %v1850
      %v1852 = vpop.f32.mrf.mxu0
      %v1853 = vadd.f32 %v1764, %v1852
      %1854 = vmatmul.bf16.gmra.mxu0 %v962
      %v1855 = vpop.f32.mrf.mxu0
      %v1856 = vadd.f32 %v1767, %v1855
      %v1857 = vpop.f32.mrf.mxu0
      %v1858 = vadd.f32 %v1769, %v1857
      %1859 = vmatmul.bf16.gmra.mxu0 %v971
      %v1860 = vpop.f32.mrf.mxu0
      %v1861 = vadd.f32 %v1772, %v1860
      %v1862 = vpop.f32.mrf.mxu0
      %v1863 = vadd.f32 %v1774, %v1862
      %1864 = vmatmul.bf16.gmra.mxu0 %v980
      %v1865 = vpop.f32.mrf.mxu0
      %v1866 = vadd.f32 %v1777, %v1865
      %v1867 = vpop.f32.mrf.mxu0
      %v1868 = vadd.f32 %v1779, %v1867
      %1869 = vmatmul.bf16.gmra.mxu0 %v989
      %v1870 = vpop.f32.mrf.mxu0
      %v1871 = vadd.f32 %v1782, %v1870
      %v1872 = vpop.f32.mrf.mxu0
      %v1873 = vadd.f32 %v1784, %v1872
      %1874 = vmatmul.bf16.gmra.mxu0 %v998
      %v1875 = vpop.f32.mrf.mxu0
      %v1876 = vadd.f32 %v1787, %v1875
      %v1877 = vpop.f32.mrf.mxu0
      %v1878 = vadd.f32 %v1789, %v1877
      %1879 = vmatmul.bf16.gmra.mxu0 %v1007
      %v1880 = vpop.f32.mrf.mxu0
      %v1881 = vadd.f32 %v1792, %v1880
      %v1882 = vpop.f32.mrf.mxu0
      %v1883 = vadd.f32 %v1794, %v1882
      %1884 = vmatmul.bf16.gmra.mxu0 %v1016
      %v1885 = vpop.f32.mrf.mxu0
      %v1886 = vadd.f32 %v1797, %v1885
      %v1887 = vpop.f32.mrf.mxu0
      %v1888 = vadd.f32 %v1799, %v1887
      %1889 = vmatmul.bf16.gmra.mxu0 %v1025
      %v1890 = vpop.f32.mrf.mxu0
      %v1891 = vadd.f32 %v1802, %v1890
      %v1892 = vpop.f32.mrf.mxu0
      %v1893 = vadd.f32 %v1804, %v1892
      %1894 = vmatmul.bf16.gmra.mxu0 %v1034
      %v1895 = vpop.f32.mrf.mxu0
      %v1896 = vadd.f32 %v1807, %v1895
      %v1897 = vpop.f32.mrf.mxu0
      %v1898 = vadd.f32 %v1809, %v1897
      %1899 = vmatmul.bf16.gmra.mxu0 %v1043
      %v1900 = vpop.f32.mrf.mxu0
      %v1901 = vadd.f32 %v1812, %v1900
      %v1902 = vpop.f32.mrf.mxu0
      %v1903 = vadd.f32 %v1814, %v1902
      %1904 = vmatmul.bf16.gmra.mxu0 %v1052
      %v1905 = vpop.f32.mrf.mxu0
      %v1906 = vadd.f32 %v1817, %v1905
      %v1907 = vpop.f32.mrf.mxu0
      %v1908 = vadd.f32 %v1819, %v1907
      %1909 = vmatmul.bf16.gmra.mxu0 %v1061
      %v1910 = vpop.f32.mrf.mxu0
      %v1911 = vadd.f32 %v1822, %v1910
      %v1912 = vpop.f32.mrf.mxu0
      %v1913 = vadd.f32 %v1824, %v1912
      %1914 = vmatmul.bf16.gmra.mxu0 %v1070
      %v1915 = vpop.f32.mrf.mxu0
      %v1916 = vadd.f32 %v1827, %v1915
      %v1917 = vpop.f32.mrf.mxu0
      %v1918 = vadd.f32 %v1829, %v1917
      %1919 = vdwg.mxu0
      %1920 = vmatpush.bf16.msra.mxu0 %v1540
      %1921 = vmatpush.bf16.msra.mxu0 %v1539
      %1922 = vmatpush.bf16.msra.mxu0 %v1538
      %1923 = vmatpush.bf16.msra.mxu0 %v1537
      %1924 = vmatpush.bf16.msra.mxu0 %v1536
      %1925 = vmatpush.bf16.msra.mxu0 %v1535
      %1926 = vmatpush.bf16.msra.mxu0 %v1534
      %1927 = vmatpush.bf16.msra.mxu0 %v1533
      %1928 = vmatmul.bf16.gmra.mxu0 %v936
      %v1929 = vpop.f32.mrf.mxu0
      %v1930 = vadd.f32 %v1841, %v1929
      %v1931 = vpop.f32.mrf.mxu0
      %v1932 = vadd.f32 %v1843, %v1931
      %1933 = vmatmul.bf16.gmra.mxu0 %v945
      %v1934 = vpop.f32.mrf.mxu0
      %v1935 = vadd.f32 %v1846, %v1934
      %v1936 = vpop.f32.mrf.mxu0
      %v1937 = vadd.f32 %v1848, %v1936
      %1938 = vmatmul.bf16.gmra.mxu0 %v954
      %v1939 = vpop.f32.mrf.mxu0
      %v1940 = vadd.f32 %v1851, %v1939
      %v1941 = vpop.f32.mrf.mxu0
      %v1942 = vadd.f32 %v1853, %v1941
      %1943 = vmatmul.bf16.gmra.mxu0 %v963
      %v1944 = vpop.f32.mrf.mxu0
      %v1945 = vadd.f32 %v1856, %v1944
      %v1946 = vpop.f32.mrf.mxu0
      %v1947 = vadd.f32 %v1858, %v1946
      %1948 = vmatmul.bf16.gmra.mxu0 %v972
      %v1949 = vpop.f32.mrf.mxu0
      %v1950 = vadd.f32 %v1861, %v1949
      %v1951 = vpop.f32.mrf.mxu0
      %v1952 = vadd.f32 %v1863, %v1951
      %1953 = vmatmul.bf16.gmra.mxu0 %v981
      %v1954 = vpop.f32.mrf.mxu0
      %v1955 = vadd.f32 %v1866, %v1954
      %v1956 = vpop.f32.mrf.mxu0
      %v1957 = vadd.f32 %v1868, %v1956
      %1958 = vmatmul.bf16.gmra.mxu0 %v990
      %v1959 = vpop.f32.mrf.mxu0
      %v1960 = vadd.f32 %v1871, %v1959
      %v1961 = vpop.f32.mrf.mxu0
      %v1962 = vadd.f32 %v1873, %v1961
      %1963 = vmatmul.bf16.gmra.mxu0 %v999
      %v1964 = vpop.f32.mrf.mxu0
      %v1965 = vadd.f32 %v1876, %v1964
      %v1966 = vpop.f32.mrf.mxu0
      %v1967 = vadd.f32 %v1878, %v1966
      %1968 = vmatmul.bf16.gmra.mxu0 %v1008
      %v1969 = vpop.f32.mrf.mxu0
      %v1970 = vadd.f32 %v1881, %v1969
      %v1971 = vpop.f32.mrf.mxu0
      %v1972 = vadd.f32 %v1883, %v1971
      %1973 = vmatmul.bf16.gmra.mxu0 %v1017
      %v1974 = vpop.f32.mrf.mxu0
      %v1975 = vadd.f32 %v1886, %v1974
      %v1976 = vpop.f32.mrf.mxu0
      %v1977 = vadd.f32 %v1888, %v1976
      %1978 = vmatmul.bf16.gmra.mxu0 %v1026
      %v1979 = vpop.f32.mrf.mxu0
      %v1980 = vadd.f32 %v1891, %v1979
      %v1981 = vpop.f32.mrf.mxu0
      %v1982 = vadd.f32 %v1893, %v1981
      %1983 = vmatmul.bf16.gmra.mxu0 %v1035
      %v1984 = vpop.f32.mrf.mxu0
      %v1985 = vadd.f32 %v1896, %v1984
      %v1986 = vpop.f32.mrf.mxu0
      %v1987 = vadd.f32 %v1898, %v1986
      %1988 = vmatmul.bf16.gmra.mxu0 %v1044
      %v1989 = vpop.f32.mrf.mxu0
      %v1990 = vadd.f32 %v1901, %v1989
      %v1991 = vpop.f32.mrf.mxu0
      %v1992 = vadd.f32 %v1903, %v1991
      %1993 = vmatmul.bf16.gmra.mxu0 %v1053
      %v1994 = vpop.f32.mrf.mxu0
      %v1995 = vadd.f32 %v1906, %v1994
      %v1996 = vpop.f32.mrf.mxu0
      %v1997 = vadd.f32 %v1908, %v1996
      %1998 = vmatmul.bf16.gmra.mxu0 %v1062
      %v1999 = vpop.f32.mrf.mxu0
      %v2000 = vadd.f32 %v1911, %v1999
      %v2001 = vpop.f32.mrf.mxu0
      %v2002 = vadd.f32 %v1913, %v2001
      %2003 = vmatmul.bf16.gmra.mxu0 %v1071
      %v2004 = vpop.f32.mrf.mxu0
      %v2005 = vadd.f32 %v1916, %v2004
      %v2006 = vpop.f32.mrf.mxu0
      %v2007 = vadd.f32 %v1918, %v2006
      %2008 = vdwg.mxu0
      %2009 = vmatpush.bf16.msra.mxu0 %v1548
      %2010 = vmatpush.bf16.msra.mxu0 %v1547
      %2011 = vmatpush.bf16.msra.mxu0 %v1546
      %2012 = vmatpush.bf16.msra.mxu0 %v1545
      %2013 = vmatpush.bf16.msra.mxu0 %v1544
      %2014 = vmatpush.bf16.msra.mxu0 %v1543
      %2015 = vmatpush.bf16.msra.mxu0 %v1542
      %2016 = vmatpush.bf16.msra.mxu0 %v1541
      %2017 = vmatmul.bf16.gmra.mxu0 %v937
      %v2018 = vpop.f32.mrf.mxu0
      %v2019 = vadd.f32 %v1930, %v2018
      %v2020 = vpop.f32.mrf.mxu0
      %v2021 = vadd.f32 %v1932, %v2020
      %2022 = vmatmul.bf16.gmra.mxu0 %v946
      %v2023 = vpop.f32.mrf.mxu0
      %v2024 = vadd.f32 %v1935, %v2023
      %v2025 = vpop.f32.mrf.mxu0
      %v2026 = vadd.f32 %v1937, %v2025
      %2027 = vmatmul.bf16.gmra.mxu0 %v955
      %v2028 = vpop.f32.mrf.mxu0
      %v2029 = vadd.f32 %v1940, %v2028
      %v2030 = vpop.f32.mrf.mxu0
      %v2031 = vadd.f32 %v1942, %v2030
      %2032 = vmatmul.bf16.gmra.mxu0 %v964
      %v2033 = vpop.f32.mrf.mxu0
      %v2034 = vadd.f32 %v1945, %v2033
      %v2035 = vpop.f32.mrf.mxu0
      %v2036 = vadd.f32 %v1947, %v2035
      %2037 = vmatmul.bf16.gmra.mxu0 %v973
      %v2038 = vpop.f32.mrf.mxu0
      %v2039 = vadd.f32 %v1950, %v2038
      %v2040 = vpop.f32.mrf.mxu0
      %v2041 = vadd.f32 %v1952, %v2040
      %2042 = vmatmul.bf16.gmra.mxu0 %v982
      %v2043 = vpop.f32.mrf.mxu0
      %v2044 = vadd.f32 %v1955, %v2043
      %v2045 = vpop.f32.mrf.mxu0
      %v2046 = vadd.f32 %v1957, %v2045
      %2047 = vmatmul.bf16.gmra.mxu0 %v991
      %v2048 = vpop.f32.mrf.mxu0
      %v2049 = vadd.f32 %v1960, %v2048
      %v2050 = vpop.f32.mrf.mxu0
      %v2051 = vadd.f32 %v1962, %v2050
      %2052 = vmatmul.bf16.gmra.mxu0 %v1000
      %v2053 = vpop.f32.mrf.mxu0
      %v2054 = vadd.f32 %v1965, %v2053
      %v2055 = vpop.f32.mrf.mxu0
      %v2056 = vadd.f32 %v1967, %v2055
      %2057 = vmatmul.bf16.gmra.mxu0 %v1009
      %v2058 = vpop.f32.mrf.mxu0
      %v2059 = vadd.f32 %v1970, %v2058
      %v2060 = vpop.f32.mrf.mxu0
      %v2061 = vadd.f32 %v1972, %v2060
      %2062 = vmatmul.bf16.gmra.mxu0 %v1018
      %v2063 = vpop.f32.mrf.mxu0
      %v2064 = vadd.f32 %v1975, %v2063
      %v2065 = vpop.f32.mrf.mxu0
      %v2066 = vadd.f32 %v1977, %v2065
      %2067 = vmatmul.bf16.gmra.mxu0 %v1027
      %v2068 = vpop.f32.mrf.mxu0
      %v2069 = vadd.f32 %v1980, %v2068
      %v2070 = vpop.f32.mrf.mxu0
      %v2071 = vadd.f32 %v1982, %v2070
      %2072 = vmatmul.bf16.gmra.mxu0 %v1036
      %v2073 = vpop.f32.mrf.mxu0
      %v2074 = vadd.f32 %v1985, %v2073
      %v2075 = vpop.f32.mrf.mxu0
      %v2076 = vadd.f32 %v1987, %v2075
      %2077 = vmatmul.bf16.gmra.mxu0 %v1045
      %v2078 = vpop.f32.mrf.mxu0
      %v2079 = vadd.f32 %v1990, %v2078
      %v2080 = vpop.f32.mrf.mxu0
      %v2081 = vadd.f32 %v1992, %v2080
      %2082 = vmatmul.bf16.gmra.mxu0 %v1054
      %v2083 = vpop.f32.mrf.mxu0
      %v2084 = vadd.f32 %v1995, %v2083
      %v2085 = vpop.f32.mrf.mxu0
      %v2086 = vadd.f32 %v1997, %v2085
      %2087 = vmatmul.bf16.gmra.mxu0 %v1063
      %v2088 = vpop.f32.mrf.mxu0
      %v2089 = vadd.f32 %v2000, %v2088
      %v2090 = vpop.f32.mrf.mxu0
      %v2091 = vadd.f32 %v2002, %v2090
      %2092 = vmatmul.bf16.gmra.mxu0 %v1072
      %v2093 = vpop.f32.mrf.mxu0
      %v2094 = vadd.f32 %v2005, %v2093
      %v2095 = vpop.f32.mrf.mxu0
      %v2096 = vadd.f32 %v2007, %v2095
      %2097 = vdwg.mxu0
      %2098 = vmatpush.bf16.msra.mxu0 %v1556
      %2099 = vmatpush.bf16.msra.mxu0 %v1555
      %2100 = vmatpush.bf16.msra.mxu0 %v1554
      %2101 = vmatpush.bf16.msra.mxu0 %v1553
      %2102 = vmatpush.bf16.msra.mxu0 %v1552
      %2103 = vmatpush.bf16.msra.mxu0 %v1551
      %2104 = vmatpush.bf16.msra.mxu0 %v1550
      %2105 = vmatpush.bf16.msra.mxu0 %v1549
      %2106 = vmatmul.bf16.gmra.mxu0 %v938
      %v2107 = vpop.f32.mrf.mxu0
      %v2108 = vadd.f32 %v2019, %v2107
      %v2109 = vpop.f32.mrf.mxu0
      %v2110 = vadd.f32 %v2021, %v2109
      %2111 = vmatmul.bf16.gmra.mxu0 %v947
      %v2112 = vpop.f32.mrf.mxu0
      %v2113 = vadd.f32 %v2024, %v2112
      %v2114 = vpop.f32.mrf.mxu0
      %v2115 = vadd.f32 %v2026, %v2114
      %2116 = vmatmul.bf16.gmra.mxu0 %v956
      %v2117 = vpop.f32.mrf.mxu0
      %v2118 = vadd.f32 %v2029, %v2117
      %v2119 = vpop.f32.mrf.mxu0
      %v2120 = vadd.f32 %v2031, %v2119
      %2121 = vmatmul.bf16.gmra.mxu0 %v965
      %v2122 = vpop.f32.mrf.mxu0
      %v2123 = vadd.f32 %v2034, %v2122
      %v2124 = vpop.f32.mrf.mxu0
      %v2125 = vadd.f32 %v2036, %v2124
      %2126 = vmatmul.bf16.gmra.mxu0 %v974
      %v2127 = vpop.f32.mrf.mxu0
      %v2128 = vadd.f32 %v2039, %v2127
      %v2129 = vpop.f32.mrf.mxu0
      %v2130 = vadd.f32 %v2041, %v2129
      %2131 = vmatmul.bf16.gmra.mxu0 %v983
      %v2132 = vpop.f32.mrf.mxu0
      %v2133 = vadd.f32 %v2044, %v2132
      %v2134 = vpop.f32.mrf.mxu0
      %v2135 = vadd.f32 %v2046, %v2134
      %2136 = vmatmul.bf16.gmra.mxu0 %v992
      %v2137 = vpop.f32.mrf.mxu0
      %v2138 = vadd.f32 %v2049, %v2137
      %v2139 = vpop.f32.mrf.mxu0
      %v2140 = vadd.f32 %v2051, %v2139
      %2141 = vmatmul.bf16.gmra.mxu0 %v1001
      %v2142 = vpop.f32.mrf.mxu0
      %v2143 = vadd.f32 %v2054, %v2142
      %v2144 = vpop.f32.mrf.mxu0
      %v2145 = vadd.f32 %v2056, %v2144
      %2146 = vmatmul.bf16.gmra.mxu0 %v1010
      %v2147 = vpop.f32.mrf.mxu0
      %v2148 = vadd.f32 %v2059, %v2147
      %v2149 = vpop.f32.mrf.mxu0
      %v2150 = vadd.f32 %v2061, %v2149
      %2151 = vmatmul.bf16.gmra.mxu0 %v1019
      %v2152 = vpop.f32.mrf.mxu0
      %v2153 = vadd.f32 %v2064, %v2152
      %v2154 = vpop.f32.mrf.mxu0
      %v2155 = vadd.f32 %v2066, %v2154
      %2156 = vmatmul.bf16.gmra.mxu0 %v1028
      %v2157 = vpop.f32.mrf.mxu0
      %v2158 = vadd.f32 %v2069, %v2157
      %v2159 = vpop.f32.mrf.mxu0
      %v2160 = vadd.f32 %v2071, %v2159
      %2161 = vmatmul.bf16.gmra.mxu0 %v1037
      %v2162 = vpop.f32.mrf.mxu0
      %v2163 = vadd.f32 %v2074, %v2162
      %v2164 = vpop.f32.mrf.mxu0
      %v2165 = vadd.f32 %v2076, %v2164
      %2166 = vmatmul.bf16.gmra.mxu0 %v1046
      %v2167 = vpop.f32.mrf.mxu0
      %v2168 = vadd.f32 %v2079, %v2167
      %v2169 = vpop.f32.mrf.mxu0
      %v2170 = vadd.f32 %v2081, %v2169
      %2171 = vmatmul.bf16.gmra.mxu0 %v1055
      %v2172 = vpop.f32.mrf.mxu0
      %v2173 = vadd.f32 %v2084, %v2172
      %v2174 = vpop.f32.mrf.mxu0
      %v2175 = vadd.f32 %v2086, %v2174
      %2176 = vmatmul.bf16.gmra.mxu0 %v1064
      %v2177 = vpop.f32.mrf.mxu0
      %v2178 = vadd.f32 %v2089, %v2177
      %v2179 = vpop.f32.mrf.mxu0
      %v2180 = vadd.f32 %v2091, %v2179
      %2181 = vmatmul.bf16.gmra.mxu0 %v1073
      %v2182 = vpop.f32.mrf.mxu0
      %v2183 = vadd.f32 %v2094, %v2182
      %v2184 = vpop.f32.mrf.mxu0
      %v2185 = vadd.f32 %v2096, %v2184
      %2186 = vdwg.mxu0
      %2187 = vmatpush.bf16.msra.mxu0 %v1564
      %2188 = vmatpush.bf16.msra.mxu0 %v1563
      %2189 = vmatpush.bf16.msra.mxu0 %v1562
      %2190 = vmatpush.bf16.msra.mxu0 %v1561
      %2191 = vmatpush.bf16.msra.mxu0 %v1560
      %2192 = vmatpush.bf16.msra.mxu0 %v1559
      %2193 = vmatpush.bf16.msra.mxu0 %v1558
      %2194 = vmatpush.bf16.msra.mxu0 %v1557
      %2195 = vmatmul.bf16.gmra.mxu0 %v939
      %v2196 = vpop.f32.mrf.mxu0
      %v2197 = vadd.f32 %v2108, %v2196
      %v2198 = vpop.f32.mrf.mxu0
      %v2199 = vadd.f32 %v2110, %v2198
      %2200 = vmatmul.bf16.gmra.mxu0 %v948
      %v2201 = vpop.f32.mrf.mxu0
      %v2202 = vadd.f32 %v2113, %v2201
      %v2203 = vpop.f32.mrf.mxu0
      %v2204 = vadd.f32 %v2115, %v2203
      %2205 = vmatmul.bf16.gmra.mxu0 %v957
      %v2206 = vpop.f32.mrf.mxu0
      %v2207 = vadd.f32 %v2118, %v2206
      %v2208 = vpop.f32.mrf.mxu0
      %v2209 = vadd.f32 %v2120, %v2208
      %2210 = vmatmul.bf16.gmra.mxu0 %v966
      %v2211 = vpop.f32.mrf.mxu0
      %v2212 = vadd.f32 %v2123, %v2211
      %v2213 = vpop.f32.mrf.mxu0
      %v2214 = vadd.f32 %v2125, %v2213
      %2215 = vmatmul.bf16.gmra.mxu0 %v975
      %v2216 = vpop.f32.mrf.mxu0
      %v2217 = vadd.f32 %v2128, %v2216
      %v2218 = vpop.f32.mrf.mxu0
      %v2219 = vadd.f32 %v2130, %v2218
      %2220 = vmatmul.bf16.gmra.mxu0 %v984
      %v2221 = vpop.f32.mrf.mxu0
      %v2222 = vadd.f32 %v2133, %v2221
      %v2223 = vpop.f32.mrf.mxu0
      %v2224 = vadd.f32 %v2135, %v2223
      %2225 = vmatmul.bf16.gmra.mxu0 %v993
      %v2226 = vpop.f32.mrf.mxu0
      %v2227 = vadd.f32 %v2138, %v2226
      %v2228 = vpop.f32.mrf.mxu0
      %v2229 = vadd.f32 %v2140, %v2228
      %2230 = vmatmul.bf16.gmra.mxu0 %v1002
      %v2231 = vpop.f32.mrf.mxu0
      %v2232 = vadd.f32 %v2143, %v2231
      %v2233 = vpop.f32.mrf.mxu0
      %v2234 = vadd.f32 %v2145, %v2233
      %2235 = vmatmul.bf16.gmra.mxu0 %v1011
      %v2236 = vpop.f32.mrf.mxu0
      %v2237 = vadd.f32 %v2148, %v2236
      %v2238 = vpop.f32.mrf.mxu0
      %v2239 = vadd.f32 %v2150, %v2238
      %2240 = vmatmul.bf16.gmra.mxu0 %v1020
      %v2241 = vpop.f32.mrf.mxu0
      %v2242 = vadd.f32 %v2153, %v2241
      %v2243 = vpop.f32.mrf.mxu0
      %v2244 = vadd.f32 %v2155, %v2243
      %2245 = vmatmul.bf16.gmra.mxu0 %v1029
      %v2246 = vpop.f32.mrf.mxu0
      %v2247 = vadd.f32 %v2158, %v2246
      %v2248 = vpop.f32.mrf.mxu0
      %v2249 = vadd.f32 %v2160, %v2248
      %2250 = vmatmul.bf16.gmra.mxu0 %v1038
      %v2251 = vpop.f32.mrf.mxu0
      %v2252 = vadd.f32 %v2163, %v2251
      %v2253 = vpop.f32.mrf.mxu0
      %v2254 = vadd.f32 %v2165, %v2253
      %2255 = vmatmul.bf16.gmra.mxu0 %v1047
      %v2256 = vpop.f32.mrf.mxu0
      %v2257 = vadd.f32 %v2168, %v2256
      %v2258 = vpop.f32.mrf.mxu0
      %v2259 = vadd.f32 %v2170, %v2258
      %2260 = vmatmul.bf16.gmra.mxu0 %v1056
      %v2261 = vpop.f32.mrf.mxu0
      %v2262 = vadd.f32 %v2173, %v2261
      %v2263 = vpop.f32.mrf.mxu0
      %v2264 = vadd.f32 %v2175, %v2263
      %2265 = vmatmul.bf16.gmra.mxu0 %v1065
      %v2266 = vpop.f32.mrf.mxu0
      %v2267 = vadd.f32 %v2178, %v2266
      %v2268 = vpop.f32.mrf.mxu0
      %v2269 = vadd.f32 %v2180, %v2268
      %2270 = vmatmul.bf16.gmra.mxu0 %v1074
      %v2271 = vpop.f32.mrf.mxu0
      %v2272 = vadd.f32 %v2183, %v2271
      %v2273 = vpop.f32.mrf.mxu0
      %v2274 = vadd.f32 %v2185, %v2273
      %2275 = vdwg.mxu0
      %2276 = vmatpush.bf16.msra.mxu0 %v1572
      %2277 = vmatpush.bf16.msra.mxu0 %v1571
      %2278 = vmatpush.bf16.msra.mxu0 %v1570
      %2279 = vmatpush.bf16.msra.mxu0 %v1569
      %2280 = vmatpush.bf16.msra.mxu0 %v1568
      %2281 = vmatpush.bf16.msra.mxu0 %v1567
      %2282 = vmatpush.bf16.msra.mxu0 %v1566
      %2283 = vmatpush.bf16.msra.mxu0 %v1565
      %2284 = vmatmul.bf16.gmra.mxu0 %v940
      %v2285 = vpop.f32.mrf.mxu0
      %v2286 = vadd.f32 %v2197, %v2285
      %v2287 = vpop.f32.mrf.mxu0
      %v2288 = vadd.f32 %v2199, %v2287
      %2289 = vmatmul.bf16.gmra.mxu0 %v949
      %v2290 = vpop.f32.mrf.mxu0
      %v2291 = vadd.f32 %v2202, %v2290
      %v2292 = vpop.f32.mrf.mxu0
      %v2293 = vadd.f32 %v2204, %v2292
      %2294 = vmatmul.bf16.gmra.mxu0 %v958
      %v2295 = vpop.f32.mrf.mxu0
      %v2296 = vadd.f32 %v2207, %v2295
      %v2297 = vpop.f32.mrf.mxu0
      %v2298 = vadd.f32 %v2209, %v2297
      %2299 = vmatmul.bf16.gmra.mxu0 %v967
      %v2300 = vpop.f32.mrf.mxu0
      %v2301 = vadd.f32 %v2212, %v2300
      %v2302 = vpop.f32.mrf.mxu0
      %v2303 = vadd.f32 %v2214, %v2302
      %2304 = vmatmul.bf16.gmra.mxu0 %v976
      %v2305 = vpop.f32.mrf.mxu0
      %v2306 = vadd.f32 %v2217, %v2305
      %v2307 = vpop.f32.mrf.mxu0
      %v2308 = vadd.f32 %v2219, %v2307
      %2309 = vmatmul.bf16.gmra.mxu0 %v985
      %v2310 = vpop.f32.mrf.mxu0
      %v2311 = vadd.f32 %v2222, %v2310
      %v2312 = vpop.f32.mrf.mxu0
      %v2313 = vadd.f32 %v2224, %v2312
      %2314 = vmatmul.bf16.gmra.mxu0 %v994
      %v2315 = vpop.f32.mrf.mxu0
      %v2316 = vadd.f32 %v2227, %v2315
      %v2317 = vpop.f32.mrf.mxu0
      %v2318 = vadd.f32 %v2229, %v2317
      %2319 = vmatmul.bf16.gmra.mxu0 %v1003
      %v2320 = vpop.f32.mrf.mxu0
      %v2321 = vadd.f32 %v2232, %v2320
      %v2322 = vpop.f32.mrf.mxu0
      %v2323 = vadd.f32 %v2234, %v2322
      %2324 = vmatmul.bf16.gmra.mxu0 %v1012
      %v2325 = vpop.f32.mrf.mxu0
      %v2326 = vadd.f32 %v2237, %v2325
      %v2327 = vpop.f32.mrf.mxu0
      %v2328 = vadd.f32 %v2239, %v2327
      %2329 = vmatmul.bf16.gmra.mxu0 %v1021
      %v2330 = vpop.f32.mrf.mxu0
      %v2331 = vadd.f32 %v2242, %v2330
      %v2332 = vpop.f32.mrf.mxu0
      %v2333 = vadd.f32 %v2244, %v2332
      %2334 = vmatmul.bf16.gmra.mxu0 %v1030
      %v2335 = vpop.f32.mrf.mxu0
      %v2336 = vadd.f32 %v2247, %v2335
      %v2337 = vpop.f32.mrf.mxu0
      %v2338 = vadd.f32 %v2249, %v2337
      %2339 = vmatmul.bf16.gmra.mxu0 %v1039
      %v2340 = vpop.f32.mrf.mxu0
      %v2341 = vadd.f32 %v2252, %v2340
      %v2342 = vpop.f32.mrf.mxu0
      %v2343 = vadd.f32 %v2254, %v2342
      %2344 = vmatmul.bf16.gmra.mxu0 %v1048
      %v2345 = vpop.f32.mrf.mxu0
      %v2346 = vadd.f32 %v2257, %v2345
      %v2347 = vpop.f32.mrf.mxu0
      %v2348 = vadd.f32 %v2259, %v2347
      %2349 = vmatmul.bf16.gmra.mxu0 %v1057
      %v2350 = vpop.f32.mrf.mxu0
      %v2351 = vadd.f32 %v2262, %v2350
      %v2352 = vpop.f32.mrf.mxu0
      %v2353 = vadd.f32 %v2264, %v2352
      %2354 = vmatmul.bf16.gmra.mxu0 %v1066
      %v2355 = vpop.f32.mrf.mxu0
      %v2356 = vadd.f32 %v2267, %v2355
      %v2357 = vpop.f32.mrf.mxu0
      %v2358 = vadd.f32 %v2269, %v2357
      %2359 = vmatmul.bf16.gmra.mxu0 %v1075
      %v2360 = vpop.f32.mrf.mxu0
      %v2361 = vadd.f32 %v2272, %v2360
      %v2362 = vpop.f32.mrf.mxu0
      %v2363 = vadd.f32 %v2274, %v2362
      %2364 = vdwg.mxu0
      %2365 = vmatpush.bf16.msra.mxu0 %v1580
      %2366 = vmatpush.bf16.msra.mxu0 %v1579
      %2367 = vmatpush.bf16.msra.mxu0 %v1578
      %2368 = vmatpush.bf16.msra.mxu0 %v1577
      %2369 = vmatpush.bf16.msra.mxu0 %v1576
      %2370 = vmatpush.bf16.msra.mxu0 %v1575
      %2371 = vmatpush.bf16.msra.mxu0 %v1574
      %2372 = vmatpush.bf16.msra.mxu0 %v1573
      %2373 = vmatmul.bf16.gmra.mxu0 %v941
      %v2374 = vpop.f32.mrf.mxu0
      %v2375 = vadd.f32 %v2286, %v2374
      %v2376 = vpop.f32.mrf.mxu0
      %v2377 = vadd.f32 %v2288, %v2376
      %2378 = vmatmul.bf16.gmra.mxu0 %v950
      %v2379 = vpop.f32.mrf.mxu0
      %v2380 = vadd.f32 %v2291, %v2379
      %v2381 = vpop.f32.mrf.mxu0
      %v2382 = vadd.f32 %v2293, %v2381
      %2383 = vmatmul.bf16.gmra.mxu0 %v959
      %v2384 = vpop.f32.mrf.mxu0
      %v2385 = vadd.f32 %v2296, %v2384
      %v2386 = vpop.f32.mrf.mxu0
      %v2387 = vadd.f32 %v2298, %v2386
      %2388 = vmatmul.bf16.gmra.mxu0 %v968
      %v2389 = vpop.f32.mrf.mxu0
      %v2390 = vadd.f32 %v2301, %v2389
      %v2391 = vpop.f32.mrf.mxu0
      %v2392 = vadd.f32 %v2303, %v2391
      %2393 = vmatmul.bf16.gmra.mxu0 %v977
      %v2394 = vpop.f32.mrf.mxu0
      %v2395 = vadd.f32 %v2306, %v2394
      %v2396 = vpop.f32.mrf.mxu0
      %v2397 = vadd.f32 %v2308, %v2396
      %2398 = vmatmul.bf16.gmra.mxu0 %v986
      %v2399 = vpop.f32.mrf.mxu0
      %v2400 = vadd.f32 %v2311, %v2399
      %v2401 = vpop.f32.mrf.mxu0
      %v2402 = vadd.f32 %v2313, %v2401
      %2403 = vmatmul.bf16.gmra.mxu0 %v995
      %v2404 = vpop.f32.mrf.mxu0
      %v2405 = vadd.f32 %v2316, %v2404
      %v2406 = vpop.f32.mrf.mxu0
      %v2407 = vadd.f32 %v2318, %v2406
      %2408 = vmatmul.bf16.gmra.mxu0 %v1004
      %v2409 = vpop.f32.mrf.mxu0
      %v2410 = vadd.f32 %v2321, %v2409
      %v2411 = vpop.f32.mrf.mxu0
      %v2412 = vadd.f32 %v2323, %v2411
      %2413 = vmatmul.bf16.gmra.mxu0 %v1013
      %v2414 = vpop.f32.mrf.mxu0
      %v2415 = vadd.f32 %v2326, %v2414
      %v2416 = vpop.f32.mrf.mxu0
      %v2417 = vadd.f32 %v2328, %v2416
      %2418 = vmatmul.bf16.gmra.mxu0 %v1022
      %v2419 = vpop.f32.mrf.mxu0
      %v2420 = vadd.f32 %v2331, %v2419
      %v2421 = vpop.f32.mrf.mxu0
      %v2422 = vadd.f32 %v2333, %v2421
      %2423 = vmatmul.bf16.gmra.mxu0 %v1031
      %v2424 = vpop.f32.mrf.mxu0
      %v2425 = vadd.f32 %v2336, %v2424
      %v2426 = vpop.f32.mrf.mxu0
      %v2427 = vadd.f32 %v2338, %v2426
      %2428 = vmatmul.bf16.gmra.mxu0 %v1040
      %v2429 = vpop.f32.mrf.mxu0
      %v2430 = vadd.f32 %v2341, %v2429
      %v2431 = vpop.f32.mrf.mxu0
      %v2432 = vadd.f32 %v2343, %v2431
      %2433 = vmatmul.bf16.gmra.mxu0 %v1049
      %v2434 = vpop.f32.mrf.mxu0
      %v2435 = vadd.f32 %v2346, %v2434
      %v2436 = vpop.f32.mrf.mxu0
      %v2437 = vadd.f32 %v2348, %v2436
      %2438 = vmatmul.bf16.gmra.mxu0 %v1058
      %v2439 = vpop.f32.mrf.mxu0
      %v2440 = vadd.f32 %v2351, %v2439
      %v2441 = vpop.f32.mrf.mxu0
      %v2442 = vadd.f32 %v2353, %v2441
      %2443 = vmatmul.bf16.gmra.mxu0 %v1067
      %v2444 = vpop.f32.mrf.mxu0
      %v2445 = vadd.f32 %v2356, %v2444
      %v2446 = vpop.f32.mrf.mxu0
      %v2447 = vadd.f32 %v2358, %v2446
      %2448 = vmatmul.bf16.gmra.mxu0 %v1076
      %v2449 = vpop.f32.mrf.mxu0
      %v2450 = vadd.f32 %v2361, %v2449
      %v2451 = vpop.f32.mrf.mxu0
      %v2452 = vadd.f32 %v2363, %v2451
      %2453 = vdwg.mxu0
      %v2454 = vmax.f32 %v2375, 0.0
      %v2455 = vmax.f32 %v2377, 0.0
      %v2456 = vmax.f32 %v2380, 0.0
      %v2457 = vmax.f32 %v2382, 0.0
      %v2458 = vmax.f32 %v2385, 0.0
      %v2459 = vmax.f32 %v2387, 0.0
      %v2460 = vmax.f32 %v2390, 0.0
      %v2461 = vmax.f32 %v2392, 0.0
      %v2462 = vmax.f32 %v2395, 0.0
      %v2463 = vmax.f32 %v2397, 0.0
      %v2464 = vmax.f32 %v2400, 0.0
      %v2465 = vmax.f32 %v2402, 0.0
      %v2466 = vmax.f32 %v2405, 0.0
      %v2467 = vmax.f32 %v2407, 0.0
      %v2468 = vmax.f32 %v2410, 0.0
      %v2469 = vmax.f32 %v2412, 0.0
      %v2470 = vmax.f32 %v2415, 0.0
      %v2471 = vmax.f32 %v2417, 0.0
      %v2472 = vmax.f32 %v2420, 0.0
      %v2473 = vmax.f32 %v2422, 0.0
      %v2474 = vmax.f32 %v2425, 0.0
      %v2475 = vmax.f32 %v2427, 0.0
      %v2476 = vmax.f32 %v2430, 0.0
      %v2477 = vmax.f32 %v2432, 0.0
      %v2478 = vmax.f32 %v2435, 0.0
      %v2479 = vmax.f32 %v2437, 0.0
      %v2480 = vmax.f32 %v2440, 0.0
      %v2481 = vmax.f32 %v2442, 0.0
      %v2482 = vmax.f32 %v2445, 0.0
      %v2483 = vmax.f32 %v2447, 0.0
      %v2484 = vmax.f32 %v2450, 0.0
      %v2485 = vmax.f32 %v2452, 0.0
      %v2486 = vpack.c.bf16 %v2454, %v2454
      %v2487 = vpack.c.bf16 %v2455, %v2455
      %v2488 = vpack.c.bf16 %v2456, %v2456
      %v2489 = vpack.c.bf16 %v2457, %v2457
      %v2490 = vpack.c.bf16 %v2458, %v2458
      %v2491 = vpack.c.bf16 %v2459, %v2459
      %v2492 = vpack.c.bf16 %v2460, %v2460
      %v2493 = vpack.c.bf16 %v2461, %v2461
      %v2494 = vpack.c.bf16 %v2462, %v2462
      %v2495 = vpack.c.bf16 %v2463, %v2463
      %v2496 = vpack.c.bf16 %v2464, %v2464
      %v2497 = vpack.c.bf16 %v2465, %v2465
      %v2498 = vpack.c.bf16 %v2466, %v2466
      %v2499 = vpack.c.bf16 %v2467, %v2467
      %v2500 = vpack.c.bf16 %v2468, %v2468
      %v2501 = vpack.c.bf16 %v2469, %v2469
      %v2502 = vpack.c.bf16 %v2470, %v2470
      %v2503 = vpack.c.bf16 %v2471, %v2471
      %v2504 = vpack.c.bf16 %v2472, %v2472
      %v2505 = vpack.c.bf16 %v2473, %v2473
      %v2506 = vpack.c.bf16 %v2474, %v2474
      %v2507 = vpack.c.bf16 %v2475, %v2475
      %v2508 = vpack.c.bf16 %v2476, %v2476
      %v2509 = vpack.c.bf16 %v2477, %v2477
      %v2510 = vpack.c.bf16 %v2478, %v2478
      %v2511 = vpack.c.bf16 %v2479, %v2479
      %v2512 = vpack.c.bf16 %v2480, %v2480
      %v2513 = vpack.c.bf16 %v2481, %v2481
      %v2514 = vpack.c.bf16 %v2482, %v2482
      %v2515 = vpack.c.bf16 %v2483, %v2483
      %v2516 = vpack.c.bf16 %v2484, %v2484
      %v2517 = vpack.c.bf16 %v2485, %v2485
      %2518 = vst [vmem:[%s175] sm:$0xf] %v2486
      %2519 = vst [vmem:[%s175 + $0x4] sm:$0xf] %v2487
      %2520 = vst [vmem:[%s175 + $0x8] sm:$0xf] %v2488
      %2521 = vst [vmem:[%s175 + $0xc] sm:$0xf] %v2489
      %2522 = vst [vmem:[%s175 + $0x10] sm:$0xf] %v2490
      %2523 = vst [vmem:[%s175 + $0x14] sm:$0xf] %v2491
      %2524 = vst [vmem:[%s175 + $0x18] sm:$0xf] %v2492
      %2525 = vst [vmem:[%s175 + $0x1c] sm:$0xf] %v2493
      %2526 = vst [vmem:[%s175 + $0x20] sm:$0xf] %v2494
      %2527 = vst [vmem:[%s175 + $0x24] sm:$0xf] %v2495
      %2528 = vst [vmem:[%s175 + $0x28] sm:$0xf] %v2496
      %2529 = vst [vmem:[%s175 + $0x2c] sm:$0xf] %v2497
      %2530 = vst [vmem:[%s175 + $0x30] sm:$0xf] %v2498
      %2531 = vst [vmem:[%s175 + $0x34] sm:$0xf] %v2499
      %2532 = vst [vmem:[%s175 + $0x38] sm:$0xf] %v2500
      %2533 = vst [vmem:[%s175 + $0x3c] sm:$0xf] %v2501
      %2534 = vst [vmem:[%s175 + $0x40] sm:$0xf] %v2502
      %2535 = vst [vmem:[%s175 + $0x44] sm:$0xf] %v2503
      %2536 = vst [vmem:[%s175 + $0x48] sm:$0xf] %v2504
      %2537 = vst [vmem:[%s175 + $0x4c] sm:$0xf] %v2505
      %2538 = vst [vmem:[%s175 + $0x50] sm:$0xf] %v2506
      %2539 = vst [vmem:[%s175 + $0x54] sm:$0xf] %v2507
      %2540 = vst [vmem:[%s175 + $0x58] sm:$0xf] %v2508
      %2541 = vst [vmem:[%s175 + $0x5c] sm:$0xf] %v2509
      %2542 = vst [vmem:[%s175 + $0x60] sm:$0xf] %v2510
      %2543 = vst [vmem:[%s175 + $0x64] sm:$0xf] %v2511
      %2544 = vst [vmem:[%s175 + $0x68] sm:$0xf] %v2512
      %2545 = vst [vmem:[%s175 + $0x6c] sm:$0xf] %v2513
      %2546 = vst [vmem:[%s175 + $0x70] sm:$0xf] %v2514
      %2547 = vst [vmem:[%s175 + $0x74] sm:$0xf] %v2515
      %2548 = vst [vmem:[%s175 + $0x78] sm:$0xf] %v2516
      %2549 = vst [vmem:[%s175 + $0x7c] sm:$0xf] %v2517
      %s2550 = smul.u32 32, %s14
      %p2551 = scmp.lt.s32.totalorder %s2550, 63
      %s2552 = scalar_select %p2551, %s2550, 63
      %s2553 = smul.addr %s2552, 4
      %s2554 = scalar_lea.vmem %s3, %s2553
      // Predicated region
      $region33: #{_lambda_.9} parent=31 // pred_check
        %p2555 = pneg %p100
      $region34: #{_lambda_.9} parent=31 // pred_check_branch
        %2557 = sbr.rel (%p2555) target = $region36
      $region35: #{_lambda_.9} parent=31 // pred_region
        %s2558 = smul.u32 32, %s14
      $region36: #{_lambda_.9} parent=31 // pred_fallthru
        _
    $region32: #{_lambda_.9} parent=5 // pred_fallthru
      _
    %p2559 = scmp.le.s32.totalorder 2, %s9
    // Predicated region
    $region37: #{_lambda_.9} parent=5 // pred_check
      %p2560 = pneg %p2559
    $region38: #{_lambda_.9} parent=5 // pred_check_branch
      %2562 = sbr.rel (%p2560) target = $region40
    $region39: #{_lambda_.9} parent=5 // pred_region
      %s2563 = ssub.s32 %s9, 2
      // Predicated region
      $region41: #{_lambda_.9} parent=39 // pred_check
        %p2564 = pneg %p106
      $region42: #{_lambda_.9} parent=39 // pred_check_branch
        %2566 = sbr.rel (%p2564) target = $region44
      $region43: #{_lambda_.9} parent=39 // pred_region
        %s2567 = smul.u32 32, %s15
        %p2568 = scmp.lt.s32.totalorder %s2567, 63
        %s2569 = scalar_select %p2568, %s2567, 63
        %s2570 = smul.addr %s2569, 4
        %s2571 = scalar_lea.vmem %s3, %s2570
      $region44: #{_lambda_.9} parent=39 // pred_fallthru
        _
    $region40: #{_lambda_.9} parent=5 // pred_fallthru
      _
  $region6: #{_lambda_.9} parent=0 // loop_footer
    %s13 = sadd.s32 1, %s9
  $region7: #{_lambda_.9} parent=0 // loop_footer_branch
    %8 = sbr.rel target = $region3
  $region8: #{_lambda_.9} parent=0 // loop_exit
    _

// kernel: _lambda_.10
$region0: #{_lambda_.10}
  #allocation0 [shape = 'u32[]', space=smem, size = 0x4, offset = 0x4, fixed_abs, tag = 'smem constant byte address 0x4 - core index']
  #allocation1 [shape = 'u32[72,128]{1,0:T(1,128)}', space=vmem, size = 0x9000, scoped, tag = 'internal scratch']
  %s0 = inlined_call_operand.vmem [shape: bf16[512,1152], index: 0, kind: input, shape index: {}]
  %s1 = inlined_call_operand.vmem [shape: bf16[1152,128], index: 1, kind: input, shape index: {}]
  %s2 = inlined_call_operand.vmem [shape: f32[1,128], index: 2, kind: input, shape index: {}]
  %s3 = inlined_call_operand.vmem [shape: bf16[512,128], index: 3, kind: input, shape index: {}]
  %s4 = inlined_call_operand.vmem [shape: bf16[512,128], index: 4, kind: output, shape index: {}]
  %s5 = sld [smem:[#allocation0]]
  $region49: #{_lambda_.10} parent=0
    _
  %s7 = ssub.s32 1, %s5
  %s8 = scalar_select 0, %s7, %s5
  loop: start=0, step=1, limit=4
  $region2: #{_lambda_.10} parent=0 // loop_pre_header
    _
  $region3: #{_lambda_.10} parent=0 // loop_header
    %s10 = sphi 0, %s14
    %p11 = scmp.ge.s32.totalorder %s10, 4
    %s20 = sphi 0, %s22
    %s23 = sphi 0, %s20
    %s24 = sphi 0, %s23
    %s40 = sphi 0, %s24
    %s44 = sphi 0, %s44
    %s46 = sphi 0, %s44
    %s47 = sphi 0, %s46
    %s61 = sphi 0, %s47
    %s65 = sphi 0, %s65
    %s67 = sphi 0, %s65
    %s68 = sphi 0, %s67
    %s82 = sphi 0, %s68
    %s88 = sphi 0, %s90
    %s91 = sphi 0, %s88
    %s92 = sphi 0, %s91
    %s108 = sphi 0, %s92
    %s114 = sphi 0, %s116
    %s117 = sphi 0, %s114
    %s118 = sphi 0, %s117
    %s134 = sphi 0, %s118
  $region4: #{_lambda_.10} parent=0 // loop_header_branch
    %13 = sbr.rel (%p11) target = $region8
  $region5: #{_lambda_.10} parent=0 // loop_body
    %s15 = ssub.s32 %s10, 1
    %s16 = ssub.s32 %s10, 2
    %s17 = sadd.s32 %s10, 1
    %s18 = ssub.s32 %s10, %s17
    %p19 = scmp.eq.s32.totalorder %s18, 0
    %s21 = sadd.s32 %s20, 1
    %s22 = scalar_select %p19, %s20, %s21
    %p25 = pneg %p19
    %p26 = scmp.eq.s32.totalorder %s10, 1
    %p27 = por %p25, %p26
    %p28 = scmp.ne.s32.totalorder %s20, %s23
    %p29 = scmp.eq.s32.totalorder %s10, 0
    %p30 = por %p28, %p29
    %p31 = scmp.ne.s32.totalorder %s20, %s23
    %p32 = scmp.eq.s32.totalorder %s15, 1
    %p33 = por %p31, %p32
    %p34 = scmp.ne.s32.totalorder %s23, %s24
    %p35 = scmp.eq.s32.totalorder %s15, 0
    %p36 = por %p34, %p35
    %p37 = scmp.ne.s32.totalorder %s23, %s24
    %p38 = scmp.eq.s32.totalorder %s16, 1
    %p39 = por %p37, %p38
    %p41 = scmp.ne.s32.totalorder %s24, %s40
    %p42 = scmp.eq.s32.totalorder %s16, 0
    %p43 = por %p41, %p42
    %s45 = sadd.s32 %s44, 1
    %p48 = scmp.eq.s32.totalorder %s10, 1
    %p49 = scmp.ne.s32.totalorder %s44, %s46
    %p50 = scmp.eq.s32.totalorder %s10, 0
    %p51 = por %p49, %p50
    %p52 = scmp.ne.s32.totalorder %s44, %s46
    %p53 = scmp.eq.s32.totalorder %s15, 1
    %p54 = por %p52, %p53
    %p55 = scmp.ne.s32.totalorder %s46, %s47
    %p56 = scmp.eq.s32.totalorder %s15, 0
    %p57 = por %p55, %p56
    %p58 = scmp.ne.s32.totalorder %s46, %s47
    %p59 = scmp.eq.s32.totalorder %s16, 1
    %p60 = por %p58, %p59
    %p62 = scmp.ne.s32.totalorder %s47, %s61
    %p63 = scmp.eq.s32.totalorder %s16, 0
    %p64 = por %p62, %p63
    %s66 = sadd.s32 %s65, 1
    %p69 = scmp.eq.s32.totalorder %s10, 1
    %p70 = scmp.ne.s32.totalorder %s65, %s67
    %p71 = scmp.eq.s32.totalorder %s10, 0
    %p72 = por %p70, %p71
    %p73 = scmp.ne.s32.totalorder %s65, %s67
    %p74 = scmp.eq.s32.totalorder %s15, 1
    %p75 = por %p73, %p74
    %p76 = scmp.ne.s32.totalorder %s67, %s68
    %p77 = scmp.eq.s32.totalorder %s15, 0
    %p78 = por %p76, %p77
    %p79 = scmp.ne.s32.totalorder %s67, %s68
    %p80 = scmp.eq.s32.totalorder %s16, 1
    %p81 = por %p79, %p80
    %p83 = scmp.ne.s32.totalorder %s68, %s82
    %p84 = scmp.eq.s32.totalorder %s16, 0
    %p85 = por %p83, %p84
    %s86 = ssub.s32 %s10, %s17
    %p87 = scmp.eq.s32.totalorder %s86, 0
    %s89 = sadd.s32 %s88, 1
    %s90 = scalar_select %p87, %s88, %s89
    %p93 = pneg %p87
    %p94 = scmp.eq.s32.totalorder %s10, 1
    %p95 = por %p93, %p94
    %p96 = scmp.ne.s32.totalorder %s88, %s91
    %p97 = scmp.eq.s32.totalorder %s10, 0
    %p98 = por %p96, %p97
    %p99 = scmp.ne.s32.totalorder %s88, %s91
    %p100 = scmp.eq.s32.totalorder %s15, 1
    %p101 = por %p99, %p100
    %p102 = scmp.ne.s32.totalorder %s91, %s92
    %p103 = scmp.eq.s32.totalorder %s15, 0
    %p104 = por %p102, %p103
    %p105 = scmp.ne.s32.totalorder %s91, %s92
    %p106 = scmp.eq.s32.totalorder %s16, 1
    %p107 = por %p105, %p106
    %p109 = scmp.ne.s32.totalorder %s92, %s108
    %p110 = scmp.eq.s32.totalorder %s16, 0
    %p111 = por %p109, %p110
    %s112 = ssub.s32 %s10, %s17
    %p113 = scmp.eq.s32.totalorder %s112, 0
    %s115 = sadd.s32 %s114, 1
    %s116 = scalar_select %p113, %s114, %s115
    %p119 = pneg %p113
    %p120 = scmp.eq.s32.totalorder %s10, 1
    %p121 = por %p119, %p120
    %p122 = scmp.ne.s32.totalorder %s114, %s117
    %p123 = scmp.eq.s32.totalorder %s10, 0
    %p124 = por %p122, %p123
    %p125 = scmp.ne.s32.totalorder %s114, %s117
    %p126 = scmp.eq.s32.totalorder %s15, 1
    %p127 = por %p125, %p126
    %p128 = scmp.ne.s32.totalorder %s117, %s118
    %p129 = scmp.eq.s32.totalorder %s15, 0
    %p130 = por %p128, %p129
    %p131 = scmp.ne.s32.totalorder %s117, %s118
    %p132 = scmp.eq.s32.totalorder %s16, 1
    %p133 = por %p131, %p132
    %p135 = scmp.ne.s32.totalorder %s118, %s134
    %p136 = scmp.eq.s32.totalorder %s16, 0
    %p137 = por %p135, %p136
    %p138 = scmp.le.s32.totalorder 1, %s10
    %p139 = scmp.lt.s32.totalorder %s10, 3
    %p140 = pnand %p138, %p139
    %p141 = pneg %p140
    // Predicated region
    $region9: #{_lambda_.10} parent=5 // pred_check
      _
    $region10: #{_lambda_.10} parent=5 // pred_check_branch
      %143 = sbr.rel (%p140) target = $region12
    $region11: #{_lambda_.10} parent=5 // pred_region
      %s144 = ssub.s32 %s10, 1
      // Predicated region
      $region13: #{_lambda_.10} parent=11 // pred_check
        %p145 = pneg %p57
      $region14: #{_lambda_.10} parent=11 // pred_check_branch
        %147 = sbr.rel (%p145) target = $region16
      $region15: #{_lambda_.10} parent=11 // pred_region
        _
      $region16: #{_lambda_.10} parent=11 // pred_fallthru
        _
      // Predicated region
      $region17: #{_lambda_.10} parent=11 // pred_check
        %p148 = pneg %p78
      $region18: #{_lambda_.10} parent=11 // pred_check_branch
        %150 = sbr.rel (%p148) target = $region20
      $region19: #{_lambda_.10} parent=11 // pred_region
        _
      $region20: #{_lambda_.10} parent=11 // pred_fallthru
        _
    $region12: #{_lambda_.10} parent=5 // pred_fallthru
      _
    %p151 = scmp.lt.s32.totalorder %s10, 2
    // Predicated region
    $region21: #{_lambda_.10} parent=5 // pred_check
      %p152 = pneg %p151
    $region22: #{_lambda_.10} parent=5 // pred_check_branch
      %154 = sbr.rel (%p152) target = $region24
    $region23: #{_lambda_.10} parent=5 // pred_region
      // Predicated region
      $region25: #{_lambda_.10} parent=23 // pred_check
        %p155 = pneg %p30
      $region26: #{_lambda_.10} parent=23 // pred_check_branch
        %157 = sbr.rel (%p155) target = $region28
      $region27: #{_lambda_.10} parent=23 // pred_region
        %s158 = smul.u32 32, %s10
        %p159 = scmp.lt.s32.totalorder %s158, 63
        %s160 = scalar_select %p159, %s158, 63
        %s161 = smul.addr %s160, 9
        %s162 = smul.addr %s161, 4
        %s163 = scalar_lea.vmem %s0, %s162
        %s164 = smul.u32 32, %s10
      $region28: #{_lambda_.10} parent=23 // pred_fallthru
        _
      // Predicated region
      $region29: #{_lambda_.10} parent=23 // pred_check
        %p165 = pneg %p98
      $region30: #{_lambda_.10} parent=23 // pred_check_branch
        %167 = sbr.rel (%p165) target = $region32
      $region31: #{_lambda_.10} parent=23 // pred_region
        %s168 = smul.u32 32, %s10
        %p169 = scmp.lt.s32.totalorder %s168, 63
        %s170 = scalar_select %p169, %s168, 63
        %s171 = smul.addr %s170, 4
        %s172 = scalar_lea.vmem %s3, %s171
        %s173 = smul.u32 32, %s10
      $region32: #{_lambda_.10} parent=23 // pred_fallthru
        _
    $region24: #{_lambda_.10} parent=5 // pred_fallthru
      _
    %p174 = scmp.le.s32.totalorder 1, %s10
    %p175 = scmp.lt.s32.totalorder %s10, 3
    %p176 = pnand %p174, %p175
    %p177 = pneg %p176
    // Predicated region
    $region33: #{_lambda_.10} parent=5 // pred_check
      _
    $region34: #{_lambda_.10} parent=5 // pred_check_branch
      %179 = sbr.rel (%p176) target = $region36
    $region35: #{_lambda_.10} parent=5 // pred_region
      %s180 = ssub.s32 %s10, 1
      %s181 = smul.u32 32, %s15
      %p182 = scmp.lt.s32.totalorder %s181, 63
      %s183 = scalar_select %p182, %s181, 63
      %s184 = smul.addr %s183, 9
      %s185 = smul.addr %s184, 4
      %s186 = scalar_lea.vmem %s0, %s185
      %p187 = pneg %p36
      %p188 = pneg %p33
      %p189 = pneg %p57
      %p190 = pneg %p54
      %p191 = pneg %p78
      %p192 = pneg %p75
      %s193 = smul.u32 32, %s15
      %p194 = scmp.lt.s32.totalorder %s193, 63
      %s195 = scalar_select %p194, %s193, 63
      %s196 = smul.addr %s195, 4
      %s197 = scalar_lea.vmem %s3, %s196
      %p198 = pneg %p104
      %p199 = pneg %p101
      %p200 = pneg %p130
      %p201 = pneg %p127
      %s202 = smul.u32 32, %s15
      %p203 = scmp.lt.s32.totalorder %s202, 63
      %s204 = scalar_select %p203, %s202, 63
      %s205 = smul.addr %s204, 4
      %s206 = scalar_lea.vmem %s4, %s205
      %s207 = smul.u32 32, %s15
      %p208 = scmp.lt.s32.totalorder %s207, 63
      %s209 = scalar_select %p208, %s207, 63
      %s210 = smul.addr %s209, 9
      %s211 = smul.addr %s210, 4
      %s212 = scalar_lea.vmem %s0, %s211
      %s213 = smul.u32 32, %s15
      %s214 = smul.u32 32, %s15
      %p215 = scmp.lt.s32.totalorder %s214, 63
      %s216 = scalar_select %p215, %s214, 63
      %s217 = smul.addr %s216, 4
      %s218 = scalar_lea.vmem %s3, %s217
      %s219 = smul.u32 32, %s15
      %s220 = smul.u32 32, %s15
      %p221 = scmp.lt.s32.totalorder %s220, 63
      %s222 = scalar_select %p221, %s220, 63
      %s223 = smul.addr %s222, 4
      %s224 = scalar_lea.vmem %s4, %s223
      %s225 = smul.u32 32, %s15
      %v226 = vld [vmem:[%s212] sm:$0xff]
      %v227 = vld [vmem:[%s212 + $0x8] sm:$0xff]
      %v228 = vld [vmem:[%s212 + $0x10] sm:$0xff]
      %v229 = vld [vmem:[%s212 + $0x18] sm:$0xff]
      %v230 = vld [vmem:[%s212 + $0x20] sm:$0xf]
      %v231 = vld [vmem:[%s212 + $0x24] sm:$0xff]
      %v232 = vld [vmem:[%s212 + $0x2c] sm:$0xff]
      %v233 = vld [vmem:[%s212 + $0x34] sm:$0xff]
      %v234 = vld [vmem:[%s212 + $0x3c] sm:$0xff]
      %v235 = vld [vmem:[%s212 + $0x44] sm:$0xf]
      %v236 = vld [vmem:[%s212 + $0x48] sm:$0xff]
      %v237 = vld [vmem:[%s212 + $0x50] sm:$0xff]
      %v238 = vld [vmem:[%s212 + $0x58] sm:$0xff]
      %v239 = vld [vmem:[%s212 + $0x60] sm:$0xff]
      %v240 = vld [vmem:[%s212 + $0x68] sm:$0xf]
      %v241 = vld [vmem:[%s212 + $0x6c] sm:$0xff]
      %v242 = vld [vmem:[%s212 + $0x74] sm:$0xff]
      %v243 = vld [vmem:[%s212 + $0x7c] sm:$0xff]
      %v244 = vld [vmem:[%s212 + $0x84] sm:$0xff]
      %v245 = vld [vmem:[%s212 + $0x8c] sm:$0xf]
      %v246 = vld [vmem:[%s212 + $0x90] sm:$0xff]
      %v247 = vld [vmem:[%s212 + $0x98] sm:$0xff]
      %v248 = vld [vmem:[%s212 + $0xa0] sm:$0xff]
      %v249 = vld [vmem:[%s212 + $0xa8] sm:$0xff]
      %v250 = vld [vmem:[%s212 + $0xb0] sm:$0xf]
      %v251 = vld [vmem:[%s212 + $0xb4] sm:$0xff]
      %v252 = vld [vmem:[%s212 + $0xbc] sm:$0xff]
      %v253 = vld [vmem:[%s212 + $0xc4] sm:$0xff]
      %v254 = vld [vmem:[%s212 + $0xcc] sm:$0xff]
      %v255 = vld [vmem:[%s212 + $0xd4] sm:$0xf]
      %v256 = vld [vmem:[%s212 + $0xd8] sm:$0xff]
      %v257 = vld [vmem:[%s212 + $0xe0] sm:$0xff]
      %v258 = vld [vmem:[%s212 + $0xe8] sm:$0xff]
      %v259 = vld [vmem:[%s212 + $0xf0] sm:$0xff]
      %v260 = vld [vmem:[%s212 + $0xf8] sm:$0xf]
      %v261 = vld [vmem:[%s212 + $0xfc] sm:$0xff]
      %v262 = vld [vmem:[%s212 + $0x104] sm:$0xff]
      %v263 = vld [vmem:[%s212 + $0x10c] sm:$0xff]
      %v264 = vld [vmem:[%s212 + $0x114] sm:$0xff]
      %v265 = vld [vmem:[%s212 + $0x11c] sm:$0xf]
      %v266 = vld [vmem:[%s212 + $0x120] sm:$0xff]
      %v267 = vld [vmem:[%s212 + $0x128] sm:$0xff]
      %v268 = vld [vmem:[%s212 + $0x130] sm:$0xff]
      %v269 = vld [vmem:[%s212 + $0x138] sm:$0xff]
      %v270 = vld [vmem:[%s212 + $0x140] sm:$0xf]
      %v271 = vld [vmem:[%s212 + $0x144] sm:$0xff]
      %v272 = vld [vmem:[%s212 + $0x14c] sm:$0xff]
      %v273 = vld [vmem:[%s212 + $0x154] sm:$0xff]
      %v274 = vld [vmem:[%s212 + $0x15c] sm:$0xff]
      %v275 = vld [vmem:[%s212 + $0x164] sm:$0xf]
      %v276 = vld [vmem:[%s212 + $0x168] sm:$0xff]
      %v277 = vld [vmem:[%s212 + $0x170] sm:$0xff]
      %v278 = vld [vmem:[%s212 + $0x178] sm:$0xff]
      %v279 = vld [vmem:[%s212 + $0x180] sm:$0xff]
      %v280 = vld [vmem:[%s212 + $0x188] sm:$0xf]
      %v281 = vld [vmem:[%s212 + $0x18c] sm:$0xff]
      %v282 = vld [vmem:[%s212 + $0x194] sm:$0xff]
      %v283 = vld [vmem:[%s212 + $0x19c] sm:$0xff]
      %v284 = vld [vmem:[%s212 + $0x1a4] sm:$0xff]
      %v285 = vld [vmem:[%s212 + $0x1ac] sm:$0xf]
      %v286 = vld [vmem:[%s212 + $0x1b0] sm:$0xff]
      %v287 = vld [vmem:[%s212 + $0x1b8] sm:$0xff]
      %v288 = vld [vmem:[%s212 + $0x1c0] sm:$0xff]
      %v289 = vld [vmem:[%s212 + $0x1c8] sm:$0xff]
      %v290 = vld [vmem:[%s212 + $0x1d0] sm:$0xf]
      %v291 = vld [vmem:[%s212 + $0x1d4] sm:$0xff]
      %v292 = vld [vmem:[%s212 + $0x1dc] sm:$0xff]
      %v293 = vld [vmem:[%s212 + $0x1e4] sm:$0xff]
      %v294 = vld [vmem:[%s212 + $0x1ec] sm:$0xff]
      %v295 = vld [vmem:[%s212 + $0x1f4] sm:$0xf]
      %v296 = vld [vmem:[%s212 + $0x1f8] sm:$0xff]
      %v297 = vld [vmem:[%s212 + $0x200] sm:$0xff]
      %v298 = vld [vmem:[%s212 + $0x208] sm:$0xff]
      %v299 = vld [vmem:[%s212 + $0x210] sm:$0xff]
      %v300 = vld [vmem:[%s212 + $0x218] sm:$0xf]
      %v301 = vld [vmem:[%s212 + $0x21c] sm:$0xff]
      %v302 = vld [vmem:[%s212 + $0x224] sm:$0xff]
      %v303 = vld [vmem:[%s212 + $0x22c] sm:$0xff]
      %v304 = vld [vmem:[%s212 + $0x234] sm:$0xff]
      %v305 = vld [vmem:[%s212 + $0x23c] sm:$0xf]
      %v306 = vld [vmem:[%s212 + $0x240] sm:$0xff]
      %v307 = vld [vmem:[%s212 + $0x248] sm:$0xff]
      %v308 = vld [vmem:[%s212 + $0x250] sm:$0xff]
      %v309 = vld [vmem:[%s212 + $0x258] sm:$0xff]
      %v310 = vld [vmem:[%s212 + $0x260] sm:$0xf]
      %v311 = vld [vmem:[%s212 + $0x264] sm:$0xff]
      %v312 = vld [vmem:[%s212 + $0x26c] sm:$0xff]
      %v313 = vld [vmem:[%s212 + $0x274] sm:$0xff]
      %v314 = vld [vmem:[%s212 + $0x27c] sm:$0xff]
      %v315 = vld [vmem:[%s212 + $0x284] sm:$0xf]
      %v316 = vld [vmem:[%s212 + $0x288] sm:$0xff]
      %v317 = vld [vmem:[%s212 + $0x290] sm:$0xff]
      %v318 = vld [vmem:[%s212 + $0x298] sm:$0xff]
      %v319 = vld [vmem:[%s212 + $0x2a0] sm:$0xff]
      %v320 = vld [vmem:[%s212 + $0x2a8] sm:$0xf]
      %v321 = vld [vmem:[%s212 + $0x2ac] sm:$0xff]
      %v322 = vld [vmem:[%s212 + $0x2b4] sm:$0xff]
      %v323 = vld [vmem:[%s212 + $0x2bc] sm:$0xff]
      %v324 = vld [vmem:[%s212 + $0x2c4] sm:$0xff]
      %v325 = vld [vmem:[%s212 + $0x2cc] sm:$0xf]
      %v326 = vld [vmem:[%s212 + $0x2d0] sm:$0xff]
      %v327 = vld [vmem:[%s212 + $0x2d8] sm:$0xff]
      %v328 = vld [vmem:[%s212 + $0x2e0] sm:$0xff]
      %v329 = vld [vmem:[%s212 + $0x2e8] sm:$0xff]
      %v330 = vld [vmem:[%s212 + $0x2f0] sm:$0xf]
      %v331 = vld [vmem:[%s212 + $0x2f4] sm:$0xff]
      %v332 = vld [vmem:[%s212 + $0x2fc] sm:$0xff]
      %v333 = vld [vmem:[%s212 + $0x304] sm:$0xff]
      %v334 = vld [vmem:[%s212 + $0x30c] sm:$0xff]
      %v335 = vld [vmem:[%s212 + $0x314] sm:$0xf]
      %v336 = vld [vmem:[%s212 + $0x318] sm:$0xff]
      %v337 = vld [vmem:[%s212 + $0x320] sm:$0xff]
      %v338 = vld [vmem:[%s212 + $0x328] sm:$0xff]
      %v339 = vld [vmem:[%s212 + $0x330] sm:$0xff]
      %v340 = vld [vmem:[%s212 + $0x338] sm:$0xf]
      %v341 = vld [vmem:[%s212 + $0x33c] sm:$0xff]
      %v342 = vld [vmem:[%s212 + $0x344] sm:$0xff]
      %v343 = vld [vmem:[%s212 + $0x34c] sm:$0xff]
      %v344 = vld [vmem:[%s212 + $0x354] sm:$0xff]
      %v345 = vld [vmem:[%s212 + $0x35c] sm:$0xf]
      %v346 = vld [vmem:[%s212 + $0x360] sm:$0xff]
      %v347 = vld [vmem:[%s212 + $0x368] sm:$0xff]
      %v348 = vld [vmem:[%s212 + $0x370] sm:$0xff]
      %v349 = vld [vmem:[%s212 + $0x378] sm:$0xff]
      %v350 = vld [vmem:[%s212 + $0x380] sm:$0xf]
      %v351 = vld [vmem:[%s212 + $0x384] sm:$0xff]
      %v352 = vld [vmem:[%s212 + $0x38c] sm:$0xff]
      %v353 = vld [vmem:[%s212 + $0x394] sm:$0xff]
      %v354 = vld [vmem:[%s212 + $0x39c] sm:$0xff]
      %v355 = vld [vmem:[%s212 + $0x3a4] sm:$0xf]
      %v356 = vld [vmem:[%s212 + $0x3a8] sm:$0xff]
      %v357 = vld [vmem:[%s212 + $0x3b0] sm:$0xff]
      %v358 = vld [vmem:[%s212 + $0x3b8] sm:$0xff]
      %v359 = vld [vmem:[%s212 + $0x3c0] sm:$0xff]
      %v360 = vld [vmem:[%s212 + $0x3c8] sm:$0xf]
      %v361 = vld [vmem:[%s212 + $0x3cc] sm:$0xff]
      %v362 = vld [vmem:[%s212 + $0x3d4] sm:$0xff]
      %v363 = vld [vmem:[%s212 + $0x3dc] sm:$0xff]
      %v364 = vld [vmem:[%s212 + $0x3e4] sm:$0xff]
      %v365 = vld [vmem:[%s212 + $0x3ec] sm:$0xf]
      %v366 = vld [vmem:[%s212 + $0x3f0] sm:$0xff]
      %v367 = vld [vmem:[%s212 + $0x3f8] sm:$0xff]
      %v368 = vld [vmem:[%s212 + $0x400] sm:$0xff]
      %v369 = vld [vmem:[%s212 + $0x408] sm:$0xff]
      %v370 = vld [vmem:[%s212 + $0x410] sm:$0xf]
      %v371 = vld [vmem:[%s212 + $0x414] sm:$0xff]
      %v372 = vld [vmem:[%s212 + $0x41c] sm:$0xff]
      %v373 = vld [vmem:[%s212 + $0x424] sm:$0xff]
      %v374 = vld [vmem:[%s212 + $0x42c] sm:$0xff]
      %v375 = vld [vmem:[%s212 + $0x434] sm:$0xf]
      %v376 = vld [vmem:[%s212 + $0x438] sm:$0xff]
      %v377 = vld [vmem:[%s212 + $0x440] sm:$0xff]
      %v378 = vld [vmem:[%s212 + $0x448] sm:$0xff]
      %v379 = vld [vmem:[%s212 + $0x450] sm:$0xff]
      %v380 = vld [vmem:[%s212 + $0x458] sm:$0xf]
      %v381 = vld [vmem:[%s212 + $0x45c] sm:$0xff]
      %v382 = vld [vmem:[%s212 + $0x464] sm:$0xff]
      %v383 = vld [vmem:[%s212 + $0x46c] sm:$0xff]
      %v384 = vld [vmem:[%s212 + $0x474] sm:$0xff]
      %v385 = vld [vmem:[%s212 + $0x47c] sm:$0xf]
      %v386 = vld [vmem:[%s1] sm:$0xf]
      %v387 = vld [vmem:[%s1 + $0x4] sm:$0xf]
      %v388 = vld [vmem:[%s1 + $0x8] sm:$0xf]
      %v389 = vld [vmem:[%s1 + $0xc] sm:$0xf]
      %v390 = vld [vmem:[%s1 + $0x10] sm:$0xf]
      %v391 = vld [vmem:[%s1 + $0x14] sm:$0xf]
      %v392 = vld [vmem:[%s1 + $0x18] sm:$0xf]
      %v393 = vld [vmem:[%s1 + $0x1c] sm:$0xf]
      %v394 = vld [vmem:[%s1 + $0x20] sm:$0xf]
      %v395 = vld [vmem:[%s1 + $0x24] sm:$0xf]
      %v396 = vld [vmem:[%s1 + $0x28] sm:$0xf]
      %v397 = vld [vmem:[%s1 + $0x2c] sm:$0xf]
      %v398 = vld [vmem:[%s1 + $0x30] sm:$0xf]
      %v399 = vld [vmem:[%s1 + $0x34] sm:$0xf]
      %v400 = vld [vmem:[%s1 + $0x38] sm:$0xf]
      %v401 = vld [vmem:[%s1 + $0x3c] sm:$0xf]
      %v402 = vld [vmem:[%s1 + $0x40] sm:$0xf]
      %v403 = vld [vmem:[%s1 + $0x44] sm:$0xf]
      %v404 = vld [vmem:[%s1 + $0x48] sm:$0xf]
      %v405 = vld [vmem:[%s1 + $0x4c] sm:$0xf]
      %v406 = vld [vmem:[%s1 + $0x50] sm:$0xf]
      %v407 = vld [vmem:[%s1 + $0x54] sm:$0xf]
      %v408 = vld [vmem:[%s1 + $0x58] sm:$0xf]
      %v409 = vld [vmem:[%s1 + $0x5c] sm:$0xf]
      %v410 = vld [vmem:[%s1 + $0x60] sm:$0xf]
      %v411 = vld [vmem:[%s1 + $0x64] sm:$0xf]
      %v412 = vld [vmem:[%s1 + $0x68] sm:$0xf]
      %v413 = vld [vmem:[%s1 + $0x6c] sm:$0xf]
      %v414 = vld [vmem:[%s1 + $0x70] sm:$0xf]
      %v415 = vld [vmem:[%s1 + $0x74] sm:$0xf]
      %v416 = vld [vmem:[%s1 + $0x78] sm:$0xf]
      %v417 = vld [vmem:[%s1 + $0x7c] sm:$0xf]
      %v418 = vld [vmem:[%s1 + $0x80] sm:$0xf]
      %v419 = vld [vmem:[%s1 + $0x84] sm:$0xf]
      %v420 = vld [vmem:[%s1 + $0x88] sm:$0xf]
      %v421 = vld [vmem:[%s1 + $0x8c] sm:$0xf]
      %v422 = vld [vmem:[%s1 + $0x90] sm:$0xf]
      %v423 = vld [vmem:[%s1 + $0x94] sm:$0xf]
      %v424 = vld [vmem:[%s1 + $0x98] sm:$0xf]
      %v425 = vld [vmem:[%s1 + $0x9c] sm:$0xf]
      %v426 = vld [vmem:[%s1 + $0xa0] sm:$0xf]
      %v427 = vld [vmem:[%s1 + $0xa4] sm:$0xf]
      %v428 = vld [vmem:[%s1 + $0xa8] sm:$0xf]
      %v429 = vld [vmem:[%s1 + $0xac] sm:$0xf]
      %v430 = vld [vmem:[%s1 + $0xb0] sm:$0xf]
      %v431 = vld [vmem:[%s1 + $0xb4] sm:$0xf]
      %v432 = vld [vmem:[%s1 + $0xb8] sm:$0xf]
      %v433 = vld [vmem:[%s1 + $0xbc] sm:$0xf]
      %v434 = vld [vmem:[%s1 + $0xc0] sm:$0xf]
      %v435 = vld [vmem:[%s1 + $0xc4] sm:$0xf]
      %v436 = vld [vmem:[%s1 + $0xc8] sm:$0xf]
      %v437 = vld [vmem:[%s1 + $0xcc] sm:$0xf]
      %v438 = vld [vmem:[%s1 + $0xd0] sm:$0xf]
      %v439 = vld [vmem:[%s1 + $0xd4] sm:$0xf]
      %v440 = vld [vmem:[%s1 + $0xd8] sm:$0xf]
      %v441 = vld [vmem:[%s1 + $0xdc] sm:$0xf]
      %v442 = vld [vmem:[%s1 + $0xe0] sm:$0xf]
      %v443 = vld [vmem:[%s1 + $0xe4] sm:$0xf]
      %v444 = vld [vmem:[%s1 + $0xe8] sm:$0xf]
      %v445 = vld [vmem:[%s1 + $0xec] sm:$0xf]
      %v446 = vld [vmem:[%s1 + $0xf0] sm:$0xf]
      %v447 = vld [vmem:[%s1 + $0xf4] sm:$0xf]
      %v448 = vld [vmem:[%s1 + $0xf8] sm:$0xf]
      %v449 = vld [vmem:[%s1 + $0xfc] sm:$0xf]
      %v450 = vld [vmem:[%s1 + $0x100] sm:$0xf]
      %v451 = vld [vmem:[%s1 + $0x104] sm:$0xf]
      %v452 = vld [vmem:[%s1 + $0x108] sm:$0xf]
      %v453 = vld [vmem:[%s1 + $0x10c] sm:$0xf]
      %v454 = vld [vmem:[%s1 + $0x110] sm:$0xf]
      %v455 = vld [vmem:[%s1 + $0x114] sm:$0xf]
      %v456 = vld [vmem:[%s1 + $0x118] sm:$0xf]
      %v457 = vld [vmem:[%s1 + $0x11c] sm:$0xf]
      %v458 = vld [vmem:[%s1 + $0x120] sm:$0xf]
      %v459 = vld [vmem:[%s1 + $0x124] sm:$0xf]
      %v460 = vld [vmem:[%s1 + $0x128] sm:$0xf]
      %v461 = vld [vmem:[%s1 + $0x12c] sm:$0xf]
      %v462 = vld [vmem:[%s1 + $0x130] sm:$0xf]
      %v463 = vld [vmem:[%s1 + $0x134] sm:$0xf]
      %v464 = vld [vmem:[%s1 + $0x138] sm:$0xf]
      %v465 = vld [vmem:[%s1 + $0x13c] sm:$0xf]
      %v466 = vld [vmem:[%s1 + $0x140] sm:$0xf]
      %v467 = vld [vmem:[%s1 + $0x144] sm:$0xf]
      %v468 = vld [vmem:[%s1 + $0x148] sm:$0xf]
      %v469 = vld [vmem:[%s1 + $0x14c] sm:$0xf]
      %v470 = vld [vmem:[%s1 + $0x150] sm:$0xf]
      %v471 = vld [vmem:[%s1 + $0x154] sm:$0xf]
      %v472 = vld [vmem:[%s1 + $0x158] sm:$0xf]
      %v473 = vld [vmem:[%s1 + $0x15c] sm:$0xf]
      %v474 = vld [vmem:[%s1 + $0x160] sm:$0xf]
      %v475 = vld [vmem:[%s1 + $0x164] sm:$0xf]
      %v476 = vld [vmem:[%s1 + $0x168] sm:$0xf]
      %v477 = vld [vmem:[%s1 + $0x16c] sm:$0xf]
      %v478 = vld [vmem:[%s1 + $0x170] sm:$0xf]
      %v479 = vld [vmem:[%s1 + $0x174] sm:$0xf]
      %v480 = vld [vmem:[%s1 + $0x178] sm:$0xf]
      %v481 = vld [vmem:[%s1 + $0x17c] sm:$0xf]
      %v482 = vld [vmem:[%s1 + $0x180] sm:$0xf]
      %v483 = vld [vmem:[%s1 + $0x184] sm:$0xf]
      %v484 = vld [vmem:[%s1 + $0x188] sm:$0xf]
      %v485 = vld [vmem:[%s1 + $0x18c] sm:$0xf]
      %v486 = vld [vmem:[%s1 + $0x190] sm:$0xf]
      %v487 = vld [vmem:[%s1 + $0x194] sm:$0xf]
      %v488 = vld [vmem:[%s1 + $0x198] sm:$0xf]
      %v489 = vld [vmem:[%s1 + $0x19c] sm:$0xf]
      %v490 = vld [vmem:[%s1 + $0x1a0] sm:$0xf]
      %v491 = vld [vmem:[%s1 + $0x1a4] sm:$0xf]
      %v492 = vld [vmem:[%s1 + $0x1a8] sm:$0xf]
      %v493 = vld [vmem:[%s1 + $0x1ac] sm:$0xf]
      %v494 = vld [vmem:[%s1 + $0x1b0] sm:$0xf]
      %v495 = vld [vmem:[%s1 + $0x1b4] sm:$0xf]
      %v496 = vld [vmem:[%s1 + $0x1b8] sm:$0xf]
      %v497 = vld [vmem:[%s1 + $0x1bc] sm:$0xf]
      %v498 = vld [vmem:[%s1 + $0x1c0] sm:$0xf]
      %v499 = vld [vmem:[%s1 + $0x1c4] sm:$0xf]
      %v500 = vld [vmem:[%s1 + $0x1c8] sm:$0xf]
      %v501 = vld [vmem:[%s1 + $0x1cc] sm:$0xf]
      %v502 = vld [vmem:[%s1 + $0x1d0] sm:$0xf]
      %v503 = vld [vmem:[%s1 + $0x1d4] sm:$0xf]
      %v504 = vld [vmem:[%s1 + $0x1d8] sm:$0xf]
      %v505 = vld [vmem:[%s1 + $0x1dc] sm:$0xf]
      %v506 = vld [vmem:[%s1 + $0x1e0] sm:$0xf]
      %v507 = vld [vmem:[%s1 + $0x1e4] sm:$0xf]
      %v508 = vld [vmem:[%s1 + $0x1e8] sm:$0xf]
      %v509 = vld [vmem:[%s1 + $0x1ec] sm:$0xf]
      %v510 = vld [vmem:[%s1 + $0x1f0] sm:$0xf]
      %v511 = vld [vmem:[%s1 + $0x1f4] sm:$0xf]
      %v512 = vld [vmem:[%s1 + $0x1f8] sm:$0xf]
      %v513 = vld [vmem:[%s1 + $0x1fc] sm:$0xf]
      %v514 = vld [vmem:[%s1 + $0x200] sm:$0xf]
      %v515 = vld [vmem:[%s1 + $0x204] sm:$0xf]
      %v516 = vld [vmem:[%s1 + $0x208] sm:$0xf]
      %v517 = vld [vmem:[%s1 + $0x20c] sm:$0xf]
      %v518 = vld [vmem:[%s1 + $0x210] sm:$0xf]
      %v519 = vld [vmem:[%s1 + $0x214] sm:$0xf]
      %v520 = vld [vmem:[%s1 + $0x218] sm:$0xf]
      %v521 = vld [vmem:[%s1 + $0x21c] sm:$0xf]
      %v522 = vld [vmem:[%s1 + $0x220] sm:$0xf]
      %v523 = vld [vmem:[%s1 + $0x224] sm:$0xf]
      %v524 = vld [vmem:[%s1 + $0x228] sm:$0xf]
      %v525 = vld [vmem:[%s1 + $0x22c] sm:$0xf]
      %v526 = vld [vmem:[%s1 + $0x230] sm:$0xf]
      %v527 = vld [vmem:[%s1 + $0x234] sm:$0xf]
      %v528 = vld [vmem:[%s1 + $0x238] sm:$0xf]
      %v529 = vld [vmem:[%s1 + $0x23c] sm:$0xf]
      %v530 = vld [vmem:[%s2] sm:$0x1]
      %v532 = vperm.slane %v530, 0
      %v694 = vunpack.c.l.b16 %v226
      %v695 = vunpack.c.h.b16 %v226
      %v696 = vunpack.c.l.b16 %v227
      %v697 = vunpack.c.h.b16 %v227
      %v698 = vunpack.c.l.b16 %v228
      %v699 = vunpack.c.h.b16 %v228
      %v700 = vunpack.c.l.b16 %v229
      %v701 = vunpack.c.h.b16 %v229
      %v702 = vunpack.c.l.b16 %v230
      %v703 = vunpack.c.l.b16 %v231
      %v704 = vunpack.c.h.b16 %v231
      %v705 = vunpack.c.l.b16 %v232
      %v706 = vunpack.c.h.b16 %v232
      %v707 = vunpack.c.l.b16 %v233
      %v708 = vunpack.c.h.b16 %v233
      %v709 = vunpack.c.l.b16 %v234
      %v710 = vunpack.c.h.b16 %v234
      %v711 = vunpack.c.l.b16 %v235
      %v712 = vunpack.c.l.b16 %v236
      %v713 = vunpack.c.h.b16 %v236
      %v714 = vunpack.c.l.b16 %v237
      %v715 = vunpack.c.h.b16 %v237
      %v716 = vunpack.c.l.b16 %v238
      %v717 = vunpack.c.h.b16 %v238
      %v718 = vunpack.c.l.b16 %v239
      %v719 = vunpack.c.h.b16 %v239
      %v720 = vunpack.c.l.b16 %v240
      %v721 = vunpack.c.l.b16 %v241
      %v722 = vunpack.c.h.b16 %v241
      %v723 = vunpack.c.l.b16 %v242
      %v724 = vunpack.c.h.b16 %v242
      %v725 = vunpack.c.l.b16 %v243
      %v726 = vunpack.c.h.b16 %v243
      %v727 = vunpack.c.l.b16 %v244
      %v728 = vunpack.c.h.b16 %v244
      %v729 = vunpack.c.l.b16 %v245
      %v730 = vunpack.c.l.b16 %v246
      %v731 = vunpack.c.h.b16 %v246
      %v732 = vunpack.c.l.b16 %v247
      %v733 = vunpack.c.h.b16 %v247
      %v734 = vunpack.c.l.b16 %v248
      %v735 = vunpack.c.h.b16 %v248
      %v736 = vunpack.c.l.b16 %v249
      %v737 = vunpack.c.h.b16 %v249
      %v738 = vunpack.c.l.b16 %v250
      %v739 = vunpack.c.l.b16 %v251
      %v740 = vunpack.c.h.b16 %v251
      %v741 = vunpack.c.l.b16 %v252
      %v742 = vunpack.c.h.b16 %v252
      %v743 = vunpack.c.l.b16 %v253
      %v744 = vunpack.c.h.b16 %v253
      %v745 = vunpack.c.l.b16 %v254
      %v746 = vunpack.c.h.b16 %v254
      %v747 = vunpack.c.l.b16 %v255
      %v748 = vunpack.c.l.b16 %v256
      %v749 = vunpack.c.h.b16 %v256
      %v750 = vunpack.c.l.b16 %v257
      %v751 = vunpack.c.h.b16 %v257
      %v752 = vunpack.c.l.b16 %v258
      %v753 = vunpack.c.h.b16 %v258
      %v754 = vunpack.c.l.b16 %v259
      %v755 = vunpack.c.h.b16 %v259
      %v756 = vunpack.c.l.b16 %v260
      %v757 = vunpack.c.l.b16 %v261
      %v758 = vunpack.c.h.b16 %v261
      %v759 = vunpack.c.l.b16 %v262
      %v760 = vunpack.c.h.b16 %v262
      %v761 = vunpack.c.l.b16 %v263
      %v762 = vunpack.c.h.b16 %v263
      %v763 = vunpack.c.l.b16 %v264
      %v764 = vunpack.c.h.b16 %v264
      %v765 = vunpack.c.l.b16 %v265
      %v766 = vunpack.c.l.b16 %v266
      %v767 = vunpack.c.h.b16 %v266
      %v768 = vunpack.c.l.b16 %v267
      %v769 = vunpack.c.h.b16 %v267
      %v770 = vunpack.c.l.b16 %v268
      %v771 = vunpack.c.h.b16 %v268
      %v772 = vunpack.c.l.b16 %v269
      %v773 = vunpack.c.h.b16 %v269
      %v774 = vunpack.c.l.b16 %v270
      %v775 = vunpack.c.l.b16 %v271
      %v776 = vunpack.c.h.b16 %v271
      %v777 = vunpack.c.l.b16 %v272
      %v778 = vunpack.c.h.b16 %v272
      %v779 = vunpack.c.l.b16 %v273
      %v780 = vunpack.c.h.b16 %v273
      %v781 = vunpack.c.l.b16 %v274
      %v782 = vunpack.c.h.b16 %v274
      %v783 = vunpack.c.l.b16 %v275
      %v784 = vunpack.c.l.b16 %v276
      %v785 = vunpack.c.h.b16 %v276
      %v786 = vunpack.c.l.b16 %v277
      %v787 = vunpack.c.h.b16 %v277
      %v788 = vunpack.c.l.b16 %v278
      %v789 = vunpack.c.h.b16 %v278
      %v790 = vunpack.c.l.b16 %v279
      %v791 = vunpack.c.h.b16 %v279
      %v792 = vunpack.c.l.b16 %v280
      %v793 = vunpack.c.l.b16 %v281
      %v794 = vunpack.c.h.b16 %v281
      %v795 = vunpack.c.l.b16 %v282
      %v796 = vunpack.c.h.b16 %v282
      %v797 = vunpack.c.l.b16 %v283
      %v798 = vunpack.c.h.b16 %v283
      %v799 = vunpack.c.l.b16 %v284
      %v800 = vunpack.c.h.b16 %v284
      %v801 = vunpack.c.l.b16 %v285
      %v802 = vunpack.c.l.b16 %v286
      %v803 = vunpack.c.h.b16 %v286
      %v804 = vunpack.c.l.b16 %v287
      %v805 = vunpack.c.h.b16 %v287
      %v806 = vunpack.c.l.b16 %v288
      %v807 = vunpack.c.h.b16 %v288
      %v808 = vunpack.c.l.b16 %v289
      %v809 = vunpack.c.h.b16 %v289
      %v810 = vunpack.c.l.b16 %v290
      %v811 = vunpack.c.l.b16 %v291
      %v812 = vunpack.c.h.b16 %v291
      %v813 = vunpack.c.l.b16 %v292
      %v814 = vunpack.c.h.b16 %v292
      %v815 = vunpack.c.l.b16 %v293
      %v816 = vunpack.c.h.b16 %v293
      %v817 = vunpack.c.l.b16 %v294
      %v818 = vunpack.c.h.b16 %v294
      %v819 = vunpack.c.l.b16 %v295
      %v820 = vunpack.c.l.b16 %v296
      %v821 = vunpack.c.h.b16 %v296
      %v822 = vunpack.c.l.b16 %v297
      %v823 = vunpack.c.h.b16 %v297
      %v824 = vunpack.c.l.b16 %v298
      %v825 = vunpack.c.h.b16 %v298
      %v826 = vunpack.c.l.b16 %v299
      %v827 = vunpack.c.h.b16 %v299
      %v828 = vunpack.c.l.b16 %v300
      %v829 = vunpack.c.l.b16 %v301
      %v830 = vunpack.c.h.b16 %v301
      %v831 = vunpack.c.l.b16 %v302
      %v832 = vunpack.c.h.b16 %v302
      %v833 = vunpack.c.l.b16 %v303
      %v834 = vunpack.c.h.b16 %v303
      %v835 = vunpack.c.l.b16 %v304
      %v836 = vunpack.c.h.b16 %v304
      %v837 = vunpack.c.l.b16 %v305
      %v838 = vunpack.c.l.b16 %v306
      %v839 = vunpack.c.h.b16 %v306
      %v840 = vunpack.c.l.b16 %v307
      %v841 = vunpack.c.h.b16 %v307
      %v842 = vunpack.c.l.b16 %v308
      %v843 = vunpack.c.h.b16 %v308
      %v844 = vunpack.c.l.b16 %v309
      %v845 = vunpack.c.h.b16 %v309
      %v846 = vunpack.c.l.b16 %v310
      %v847 = vunpack.c.l.b16 %v311
      %v848 = vunpack.c.h.b16 %v311
      %v849 = vunpack.c.l.b16 %v312
      %v850 = vunpack.c.h.b16 %v312
      %v851 = vunpack.c.l.b16 %v313
      %v852 = vunpack.c.h.b16 %v313
      %v853 = vunpack.c.l.b16 %v314
      %v854 = vunpack.c.h.b16 %v314
      %v855 = vunpack.c.l.b16 %v315
      %v856 = vunpack.c.l.b16 %v316
      %v857 = vunpack.c.h.b16 %v316
      %v858 = vunpack.c.l.b16 %v317
      %v859 = vunpack.c.h.b16 %v317
      %v860 = vunpack.c.l.b16 %v318
      %v861 = vunpack.c.h.b16 %v318
      %v862 = vunpack.c.l.b16 %v319
      %v863 = vunpack.c.h.b16 %v319
      %v864 = vunpack.c.l.b16 %v320
      %v865 = vunpack.c.l.b16 %v321
      %v866 = vunpack.c.h.b16 %v321
      %v867 = vunpack.c.l.b16 %v322
      %v868 = vunpack.c.h.b16 %v322
      %v869 = vunpack.c.l.b16 %v323
      %v870 = vunpack.c.h.b16 %v323
      %v871 = vunpack.c.l.b16 %v324
      %v872 = vunpack.c.h.b16 %v324
      %v873 = vunpack.c.l.b16 %v325
      %v874 = vunpack.c.l.b16 %v326
      %v875 = vunpack.c.h.b16 %v326
      %v876 = vunpack.c.l.b16 %v327
      %v877 = vunpack.c.h.b16 %v327
      %v878 = vunpack.c.l.b16 %v328
      %v879 = vunpack.c.h.b16 %v328
      %v880 = vunpack.c.l.b16 %v329
      %v881 = vunpack.c.h.b16 %v329
      %v882 = vunpack.c.l.b16 %v330
      %v883 = vunpack.c.l.b16 %v331
      %v884 = vunpack.c.h.b16 %v331
      %v885 = vunpack.c.l.b16 %v332
      %v886 = vunpack.c.h.b16 %v332
      %v887 = vunpack.c.l.b16 %v333
      %v888 = vunpack.c.h.b16 %v333
      %v889 = vunpack.c.l.b16 %v334
      %v890 = vunpack.c.h.b16 %v334
      %v891 = vunpack.c.l.b16 %v335
      %v892 = vunpack.c.l.b16 %v336
      %v893 = vunpack.c.h.b16 %v336
      %v894 = vunpack.c.l.b16 %v337
      %v895 = vunpack.c.h.b16 %v337
      %v896 = vunpack.c.l.b16 %v338
      %v897 = vunpack.c.h.b16 %v338
      %v898 = vunpack.c.l.b16 %v339
      %v899 = vunpack.c.h.b16 %v339
      %v900 = vunpack.c.l.b16 %v340
      %v901 = vunpack.c.l.b16 %v341
      %v902 = vunpack.c.h.b16 %v341
      %v903 = vunpack.c.l.b16 %v342
      %v904 = vunpack.c.h.b16 %v342
      %v905 = vunpack.c.l.b16 %v343
      %v906 = vunpack.c.h.b16 %v343
      %v907 = vunpack.c.l.b16 %v344
      %v908 = vunpack.c.h.b16 %v344
      %v909 = vunpack.c.l.b16 %v345
      %v910 = vunpack.c.l.b16 %v346
      %v911 = vunpack.c.h.b16 %v346
      %v912 = vunpack.c.l.b16 %v347
      %v913 = vunpack.c.h.b16 %v347
      %v914 = vunpack.c.l.b16 %v348
      %v915 = vunpack.c.h.b16 %v348
      %v916 = vunpack.c.l.b16 %v349
      %v917 = vunpack.c.h.b16 %v349
      %v918 = vunpack.c.l.b16 %v350
      %v919 = vunpack.c.l.b16 %v351
      %v920 = vunpack.c.h.b16 %v351
      %v921 = vunpack.c.l.b16 %v352
      %v922 = vunpack.c.h.b16 %v352
      %v923 = vunpack.c.l.b16 %v353
      %v924 = vunpack.c.h.b16 %v353
      %v925 = vunpack.c.l.b16 %v354
      %v926 = vunpack.c.h.b16 %v354
      %v927 = vunpack.c.l.b16 %v355
      %v928 = vunpack.c.l.b16 %v356
      %v929 = vunpack.c.h.b16 %v356
      %v930 = vunpack.c.l.b16 %v357
      %v931 = vunpack.c.h.b16 %v357
      %v932 = vunpack.c.l.b16 %v358
      %v933 = vunpack.c.h.b16 %v358
      %v934 = vunpack.c.l.b16 %v359
      %v935 = vunpack.c.h.b16 %v359
      %v936 = vunpack.c.l.b16 %v360
      %v937 = vunpack.c.l.b16 %v361
      %v938 = vunpack.c.h.b16 %v361
      %v939 = vunpack.c.l.b16 %v362
      %v940 = vunpack.c.h.b16 %v362
      %v941 = vunpack.c.l.b16 %v363
      %v942 = vunpack.c.h.b16 %v363
      %v943 = vunpack.c.l.b16 %v364
      %v944 = vunpack.c.h.b16 %v364
      %v945 = vunpack.c.l.b16 %v365
      %v946 = vunpack.c.l.b16 %v366
      %v947 = vunpack.c.h.b16 %v366
      %v948 = vunpack.c.l.b16 %v367
      %v949 = vunpack.c.h.b16 %v367
      %v950 = vunpack.c.l.b16 %v368
      %v951 = vunpack.c.h.b16 %v368
      %v952 = vunpack.c.l.b16 %v369
      %v953 = vunpack.c.h.b16 %v369
      %v954 = vunpack.c.l.b16 %v370
      %v955 = vunpack.c.l.b16 %v371
      %v956 = vunpack.c.h.b16 %v371
      %v957 = vunpack.c.l.b16 %v372
      %v958 = vunpack.c.h.b16 %v372
      %v959 = vunpack.c.l.b16 %v373
      %v960 = vunpack.c.h.b16 %v373
      %v961 = vunpack.c.l.b16 %v374
      %v962 = vunpack.c.h.b16 %v374
      %v963 = vunpack.c.l.b16 %v375
      %v964 = vunpack.c.l.b16 %v376
      %v965 = vunpack.c.h.b16 %v376
      %v966 = vunpack.c.l.b16 %v377
      %v967 = vunpack.c.h.b16 %v377
      %v968 = vunpack.c.l.b16 %v378
      %v969 = vunpack.c.h.b16 %v378
      %v970 = vunpack.c.l.b16 %v379
      %v971 = vunpack.c.h.b16 %v379
      %v972 = vunpack.c.l.b16 %v380
      %v973 = vunpack.c.l.b16 %v381
      %v974 = vunpack.c.h.b16 %v381
      %v975 = vunpack.c.l.b16 %v382
      %v976 = vunpack.c.h.b16 %v382
      %v977 = vunpack.c.l.b16 %v383
      %v978 = vunpack.c.h.b16 %v383
      %v979 = vunpack.c.l.b16 %v384
      %v980 = vunpack.c.h.b16 %v384
      %v981 = vunpack.c.l.b16 %v385
      %v982 = vpack.c.b16 %v703, %v694
      %v983 = vpack.c.b16 %v704, %v695
      %v984 = vpack.c.b16 %v705, %v696
      %v985 = vpack.c.b16 %v706, %v697
      %v986 = vpack.c.b16 %v707, %v698
      %v987 = vpack.c.b16 %v708, %v699
      %v988 = vpack.c.b16 %v709, %v700
      %v989 = vpack.c.b16 %v710, %v701
      %v990 = vpack.c.b16 %v711, %v702
      %v991 = vpack.c.b16 %v721, %v712
      %v992 = vpack.c.b16 %v722, %v713
      %v993 = vpack.c.b16 %v723, %v714
      %v994 = vpack.c.b16 %v724, %v715
      %v995 = vpack.c.b16 %v725, %v716
      %v996 = vpack.c.b16 %v726, %v717
      %v997 = vpack.c.b16 %v727, %v718
      %v998 = vpack.c.b16 %v728, %v719
      %v999 = vpack.c.b16 %v729, %v720
      %v1000 = vpack.c.b16 %v739, %v730
      %v1001 = vpack.c.b16 %v740, %v731
      %v1002 = vpack.c.b16 %v741, %v732
      %v1003 = vpack.c.b16 %v742, %v733
      %v1004 = vpack.c.b16 %v743, %v734
      %v1005 = vpack.c.b16 %v744, %v735
      %v1006 = vpack.c.b16 %v745, %v736
      %v1007 = vpack.c.b16 %v746, %v737
      %v1008 = vpack.c.b16 %v747, %v738
      %v1009 = vpack.c.b16 %v757, %v748
      %v1010 = vpack.c.b16 %v758, %v749
      %v1011 = vpack.c.b16 %v759, %v750
      %v1012 = vpack.c.b16 %v760, %v751
      %v1013 = vpack.c.b16 %v761, %v752
      %v1014 = vpack.c.b16 %v762, %v753
      %v1015 = vpack.c.b16 %v763, %v754
      %v1016 = vpack.c.b16 %v764, %v755
      %v1017 = vpack.c.b16 %v765, %v756
      %v1018 = vpack.c.b16 %v775, %v766
      %v1019 = vpack.c.b16 %v776, %v767
      %v1020 = vpack.c.b16 %v777, %v768
      %v1021 = vpack.c.b16 %v778, %v769
      %v1022 = vpack.c.b16 %v779, %v770
      %v1023 = vpack.c.b16 %v780, %v771
      %v1024 = vpack.c.b16 %v781, %v772
      %v1025 = vpack.c.b16 %v782, %v773
      %v1026 = vpack.c.b16 %v783, %v774
      %v1027 = vpack.c.b16 %v793, %v784
      %v1028 = vpack.c.b16 %v794, %v785
      %v1029 = vpack.c.b16 %v795, %v786
      %v1030 = vpack.c.b16 %v796, %v787
      %v1031 = vpack.c.b16 %v797, %v788
      %v1032 = vpack.c.b16 %v798, %v789
      %v1033 = vpack.c.b16 %v799, %v790
      %v1034 = vpack.c.b16 %v800, %v791
      %v1035 = vpack.c.b16 %v801, %v792
      %v1036 = vpack.c.b16 %v811, %v802
      %v1037 = vpack.c.b16 %v812, %v803
      %v1038 = vpack.c.b16 %v813, %v804
      %v1039 = vpack.c.b16 %v814, %v805
      %v1040 = vpack.c.b16 %v815, %v806
      %v1041 = vpack.c.b16 %v816, %v807
      %v1042 = vpack.c.b16 %v817, %v808
      %v1043 = vpack.c.b16 %v818, %v809
      %v1044 = vpack.c.b16 %v819, %v810
      %v1045 = vpack.c.b16 %v829, %v820
      %v1046 = vpack.c.b16 %v830, %v821
      %v1047 = vpack.c.b16 %v831, %v822
      %v1048 = vpack.c.b16 %v832, %v823
      %v1049 = vpack.c.b16 %v833, %v824
      %v1050 = vpack.c.b16 %v834, %v825
      %v1051 = vpack.c.b16 %v835, %v826
      %v1052 = vpack.c.b16 %v836, %v827
      %v1053 = vpack.c.b16 %v837, %v828
      %v1054 = vpack.c.b16 %v847, %v838
      %v1055 = vpack.c.b16 %v848, %v839
      %v1056 = vpack.c.b16 %v849, %v840
      %v1057 = vpack.c.b16 %v850, %v841
      %v1058 = vpack.c.b16 %v851, %v842
      %v1059 = vpack.c.b16 %v852, %v843
      %v1060 = vpack.c.b16 %v853, %v844
      %v1061 = vpack.c.b16 %v854, %v845
      %v1062 = vpack.c.b16 %v855, %v846
      %v1063 = vpack.c.b16 %v865, %v856
      %v1064 = vpack.c.b16 %v866, %v857
      %v1065 = vpack.c.b16 %v867, %v858
      %v1066 = vpack.c.b16 %v868, %v859
      %v1067 = vpack.c.b16 %v869, %v860
      %v1068 = vpack.c.b16 %v870, %v861
      %v1069 = vpack.c.b16 %v871, %v862
      %v1070 = vpack.c.b16 %v872, %v863
      %v1071 = vpack.c.b16 %v873, %v864
      %v1072 = vpack.c.b16 %v883, %v874
      %v1073 = vpack.c.b16 %v884, %v875
      %v1074 = vpack.c.b16 %v885, %v876
      %v1075 = vpack.c.b16 %v886, %v877
      %v1076 = vpack.c.b16 %v887, %v878
      %v1077 = vpack.c.b16 %v888, %v879
      %v1078 = vpack.c.b16 %v889, %v880
      %v1079 = vpack.c.b16 %v890, %v881
      %v1080 = vpack.c.b16 %v891, %v882
      %v1081 = vpack.c.b16 %v901, %v892
      %v1082 = vpack.c.b16 %v902, %v893
      %v1083 = vpack.c.b16 %v903, %v894
      %v1084 = vpack.c.b16 %v904, %v895
      %v1085 = vpack.c.b16 %v905, %v896
      %v1086 = vpack.c.b16 %v906, %v897
      %v1087 = vpack.c.b16 %v907, %v898
      %v1088 = vpack.c.b16 %v908, %v899
      %v1089 = vpack.c.b16 %v909, %v900
      %v1090 = vpack.c.b16 %v919, %v910
      %v1091 = vpack.c.b16 %v920, %v911
      %v1092 = vpack.c.b16 %v921, %v912
      %v1093 = vpack.c.b16 %v922, %v913
      %v1094 = vpack.c.b16 %v923, %v914
      %v1095 = vpack.c.b16 %v924, %v915
      %v1096 = vpack.c.b16 %v925, %v916
      %v1097 = vpack.c.b16 %v926, %v917
      %v1098 = vpack.c.b16 %v927, %v918
      %v1099 = vpack.c.b16 %v937, %v928
      %v1100 = vpack.c.b16 %v938, %v929
      %v1101 = vpack.c.b16 %v939, %v930
      %v1102 = vpack.c.b16 %v940, %v931
      %v1103 = vpack.c.b16 %v941, %v932
      %v1104 = vpack.c.b16 %v942, %v933
      %v1105 = vpack.c.b16 %v943, %v934
      %v1106 = vpack.c.b16 %v944, %v935
      %v1107 = vpack.c.b16 %v945, %v936
      %v1108 = vpack.c.b16 %v955, %v946
      %v1109 = vpack.c.b16 %v956, %v947
      %v1110 = vpack.c.b16 %v957, %v948
      %v1111 = vpack.c.b16 %v958, %v949
      %v1112 = vpack.c.b16 %v959, %v950
      %v1113 = vpack.c.b16 %v960, %v951
      %v1114 = vpack.c.b16 %v961, %v952
      %v1115 = vpack.c.b16 %v962, %v953
      %v1116 = vpack.c.b16 %v963, %v954
      %v1117 = vpack.c.b16 %v973, %v964
      %v1118 = vpack.c.b16 %v974, %v965
      %v1119 = vpack.c.b16 %v975, %v966
      %v1120 = vpack.c.b16 %v976, %v967
      %v1121 = vpack.c.b16 %v977, %v968
      %v1122 = vpack.c.b16 %v978, %v969
      %v1123 = vpack.c.b16 %v979, %v970
      %v1124 = vpack.c.b16 %v980, %v971
      %v1125 = vpack.c.b16 %v981, %v972
      %v1414 = vunpack.c.l.b16 %v386
      %v1415 = vunpack.c.l.b16 %v387
      %v1416 = vunpack.c.l.b16 %v388
      %v1417 = vunpack.c.l.b16 %v389
      %v1418 = vunpack.c.l.b16 %v390
      %v1419 = vunpack.c.l.b16 %v391
      %v1420 = vunpack.c.l.b16 %v392
      %v1421 = vunpack.c.l.b16 %v393
      %v1422 = vunpack.c.l.b16 %v394
      %v1423 = vunpack.c.l.b16 %v395
      %v1424 = vunpack.c.l.b16 %v396
      %v1425 = vunpack.c.l.b16 %v397
      %v1426 = vunpack.c.l.b16 %v398
      %v1427 = vunpack.c.l.b16 %v399
      %v1428 = vunpack.c.l.b16 %v400
      %v1429 = vunpack.c.l.b16 %v401
      %v1430 = vunpack.c.l.b16 %v402
      %v1431 = vunpack.c.l.b16 %v403
      %v1432 = vunpack.c.l.b16 %v404
      %v1433 = vunpack.c.l.b16 %v405
      %v1434 = vunpack.c.l.b16 %v406
      %v1435 = vunpack.c.l.b16 %v407
      %v1436 = vunpack.c.l.b16 %v408
      %v1437 = vunpack.c.l.b16 %v409
      %v1438 = vunpack.c.l.b16 %v410
      %v1439 = vunpack.c.l.b16 %v411
      %v1440 = vunpack.c.l.b16 %v412
      %v1441 = vunpack.c.l.b16 %v413
      %v1442 = vunpack.c.l.b16 %v414
      %v1443 = vunpack.c.l.b16 %v415
      %v1444 = vunpack.c.l.b16 %v416
      %v1445 = vunpack.c.l.b16 %v417
      %v1446 = vunpack.c.l.b16 %v418
      %v1447 = vunpack.c.l.b16 %v419
      %v1448 = vunpack.c.l.b16 %v420
      %v1449 = vunpack.c.l.b16 %v421
      %v1450 = vunpack.c.l.b16 %v422
      %v1451 = vunpack.c.l.b16 %v423
      %v1452 = vunpack.c.l.b16 %v424
      %v1453 = vunpack.c.l.b16 %v425
      %v1454 = vunpack.c.l.b16 %v426
      %v1455 = vunpack.c.l.b16 %v427
      %v1456 = vunpack.c.l.b16 %v428
      %v1457 = vunpack.c.l.b16 %v429
      %v1458 = vunpack.c.l.b16 %v430
      %v1459 = vunpack.c.l.b16 %v431
      %v1460 = vunpack.c.l.b16 %v432
      %v1461 = vunpack.c.l.b16 %v433
      %v1462 = vunpack.c.l.b16 %v434
      %v1463 = vunpack.c.l.b16 %v435
      %v1464 = vunpack.c.l.b16 %v436
      %v1465 = vunpack.c.l.b16 %v437
      %v1466 = vunpack.c.l.b16 %v438
      %v1467 = vunpack.c.l.b16 %v439
      %v1468 = vunpack.c.l.b16 %v440
      %v1469 = vunpack.c.l.b16 %v441
      %v1470 = vunpack.c.l.b16 %v442
      %v1471 = vunpack.c.l.b16 %v443
      %v1472 = vunpack.c.l.b16 %v444
      %v1473 = vunpack.c.l.b16 %v445
      %v1474 = vunpack.c.l.b16 %v446
      %v1475 = vunpack.c.l.b16 %v447
      %v1476 = vunpack.c.l.b16 %v448
      %v1477 = vunpack.c.l.b16 %v449
      %v1478 = vunpack.c.l.b16 %v450
      %v1479 = vunpack.c.l.b16 %v451
      %v1480 = vunpack.c.l.b16 %v452
      %v1481 = vunpack.c.l.b16 %v453
      %v1482 = vunpack.c.l.b16 %v454
      %v1483 = vunpack.c.l.b16 %v455
      %v1484 = vunpack.c.l.b16 %v456
      %v1485 = vunpack.c.l.b16 %v457
      %v1486 = vunpack.c.l.b16 %v458
      %v1487 = vunpack.c.l.b16 %v459
      %v1488 = vunpack.c.l.b16 %v460
      %v1489 = vunpack.c.l.b16 %v461
      %v1490 = vunpack.c.l.b16 %v462
      %v1491 = vunpack.c.l.b16 %v463
      %v1492 = vunpack.c.l.b16 %v464
      %v1493 = vunpack.c.l.b16 %v465
      %v1494 = vunpack.c.l.b16 %v466
      %v1495 = vunpack.c.l.b16 %v467
      %v1496 = vunpack.c.l.b16 %v468
      %v1497 = vunpack.c.l.b16 %v469
      %v1498 = vunpack.c.l.b16 %v470
      %v1499 = vunpack.c.l.b16 %v471
      %v1500 = vunpack.c.l.b16 %v472
      %v1501 = vunpack.c.l.b16 %v473
      %v1502 = vunpack.c.l.b16 %v474
      %v1503 = vunpack.c.l.b16 %v475
      %v1504 = vunpack.c.l.b16 %v476
      %v1505 = vunpack.c.l.b16 %v477
      %v1506 = vunpack.c.l.b16 %v478
      %v1507 = vunpack.c.l.b16 %v479
      %v1508 = vunpack.c.l.b16 %v480
      %v1509 = vunpack.c.l.b16 %v481
      %v1510 = vunpack.c.l.b16 %v482
      %v1511 = vunpack.c.l.b16 %v483
      %v1512 = vunpack.c.l.b16 %v484
      %v1513 = vunpack.c.l.b16 %v485
      %v1514 = vunpack.c.l.b16 %v486
      %v1515 = vunpack.c.l.b16 %v487
      %v1516 = vunpack.c.l.b16 %v488
      %v1517 = vunpack.c.l.b16 %v489
      %v1518 = vunpack.c.l.b16 %v490
      %v1519 = vunpack.c.l.b16 %v491
      %v1520 = vunpack.c.l.b16 %v492
      %v1521 = vunpack.c.l.b16 %v493
      %v1522 = vunpack.c.l.b16 %v494
      %v1523 = vunpack.c.l.b16 %v495
      %v1524 = vunpack.c.l.b16 %v496
      %v1525 = vunpack.c.l.b16 %v497
      %v1526 = vunpack.c.l.b16 %v498
      %v1527 = vunpack.c.l.b16 %v499
      %v1528 = vunpack.c.l.b16 %v500
      %v1529 = vunpack.c.l.b16 %v501
      %v1530 = vunpack.c.l.b16 %v502
      %v1531 = vunpack.c.l.b16 %v503
      %v1532 = vunpack.c.l.b16 %v504
      %v1533 = vunpack.c.l.b16 %v505
      %v1534 = vunpack.c.l.b16 %v506
      %v1535 = vunpack.c.l.b16 %v507
      %v1536 = vunpack.c.l.b16 %v508
      %v1537 = vunpack.c.l.b16 %v509
      %v1538 = vunpack.c.l.b16 %v510
      %v1539 = vunpack.c.l.b16 %v511
      %v1540 = vunpack.c.l.b16 %v512
      %v1541 = vunpack.c.l.b16 %v513
      %v1542 = vunpack.c.l.b16 %v514
      %v1543 = vunpack.c.l.b16 %v515
      %v1544 = vunpack.c.l.b16 %v516
      %v1545 = vunpack.c.l.b16 %v517
      %v1546 = vunpack.c.l.b16 %v518
      %v1547 = vunpack.c.l.b16 %v519
      %v1548 = vunpack.c.l.b16 %v520
      %v1549 = vunpack.c.l.b16 %v521
      %v1550 = vunpack.c.l.b16 %v522
      %v1551 = vunpack.c.l.b16 %v523
      %v1552 = vunpack.c.l.b16 %v524
      %v1553 = vunpack.c.l.b16 %v525
      %v1554 = vunpack.c.l.b16 %v526
      %v1555 = vunpack.c.l.b16 %v527
      %v1556 = vunpack.c.l.b16 %v528
      %v1557 = vunpack.c.l.b16 %v529
      %v1558 = vpack.c.b16 %v1415, %v1414
      %v1559 = vpack.c.b16 %v1417, %v1416
      %v1560 = vpack.c.b16 %v1419, %v1418
      %v1561 = vpack.c.b16 %v1421, %v1420
      %v1562 = vpack.c.b16 %v1423, %v1422
      %v1563 = vpack.c.b16 %v1425, %v1424
      %v1564 = vpack.c.b16 %v1427, %v1426
      %v1565 = vpack.c.b16 %v1429, %v1428
      %v1566 = vpack.c.b16 %v1431, %v1430
      %v1567 = vpack.c.b16 %v1433, %v1432
      %v1568 = vpack.c.b16 %v1435, %v1434
      %v1569 = vpack.c.b16 %v1437, %v1436
      %v1570 = vpack.c.b16 %v1439, %v1438
      %v1571 = vpack.c.b16 %v1441, %v1440
      %v1572 = vpack.c.b16 %v1443, %v1442
      %v1573 = vpack.c.b16 %v1445, %v1444
      %v1574 = vpack.c.b16 %v1447, %v1446
      %v1575 = vpack.c.b16 %v1449, %v1448
      %v1576 = vpack.c.b16 %v1451, %v1450
      %v1577 = vpack.c.b16 %v1453, %v1452
      %v1578 = vpack.c.b16 %v1455, %v1454
      %v1579 = vpack.c.b16 %v1457, %v1456
      %v1580 = vpack.c.b16 %v1459, %v1458
      %v1581 = vpack.c.b16 %v1461, %v1460
      %v1582 = vpack.c.b16 %v1463, %v1462
      %v1583 = vpack.c.b16 %v1465, %v1464
      %v1584 = vpack.c.b16 %v1467, %v1466
      %v1585 = vpack.c.b16 %v1469, %v1468
      %v1586 = vpack.c.b16 %v1471, %v1470
      %v1587 = vpack.c.b16 %v1473, %v1472
      %v1588 = vpack.c.b16 %v1475, %v1474
      %v1589 = vpack.c.b16 %v1477, %v1476
      %v1590 = vpack.c.b16 %v1479, %v1478
      %v1591 = vpack.c.b16 %v1481, %v1480
      %v1592 = vpack.c.b16 %v1483, %v1482
      %v1593 = vpack.c.b16 %v1485, %v1484
      %v1594 = vpack.c.b16 %v1487, %v1486
      %v1595 = vpack.c.b16 %v1489, %v1488
      %v1596 = vpack.c.b16 %v1491, %v1490
      %v1597 = vpack.c.b16 %v1493, %v1492
      %v1598 = vpack.c.b16 %v1495, %v1494
      %v1599 = vpack.c.b16 %v1497, %v1496
      %v1600 = vpack.c.b16 %v1499, %v1498
      %v1601 = vpack.c.b16 %v1501, %v1500
      %v1602 = vpack.c.b16 %v1503, %v1502
      %v1603 = vpack.c.b16 %v1505, %v1504
      %v1604 = vpack.c.b16 %v1507, %v1506
      %v1605 = vpack.c.b16 %v1509, %v1508
      %v1606 = vpack.c.b16 %v1511, %v1510
      %v1607 = vpack.c.b16 %v1513, %v1512
      %v1608 = vpack.c.b16 %v1515, %v1514
      %v1609 = vpack.c.b16 %v1517, %v1516
      %v1610 = vpack.c.b16 %v1519, %v1518
      %v1611 = vpack.c.b16 %v1521, %v1520
      %v1612 = vpack.c.b16 %v1523, %v1522
      %v1613 = vpack.c.b16 %v1525, %v1524
      %v1614 = vpack.c.b16 %v1527, %v1526
      %v1615 = vpack.c.b16 %v1529, %v1528
      %v1616 = vpack.c.b16 %v1531, %v1530
      %v1617 = vpack.c.b16 %v1533, %v1532
      %v1618 = vpack.c.b16 %v1535, %v1534
      %v1619 = vpack.c.b16 %v1537, %v1536
      %v1620 = vpack.c.b16 %v1539, %v1538
      %v1621 = vpack.c.b16 %v1541, %v1540
      %v1622 = vpack.c.b16 %v1543, %v1542
      %v1623 = vpack.c.b16 %v1545, %v1544
      %v1624 = vpack.c.b16 %v1547, %v1546
      %v1625 = vpack.c.b16 %v1549, %v1548
      %v1626 = vpack.c.b16 %v1551, %v1550
      %v1627 = vpack.c.b16 %v1553, %v1552
      %v1628 = vpack.c.b16 %v1555, %v1554
      %v1629 = vpack.c.b16 %v1557, %v1556
      %1702 = vmatpush.bf16.msra.mxu0 %v1565
      %1703 = vmatpush.bf16.msra.mxu0 %v1564
      %1704 = vmatpush.bf16.msra.mxu0 %v1563
      %1705 = vmatpush.bf16.msra.mxu0 %v1562
      %1706 = vmatpush.bf16.msra.mxu0 %v1561
      %1707 = vmatpush.bf16.msra.mxu0 %v1560
      %1708 = vmatpush.bf16.msra.mxu0 %v1559
      %1709 = vmatpush.bf16.msra.mxu0 %v1558
      %1710 = vmatmul.bf16.gmra.mxu0 %v982
      %v1711 = vpop.f32.mrf.mxu0
      %v1712 = vadd.f32 %v532, %v1711
      %v1713 = vpop.f32.mrf.mxu0
      %v1714 = vadd.f32 %v532, %v1713
      %1715 = vmatmul.bf16.gmra.mxu0 %v991
      %v1716 = vpop.f32.mrf.mxu0
      %v1717 = vadd.f32 %v532, %v1716
      %v1718 = vpop.f32.mrf.mxu0
      %v1719 = vadd.f32 %v532, %v1718
      %1720 = vmatmul.bf16.gmra.mxu0 %v1000
      %v1721 = vpop.f32.mrf.mxu0
      %v1722 = vadd.f32 %v532, %v1721
      %v1723 = vpop.f32.mrf.mxu0
      %v1724 = vadd.f32 %v532, %v1723
      %1725 = vmatmul.bf16.gmra.mxu0 %v1009
      %v1726 = vpop.f32.mrf.mxu0
      %v1727 = vadd.f32 %v532, %v1726
      %v1728 = vpop.f32.mrf.mxu0
      %v1729 = vadd.f32 %v532, %v1728
      %1730 = vmatmul.bf16.gmra.mxu0 %v1018
      %v1731 = vpop.f32.mrf.mxu0
      %v1732 = vadd.f32 %v532, %v1731
      %v1733 = vpop.f32.mrf.mxu0
      %v1734 = vadd.f32 %v532, %v1733
      %1735 = vmatmul.bf16.gmra.mxu0 %v1027
      %v1736 = vpop.f32.mrf.mxu0
      %v1737 = vadd.f32 %v532, %v1736
      %v1738 = vpop.f32.mrf.mxu0
      %v1739 = vadd.f32 %v532, %v1738
      %1740 = vmatmul.bf16.gmra.mxu0 %v1036
      %v1741 = vpop.f32.mrf.mxu0
      %v1742 = vadd.f32 %v532, %v1741
      %v1743 = vpop.f32.mrf.mxu0
      %v1744 = vadd.f32 %v532, %v1743
      %1745 = vmatmul.bf16.gmra.mxu0 %v1045
      %v1746 = vpop.f32.mrf.mxu0
      %v1747 = vadd.f32 %v532, %v1746
      %v1748 = vpop.f32.mrf.mxu0
      %v1749 = vadd.f32 %v532, %v1748
      %1750 = vmatmul.bf16.gmra.mxu0 %v1054
      %v1751 = vpop.f32.mrf.mxu0
      %v1752 = vadd.f32 %v532, %v1751
      %v1753 = vpop.f32.mrf.mxu0
      %v1754 = vadd.f32 %v532, %v1753
      %1755 = vmatmul.bf16.gmra.mxu0 %v1063
      %v1756 = vpop.f32.mrf.mxu0
      %v1757 = vadd.f32 %v532, %v1756
      %v1758 = vpop.f32.mrf.mxu0
      %v1759 = vadd.f32 %v532, %v1758
      %1760 = vmatmul.bf16.gmra.mxu0 %v1072
      %v1761 = vpop.f32.mrf.mxu0
      %v1762 = vadd.f32 %v532, %v1761
      %v1763 = vpop.f32.mrf.mxu0
      %v1764 = vadd.f32 %v532, %v1763
      %1765 = vmatmul.bf16.gmra.mxu0 %v1081
      %v1766 = vpop.f32.mrf.mxu0
      %v1767 = vadd.f32 %v532, %v1766
      %v1768 = vpop.f32.mrf.mxu0
      %v1769 = vadd.f32 %v532, %v1768
      %1770 = vmatmul.bf16.gmra.mxu0 %v1090
      %v1771 = vpop.f32.mrf.mxu0
      %v1772 = vadd.f32 %v532, %v1771
      %v1773 = vpop.f32.mrf.mxu0
      %v1774 = vadd.f32 %v532, %v1773
      %1775 = vmatmul.bf16.gmra.mxu0 %v1099
      %v1776 = vpop.f32.mrf.mxu0
      %v1777 = vadd.f32 %v532, %v1776
      %v1778 = vpop.f32.mrf.mxu0
      %v1779 = vadd.f32 %v532, %v1778
      %1780 = vmatmul.bf16.gmra.mxu0 %v1108
      %v1781 = vpop.f32.mrf.mxu0
      %v1782 = vadd.f32 %v532, %v1781
      %v1783 = vpop.f32.mrf.mxu0
      %v1784 = vadd.f32 %v532, %v1783
      %1785 = vmatmul.bf16.gmra.mxu0 %v1117
      %v1786 = vpop.f32.mrf.mxu0
      %v1787 = vadd.f32 %v532, %v1786
      %v1788 = vpop.f32.mrf.mxu0
      %v1789 = vadd.f32 %v532, %v1788
      %1790 = vdwg.mxu0
      %1791 = vmatpush.bf16.msra.mxu0 %v1573
      %1792 = vmatpush.bf16.msra.mxu0 %v1572
      %1793 = vmatpush.bf16.msra.mxu0 %v1571
      %1794 = vmatpush.bf16.msra.mxu0 %v1570
      %1795 = vmatpush.bf16.msra.mxu0 %v1569
      %1796 = vmatpush.bf16.msra.mxu0 %v1568
      %1797 = vmatpush.bf16.msra.mxu0 %v1567
      %1798 = vmatpush.bf16.msra.mxu0 %v1566
      %1799 = vmatmul.bf16.gmra.mxu0 %v983
      %v1800 = vpop.f32.mrf.mxu0
      %v1801 = vadd.f32 %v1712, %v1800
      %v1802 = vpop.f32.mrf.mxu0
      %v1803 = vadd.f32 %v1714, %v1802
      %1804 = vmatmul.bf16.gmra.mxu0 %v992
      %v1805 = vpop.f32.mrf.mxu0
      %v1806 = vadd.f32 %v1717, %v1805
      %v1807 = vpop.f32.mrf.mxu0
      %v1808 = vadd.f32 %v1719, %v1807
      %1809 = vmatmul.bf16.gmra.mxu0 %v1001
      %v1810 = vpop.f32.mrf.mxu0
      %v1811 = vadd.f32 %v1722, %v1810
      %v1812 = vpop.f32.mrf.mxu0
      %v1813 = vadd.f32 %v1724, %v1812
      %1814 = vmatmul.bf16.gmra.mxu0 %v1010
      %v1815 = vpop.f32.mrf.mxu0
      %v1816 = vadd.f32 %v1727, %v1815
      %v1817 = vpop.f32.mrf.mxu0
      %v1818 = vadd.f32 %v1729, %v1817
      %1819 = vmatmul.bf16.gmra.mxu0 %v1019
      %v1820 = vpop.f32.mrf.mxu0
      %v1821 = vadd.f32 %v1732, %v1820
      %v1822 = vpop.f32.mrf.mxu0
      %v1823 = vadd.f32 %v1734, %v1822
      %1824 = vmatmul.bf16.gmra.mxu0 %v1028
      %v1825 = vpop.f32.mrf.mxu0
      %v1826 = vadd.f32 %v1737, %v1825
      %v1827 = vpop.f32.mrf.mxu0
      %v1828 = vadd.f32 %v1739, %v1827
      %1829 = vmatmul.bf16.gmra.mxu0 %v1037
      %v1830 = vpop.f32.mrf.mxu0
      %v1831 = vadd.f32 %v1742, %v1830
      %v1832 = vpop.f32.mrf.mxu0
      %v1833 = vadd.f32 %v1744, %v1832
      %1834 = vmatmul.bf16.gmra.mxu0 %v1046
      %v1835 = vpop.f32.mrf.mxu0
      %v1836 = vadd.f32 %v1747, %v1835
      %v1837 = vpop.f32.mrf.mxu0
      %v1838 = vadd.f32 %v1749, %v1837
      %1839 = vmatmul.bf16.gmra.mxu0 %v1055
      %v1840 = vpop.f32.mrf.mxu0
      %v1841 = vadd.f32 %v1752, %v1840
      %v1842 = vpop.f32.mrf.mxu0
      %v1843 = vadd.f32 %v1754, %v1842
      %1844 = vmatmul.bf16.gmra.mxu0 %v1064
      %v1845 = vpop.f32.mrf.mxu0
      %v1846 = vadd.f32 %v1757, %v1845
      %v1847 = vpop.f32.mrf.mxu0
      %v1848 = vadd.f32 %v1759, %v1847
      %1849 = vmatmul.bf16.gmra.mxu0 %v1073
      %v1850 = vpop.f32.mrf.mxu0
      %v1851 = vadd.f32 %v1762, %v1850
      %v1852 = vpop.f32.mrf.mxu0
      %v1853 = vadd.f32 %v1764, %v1852
      %1854 = vmatmul.bf16.gmra.mxu0 %v1082
      %v1855 = vpop.f32.mrf.mxu0
      %v1856 = vadd.f32 %v1767, %v1855
      %v1857 = vpop.f32.mrf.mxu0
      %v1858 = vadd.f32 %v1769, %v1857
      %1859 = vmatmul.bf16.gmra.mxu0 %v1091
      %v1860 = vpop.f32.mrf.mxu0
      %v1861 = vadd.f32 %v1772, %v1860
      %v1862 = vpop.f32.mrf.mxu0
      %v1863 = vadd.f32 %v1774, %v1862
      %1864 = vmatmul.bf16.gmra.mxu0 %v1100
      %v1865 = vpop.f32.mrf.mxu0
      %v1866 = vadd.f32 %v1777, %v1865
      %v1867 = vpop.f32.mrf.mxu0
      %v1868 = vadd.f32 %v1779, %v1867
      %1869 = vmatmul.bf16.gmra.mxu0 %v1109
      %v1870 = vpop.f32.mrf.mxu0
      %v1871 = vadd.f32 %v1782, %v1870
      %v1872 = vpop.f32.mrf.mxu0
      %v1873 = vadd.f32 %v1784, %v1872
      %1874 = vmatmul.bf16.gmra.mxu0 %v1118
      %v1875 = vpop.f32.mrf.mxu0
      %v1876 = vadd.f32 %v1787, %v1875
      %v1877 = vpop.f32.mrf.mxu0
      %v1878 = vadd.f32 %v1789, %v1877
      %1879 = vdwg.mxu0
      %1880 = vmatpush.bf16.msra.mxu0 %v1581
      %1881 = vmatpush.bf16.msra.mxu0 %v1580
      %1882 = vmatpush.bf16.msra.mxu0 %v1579
      %1883 = vmatpush.bf16.msra.mxu0 %v1578
      %1884 = vmatpush.bf16.msra.mxu0 %v1577
      %1885 = vmatpush.bf16.msra.mxu0 %v1576
      %1886 = vmatpush.bf16.msra.mxu0 %v1575
      %1887 = vmatpush.bf16.msra.mxu0 %v1574
      %1888 = vmatmul.bf16.gmra.mxu0 %v984
      %v1889 = vpop.f32.mrf.mxu0
      %v1890 = vadd.f32 %v1801, %v1889
      %v1891 = vpop.f32.mrf.mxu0
      %v1892 = vadd.f32 %v1803, %v1891
      %1893 = vmatmul.bf16.gmra.mxu0 %v993
      %v1894 = vpop.f32.mrf.mxu0
      %v1895 = vadd.f32 %v1806, %v1894
      %v1896 = vpop.f32.mrf.mxu0
      %v1897 = vadd.f32 %v1808, %v1896
      %1898 = vmatmul.bf16.gmra.mxu0 %v1002
      %v1899 = vpop.f32.mrf.mxu0
      %v1900 = vadd.f32 %v1811, %v1899
      %v1901 = vpop.f32.mrf.mxu0
      %v1902 = vadd.f32 %v1813, %v1901
      %1903 = vmatmul.bf16.gmra.mxu0 %v1011
      %v1904 = vpop.f32.mrf.mxu0
      %v1905 = vadd.f32 %v1816, %v1904
      %v1906 = vpop.f32.mrf.mxu0
      %v1907 = vadd.f32 %v1818, %v1906
      %1908 = vmatmul.bf16.gmra.mxu0 %v1020
      %v1909 = vpop.f32.mrf.mxu0
      %v1910 = vadd.f32 %v1821, %v1909
      %v1911 = vpop.f32.mrf.mxu0
      %v1912 = vadd.f32 %v1823, %v1911
      %1913 = vmatmul.bf16.gmra.mxu0 %v1029
      %v1914 = vpop.f32.mrf.mxu0
      %v1915 = vadd.f32 %v1826, %v1914
      %v1916 = vpop.f32.mrf.mxu0
      %v1917 = vadd.f32 %v1828, %v1916
      %1918 = vmatmul.bf16.gmra.mxu0 %v1038
      %v1919 = vpop.f32.mrf.mxu0
      %v1920 = vadd.f32 %v1831, %v1919
      %v1921 = vpop.f32.mrf.mxu0
      %v1922 = vadd.f32 %v1833, %v1921
      %1923 = vmatmul.bf16.gmra.mxu0 %v1047
      %v1924 = vpop.f32.mrf.mxu0
      %v1925 = vadd.f32 %v1836, %v1924
      %v1926 = vpop.f32.mrf.mxu0
      %v1927 = vadd.f32 %v1838, %v1926
      %1928 = vmatmul.bf16.gmra.mxu0 %v1056
      %v1929 = vpop.f32.mrf.mxu0
      %v1930 = vadd.f32 %v1841, %v1929
      %v1931 = vpop.f32.mrf.mxu0
      %v1932 = vadd.f32 %v1843, %v1931
      %1933 = vmatmul.bf16.gmra.mxu0 %v1065
      %v1934 = vpop.f32.mrf.mxu0
      %v1935 = vadd.f32 %v1846, %v1934
      %v1936 = vpop.f32.mrf.mxu0
      %v1937 = vadd.f32 %v1848, %v1936
      %1938 = vmatmul.bf16.gmra.mxu0 %v1074
      %v1939 = vpop.f32.mrf.mxu0
      %v1940 = vadd.f32 %v1851, %v1939
      %v1941 = vpop.f32.mrf.mxu0
      %v1942 = vadd.f32 %v1853, %v1941
      %1943 = vmatmul.bf16.gmra.mxu0 %v1083
      %v1944 = vpop.f32.mrf.mxu0
      %v1945 = vadd.f32 %v1856, %v1944
      %v1946 = vpop.f32.mrf.mxu0
      %v1947 = vadd.f32 %v1858, %v1946
      %1948 = vmatmul.bf16.gmra.mxu0 %v1092
      %v1949 = vpop.f32.mrf.mxu0
      %v1950 = vadd.f32 %v1861, %v1949
      %v1951 = vpop.f32.mrf.mxu0
      %v1952 = vadd.f32 %v1863, %v1951
      %1953 = vmatmul.bf16.gmra.mxu0 %v1101
      %v1954 = vpop.f32.mrf.mxu0
      %v1955 = vadd.f32 %v1866, %v1954
      %v1956 = vpop.f32.mrf.mxu0
      %v1957 = vadd.f32 %v1868, %v1956
      %1958 = vmatmul.bf16.gmra.mxu0 %v1110
      %v1959 = vpop.f32.mrf.mxu0
      %v1960 = vadd.f32 %v1871, %v1959
      %v1961 = vpop.f32.mrf.mxu0
      %v1962 = vadd.f32 %v1873, %v1961
      %1963 = vmatmul.bf16.gmra.mxu0 %v1119
      %v1964 = vpop.f32.mrf.mxu0
      %v1965 = vadd.f32 %v1876, %v1964
      %v1966 = vpop.f32.mrf.mxu0
      %v1967 = vadd.f32 %v1878, %v1966
      %1968 = vdwg.mxu0
      %1969 = vmatpush.bf16.msra.mxu0 %v1589
      %1970 = vmatpush.bf16.msra.mxu0 %v1588
      %1971 = vmatpush.bf16.msra.mxu0 %v1587
      %1972 = vmatpush.bf16.msra.mxu0 %v1586
      %1973 = vmatpush.bf16.msra.mxu0 %v1585
      %1974 = vmatpush.bf16.msra.mxu0 %v1584
      %1975 = vmatpush.bf16.msra.mxu0 %v1583
      %1976 = vmatpush.bf16.msra.mxu0 %v1582
      %1977 = vmatmul.bf16.gmra.mxu0 %v985
      %v1978 = vpop.f32.mrf.mxu0
      %v1979 = vadd.f32 %v1890, %v1978
      %v1980 = vpop.f32.mrf.mxu0
      %v1981 = vadd.f32 %v1892, %v1980
      %1982 = vmatmul.bf16.gmra.mxu0 %v994
      %v1983 = vpop.f32.mrf.mxu0
      %v1984 = vadd.f32 %v1895, %v1983
      %v1985 = vpop.f32.mrf.mxu0
      %v1986 = vadd.f32 %v1897, %v1985
      %1987 = vmatmul.bf16.gmra.mxu0 %v1003
      %v1988 = vpop.f32.mrf.mxu0
      %v1989 = vadd.f32 %v1900, %v1988
      %v1990 = vpop.f32.mrf.mxu0
      %v1991 = vadd.f32 %v1902, %v1990
      %1992 = vmatmul.bf16.gmra.mxu0 %v1012
      %v1993 = vpop.f32.mrf.mxu0
      %v1994 = vadd.f32 %v1905, %v1993
      %v1995 = vpop.f32.mrf.mxu0
      %v1996 = vadd.f32 %v1907, %v1995
      %1997 = vmatmul.bf16.gmra.mxu0 %v1021
      %v1998 = vpop.f32.mrf.mxu0
      %v1999 = vadd.f32 %v1910, %v1998
      %v2000 = vpop.f32.mrf.mxu0
      %v2001 = vadd.f32 %v1912, %v2000
      %2002 = vmatmul.bf16.gmra.mxu0 %v1030
      %v2003 = vpop.f32.mrf.mxu0
      %v2004 = vadd.f32 %v1915, %v2003
      %v2005 = vpop.f32.mrf.mxu0
      %v2006 = vadd.f32 %v1917, %v2005
      %2007 = vmatmul.bf16.gmra.mxu0 %v1039
      %v2008 = vpop.f32.mrf.mxu0
      %v2009 = vadd.f32 %v1920, %v2008
      %v2010 = vpop.f32.mrf.mxu0
      %v2011 = vadd.f32 %v1922, %v2010
      %2012 = vmatmul.bf16.gmra.mxu0 %v1048
      %v2013 = vpop.f32.mrf.mxu0
      %v2014 = vadd.f32 %v1925, %v2013
      %v2015 = vpop.f32.mrf.mxu0
      %v2016 = vadd.f32 %v1927, %v2015
      %2017 = vmatmul.bf16.gmra.mxu0 %v1057
      %v2018 = vpop.f32.mrf.mxu0
      %v2019 = vadd.f32 %v1930, %v2018
      %v2020 = vpop.f32.mrf.mxu0
      %v2021 = vadd.f32 %v1932, %v2020
      %2022 = vmatmul.bf16.gmra.mxu0 %v1066
      %v2023 = vpop.f32.mrf.mxu0
      %v2024 = vadd.f32 %v1935, %v2023
      %v2025 = vpop.f32.mrf.mxu0
      %v2026 = vadd.f32 %v1937, %v2025
      %2027 = vmatmul.bf16.gmra.mxu0 %v1075
      %v2028 = vpop.f32.mrf.mxu0
      %v2029 = vadd.f32 %v1940, %v2028
      %v2030 = vpop.f32.mrf.mxu0
      %v2031 = vadd.f32 %v1942, %v2030
      %2032 = vmatmul.bf16.gmra.mxu0 %v1084
      %v2033 = vpop.f32.mrf.mxu0
      %v2034 = vadd.f32 %v1945, %v2033
      %v2035 = vpop.f32.mrf.mxu0
      %v2036 = vadd.f32 %v1947, %v2035
      %2037 = vmatmul.bf16.gmra.mxu0 %v1093
      %v2038 = vpop.f32.mrf.mxu0
      %v2039 = vadd.f32 %v1950, %v2038
      %v2040 = vpop.f32.mrf.mxu0
      %v2041 = vadd.f32 %v1952, %v2040
      %2042 = vmatmul.bf16.gmra.mxu0 %v1102
      %v2043 = vpop.f32.mrf.mxu0
      %v2044 = vadd.f32 %v1955, %v2043
      %v2045 = vpop.f32.mrf.mxu0
      %v2046 = vadd.f32 %v1957, %v2045
      %2047 = vmatmul.bf16.gmra.mxu0 %v1111
      %v2048 = vpop.f32.mrf.mxu0
      %v2049 = vadd.f32 %v1960, %v2048
      %v2050 = vpop.f32.mrf.mxu0
      %v2051 = vadd.f32 %v1962, %v2050
      %2052 = vmatmul.bf16.gmra.mxu0 %v1120
      %v2053 = vpop.f32.mrf.mxu0
      %v2054 = vadd.f32 %v1965, %v2053
      %v2055 = vpop.f32.mrf.mxu0
      %v2056 = vadd.f32 %v1967, %v2055
      %2057 = vdwg.mxu0
      %2058 = vmatpush.bf16.msra.mxu0 %v1597
      %2059 = vmatpush.bf16.msra.mxu0 %v1596
      %2060 = vmatpush.bf16.msra.mxu0 %v1595
      %2061 = vmatpush.bf16.msra.mxu0 %v1594
      %2062 = vmatpush.bf16.msra.mxu0 %v1593
      %2063 = vmatpush.bf16.msra.mxu0 %v1592
      %2064 = vmatpush.bf16.msra.mxu0 %v1591
      %2065 = vmatpush.bf16.msra.mxu0 %v1590
      %2066 = vmatmul.bf16.gmra.mxu0 %v986
      %v2067 = vpop.f32.mrf.mxu0
      %v2068 = vadd.f32 %v1979, %v2067
      %v2069 = vpop.f32.mrf.mxu0
      %v2070 = vadd.f32 %v1981, %v2069
      %2071 = vmatmul.bf16.gmra.mxu0 %v995
      %v2072 = vpop.f32.mrf.mxu0
      %v2073 = vadd.f32 %v1984, %v2072
      %v2074 = vpop.f32.mrf.mxu0
      %v2075 = vadd.f32 %v1986, %v2074
      %2076 = vmatmul.bf16.gmra.mxu0 %v1004
      %v2077 = vpop.f32.mrf.mxu0
      %v2078 = vadd.f32 %v1989, %v2077
      %v2079 = vpop.f32.mrf.mxu0
      %v2080 = vadd.f32 %v1991, %v2079
      %2081 = vmatmul.bf16.gmra.mxu0 %v1013
      %v2082 = vpop.f32.mrf.mxu0
      %v2083 = vadd.f32 %v1994, %v2082
      %v2084 = vpop.f32.mrf.mxu0
      %v2085 = vadd.f32 %v1996, %v2084
      %2086 = vmatmul.bf16.gmra.mxu0 %v1022
      %v2087 = vpop.f32.mrf.mxu0
      %v2088 = vadd.f32 %v1999, %v2087
      %v2089 = vpop.f32.mrf.mxu0
      %v2090 = vadd.f32 %v2001, %v2089
      %2091 = vmatmul.bf16.gmra.mxu0 %v1031
      %v2092 = vpop.f32.mrf.mxu0
      %v2093 = vadd.f32 %v2004, %v2092
      %v2094 = vpop.f32.mrf.mxu0
      %v2095 = vadd.f32 %v2006, %v2094
      %2096 = vmatmul.bf16.gmra.mxu0 %v1040
      %v2097 = vpop.f32.mrf.mxu0
      %v2098 = vadd.f32 %v2009, %v2097
      %v2099 = vpop.f32.mrf.mxu0
      %v2100 = vadd.f32 %v2011, %v2099
      %2101 = vmatmul.bf16.gmra.mxu0 %v1049
      %v2102 = vpop.f32.mrf.mxu0
      %v2103 = vadd.f32 %v2014, %v2102
      %v2104 = vpop.f32.mrf.mxu0
      %v2105 = vadd.f32 %v2016, %v2104
      %2106 = vmatmul.bf16.gmra.mxu0 %v1058
      %v2107 = vpop.f32.mrf.mxu0
      %v2108 = vadd.f32 %v2019, %v2107
      %v2109 = vpop.f32.mrf.mxu0
      %v2110 = vadd.f32 %v2021, %v2109
      %2111 = vmatmul.bf16.gmra.mxu0 %v1067
      %v2112 = vpop.f32.mrf.mxu0
      %v2113 = vadd.f32 %v2024, %v2112
      %v2114 = vpop.f32.mrf.mxu0
      %v2115 = vadd.f32 %v2026, %v2114
      %2116 = vmatmul.bf16.gmra.mxu0 %v1076
      %v2117 = vpop.f32.mrf.mxu0
      %v2118 = vadd.f32 %v2029, %v2117
      %v2119 = vpop.f32.mrf.mxu0
      %v2120 = vadd.f32 %v2031, %v2119
      %2121 = vmatmul.bf16.gmra.mxu0 %v1085
      %v2122 = vpop.f32.mrf.mxu0
      %v2123 = vadd.f32 %v2034, %v2122
      %v2124 = vpop.f32.mrf.mxu0
      %v2125 = vadd.f32 %v2036, %v2124
      %2126 = vmatmul.bf16.gmra.mxu0 %v1094
      %v2127 = vpop.f32.mrf.mxu0
      %v2128 = vadd.f32 %v2039, %v2127
      %v2129 = vpop.f32.mrf.mxu0
      %v2130 = vadd.f32 %v2041, %v2129
      %2131 = vmatmul.bf16.gmra.mxu0 %v1103
      %v2132 = vpop.f32.mrf.mxu0
      %v2133 = vadd.f32 %v2044, %v2132
      %v2134 = vpop.f32.mrf.mxu0
      %v2135 = vadd.f32 %v2046, %v2134
      %2136 = vmatmul.bf16.gmra.mxu0 %v1112
      %v2137 = vpop.f32.mrf.mxu0
      %v2138 = vadd.f32 %v2049, %v2137
      %v2139 = vpop.f32.mrf.mxu0
      %v2140 = vadd.f32 %v2051, %v2139
      %2141 = vmatmul.bf16.gmra.mxu0 %v1121
      %v2142 = vpop.f32.mrf.mxu0
      %v2143 = vadd.f32 %v2054, %v2142
      %v2144 = vpop.f32.mrf.mxu0
      %v2145 = vadd.f32 %v2056, %v2144
      %2146 = vdwg.mxu0
      %2147 = vmatpush.bf16.msra.mxu0 %v1605
      %2148 = vmatpush.bf16.msra.mxu0 %v1604
      %2149 = vmatpush.bf16.msra.mxu0 %v1603
      %2150 = vmatpush.bf16.msra.mxu0 %v1602
      %2151 = vmatpush.bf16.msra.mxu0 %v1601
      %2152 = vmatpush.bf16.msra.mxu0 %v1600
      %2153 = vmatpush.bf16.msra.mxu0 %v1599
      %2154 = vmatpush.bf16.msra.mxu0 %v1598
      %2155 = vmatmul.bf16.gmra.mxu0 %v987
      %v2156 = vpop.f32.mrf.mxu0
      %v2157 = vadd.f32 %v2068, %v2156
      %v2158 = vpop.f32.mrf.mxu0
      %v2159 = vadd.f32 %v2070, %v2158
      %2160 = vmatmul.bf16.gmra.mxu0 %v996
      %v2161 = vpop.f32.mrf.mxu0
      %v2162 = vadd.f32 %v2073, %v2161
      %v2163 = vpop.f32.mrf.mxu0
      %v2164 = vadd.f32 %v2075, %v2163
      %2165 = vmatmul.bf16.gmra.mxu0 %v1005
      %v2166 = vpop.f32.mrf.mxu0
      %v2167 = vadd.f32 %v2078, %v2166
      %v2168 = vpop.f32.mrf.mxu0
      %v2169 = vadd.f32 %v2080, %v2168
      %2170 = vmatmul.bf16.gmra.mxu0 %v1014
      %v2171 = vpop.f32.mrf.mxu0
      %v2172 = vadd.f32 %v2083, %v2171
      %v2173 = vpop.f32.mrf.mxu0
      %v2174 = vadd.f32 %v2085, %v2173
      %2175 = vmatmul.bf16.gmra.mxu0 %v1023
      %v2176 = vpop.f32.mrf.mxu0
      %v2177 = vadd.f32 %v2088, %v2176
      %v2178 = vpop.f32.mrf.mxu0
      %v2179 = vadd.f32 %v2090, %v2178
      %2180 = vmatmul.bf16.gmra.mxu0 %v1032
      %v2181 = vpop.f32.mrf.mxu0
      %v2182 = vadd.f32 %v2093, %v2181
      %v2183 = vpop.f32.mrf.mxu0
      %v2184 = vadd.f32 %v2095, %v2183
      %2185 = vmatmul.bf16.gmra.mxu0 %v1041
      %v2186 = vpop.f32.mrf.mxu0
      %v2187 = vadd.f32 %v2098, %v2186
      %v2188 = vpop.f32.mrf.mxu0
      %v2189 = vadd.f32 %v2100, %v2188
      %2190 = vmatmul.bf16.gmra.mxu0 %v1050
      %v2191 = vpop.f32.mrf.mxu0
      %v2192 = vadd.f32 %v2103, %v2191
      %v2193 = vpop.f32.mrf.mxu0
      %v2194 = vadd.f32 %v2105, %v2193
      %2195 = vmatmul.bf16.gmra.mxu0 %v1059
      %v2196 = vpop.f32.mrf.mxu0
      %v2197 = vadd.f32 %v2108, %v2196
      %v2198 = vpop.f32.mrf.mxu0
      %v2199 = vadd.f32 %v2110, %v2198
      %2200 = vmatmul.bf16.gmra.mxu0 %v1068
      %v2201 = vpop.f32.mrf.mxu0
      %v2202 = vadd.f32 %v2113, %v2201
      %v2203 = vpop.f32.mrf.mxu0
      %v2204 = vadd.f32 %v2115, %v2203
      %2205 = vmatmul.bf16.gmra.mxu0 %v1077
      %v2206 = vpop.f32.mrf.mxu0
      %v2207 = vadd.f32 %v2118, %v2206
      %v2208 = vpop.f32.mrf.mxu0
      %v2209 = vadd.f32 %v2120, %v2208
      %2210 = vmatmul.bf16.gmra.mxu0 %v1086
      %v2211 = vpop.f32.mrf.mxu0
      %v2212 = vadd.f32 %v2123, %v2211
      %v2213 = vpop.f32.mrf.mxu0
      %v2214 = vadd.f32 %v2125, %v2213
      %2215 = vmatmul.bf16.gmra.mxu0 %v1095
      %v2216 = vpop.f32.mrf.mxu0
      %v2217 = vadd.f32 %v2128, %v2216
      %v2218 = vpop.f32.mrf.mxu0
      %v2219 = vadd.f32 %v2130, %v2218
      %2220 = vmatmul.bf16.gmra.mxu0 %v1104
      %v2221 = vpop.f32.mrf.mxu0
      %v2222 = vadd.f32 %v2133, %v2221
      %v2223 = vpop.f32.mrf.mxu0
      %v2224 = vadd.f32 %v2135, %v2223
      %2225 = vmatmul.bf16.gmra.mxu0 %v1113
      %v2226 = vpop.f32.mrf.mxu0
      %v2227 = vadd.f32 %v2138, %v2226
      %v2228 = vpop.f32.mrf.mxu0
      %v2229 = vadd.f32 %v2140, %v2228
      %2230 = vmatmul.bf16.gmra.mxu0 %v1122
      %v2231 = vpop.f32.mrf.mxu0
      %v2232 = vadd.f32 %v2143, %v2231
      %v2233 = vpop.f32.mrf.mxu0
      %v2234 = vadd.f32 %v2145, %v2233
      %2235 = vdwg.mxu0
      %2236 = vmatpush.bf16.msra.mxu0 %v1613
      %2237 = vmatpush.bf16.msra.mxu0 %v1612
      %2238 = vmatpush.bf16.msra.mxu0 %v1611
      %2239 = vmatpush.bf16.msra.mxu0 %v1610
      %2240 = vmatpush.bf16.msra.mxu0 %v1609
      %2241 = vmatpush.bf16.msra.mxu0 %v1608
      %2242 = vmatpush.bf16.msra.mxu0 %v1607
      %2243 = vmatpush.bf16.msra.mxu0 %v1606
      %2244 = vmatmul.bf16.gmra.mxu0 %v988
      %v2245 = vpop.f32.mrf.mxu0
      %v2246 = vadd.f32 %v2157, %v2245
      %v2247 = vpop.f32.mrf.mxu0
      %v2248 = vadd.f32 %v2159, %v2247
      %2249 = vmatmul.bf16.gmra.mxu0 %v997
      %v2250 = vpop.f32.mrf.mxu0
      %v2251 = vadd.f32 %v2162, %v2250
      %v2252 = vpop.f32.mrf.mxu0
      %v2253 = vadd.f32 %v2164, %v2252
      %2254 = vmatmul.bf16.gmra.mxu0 %v1006
      %v2255 = vpop.f32.mrf.mxu0
      %v2256 = vadd.f32 %v2167, %v2255
      %v2257 = vpop.f32.mrf.mxu0
      %v2258 = vadd.f32 %v2169, %v2257
      %2259 = vmatmul.bf16.gmra.mxu0 %v1015
      %v2260 = vpop.f32.mrf.mxu0
      %v2261 = vadd.f32 %v2172, %v2260
      %v2262 = vpop.f32.mrf.mxu0
      %v2263 = vadd.f32 %v2174, %v2262
      %2264 = vmatmul.bf16.gmra.mxu0 %v1024
      %v2265 = vpop.f32.mrf.mxu0
      %v2266 = vadd.f32 %v2177, %v2265
      %v2267 = vpop.f32.mrf.mxu0
      %v2268 = vadd.f32 %v2179, %v2267
      %2269 = vmatmul.bf16.gmra.mxu0 %v1033
      %v2270 = vpop.f32.mrf.mxu0
      %v2271 = vadd.f32 %v2182, %v2270
      %v2272 = vpop.f32.mrf.mxu0
      %v2273 = vadd.f32 %v2184, %v2272
      %2274 = vmatmul.bf16.gmra.mxu0 %v1042
      %v2275 = vpop.f32.mrf.mxu0
      %v2276 = vadd.f32 %v2187, %v2275
      %v2277 = vpop.f32.mrf.mxu0
      %v2278 = vadd.f32 %v2189, %v2277
      %2279 = vmatmul.bf16.gmra.mxu0 %v1051
      %v2280 = vpop.f32.mrf.mxu0
      %v2281 = vadd.f32 %v2192, %v2280
      %v2282 = vpop.f32.mrf.mxu0
      %v2283 = vadd.f32 %v2194, %v2282
      %2284 = vmatmul.bf16.gmra.mxu0 %v1060
      %v2285 = vpop.f32.mrf.mxu0
      %v2286 = vadd.f32 %v2197, %v2285
      %v2287 = vpop.f32.mrf.mxu0
      %v2288 = vadd.f32 %v2199, %v2287
      %2289 = vmatmul.bf16.gmra.mxu0 %v1069
      %v2290 = vpop.f32.mrf.mxu0
      %v2291 = vadd.f32 %v2202, %v2290
      %v2292 = vpop.f32.mrf.mxu0
      %v2293 = vadd.f32 %v2204, %v2292
      %2294 = vmatmul.bf16.gmra.mxu0 %v1078
      %v2295 = vpop.f32.mrf.mxu0
      %v2296 = vadd.f32 %v2207, %v2295
      %v2297 = vpop.f32.mrf.mxu0
      %v2298 = vadd.f32 %v2209, %v2297
      %2299 = vmatmul.bf16.gmra.mxu0 %v1087
      %v2300 = vpop.f32.mrf.mxu0
      %v2301 = vadd.f32 %v2212, %v2300
      %v2302 = vpop.f32.mrf.mxu0
      %v2303 = vadd.f32 %v2214, %v2302
      %2304 = vmatmul.bf16.gmra.mxu0 %v1096
      %v2305 = vpop.f32.mrf.mxu0
      %v2306 = vadd.f32 %v2217, %v2305
      %v2307 = vpop.f32.mrf.mxu0
      %v2308 = vadd.f32 %v2219, %v2307
      %2309 = vmatmul.bf16.gmra.mxu0 %v1105
      %v2310 = vpop.f32.mrf.mxu0
      %v2311 = vadd.f32 %v2222, %v2310
      %v2312 = vpop.f32.mrf.mxu0
      %v2313 = vadd.f32 %v2224, %v2312
      %2314 = vmatmul.bf16.gmra.mxu0 %v1114
      %v2315 = vpop.f32.mrf.mxu0
      %v2316 = vadd.f32 %v2227, %v2315
      %v2317 = vpop.f32.mrf.mxu0
      %v2318 = vadd.f32 %v2229, %v2317
      %2319 = vmatmul.bf16.gmra.mxu0 %v1123
      %v2320 = vpop.f32.mrf.mxu0
      %v2321 = vadd.f32 %v2232, %v2320
      %v2322 = vpop.f32.mrf.mxu0
      %v2323 = vadd.f32 %v2234, %v2322
      %2324 = vdwg.mxu0
      %2325 = vmatpush.bf16.msra.mxu0 %v1621
      %2326 = vmatpush.bf16.msra.mxu0 %v1620
      %2327 = vmatpush.bf16.msra.mxu0 %v1619
      %2328 = vmatpush.bf16.msra.mxu0 %v1618
      %2329 = vmatpush.bf16.msra.mxu0 %v1617
      %2330 = vmatpush.bf16.msra.mxu0 %v1616
      %2331 = vmatpush.bf16.msra.mxu0 %v1615
      %2332 = vmatpush.bf16.msra.mxu0 %v1614
      %2333 = vmatmul.bf16.gmra.mxu0 %v989
      %v2334 = vpop.f32.mrf.mxu0
      %v2335 = vadd.f32 %v2246, %v2334
      %v2336 = vpop.f32.mrf.mxu0
      %v2337 = vadd.f32 %v2248, %v2336
      %2338 = vmatmul.bf16.gmra.mxu0 %v998
      %v2339 = vpop.f32.mrf.mxu0
      %v2340 = vadd.f32 %v2251, %v2339
      %v2341 = vpop.f32.mrf.mxu0
      %v2342 = vadd.f32 %v2253, %v2341
      %2343 = vmatmul.bf16.gmra.mxu0 %v1007
      %v2344 = vpop.f32.mrf.mxu0
      %v2345 = vadd.f32 %v2256, %v2344
      %v2346 = vpop.f32.mrf.mxu0
      %v2347 = vadd.f32 %v2258, %v2346
      %2348 = vmatmul.bf16.gmra.mxu0 %v1016
      %v2349 = vpop.f32.mrf.mxu0
      %v2350 = vadd.f32 %v2261, %v2349
      %v2351 = vpop.f32.mrf.mxu0
      %v2352 = vadd.f32 %v2263, %v2351
      %2353 = vmatmul.bf16.gmra.mxu0 %v1025
      %v2354 = vpop.f32.mrf.mxu0
      %v2355 = vadd.f32 %v2266, %v2354
      %v2356 = vpop.f32.mrf.mxu0
      %v2357 = vadd.f32 %v2268, %v2356
      %2358 = vmatmul.bf16.gmra.mxu0 %v1034
      %v2359 = vpop.f32.mrf.mxu0
      %v2360 = vadd.f32 %v2271, %v2359
      %v2361 = vpop.f32.mrf.mxu0
      %v2362 = vadd.f32 %v2273, %v2361
      %2363 = vmatmul.bf16.gmra.mxu0 %v1043
      %v2364 = vpop.f32.mrf.mxu0
      %v2365 = vadd.f32 %v2276, %v2364
      %v2366 = vpop.f32.mrf.mxu0
      %v2367 = vadd.f32 %v2278, %v2366
      %2368 = vmatmul.bf16.gmra.mxu0 %v1052
      %v2369 = vpop.f32.mrf.mxu0
      %v2370 = vadd.f32 %v2281, %v2369
      %v2371 = vpop.f32.mrf.mxu0
      %v2372 = vadd.f32 %v2283, %v2371
      %2373 = vmatmul.bf16.gmra.mxu0 %v1061
      %v2374 = vpop.f32.mrf.mxu0
      %v2375 = vadd.f32 %v2286, %v2374
      %v2376 = vpop.f32.mrf.mxu0
      %v2377 = vadd.f32 %v2288, %v2376
      %2378 = vmatmul.bf16.gmra.mxu0 %v1070
      %v2379 = vpop.f32.mrf.mxu0
      %v2380 = vadd.f32 %v2291, %v2379
      %v2381 = vpop.f32.mrf.mxu0
      %v2382 = vadd.f32 %v2293, %v2381
      %2383 = vmatmul.bf16.gmra.mxu0 %v1079
      %v2384 = vpop.f32.mrf.mxu0
      %v2385 = vadd.f32 %v2296, %v2384
      %v2386 = vpop.f32.mrf.mxu0
      %v2387 = vadd.f32 %v2298, %v2386
      %2388 = vmatmul.bf16.gmra.mxu0 %v1088
      %v2389 = vpop.f32.mrf.mxu0
      %v2390 = vadd.f32 %v2301, %v2389
      %v2391 = vpop.f32.mrf.mxu0
      %v2392 = vadd.f32 %v2303, %v2391
      %2393 = vmatmul.bf16.gmra.mxu0 %v1097
      %v2394 = vpop.f32.mrf.mxu0
      %v2395 = vadd.f32 %v2306, %v2394
      %v2396 = vpop.f32.mrf.mxu0
      %v2397 = vadd.f32 %v2308, %v2396
      %2398 = vmatmul.bf16.gmra.mxu0 %v1106
      %v2399 = vpop.f32.mrf.mxu0
      %v2400 = vadd.f32 %v2311, %v2399
      %v2401 = vpop.f32.mrf.mxu0
      %v2402 = vadd.f32 %v2313, %v2401
      %2403 = vmatmul.bf16.gmra.mxu0 %v1115
      %v2404 = vpop.f32.mrf.mxu0
      %v2405 = vadd.f32 %v2316, %v2404
      %v2406 = vpop.f32.mrf.mxu0
      %v2407 = vadd.f32 %v2318, %v2406
      %2408 = vmatmul.bf16.gmra.mxu0 %v1124
      %v2409 = vpop.f32.mrf.mxu0
      %v2410 = vadd.f32 %v2321, %v2409
      %v2411 = vpop.f32.mrf.mxu0
      %v2412 = vadd.f32 %v2323, %v2411
      %2413 = vdwg.mxu0
      %2414 = vmatpush.bf16.msra.mxu0 %v1629
      %2415 = vmatpush.bf16.msra.mxu0 %v1628
      %2416 = vmatpush.bf16.msra.mxu0 %v1627
      %2417 = vmatpush.bf16.msra.mxu0 %v1626
      %2418 = vmatpush.bf16.msra.mxu0 %v1625
      %2419 = vmatpush.bf16.msra.mxu0 %v1624
      %2420 = vmatpush.bf16.msra.mxu0 %v1623
      %2421 = vmatpush.bf16.msra.mxu0 %v1622
      %2422 = vmatmul.bf16.gmra.mxu0 %v990
      %v2423 = vpop.f32.mrf.mxu0
      %v2424 = vadd.f32 %v2335, %v2423
      %v2425 = vpop.f32.mrf.mxu0
      %v2426 = vadd.f32 %v2337, %v2425
      %2427 = vmatmul.bf16.gmra.mxu0 %v999
      %v2428 = vpop.f32.mrf.mxu0
      %v2429 = vadd.f32 %v2340, %v2428
      %v2430 = vpop.f32.mrf.mxu0
      %v2431 = vadd.f32 %v2342, %v2430
      %2432 = vmatmul.bf16.gmra.mxu0 %v1008
      %v2433 = vpop.f32.mrf.mxu0
      %v2434 = vadd.f32 %v2345, %v2433
      %v2435 = vpop.f32.mrf.mxu0
      %v2436 = vadd.f32 %v2347, %v2435
      %2437 = vmatmul.bf16.gmra.mxu0 %v1017
      %v2438 = vpop.f32.mrf.mxu0
      %v2439 = vadd.f32 %v2350, %v2438
      %v2440 = vpop.f32.mrf.mxu0
      %v2441 = vadd.f32 %v2352, %v2440
      %2442 = vmatmul.bf16.gmra.mxu0 %v1026
      %v2443 = vpop.f32.mrf.mxu0
      %v2444 = vadd.f32 %v2355, %v2443
      %v2445 = vpop.f32.mrf.mxu0
      %v2446 = vadd.f32 %v2357, %v2445
      %2447 = vmatmul.bf16.gmra.mxu0 %v1035
      %v2448 = vpop.f32.mrf.mxu0
      %v2449 = vadd.f32 %v2360, %v2448
      %v2450 = vpop.f32.mrf.mxu0
      %v2451 = vadd.f32 %v2362, %v2450
      %2452 = vmatmul.bf16.gmra.mxu0 %v1044
      %v2453 = vpop.f32.mrf.mxu0
      %v2454 = vadd.f32 %v2365, %v2453
      %v2455 = vpop.f32.mrf.mxu0
      %v2456 = vadd.f32 %v2367, %v2455
      %2457 = vmatmul.bf16.gmra.mxu0 %v1053
      %v2458 = vpop.f32.mrf.mxu0
      %v2459 = vadd.f32 %v2370, %v2458
      %v2460 = vpop.f32.mrf.mxu0
      %v2461 = vadd.f32 %v2372, %v2460
      %2462 = vmatmul.bf16.gmra.mxu0 %v1062
      %v2463 = vpop.f32.mrf.mxu0
      %v2464 = vadd.f32 %v2375, %v2463
      %v2465 = vpop.f32.mrf.mxu0
      %v2466 = vadd.f32 %v2377, %v2465
      %2467 = vmatmul.bf16.gmra.mxu0 %v1071
      %v2468 = vpop.f32.mrf.mxu0
      %v2469 = vadd.f32 %v2380, %v2468
      %v2470 = vpop.f32.mrf.mxu0
      %v2471 = vadd.f32 %v2382, %v2470
      %2472 = vmatmul.bf16.gmra.mxu0 %v1080
      %v2473 = vpop.f32.mrf.mxu0
      %v2474 = vadd.f32 %v2385, %v2473
      %v2475 = vpop.f32.mrf.mxu0
      %v2476 = vadd.f32 %v2387, %v2475
      %2477 = vmatmul.bf16.gmra.mxu0 %v1089
      %v2478 = vpop.f32.mrf.mxu0
      %v2479 = vadd.f32 %v2390, %v2478
      %v2480 = vpop.f32.mrf.mxu0
      %v2481 = vadd.f32 %v2392, %v2480
      %2482 = vmatmul.bf16.gmra.mxu0 %v1098
      %v2483 = vpop.f32.mrf.mxu0
      %v2484 = vadd.f32 %v2395, %v2483
      %v2485 = vpop.f32.mrf.mxu0
      %v2486 = vadd.f32 %v2397, %v2485
      %2487 = vmatmul.bf16.gmra.mxu0 %v1107
      %v2488 = vpop.f32.mrf.mxu0
      %v2489 = vadd.f32 %v2400, %v2488
      %v2490 = vpop.f32.mrf.mxu0
      %v2491 = vadd.f32 %v2402, %v2490
      %2492 = vmatmul.bf16.gmra.mxu0 %v1116
      %v2493 = vpop.f32.mrf.mxu0
      %v2494 = vadd.f32 %v2405, %v2493
      %v2495 = vpop.f32.mrf.mxu0
      %v2496 = vadd.f32 %v2407, %v2495
      %2497 = vmatmul.bf16.gmra.mxu0 %v1125
      %v2498 = vpop.f32.mrf.mxu0
      %v2499 = vadd.f32 %v2410, %v2498
      %v2500 = vpop.f32.mrf.mxu0
      %v2501 = vadd.f32 %v2412, %v2500
      %2502 = vdwg.mxu0
      %v2503 = vld [vmem:[%s218] sm:$0xf]
      %v2504 = vld [vmem:[%s218 + $0x4] sm:$0xf]
      %v2505 = vld [vmem:[%s218 + $0x8] sm:$0xf]
      %v2506 = vld [vmem:[%s218 + $0xc] sm:$0xf]
      %v2507 = vld [vmem:[%s218 + $0x10] sm:$0xf]
      %v2508 = vld [vmem:[%s218 + $0x14] sm:$0xf]
      %v2509 = vld [vmem:[%s218 + $0x18] sm:$0xf]
      %v2510 = vld [vmem:[%s218 + $0x1c] sm:$0xf]
      %v2511 = vld [vmem:[%s218 + $0x20] sm:$0xf]
      %v2512 = vld [vmem:[%s218 + $0x24] sm:$0xf]
      %v2513 = vld [vmem:[%s218 + $0x28] sm:$0xf]
      %v2514 = vld [vmem:[%s218 + $0x2c] sm:$0xf]
      %v2515 = vld [vmem:[%s218 + $0x30] sm:$0xf]
      %v2516 = vld [vmem:[%s218 + $0x34] sm:$0xf]
      %v2517 = vld [vmem:[%s218 + $0x38] sm:$0xf]
      %v2518 = vld [vmem:[%s218 + $0x3c] sm:$0xf]
      %v2519 = vld [vmem:[%s218 + $0x40] sm:$0xf]
      %v2520 = vld [vmem:[%s218 + $0x44] sm:$0xf]
      %v2521 = vld [vmem:[%s218 + $0x48] sm:$0xf]
      %v2522 = vld [vmem:[%s218 + $0x4c] sm:$0xf]
      %v2523 = vld [vmem:[%s218 + $0x50] sm:$0xf]
      %v2524 = vld [vmem:[%s218 + $0x54] sm:$0xf]
      %v2525 = vld [vmem:[%s218 + $0x58] sm:$0xf]
      %v2526 = vld [vmem:[%s218 + $0x5c] sm:$0xf]
      %v2527 = vld [vmem:[%s218 + $0x60] sm:$0xf]
      %v2528 = vld [vmem:[%s218 + $0x64] sm:$0xf]
      %v2529 = vld [vmem:[%s218 + $0x68] sm:$0xf]
      %v2530 = vld [vmem:[%s218 + $0x6c] sm:$0xf]
      %v2531 = vld [vmem:[%s218 + $0x70] sm:$0xf]
      %v2532 = vld [vmem:[%s218 + $0x74] sm:$0xf]
      %v2533 = vld [vmem:[%s218 + $0x78] sm:$0xf]
      %v2534 = vld [vmem:[%s218 + $0x7c] sm:$0xf]
      %v2535 = vunpack.c.l.bf16 %v2503
      %v2536 = vunpack.c.l.bf16 %v2504
      %v2537 = vunpack.c.l.bf16 %v2505
      %v2538 = vunpack.c.l.bf16 %v2506
      %v2539 = vunpack.c.l.bf16 %v2507
      %v2540 = vunpack.c.l.bf16 %v2508
      %v2541 = vunpack.c.l.bf16 %v2509
      %v2542 = vunpack.c.l.bf16 %v2510
      %v2543 = vunpack.c.l.bf16 %v2511
      %v2544 = vunpack.c.l.bf16 %v2512
      %v2545 = vunpack.c.l.bf16 %v2513
      %v2546 = vunpack.c.l.bf16 %v2514
      %v2547 = vunpack.c.l.bf16 %v2515
      %v2548 = vunpack.c.l.bf16 %v2516
      %v2549 = vunpack.c.l.bf16 %v2517
      %v2550 = vunpack.c.l.bf16 %v2518
      %v2551 = vunpack.c.l.bf16 %v2519
      %v2552 = vunpack.c.l.bf16 %v2520
      %v2553 = vunpack.c.l.bf16 %v2521
      %v2554 = vunpack.c.l.bf16 %v2522
      %v2555 = vunpack.c.l.bf16 %v2523
      %v2556 = vunpack.c.l.bf16 %v2524
      %v2557 = vunpack.c.l.bf16 %v2525
      %v2558 = vunpack.c.l.bf16 %v2526
      %v2559 = vunpack.c.l.bf16 %v2527
      %v2560 = vunpack.c.l.bf16 %v2528
      %v2561 = vunpack.c.l.bf16 %v2529
      %v2562 = vunpack.c.l.bf16 %v2530
      %v2563 = vunpack.c.l.bf16 %v2531
      %v2564 = vunpack.c.l.bf16 %v2532
      %v2565 = vunpack.c.l.bf16 %v2533
      %v2566 = vunpack.c.l.bf16 %v2534
      %v2567 = vadd.f32 %v2424, %v2535
      %v2568 = vadd.f32 %v2426, %v2536
      %v2569 = vadd.f32 %v2429, %v2537
      %v2570 = vadd.f32 %v2431, %v2538
      %v2571 = vadd.f32 %v2434, %v2539
      %v2572 = vadd.f32 %v2436, %v2540
      %v2573 = vadd.f32 %v2439, %v2541
      %v2574 = vadd.f32 %v2441, %v2542
      %v2575 = vadd.f32 %v2444, %v2543
      %v2576 = vadd.f32 %v2446, %v2544
      %v2577 = vadd.f32 %v2449, %v2545
      %v2578 = vadd.f32 %v2451, %v2546
      %v2579 = vadd.f32 %v2454, %v2547
      %v2580 = vadd.f32 %v2456, %v2548
      %v2581 = vadd.f32 %v2459, %v2549
      %v2582 = vadd.f32 %v2461, %v2550
      %v2583 = vadd.f32 %v2464, %v2551
      %v2584 = vadd.f32 %v2466, %v2552
      %v2585 = vadd.f32 %v2469, %v2553
      %v2586 = vadd.f32 %v2471, %v2554
      %v2587 = vadd.f32 %v2474, %v2555
      %v2588 = vadd.f32 %v2476, %v2556
      %v2589 = vadd.f32 %v2479, %v2557
      %v2590 = vadd.f32 %v2481, %v2558
      %v2591 = vadd.f32 %v2484, %v2559
      %v2592 = vadd.f32 %v2486, %v2560
      %v2593 = vadd.f32 %v2489, %v2561
      %v2594 = vadd.f32 %v2491, %v2562
      %v2595 = vadd.f32 %v2494, %v2563
      %v2596 = vadd.f32 %v2496, %v2564
      %v2597 = vadd.f32 %v2499, %v2565
      %v2598 = vadd.f32 %v2501, %v2566
      %v2599 = vmax.f32 %v2567, 0.0
      %v2600 = vmax.f32 %v2568, 0.0
      %v2601 = vmax.f32 %v2569, 0.0
      %v2602 = vmax.f32 %v2570, 0.0
      %v2603 = vmax.f32 %v2571, 0.0
      %v2604 = vmax.f32 %v2572, 0.0
      %v2605 = vmax.f32 %v2573, 0.0
      %v2606 = vmax.f32 %v2574, 0.0
      %v2607 = vmax.f32 %v2575, 0.0
      %v2608 = vmax.f32 %v2576, 0.0
      %v2609 = vmax.f32 %v2577, 0.0
      %v2610 = vmax.f32 %v2578, 0.0
      %v2611 = vmax.f32 %v2579, 0.0
      %v2612 = vmax.f32 %v2580, 0.0
      %v2613 = vmax.f32 %v2581, 0.0
      %v2614 = vmax.f32 %v2582, 0.0
      %v2615 = vmax.f32 %v2583, 0.0
      %v2616 = vmax.f32 %v2584, 0.0
      %v2617 = vmax.f32 %v2585, 0.0
      %v2618 = vmax.f32 %v2586, 0.0
      %v2619 = vmax.f32 %v2587, 0.0
      %v2620 = vmax.f32 %v2588, 0.0
      %v2621 = vmax.f32 %v2589, 0.0
      %v2622 = vmax.f32 %v2590, 0.0
      %v2623 = vmax.f32 %v2591, 0.0
      %v2624 = vmax.f32 %v2592, 0.0
      %v2625 = vmax.f32 %v2593, 0.0
      %v2626 = vmax.f32 %v2594, 0.0
      %v2627 = vmax.f32 %v2595, 0.0
      %v2628 = vmax.f32 %v2596, 0.0
      %v2629 = vmax.f32 %v2597, 0.0
      %v2630 = vmax.f32 %v2598, 0.0
      %v2631 = vpack.c.bf16 %v2599, %v2599
      %v2632 = vpack.c.bf16 %v2600, %v2600
      %v2633 = vpack.c.bf16 %v2601, %v2601
      %v2634 = vpack.c.bf16 %v2602, %v2602
      %v2635 = vpack.c.bf16 %v2603, %v2603
      %v2636 = vpack.c.bf16 %v2604, %v2604
      %v2637 = vpack.c.bf16 %v2605, %v2605
      %v2638 = vpack.c.bf16 %v2606, %v2606
      %v2639 = vpack.c.bf16 %v2607, %v2607
      %v2640 = vpack.c.bf16 %v2608, %v2608
      %v2641 = vpack.c.bf16 %v2609, %v2609
      %v2642 = vpack.c.bf16 %v2610, %v2610
      %v2643 = vpack.c.bf16 %v2611, %v2611
      %v2644 = vpack.c.bf16 %v2612, %v2612
      %v2645 = vpack.c.bf16 %v2613, %v2613
      %v2646 = vpack.c.bf16 %v2614, %v2614
      %v2647 = vpack.c.bf16 %v2615, %v2615
      %v2648 = vpack.c.bf16 %v2616, %v2616
      %v2649 = vpack.c.bf16 %v2617, %v2617
      %v2650 = vpack.c.bf16 %v2618, %v2618
      %v2651 = vpack.c.bf16 %v2619, %v2619
      %v2652 = vpack.c.bf16 %v2620, %v2620
      %v2653 = vpack.c.bf16 %v2621, %v2621
      %v2654 = vpack.c.bf16 %v2622, %v2622
      %v2655 = vpack.c.bf16 %v2623, %v2623
      %v2656 = vpack.c.bf16 %v2624, %v2624
      %v2657 = vpack.c.bf16 %v2625, %v2625
      %v2658 = vpack.c.bf16 %v2626, %v2626
      %v2659 = vpack.c.bf16 %v2627, %v2627
      %v2660 = vpack.c.bf16 %v2628, %v2628
      %v2661 = vpack.c.bf16 %v2629, %v2629
      %v2662 = vpack.c.bf16 %v2630, %v2630
      %2663 = vst [vmem:[%s224] sm:$0xf] %v2631
      %2664 = vst [vmem:[%s224 + $0x4] sm:$0xf] %v2632
      %2665 = vst [vmem:[%s224 + $0x8] sm:$0xf] %v2633
      %2666 = vst [vmem:[%s224 + $0xc] sm:$0xf] %v2634
      %2667 = vst [vmem:[%s224 + $0x10] sm:$0xf] %v2635
      %2668 = vst [vmem:[%s224 + $0x14] sm:$0xf] %v2636
      %2669 = vst [vmem:[%s224 + $0x18] sm:$0xf] %v2637
      %2670 = vst [vmem:[%s224 + $0x1c] sm:$0xf] %v2638
      %2671 = vst [vmem:[%s224 + $0x20] sm:$0xf] %v2639
      %2672 = vst [vmem:[%s224 + $0x24] sm:$0xf] %v2640
      %2673 = vst [vmem:[%s224 + $0x28] sm:$0xf] %v2641
      %2674 = vst [vmem:[%s224 + $0x2c] sm:$0xf] %v2642
      %2675 = vst [vmem:[%s224 + $0x30] sm:$0xf] %v2643
      %2676 = vst [vmem:[%s224 + $0x34] sm:$0xf] %v2644
      %2677 = vst [vmem:[%s224 + $0x38] sm:$0xf] %v2645
      %2678 = vst [vmem:[%s224 + $0x3c] sm:$0xf] %v2646
      %2679 = vst [vmem:[%s224 + $0x40] sm:$0xf] %v2647
      %2680 = vst [vmem:[%s224 + $0x44] sm:$0xf] %v2648
      %2681 = vst [vmem:[%s224 + $0x48] sm:$0xf] %v2649
      %2682 = vst [vmem:[%s224 + $0x4c] sm:$0xf] %v2650
      %2683 = vst [vmem:[%s224 + $0x50] sm:$0xf] %v2651
      %2684 = vst [vmem:[%s224 + $0x54] sm:$0xf] %v2652
      %2685 = vst [vmem:[%s224 + $0x58] sm:$0xf] %v2653
      %2686 = vst [vmem:[%s224 + $0x5c] sm:$0xf] %v2654
      %2687 = vst [vmem:[%s224 + $0x60] sm:$0xf] %v2655
      %2688 = vst [vmem:[%s224 + $0x64] sm:$0xf] %v2656
      %2689 = vst [vmem:[%s224 + $0x68] sm:$0xf] %v2657
      %2690 = vst [vmem:[%s224 + $0x6c] sm:$0xf] %v2658
      %2691 = vst [vmem:[%s224 + $0x70] sm:$0xf] %v2659
      %2692 = vst [vmem:[%s224 + $0x74] sm:$0xf] %v2660
      %2693 = vst [vmem:[%s224 + $0x78] sm:$0xf] %v2661
      %2694 = vst [vmem:[%s224 + $0x7c] sm:$0xf] %v2662
      %s2695 = smul.u32 32, %s15
      %p2696 = scmp.lt.s32.totalorder %s2695, 63
      %s2697 = scalar_select %p2696, %s2695, 63
      %s2698 = smul.addr %s2697, 4
      %s2699 = scalar_lea.vmem %s4, %s2698
      // Predicated region
      $region37: #{_lambda_.10} parent=35 // pred_check
        %p2700 = pneg %p127
      $region38: #{_lambda_.10} parent=35 // pred_check_branch
        %2702 = sbr.rel (%p2700) target = $region40
      $region39: #{_lambda_.10} parent=35 // pred_region
        %s2703 = smul.u32 32, %s15
      $region40: #{_lambda_.10} parent=35 // pred_fallthru
        _
    $region36: #{_lambda_.10} parent=5 // pred_fallthru
      _
    %p2704 = scmp.le.s32.totalorder 2, %s10
    // Predicated region
    $region41: #{_lambda_.10} parent=5 // pred_check
      %p2705 = pneg %p2704
    $region42: #{_lambda_.10} parent=5 // pred_check_branch
      %2707 = sbr.rel (%p2705) target = $region44
    $region43: #{_lambda_.10} parent=5 // pred_region
      %s2708 = ssub.s32 %s10, 2
      // Predicated region
      $region45: #{_lambda_.10} parent=43 // pred_check
        %p2709 = pneg %p133
      $region46: #{_lambda_.10} parent=43 // pred_check_branch
        %2711 = sbr.rel (%p2709) target = $region48
      $region47: #{_lambda_.10} parent=43 // pred_region
        %s2712 = smul.u32 32, %s16
        %p2713 = scmp.lt.s32.totalorder %s2712, 63
        %s2714 = scalar_select %p2713, %s2712, 63
        %s2715 = smul.addr %s2714, 4
        %s2716 = scalar_lea.vmem %s4, %s2715
      $region48: #{_lambda_.10} parent=43 // pred_fallthru
        _
    $region44: #{_lambda_.10} parent=5 // pred_fallthru
      _
  $region6: #{_lambda_.10} parent=0 // loop_footer
    %s14 = sadd.s32 1, %s10
  $region7: #{_lambda_.10} parent=0 // loop_footer_branch
    %9 = sbr.rel target = $region3
  $region8: #{_lambda_.10} parent=0 // loop_exit
    _

// kernel: _lambda_.11
$region0: #{_lambda_.11}
  #allocation0 [shape = 'u32[]', space=smem, size = 0x4, offset = 0x4, fixed_abs, tag = 'smem constant byte address 0x4 - core index']
  #allocation1 [shape = 'u32[72,128]{1,0:T(1,128)}', space=vmem, size = 0x9000, scoped, tag = 'internal scratch']
  %s0 = inlined_call_operand.vmem [shape: bf16[128,1152], index: 0, kind: input, shape index: {}]
  %s1 = inlined_call_operand.vmem [shape: bf16[1152,128], index: 1, kind: input, shape index: {}]
  %s2 = inlined_call_operand.vmem [shape: f32[1,128], index: 2, kind: input, shape index: {}]
  %s3 = inlined_call_operand.vmem [shape: bf16[128,128], index: 3, kind: output, shape index: {}]
  %s4 = sld [smem:[#allocation0]]
  $region45: #{_lambda_.11} parent=0
    _
  %s6 = ssub.s32 1, %s4
  %s7 = scalar_select 0, %s6, %s4
  loop: start=0, step=1, limit=4
  $region2: #{_lambda_.11} parent=0 // loop_pre_header
    _
  $region3: #{_lambda_.11} parent=0 // loop_header
    %s9 = sphi 0, %s13
    %p10 = scmp.ge.s32.totalorder %s9, 4
    %s19 = sphi 0, %s21
    %s22 = sphi 0, %s19
    %s23 = sphi 0, %s22
    %s39 = sphi 0, %s23
    %s43 = sphi 0, %s43
    %s45 = sphi 0, %s43
    %s46 = sphi 0, %s45
    %s60 = sphi 0, %s46
    %s64 = sphi 0, %s64
    %s66 = sphi 0, %s64
    %s67 = sphi 0, %s66
    %s81 = sphi 0, %s67
    %s87 = sphi 0, %s89
    %s90 = sphi 0, %s87
    %s91 = sphi 0, %s90
    %s107 = sphi 0, %s91
  $region4: #{_lambda_.11} parent=0 // loop_header_branch
    %12 = sbr.rel (%p10) target = $region8
  $region5: #{_lambda_.11} parent=0 // loop_body
    %s14 = ssub.s32 %s9, 1
    %s15 = ssub.s32 %s9, 2
    %s16 = sadd.s32 %s9, 1
    %s17 = ssub.s32 %s9, %s16
    %p18 = scmp.eq.s32.totalorder %s17, 0
    %s20 = sadd.s32 %s19, 1
    %s21 = scalar_select %p18, %s19, %s20
    %p24 = pneg %p18
    %p25 = scmp.eq.s32.totalorder %s9, 1
    %p26 = por %p24, %p25
    %p27 = scmp.ne.s32.totalorder %s19, %s22
    %p28 = scmp.eq.s32.totalorder %s9, 0
    %p29 = por %p27, %p28
    %p30 = scmp.ne.s32.totalorder %s19, %s22
    %p31 = scmp.eq.s32.totalorder %s14, 1
    %p32 = por %p30, %p31
    %p33 = scmp.ne.s32.totalorder %s22, %s23
    %p34 = scmp.eq.s32.totalorder %s14, 0
    %p35 = por %p33, %p34
    %p36 = scmp.ne.s32.totalorder %s22, %s23
    %p37 = scmp.eq.s32.totalorder %s15, 1
    %p38 = por %p36, %p37
    %p40 = scmp.ne.s32.totalorder %s23, %s39
    %p41 = scmp.eq.s32.totalorder %s15, 0
    %p42 = por %p40, %p41
    %s44 = sadd.s32 %s43, 1
    %p47 = scmp.eq.s32.totalorder %s9, 1
    %p48 = scmp.ne.s32.totalorder %s43, %s45
    %p49 = scmp.eq.s32.totalorder %s9, 0
    %p50 = por %p48, %p49
    %p51 = scmp.ne.s32.totalorder %s43, %s45
    %p52 = scmp.eq.s32.totalorder %s14, 1
    %p53 = por %p51, %p52
    %p54 = scmp.ne.s32.totalorder %s45, %s46
    %p55 = scmp.eq.s32.totalorder %s14, 0
    %p56 = por %p54, %p55
    %p57 = scmp.ne.s32.totalorder %s45, %s46
    %p58 = scmp.eq.s32.totalorder %s15, 1
    %p59 = por %p57, %p58
    %p61 = scmp.ne.s32.totalorder %s46, %s60
    %p62 = scmp.eq.s32.totalorder %s15, 0
    %p63 = por %p61, %p62
    %s65 = sadd.s32 %s64, 1
    %p68 = scmp.eq.s32.totalorder %s9, 1
    %p69 = scmp.ne.s32.totalorder %s64, %s66
    %p70 = scmp.eq.s32.totalorder %s9, 0
    %p71 = por %p69, %p70
    %p72 = scmp.ne.s32.totalorder %s64, %s66
    %p73 = scmp.eq.s32.totalorder %s14, 1
    %p74 = por %p72, %p73
    %p75 = scmp.ne.s32.totalorder %s66, %s67
    %p76 = scmp.eq.s32.totalorder %s14, 0
    %p77 = por %p75, %p76
    %p78 = scmp.ne.s32.totalorder %s66, %s67
    %p79 = scmp.eq.s32.totalorder %s15, 1
    %p80 = por %p78, %p79
    %p82 = scmp.ne.s32.totalorder %s67, %s81
    %p83 = scmp.eq.s32.totalorder %s15, 0
    %p84 = por %p82, %p83
    %s85 = ssub.s32 %s9, %s16
    %p86 = scmp.eq.s32.totalorder %s85, 0
    %s88 = sadd.s32 %s87, 1
    %s89 = scalar_select %p86, %s87, %s88
    %p92 = pneg %p86
    %p93 = scmp.eq.s32.totalorder %s9, 1
    %p94 = por %p92, %p93
    %p95 = scmp.ne.s32.totalorder %s87, %s90
    %p96 = scmp.eq.s32.totalorder %s9, 0
    %p97 = por %p95, %p96
    %p98 = scmp.ne.s32.totalorder %s87, %s90
    %p99 = scmp.eq.s32.totalorder %s14, 1
    %p100 = por %p98, %p99
    %p101 = scmp.ne.s32.totalorder %s90, %s91
    %p102 = scmp.eq.s32.totalorder %s14, 0
    %p103 = por %p101, %p102
    %p104 = scmp.ne.s32.totalorder %s90, %s91
    %p105 = scmp.eq.s32.totalorder %s15, 1
    %p106 = por %p104, %p105
    %p108 = scmp.ne.s32.totalorder %s91, %s107
    %p109 = scmp.eq.s32.totalorder %s15, 0
    %p110 = por %p108, %p109
    %p111 = scmp.le.s32.totalorder 1, %s9
    %p112 = scmp.lt.s32.totalorder %s9, 3
    %p113 = pnand %p111, %p112
    %p114 = pneg %p113
    // Predicated region
    $region9: #{_lambda_.11} parent=5 // pred_check
      _
    $region10: #{_lambda_.11} parent=5 // pred_check_branch
      %116 = sbr.rel (%p113) target = $region12
    $region11: #{_lambda_.11} parent=5 // pred_region
      %s117 = ssub.s32 %s9, 1
      // Predicated region
      $region13: #{_lambda_.11} parent=11 // pred_check
        %p118 = pneg %p56
      $region14: #{_lambda_.11} parent=11 // pred_check_branch
        %120 = sbr.rel (%p118) target = $region16
      $region15: #{_lambda_.11} parent=11 // pred_region
        _
      $region16: #{_lambda_.11} parent=11 // pred_fallthru
        _
      // Predicated region
      $region17: #{_lambda_.11} parent=11 // pred_check
        %p121 = pneg %p77
      $region18: #{_lambda_.11} parent=11 // pred_check_branch
        %123 = sbr.rel (%p121) target = $region20
      $region19: #{_lambda_.11} parent=11 // pred_region
        _
      $region20: #{_lambda_.11} parent=11 // pred_fallthru
        _
    $region12: #{_lambda_.11} parent=5 // pred_fallthru
      _
    %p124 = scmp.lt.s32.totalorder %s9, 2
    // Predicated region
    $region21: #{_lambda_.11} parent=5 // pred_check
      %p125 = pneg %p124
    $region22: #{_lambda_.11} parent=5 // pred_check_branch
      %127 = sbr.rel (%p125) target = $region24
    $region23: #{_lambda_.11} parent=5 // pred_region
      // Predicated region
      $region25: #{_lambda_.11} parent=23 // pred_check
        %p128 = pneg %p29
      $region26: #{_lambda_.11} parent=23 // pred_check_branch
        %130 = sbr.rel (%p128) target = $region28
      $region27: #{_lambda_.11} parent=23 // pred_region
        %s131 = smul.u32 8, %s9
        %p132 = scmp.lt.s32.totalorder %s131, 15
        %s133 = scalar_select %p132, %s131, 15
        %s134 = smul.addr %s133, 9
        %s135 = smul.addr %s134, 4
        %s136 = scalar_lea.vmem %s0, %s135
        %s137 = smul.u32 8, %s9
      $region28: #{_lambda_.11} parent=23 // pred_fallthru
        _
    $region24: #{_lambda_.11} parent=5 // pred_fallthru
      _
    %p138 = scmp.le.s32.totalorder 1, %s9
    %p139 = scmp.lt.s32.totalorder %s9, 3
    %p140 = pnand %p138, %p139
    %p141 = pneg %p140
    // Predicated region
    $region29: #{_lambda_.11} parent=5 // pred_check
      _
    $region30: #{_lambda_.11} parent=5 // pred_check_branch
      %143 = sbr.rel (%p140) target = $region32
    $region31: #{_lambda_.11} parent=5 // pred_region
      %s144 = ssub.s32 %s9, 1
      %s145 = smul.u32 8, %s14
      %p146 = scmp.lt.s32.totalorder %s145, 15
      %s147 = scalar_select %p146, %s145, 15
      %s148 = smul.addr %s147, 9
      %s149 = smul.addr %s148, 4
      %s150 = scalar_lea.vmem %s0, %s149
      %p151 = pneg %p35
      %p152 = pneg %p32
      %p153 = pneg %p56
      %p154 = pneg %p53
      %p155 = pneg %p77
      %p156 = pneg %p74
      %p157 = pneg %p103
      %p158 = pneg %p100
      %s159 = smul.u32 8, %s14
      %p160 = scmp.lt.s32.totalorder %s159, 15
      %s161 = scalar_select %p160, %s159, 15
      %s162 = smul.addr %s161, 4
      %s163 = scalar_lea.vmem %s3, %s162
      %s164 = smul.u32 8, %s14
      %p165 = scmp.lt.s32.totalorder %s164, 15
      %s166 = scalar_select %p165, %s164, 15
      %s167 = smul.addr %s166, 9
      %s168 = smul.addr %s167, 4
      %s169 = scalar_lea.vmem %s0, %s168
      %s170 = smul.u32 8, %s14
      %s171 = smul.u32 8, %s14
      %p172 = scmp.lt.s32.totalorder %s171, 15
      %s173 = scalar_select %p172, %s171, 15
      %s174 = smul.addr %s173, 4
      %s175 = scalar_lea.vmem %s3, %s174
      %s176 = smul.u32 8, %s14
      %v177 = vld [vmem:[%s169] sm:$0xff]
      %v178 = vld [vmem:[%s169 + $0x8] sm:$0xff]
      %v179 = vld [vmem:[%s169 + $0x10] sm:$0xff]
      %v180 = vld [vmem:[%s169 + $0x18] sm:$0xff]
      %v181 = vld [vmem:[%s169 + $0x20] sm:$0xf]
      %v182 = vld [vmem:[%s169 + $0x24] sm:$0xff]
      %v183 = vld [vmem:[%s169 + $0x2c] sm:$0xff]
      %v184 = vld [vmem:[%s169 + $0x34] sm:$0xff]
      %v185 = vld [vmem:[%s169 + $0x3c] sm:$0xff]
      %v186 = vld [vmem:[%s169 + $0x44] sm:$0xf]
      %v187 = vld [vmem:[%s169 + $0x48] sm:$0xff]
      %v188 = vld [vmem:[%s169 + $0x50] sm:$0xff]
      %v189 = vld [vmem:[%s169 + $0x58] sm:$0xff]
      %v190 = vld [vmem:[%s169 + $0x60] sm:$0xff]
      %v191 = vld [vmem:[%s169 + $0x68] sm:$0xf]
      %v192 = vld [vmem:[%s169 + $0x6c] sm:$0xff]
      %v193 = vld [vmem:[%s169 + $0x74] sm:$0xff]
      %v194 = vld [vmem:[%s169 + $0x7c] sm:$0xff]
      %v195 = vld [vmem:[%s169 + $0x84] sm:$0xff]
      %v196 = vld [vmem:[%s169 + $0x8c] sm:$0xf]
      %v197 = vld [vmem:[%s169 + $0x90] sm:$0xff]
      %v198 = vld [vmem:[%s169 + $0x98] sm:$0xff]
      %v199 = vld [vmem:[%s169 + $0xa0] sm:$0xff]
      %v200 = vld [vmem:[%s169 + $0xa8] sm:$0xff]
      %v201 = vld [vmem:[%s169 + $0xb0] sm:$0xf]
      %v202 = vld [vmem:[%s169 + $0xb4] sm:$0xff]
      %v203 = vld [vmem:[%s169 + $0xbc] sm:$0xff]
      %v204 = vld [vmem:[%s169 + $0xc4] sm:$0xff]
      %v205 = vld [vmem:[%s169 + $0xcc] sm:$0xff]
      %v206 = vld [vmem:[%s169 + $0xd4] sm:$0xf]
      %v207 = vld [vmem:[%s169 + $0xd8] sm:$0xff]
      %v208 = vld [vmem:[%s169 + $0xe0] sm:$0xff]
      %v209 = vld [vmem:[%s169 + $0xe8] sm:$0xff]
      %v210 = vld [vmem:[%s169 + $0xf0] sm:$0xff]
      %v211 = vld [vmem:[%s169 + $0xf8] sm:$0xf]
      %v212 = vld [vmem:[%s169 + $0xfc] sm:$0xff]
      %v213 = vld [vmem:[%s169 + $0x104] sm:$0xff]
      %v214 = vld [vmem:[%s169 + $0x10c] sm:$0xff]
      %v215 = vld [vmem:[%s169 + $0x114] sm:$0xff]
      %v216 = vld [vmem:[%s169 + $0x11c] sm:$0xf]
      %v217 = vld [vmem:[%s1] sm:$0xf]
      %v218 = vld [vmem:[%s1 + $0x4] sm:$0xf]
      %v219 = vld [vmem:[%s1 + $0x8] sm:$0xf]
      %v220 = vld [vmem:[%s1 + $0xc] sm:$0xf]
      %v221 = vld [vmem:[%s1 + $0x10] sm:$0xf]
      %v222 = vld [vmem:[%s1 + $0x14] sm:$0xf]
      %v223 = vld [vmem:[%s1 + $0x18] sm:$0xf]
      %v224 = vld [vmem:[%s1 + $0x1c] sm:$0xf]
      %v225 = vld [vmem:[%s1 + $0x20] sm:$0xf]
      %v226 = vld [vmem:[%s1 + $0x24] sm:$0xf]
      %v227 = vld [vmem:[%s1 + $0x28] sm:$0xf]
      %v228 = vld [vmem:[%s1 + $0x2c] sm:$0xf]
      %v229 = vld [vmem:[%s1 + $0x30] sm:$0xf]
      %v230 = vld [vmem:[%s1 + $0x34] sm:$0xf]
      %v231 = vld [vmem:[%s1 + $0x38] sm:$0xf]
      %v232 = vld [vmem:[%s1 + $0x3c] sm:$0xf]
      %v233 = vld [vmem:[%s1 + $0x40] sm:$0xf]
      %v234 = vld [vmem:[%s1 + $0x44] sm:$0xf]
      %v235 = vld [vmem:[%s1 + $0x48] sm:$0xf]
      %v236 = vld [vmem:[%s1 + $0x4c] sm:$0xf]
      %v237 = vld [vmem:[%s1 + $0x50] sm:$0xf]
      %v238 = vld [vmem:[%s1 + $0x54] sm:$0xf]
      %v239 = vld [vmem:[%s1 + $0x58] sm:$0xf]
      %v240 = vld [vmem:[%s1 + $0x5c] sm:$0xf]
      %v241 = vld [vmem:[%s1 + $0x60] sm:$0xf]
      %v242 = vld [vmem:[%s1 + $0x64] sm:$0xf]
      %v243 = vld [vmem:[%s1 + $0x68] sm:$0xf]
      %v244 = vld [vmem:[%s1 + $0x6c] sm:$0xf]
      %v245 = vld [vmem:[%s1 + $0x70] sm:$0xf]
      %v246 = vld [vmem:[%s1 + $0x74] sm:$0xf]
      %v247 = vld [vmem:[%s1 + $0x78] sm:$0xf]
      %v248 = vld [vmem:[%s1 + $0x7c] sm:$0xf]
      %v249 = vld [vmem:[%s1 + $0x80] sm:$0xf]
      %v250 = vld [vmem:[%s1 + $0x84] sm:$0xf]
      %v251 = vld [vmem:[%s1 + $0x88] sm:$0xf]
      %v252 = vld [vmem:[%s1 + $0x8c] sm:$0xf]
      %v253 = vld [vmem:[%s1 + $0x90] sm:$0xf]
      %v254 = vld [vmem:[%s1 + $0x94] sm:$0xf]
      %v255 = vld [vmem:[%s1 + $0x98] sm:$0xf]
      %v256 = vld [vmem:[%s1 + $0x9c] sm:$0xf]
      %v257 = vld [vmem:[%s1 + $0xa0] sm:$0xf]
      %v258 = vld [vmem:[%s1 + $0xa4] sm:$0xf]
      %v259 = vld [vmem:[%s1 + $0xa8] sm:$0xf]
      %v260 = vld [vmem:[%s1 + $0xac] sm:$0xf]
      %v261 = vld [vmem:[%s1 + $0xb0] sm:$0xf]
      %v262 = vld [vmem:[%s1 + $0xb4] sm:$0xf]
      %v263 = vld [vmem:[%s1 + $0xb8] sm:$0xf]
      %v264 = vld [vmem:[%s1 + $0xbc] sm:$0xf]
      %v265 = vld [vmem:[%s1 + $0xc0] sm:$0xf]
      %v266 = vld [vmem:[%s1 + $0xc4] sm:$0xf]
      %v267 = vld [vmem:[%s1 + $0xc8] sm:$0xf]
      %v268 = vld [vmem:[%s1 + $0xcc] sm:$0xf]
      %v269 = vld [vmem:[%s1 + $0xd0] sm:$0xf]
      %v270 = vld [vmem:[%s1 + $0xd4] sm:$0xf]
      %v271 = vld [vmem:[%s1 + $0xd8] sm:$0xf]
      %v272 = vld [vmem:[%s1 + $0xdc] sm:$0xf]
      %v273 = vld [vmem:[%s1 + $0xe0] sm:$0xf]
      %v274 = vld [vmem:[%s1 + $0xe4] sm:$0xf]
      %v275 = vld [vmem:[%s1 + $0xe8] sm:$0xf]
      %v276 = vld [vmem:[%s1 + $0xec] sm:$0xf]
      %v277 = vld [vmem:[%s1 + $0xf0] sm:$0xf]
      %v278 = vld [vmem:[%s1 + $0xf4] sm:$0xf]
      %v279 = vld [vmem:[%s1 + $0xf8] sm:$0xf]
      %v280 = vld [vmem:[%s1 + $0xfc] sm:$0xf]
      %v281 = vld [vmem:[%s1 + $0x100] sm:$0xf]
      %v282 = vld [vmem:[%s1 + $0x104] sm:$0xf]
      %v283 = vld [vmem:[%s1 + $0x108] sm:$0xf]
      %v284 = vld [vmem:[%s1 + $0x10c] sm:$0xf]
      %v285 = vld [vmem:[%s1 + $0x110] sm:$0xf]
      %v286 = vld [vmem:[%s1 + $0x114] sm:$0xf]
      %v287 = vld [vmem:[%s1 + $0x118] sm:$0xf]
      %v288 = vld [vmem:[%s1 + $0x11c] sm:$0xf]
      %v289 = vld [vmem:[%s1 + $0x120] sm:$0xf]
      %v290 = vld [vmem:[%s1 + $0x124] sm:$0xf]
      %v291 = vld [vmem:[%s1 + $0x128] sm:$0xf]
      %v292 = vld [vmem:[%s1 + $0x12c] sm:$0xf]
      %v293 = vld [vmem:[%s1 + $0x130] sm:$0xf]
      %v294 = vld [vmem:[%s1 + $0x134] sm:$0xf]
      %v295 = vld [vmem:[%s1 + $0x138] sm:$0xf]
      %v296 = vld [vmem:[%s1 + $0x13c] sm:$0xf]
      %v297 = vld [vmem:[%s1 + $0x140] sm:$0xf]
      %v298 = vld [vmem:[%s1 + $0x144] sm:$0xf]
      %v299 = vld [vmem:[%s1 + $0x148] sm:$0xf]
      %v300 = vld [vmem:[%s1 + $0x14c] sm:$0xf]
      %v301 = vld [vmem:[%s1 + $0x150] sm:$0xf]
      %v302 = vld [vmem:[%s1 + $0x154] sm:$0xf]
      %v303 = vld [vmem:[%s1 + $0x158] sm:$0xf]
      %v304 = vld [vmem:[%s1 + $0x15c] sm:$0xf]
      %v305 = vld [vmem:[%s1 + $0x160] sm:$0xf]
      %v306 = vld [vmem:[%s1 + $0x164] sm:$0xf]
      %v307 = vld [vmem:[%s1 + $0x168] sm:$0xf]
      %v308 = vld [vmem:[%s1 + $0x16c] sm:$0xf]
      %v309 = vld [vmem:[%s1 + $0x170] sm:$0xf]
      %v310 = vld [vmem:[%s1 + $0x174] sm:$0xf]
      %v311 = vld [vmem:[%s1 + $0x178] sm:$0xf]
      %v312 = vld [vmem:[%s1 + $0x17c] sm:$0xf]
      %v313 = vld [vmem:[%s1 + $0x180] sm:$0xf]
      %v314 = vld [vmem:[%s1 + $0x184] sm:$0xf]
      %v315 = vld [vmem:[%s1 + $0x188] sm:$0xf]
      %v316 = vld [vmem:[%s1 + $0x18c] sm:$0xf]
      %v317 = vld [vmem:[%s1 + $0x190] sm:$0xf]
      %v318 = vld [vmem:[%s1 + $0x194] sm:$0xf]
      %v319 = vld [vmem:[%s1 + $0x198] sm:$0xf]
      %v320 = vld [vmem:[%s1 + $0x19c] sm:$0xf]
      %v321 = vld [vmem:[%s1 + $0x1a0] sm:$0xf]
      %v322 = vld [vmem:[%s1 + $0x1a4] sm:$0xf]
      %v323 = vld [vmem:[%s1 + $0x1a8] sm:$0xf]
      %v324 = vld [vmem:[%s1 + $0x1ac] sm:$0xf]
      %v325 = vld [vmem:[%s1 + $0x1b0] sm:$0xf]
      %v326 = vld [vmem:[%s1 + $0x1b4] sm:$0xf]
      %v327 = vld [vmem:[%s1 + $0x1b8] sm:$0xf]
      %v328 = vld [vmem:[%s1 + $0x1bc] sm:$0xf]
      %v329 = vld [vmem:[%s1 + $0x1c0] sm:$0xf]
      %v330 = vld [vmem:[%s1 + $0x1c4] sm:$0xf]
      %v331 = vld [vmem:[%s1 + $0x1c8] sm:$0xf]
      %v332 = vld [vmem:[%s1 + $0x1cc] sm:$0xf]
      %v333 = vld [vmem:[%s1 + $0x1d0] sm:$0xf]
      %v334 = vld [vmem:[%s1 + $0x1d4] sm:$0xf]
      %v335 = vld [vmem:[%s1 + $0x1d8] sm:$0xf]
      %v336 = vld [vmem:[%s1 + $0x1dc] sm:$0xf]
      %v337 = vld [vmem:[%s1 + $0x1e0] sm:$0xf]
      %v338 = vld [vmem:[%s1 + $0x1e4] sm:$0xf]
      %v339 = vld [vmem:[%s1 + $0x1e8] sm:$0xf]
      %v340 = vld [vmem:[%s1 + $0x1ec] sm:$0xf]
      %v341 = vld [vmem:[%s1 + $0x1f0] sm:$0xf]
      %v342 = vld [vmem:[%s1 + $0x1f4] sm:$0xf]
      %v343 = vld [vmem:[%s1 + $0x1f8] sm:$0xf]
      %v344 = vld [vmem:[%s1 + $0x1fc] sm:$0xf]
      %v345 = vld [vmem:[%s1 + $0x200] sm:$0xf]
      %v346 = vld [vmem:[%s1 + $0x204] sm:$0xf]
      %v347 = vld [vmem:[%s1 + $0x208] sm:$0xf]
      %v348 = vld [vmem:[%s1 + $0x20c] sm:$0xf]
      %v349 = vld [vmem:[%s1 + $0x210] sm:$0xf]
      %v350 = vld [vmem:[%s1 + $0x214] sm:$0xf]
      %v351 = vld [vmem:[%s1 + $0x218] sm:$0xf]
      %v352 = vld [vmem:[%s1 + $0x21c] sm:$0xf]
      %v353 = vld [vmem:[%s1 + $0x220] sm:$0xf]
      %v354 = vld [vmem:[%s1 + $0x224] sm:$0xf]
      %v355 = vld [vmem:[%s1 + $0x228] sm:$0xf]
      %v356 = vld [vmem:[%s1 + $0x22c] sm:$0xf]
      %v357 = vld [vmem:[%s1 + $0x230] sm:$0xf]
      %v358 = vld [vmem:[%s1 + $0x234] sm:$0xf]
      %v359 = vld [vmem:[%s1 + $0x238] sm:$0xf]
      %v360 = vld [vmem:[%s1 + $0x23c] sm:$0xf]
      %v361 = vld [vmem:[%s2] sm:$0x1]
      %v363 = vperm.slane %v361, 0
      %v405 = vunpack.c.l.b16 %v177
      %v406 = vunpack.c.h.b16 %v177
      %v407 = vunpack.c.l.b16 %v178
      %v408 = vunpack.c.h.b16 %v178
      %v409 = vunpack.c.l.b16 %v179
      %v410 = vunpack.c.h.b16 %v179
      %v411 = vunpack.c.l.b16 %v180
      %v412 = vunpack.c.h.b16 %v180
      %v413 = vunpack.c.l.b16 %v181
      %v414 = vunpack.c.l.b16 %v182
      %v415 = vunpack.c.h.b16 %v182
      %v416 = vunpack.c.l.b16 %v183
      %v417 = vunpack.c.h.b16 %v183
      %v418 = vunpack.c.l.b16 %v184
      %v419 = vunpack.c.h.b16 %v184
      %v420 = vunpack.c.l.b16 %v185
      %v421 = vunpack.c.h.b16 %v185
      %v422 = vunpack.c.l.b16 %v186
      %v423 = vunpack.c.l.b16 %v187
      %v424 = vunpack.c.h.b16 %v187
      %v425 = vunpack.c.l.b16 %v188
      %v426 = vunpack.c.h.b16 %v188
      %v427 = vunpack.c.l.b16 %v189
      %v428 = vunpack.c.h.b16 %v189
      %v429 = vunpack.c.l.b16 %v190
      %v430 = vunpack.c.h.b16 %v190
      %v431 = vunpack.c.l.b16 %v191
      %v432 = vunpack.c.l.b16 %v192
      %v433 = vunpack.c.h.b16 %v192
      %v434 = vunpack.c.l.b16 %v193
      %v435 = vunpack.c.h.b16 %v193
      %v436 = vunpack.c.l.b16 %v194
      %v437 = vunpack.c.h.b16 %v194
      %v438 = vunpack.c.l.b16 %v195
      %v439 = vunpack.c.h.b16 %v195
      %v440 = vunpack.c.l.b16 %v196
      %v441 = vunpack.c.l.b16 %v197
      %v442 = vunpack.c.h.b16 %v197
      %v443 = vunpack.c.l.b16 %v198
      %v444 = vunpack.c.h.b16 %v198
      %v445 = vunpack.c.l.b16 %v199
      %v446 = vunpack.c.h.b16 %v199
      %v447 = vunpack.c.l.b16 %v200
      %v448 = vunpack.c.h.b16 %v200
      %v449 = vunpack.c.l.b16 %v201
      %v450 = vunpack.c.l.b16 %v202
      %v451 = vunpack.c.h.b16 %v202
      %v452 = vunpack.c.l.b16 %v203
      %v453 = vunpack.c.h.b16 %v203
      %v454 = vunpack.c.l.b16 %v204
      %v455 = vunpack.c.h.b16 %v204
      %v456 = vunpack.c.l.b16 %v205
      %v457 = vunpack.c.h.b16 %v205
      %v458 = vunpack.c.l.b16 %v206
      %v459 = vunpack.c.l.b16 %v207
      %v460 = vunpack.c.h.b16 %v207
      %v461 = vunpack.c.l.b16 %v208
      %v462 = vunpack.c.h.b16 %v208
      %v463 = vunpack.c.l.b16 %v209
      %v464 = vunpack.c.h.b16 %v209
      %v465 = vunpack.c.l.b16 %v210
      %v466 = vunpack.c.h.b16 %v210
      %v467 = vunpack.c.l.b16 %v211
      %v468 = vunpack.c.l.b16 %v212
      %v469 = vunpack.c.h.b16 %v212
      %v470 = vunpack.c.l.b16 %v213
      %v471 = vunpack.c.h.b16 %v213
      %v472 = vunpack.c.l.b16 %v214
      %v473 = vunpack.c.h.b16 %v214
      %v474 = vunpack.c.l.b16 %v215
      %v475 = vunpack.c.h.b16 %v215
      %v476 = vunpack.c.l.b16 %v216
      %v477 = vpack.c.b16 %v414, %v405
      %v478 = vpack.c.b16 %v415, %v406
      %v479 = vpack.c.b16 %v416, %v407
      %v480 = vpack.c.b16 %v417, %v408
      %v481 = vpack.c.b16 %v418, %v409
      %v482 = vpack.c.b16 %v419, %v410
      %v483 = vpack.c.b16 %v420, %v411
      %v484 = vpack.c.b16 %v421, %v412
      %v485 = vpack.c.b16 %v422, %v413
      %v486 = vpack.c.b16 %v432, %v423
      %v487 = vpack.c.b16 %v433, %v424
      %v488 = vpack.c.b16 %v434, %v425
      %v489 = vpack.c.b16 %v435, %v426
      %v490 = vpack.c.b16 %v436, %v427
      %v491 = vpack.c.b16 %v437, %v428
      %v492 = vpack.c.b16 %v438, %v429
      %v493 = vpack.c.b16 %v439, %v430
      %v494 = vpack.c.b16 %v440, %v431
      %v495 = vpack.c.b16 %v450, %v441
      %v496 = vpack.c.b16 %v451, %v442
      %v497 = vpack.c.b16 %v452, %v443
      %v498 = vpack.c.b16 %v453, %v444
      %v499 = vpack.c.b16 %v454, %v445
      %v500 = vpack.c.b16 %v455, %v446
      %v501 = vpack.c.b16 %v456, %v447
      %v502 = vpack.c.b16 %v457, %v448
      %v503 = vpack.c.b16 %v458, %v449
      %v504 = vpack.c.b16 %v468, %v459
      %v505 = vpack.c.b16 %v469, %v460
      %v506 = vpack.c.b16 %v470, %v461
      %v507 = vpack.c.b16 %v471, %v462
      %v508 = vpack.c.b16 %v472, %v463
      %v509 = vpack.c.b16 %v473, %v464
      %v510 = vpack.c.b16 %v474, %v465
      %v511 = vpack.c.b16 %v475, %v466
      %v512 = vpack.c.b16 %v476, %v467
      %v693 = vunpack.c.l.b16 %v217
      %v694 = vunpack.c.l.b16 %v218
      %v695 = vunpack.c.l.b16 %v219
      %v696 = vunpack.c.l.b16 %v220
      %v697 = vunpack.c.l.b16 %v221
      %v698 = vunpack.c.l.b16 %v222
      %v699 = vunpack.c.l.b16 %v223
      %v700 = vunpack.c.l.b16 %v224
      %v701 = vunpack.c.l.b16 %v225
      %v702 = vunpack.c.l.b16 %v226
      %v703 = vunpack.c.l.b16 %v227
      %v704 = vunpack.c.l.b16 %v228
      %v705 = vunpack.c.l.b16 %v229
      %v706 = vunpack.c.l.b16 %v230
      %v707 = vunpack.c.l.b16 %v231
      %v708 = vunpack.c.l.b16 %v232
      %v709 = vunpack.c.l.b16 %v233
      %v710 = vunpack.c.l.b16 %v234
      %v711 = vunpack.c.l.b16 %v235
      %v712 = vunpack.c.l.b16 %v236
      %v713 = vunpack.c.l.b16 %v237
      %v714 = vunpack.c.l.b16 %v238
      %v715 = vunpack.c.l.b16 %v239
      %v716 = vunpack.c.l.b16 %v240
      %v717 = vunpack.c.l.b16 %v241
      %v718 = vunpack.c.l.b16 %v242
      %v719 = vunpack.c.l.b16 %v243
      %v720 = vunpack.c.l.b16 %v244
      %v721 = vunpack.c.l.b16 %v245
      %v722 = vunpack.c.l.b16 %v246
      %v723 = vunpack.c.l.b16 %v247
      %v724 = vunpack.c.l.b16 %v248
      %v725 = vunpack.c.l.b16 %v249
      %v726 = vunpack.c.l.b16 %v250
      %v727 = vunpack.c.l.b16 %v251
      %v728 = vunpack.c.l.b16 %v252
      %v729 = vunpack.c.l.b16 %v253
      %v730 = vunpack.c.l.b16 %v254
      %v731 = vunpack.c.l.b16 %v255
      %v732 = vunpack.c.l.b16 %v256
      %v733 = vunpack.c.l.b16 %v257
      %v734 = vunpack.c.l.b16 %v258
      %v735 = vunpack.c.l.b16 %v259
      %v736 = vunpack.c.l.b16 %v260
      %v737 = vunpack.c.l.b16 %v261
      %v738 = vunpack.c.l.b16 %v262
      %v739 = vunpack.c.l.b16 %v263
      %v740 = vunpack.c.l.b16 %v264
      %v741 = vunpack.c.l.b16 %v265
      %v742 = vunpack.c.l.b16 %v266
      %v743 = vunpack.c.l.b16 %v267
      %v744 = vunpack.c.l.b16 %v268
      %v745 = vunpack.c.l.b16 %v269
      %v746 = vunpack.c.l.b16 %v270
      %v747 = vunpack.c.l.b16 %v271
      %v748 = vunpack.c.l.b16 %v272
      %v749 = vunpack.c.l.b16 %v273
      %v750 = vunpack.c.l.b16 %v274
      %v751 = vunpack.c.l.b16 %v275
      %v752 = vunpack.c.l.b16 %v276
      %v753 = vunpack.c.l.b16 %v277
      %v754 = vunpack.c.l.b16 %v278
      %v755 = vunpack.c.l.b16 %v279
      %v756 = vunpack.c.l.b16 %v280
      %v757 = vunpack.c.l.b16 %v281
      %v758 = vunpack.c.l.b16 %v282
      %v759 = vunpack.c.l.b16 %v283
      %v760 = vunpack.c.l.b16 %v284
      %v761 = vunpack.c.l.b16 %v285
      %v762 = vunpack.c.l.b16 %v286
      %v763 = vunpack.c.l.b16 %v287
      %v764 = vunpack.c.l.b16 %v288
      %v765 = vunpack.c.l.b16 %v289
      %v766 = vunpack.c.l.b16 %v290
      %v767 = vunpack.c.l.b16 %v291
      %v768 = vunpack.c.l.b16 %v292
      %v769 = vunpack.c.l.b16 %v293
      %v770 = vunpack.c.l.b16 %v294
      %v771 = vunpack.c.l.b16 %v295
      %v772 = vunpack.c.l.b16 %v296
      %v773 = vunpack.c.l.b16 %v297
      %v774 = vunpack.c.l.b16 %v298
      %v775 = vunpack.c.l.b16 %v299
      %v776 = vunpack.c.l.b16 %v300
      %v777 = vunpack.c.l.b16 %v301
      %v778 = vunpack.c.l.b16 %v302
      %v779 = vunpack.c.l.b16 %v303
      %v780 = vunpack.c.l.b16 %v304
      %v781 = vunpack.c.l.b16 %v305
      %v782 = vunpack.c.l.b16 %v306
      %v783 = vunpack.c.l.b16 %v307
      %v784 = vunpack.c.l.b16 %v308
      %v785 = vunpack.c.l.b16 %v309
      %v786 = vunpack.c.l.b16 %v310
      %v787 = vunpack.c.l.b16 %v311
      %v788 = vunpack.c.l.b16 %v312
      %v789 = vunpack.c.l.b16 %v313
      %v790 = vunpack.c.l.b16 %v314
      %v791 = vunpack.c.l.b16 %v315
      %v792 = vunpack.c.l.b16 %v316
      %v793 = vunpack.c.l.b16 %v317
      %v794 = vunpack.c.l.b16 %v318
      %v795 = vunpack.c.l.b16 %v319
      %v796 = vunpack.c.l.b16 %v320
      %v797 = vunpack.c.l.b16 %v321
      %v798 = vunpack.c.l.b16 %v322
      %v799 = vunpack.c.l.b16 %v323
      %v800 = vunpack.c.l.b16 %v324
      %v801 = vunpack.c.l.b16 %v325
      %v802 = vunpack.c.l.b16 %v326
      %v803 = vunpack.c.l.b16 %v327
      %v804 = vunpack.c.l.b16 %v328
      %v805 = vunpack.c.l.b16 %v329
      %v806 = vunpack.c.l.b16 %v330
      %v807 = vunpack.c.l.b16 %v331
      %v808 = vunpack.c.l.b16 %v332
      %v809 = vunpack.c.l.b16 %v333
      %v810 = vunpack.c.l.b16 %v334
      %v811 = vunpack.c.l.b16 %v335
      %v812 = vunpack.c.l.b16 %v336
      %v813 = vunpack.c.l.b16 %v337
      %v814 = vunpack.c.l.b16 %v338
      %v815 = vunpack.c.l.b16 %v339
      %v816 = vunpack.c.l.b16 %v340
      %v817 = vunpack.c.l.b16 %v341
      %v818 = vunpack.c.l.b16 %v342
      %v819 = vunpack.c.l.b16 %v343
      %v820 = vunpack.c.l.b16 %v344
      %v821 = vunpack.c.l.b16 %v345
      %v822 = vunpack.c.l.b16 %v346
      %v823 = vunpack.c.l.b16 %v347
      %v824 = vunpack.c.l.b16 %v348
      %v825 = vunpack.c.l.b16 %v349
      %v826 = vunpack.c.l.b16 %v350
      %v827 = vunpack.c.l.b16 %v351
      %v828 = vunpack.c.l.b16 %v352
      %v829 = vunpack.c.l.b16 %v353
      %v830 = vunpack.c.l.b16 %v354
      %v831 = vunpack.c.l.b16 %v355
      %v832 = vunpack.c.l.b16 %v356
      %v833 = vunpack.c.l.b16 %v357
      %v834 = vunpack.c.l.b16 %v358
      %v835 = vunpack.c.l.b16 %v359
      %v836 = vunpack.c.l.b16 %v360
      %v837 = vpack.c.b16 %v694, %v693
      %v838 = vpack.c.b16 %v696, %v695
      %v839 = vpack.c.b16 %v698, %v697
      %v840 = vpack.c.b16 %v700, %v699
      %v841 = vpack.c.b16 %v702, %v701
      %v842 = vpack.c.b16 %v704, %v703
      %v843 = vpack.c.b16 %v706, %v705
      %v844 = vpack.c.b16 %v708, %v707
      %v845 = vpack.c.b16 %v710, %v709
      %v846 = vpack.c.b16 %v712, %v711
      %v847 = vpack.c.b16 %v714, %v713
      %v848 = vpack.c.b16 %v716, %v715
      %v849 = vpack.c.b16 %v718, %v717
      %v850 = vpack.c.b16 %v720, %v719
      %v851 = vpack.c.b16 %v722, %v721
      %v852 = vpack.c.b16 %v724, %v723
      %v853 = vpack.c.b16 %v726, %v725
      %v854 = vpack.c.b16 %v728, %v727
      %v855 = vpack.c.b16 %v730, %v729
      %v856 = vpack.c.b16 %v732, %v731
      %v857 = vpack.c.b16 %v734, %v733
      %v858 = vpack.c.b16 %v736, %v735
      %v859 = vpack.c.b16 %v738, %v737
      %v860 = vpack.c.b16 %v740, %v739
      %v861 = vpack.c.b16 %v742, %v741
      %v862 = vpack.c.b16 %v744, %v743
      %v863 = vpack.c.b16 %v746, %v745
      %v864 = vpack.c.b16 %v748, %v747
      %v865 = vpack.c.b16 %v750, %v749
      %v866 = vpack.c.b16 %v752, %v751
      %v867 = vpack.c.b16 %v754, %v753
      %v868 = vpack.c.b16 %v756, %v755
      %v869 = vpack.c.b16 %v758, %v757
      %v870 = vpack.c.b16 %v760, %v759
      %v871 = vpack.c.b16 %v762, %v761
      %v872 = vpack.c.b16 %v764, %v763
      %v873 = vpack.c.b16 %v766, %v765
      %v874 = vpack.c.b16 %v768, %v767
      %v875 = vpack.c.b16 %v770, %v769
      %v876 = vpack.c.b16 %v772, %v771
      %v877 = vpack.c.b16 %v774, %v773
      %v878 = vpack.c.b16 %v776, %v775
      %v879 = vpack.c.b16 %v778, %v777
      %v880 = vpack.c.b16 %v780, %v779
      %v881 = vpack.c.b16 %v782, %v781
      %v882 = vpack.c.b16 %v784, %v783
      %v883 = vpack.c.b16 %v786, %v785
      %v884 = vpack.c.b16 %v788, %v787
      %v885 = vpack.c.b16 %v790, %v789
      %v886 = vpack.c.b16 %v792, %v791
      %v887 = vpack.c.b16 %v794, %v793
      %v888 = vpack.c.b16 %v796, %v795
      %v889 = vpack.c.b16 %v798, %v797
      %v890 = vpack.c.b16 %v800, %v799
      %v891 = vpack.c.b16 %v802, %v801
      %v892 = vpack.c.b16 %v804, %v803
      %v893 = vpack.c.b16 %v806, %v805
      %v894 = vpack.c.b16 %v808, %v807
      %v895 = vpack.c.b16 %v810, %v809
      %v896 = vpack.c.b16 %v812, %v811
      %v897 = vpack.c.b16 %v814, %v813
      %v898 = vpack.c.b16 %v816, %v815
      %v899 = vpack.c.b16 %v818, %v817
      %v900 = vpack.c.b16 %v820, %v819
      %v901 = vpack.c.b16 %v822, %v821
      %v902 = vpack.c.b16 %v824, %v823
      %v903 = vpack.c.b16 %v826, %v825
      %v904 = vpack.c.b16 %v828, %v827
      %v905 = vpack.c.b16 %v830, %v829
      %v906 = vpack.c.b16 %v832, %v831
      %v907 = vpack.c.b16 %v834, %v833
      %v908 = vpack.c.b16 %v836, %v835
      %981 = vmatpush.bf16.msra.mxu0 %v844
      %982 = vmatpush.bf16.msra.mxu0 %v843
      %983 = vmatpush.bf16.msra.mxu0 %v842
      %984 = vmatpush.bf16.msra.mxu0 %v841
      %985 = vmatpush.bf16.msra.mxu0 %v840
      %986 = vmatpush.bf16.msra.mxu0 %v839
      %987 = vmatpush.bf16.msra.mxu0 %v838
      %988 = vmatpush.bf16.msra.mxu0 %v837
      %989 = vmatmul.bf16.gmra.mxu0 %v477
      %v990 = vpop.f32.mrf.mxu0
      %v991 = vadd.f32 %v363, %v990
      %v992 = vpop.f32.mrf.mxu0
      %v993 = vadd.f32 %v363, %v992
      %994 = vmatmul.bf16.gmra.mxu0 %v486
      %v995 = vpop.f32.mrf.mxu0
      %v996 = vadd.f32 %v363, %v995
      %v997 = vpop.f32.mrf.mxu0
      %v998 = vadd.f32 %v363, %v997
      %999 = vmatmul.bf16.gmra.mxu0 %v495
      %v1000 = vpop.f32.mrf.mxu0
      %v1001 = vadd.f32 %v363, %v1000
      %v1002 = vpop.f32.mrf.mxu0
      %v1003 = vadd.f32 %v363, %v1002
      %1004 = vmatmul.bf16.gmra.mxu0 %v504
      %v1005 = vpop.f32.mrf.mxu0
      %v1006 = vadd.f32 %v363, %v1005
      %v1007 = vpop.f32.mrf.mxu0
      %v1008 = vadd.f32 %v363, %v1007
      %1009 = vdwg.mxu0
      %1010 = vmatpush.bf16.msra.mxu0 %v852
      %1011 = vmatpush.bf16.msra.mxu0 %v851
      %1012 = vmatpush.bf16.msra.mxu0 %v850
      %1013 = vmatpush.bf16.msra.mxu0 %v849
      %1014 = vmatpush.bf16.msra.mxu0 %v848
      %1015 = vmatpush.bf16.msra.mxu0 %v847
      %1016 = vmatpush.bf16.msra.mxu0 %v846
      %1017 = vmatpush.bf16.msra.mxu0 %v845
      %1018 = vmatmul.bf16.gmra.mxu0 %v478
      %v1019 = vpop.f32.mrf.mxu0
      %v1020 = vadd.f32 %v991, %v1019
      %v1021 = vpop.f32.mrf.mxu0
      %v1022 = vadd.f32 %v993, %v1021
      %1023 = vmatmul.bf16.gmra.mxu0 %v487
      %v1024 = vpop.f32.mrf.mxu0
      %v1025 = vadd.f32 %v996, %v1024
      %v1026 = vpop.f32.mrf.mxu0
      %v1027 = vadd.f32 %v998, %v1026
      %1028 = vmatmul.bf16.gmra.mxu0 %v496
      %v1029 = vpop.f32.mrf.mxu0
      %v1030 = vadd.f32 %v1001, %v1029
      %v1031 = vpop.f32.mrf.mxu0
      %v1032 = vadd.f32 %v1003, %v1031
      %1033 = vmatmul.bf16.gmra.mxu0 %v505
      %v1034 = vpop.f32.mrf.mxu0
      %v1035 = vadd.f32 %v1006, %v1034
      %v1036 = vpop.f32.mrf.mxu0
      %v1037 = vadd.f32 %v1008, %v1036
      %1038 = vdwg.mxu0
      %1039 = vmatpush.bf16.msra.mxu0 %v860
      %1040 = vmatpush.bf16.msra.mxu0 %v859
      %1041 = vmatpush.bf16.msra.mxu0 %v858
      %1042 = vmatpush.bf16.msra.mxu0 %v857
      %1043 = vmatpush.bf16.msra.mxu0 %v856
      %1044 = vmatpush.bf16.msra.mxu0 %v855
      %1045 = vmatpush.bf16.msra.mxu0 %v854
      %1046 = vmatpush.bf16.msra.mxu0 %v853
      %1047 = vmatmul.bf16.gmra.mxu0 %v479
      %v1048 = vpop.f32.mrf.mxu0
      %v1049 = vadd.f32 %v1020, %v1048
      %v1050 = vpop.f32.mrf.mxu0
      %v1051 = vadd.f32 %v1022, %v1050
      %1052 = vmatmul.bf16.gmra.mxu0 %v488
      %v1053 = vpop.f32.mrf.mxu0
      %v1054 = vadd.f32 %v1025, %v1053
      %v1055 = vpop.f32.mrf.mxu0
      %v1056 = vadd.f32 %v1027, %v1055
      %1057 = vmatmul.bf16.gmra.mxu0 %v497
      %v1058 = vpop.f32.mrf.mxu0
      %v1059 = vadd.f32 %v1030, %v1058
      %v1060 = vpop.f32.mrf.mxu0
      %v1061 = vadd.f32 %v1032, %v1060
      %1062 = vmatmul.bf16.gmra.mxu0 %v506
      %v1063 = vpop.f32.mrf.mxu0
      %v1064 = vadd.f32 %v1035, %v1063
      %v1065 = vpop.f32.mrf.mxu0
      %v1066 = vadd.f32 %v1037, %v1065
      %1067 = vdwg.mxu0
      %1068 = vmatpush.bf16.msra.mxu0 %v868
      %1069 = vmatpush.bf16.msra.mxu0 %v867
      %1070 = vmatpush.bf16.msra.mxu0 %v866
      %1071 = vmatpush.bf16.msra.mxu0 %v865
      %1072 = vmatpush.bf16.msra.mxu0 %v864
      %1073 = vmatpush.bf16.msra.mxu0 %v863
      %1074 = vmatpush.bf16.msra.mxu0 %v862
      %1075 = vmatpush.bf16.msra.mxu0 %v861
      %1076 = vmatmul.bf16.gmra.mxu0 %v480
      %v1077 = vpop.f32.mrf.mxu0
      %v1078 = vadd.f32 %v1049, %v1077
      %v1079 = vpop.f32.mrf.mxu0
      %v1080 = vadd.f32 %v1051, %v1079
      %1081 = vmatmul.bf16.gmra.mxu0 %v489
      %v1082 = vpop.f32.mrf.mxu0
      %v1083 = vadd.f32 %v1054, %v1082
      %v1084 = vpop.f32.mrf.mxu0
      %v1085 = vadd.f32 %v1056, %v1084
      %1086 = vmatmul.bf16.gmra.mxu0 %v498
      %v1087 = vpop.f32.mrf.mxu0
      %v1088 = vadd.f32 %v1059, %v1087
      %v1089 = vpop.f32.mrf.mxu0
      %v1090 = vadd.f32 %v1061, %v1089
      %1091 = vmatmul.bf16.gmra.mxu0 %v507
      %v1092 = vpop.f32.mrf.mxu0
      %v1093 = vadd.f32 %v1064, %v1092
      %v1094 = vpop.f32.mrf.mxu0
      %v1095 = vadd.f32 %v1066, %v1094
      %1096 = vdwg.mxu0
      %1097 = vmatpush.bf16.msra.mxu0 %v876
      %1098 = vmatpush.bf16.msra.mxu0 %v875
      %1099 = vmatpush.bf16.msra.mxu0 %v874
      %1100 = vmatpush.bf16.msra.mxu0 %v873
      %1101 = vmatpush.bf16.msra.mxu0 %v872
      %1102 = vmatpush.bf16.msra.mxu0 %v871
      %1103 = vmatpush.bf16.msra.mxu0 %v870
      %1104 = vmatpush.bf16.msra.mxu0 %v869
      %1105 = vmatmul.bf16.gmra.mxu0 %v481
      %v1106 = vpop.f32.mrf.mxu0
      %v1107 = vadd.f32 %v1078, %v1106
      %v1108 = vpop.f32.mrf.mxu0
      %v1109 = vadd.f32 %v1080, %v1108
      %1110 = vmatmul.bf16.gmra.mxu0 %v490
      %v1111 = vpop.f32.mrf.mxu0
      %v1112 = vadd.f32 %v1083, %v1111
      %v1113 = vpop.f32.mrf.mxu0
      %v1114 = vadd.f32 %v1085, %v1113
      %1115 = vmatmul.bf16.gmra.mxu0 %v499
      %v1116 = vpop.f32.mrf.mxu0
      %v1117 = vadd.f32 %v1088, %v1116
      %v1118 = vpop.f32.mrf.mxu0
      %v1119 = vadd.f32 %v1090, %v1118
      %1120 = vmatmul.bf16.gmra.mxu0 %v508
      %v1121 = vpop.f32.mrf.mxu0
      %v1122 = vadd.f32 %v1093, %v1121
      %v1123 = vpop.f32.mrf.mxu0
      %v1124 = vadd.f32 %v1095, %v1123
      %1125 = vdwg.mxu0
      %1126 = vmatpush.bf16.msra.mxu0 %v884
      %1127 = vmatpush.bf16.msra.mxu0 %v883
      %1128 = vmatpush.bf16.msra.mxu0 %v882
      %1129 = vmatpush.bf16.msra.mxu0 %v881
      %1130 = vmatpush.bf16.msra.mxu0 %v880
      %1131 = vmatpush.bf16.msra.mxu0 %v879
      %1132 = vmatpush.bf16.msra.mxu0 %v878
      %1133 = vmatpush.bf16.msra.mxu0 %v877
      %1134 = vmatmul.bf16.gmra.mxu0 %v482
      %v1135 = vpop.f32.mrf.mxu0
      %v1136 = vadd.f32 %v1107, %v1135
      %v1137 = vpop.f32.mrf.mxu0
      %v1138 = vadd.f32 %v1109, %v1137
      %1139 = vmatmul.bf16.gmra.mxu0 %v491
      %v1140 = vpop.f32.mrf.mxu0
      %v1141 = vadd.f32 %v1112, %v1140
      %v1142 = vpop.f32.mrf.mxu0
      %v1143 = vadd.f32 %v1114, %v1142
      %1144 = vmatmul.bf16.gmra.mxu0 %v500
      %v1145 = vpop.f32.mrf.mxu0
      %v1146 = vadd.f32 %v1117, %v1145
      %v1147 = vpop.f32.mrf.mxu0
      %v1148 = vadd.f32 %v1119, %v1147
      %1149 = vmatmul.bf16.gmra.mxu0 %v509
      %v1150 = vpop.f32.mrf.mxu0
      %v1151 = vadd.f32 %v1122, %v1150
      %v1152 = vpop.f32.mrf.mxu0
      %v1153 = vadd.f32 %v1124, %v1152
      %1154 = vdwg.mxu0
      %1155 = vmatpush.bf16.msra.mxu0 %v892
      %1156 = vmatpush.bf16.msra.mxu0 %v891
      %1157 = vmatpush.bf16.msra.mxu0 %v890
      %1158 = vmatpush.bf16.msra.mxu0 %v889
      %1159 = vmatpush.bf16.msra.mxu0 %v888
      %1160 = vmatpush.bf16.msra.mxu0 %v887
      %1161 = vmatpush.bf16.msra.mxu0 %v886
      %1162 = vmatpush.bf16.msra.mxu0 %v885
      %1163 = vmatmul.bf16.gmra.mxu0 %v483
      %v1164 = vpop.f32.mrf.mxu0
      %v1165 = vadd.f32 %v1136, %v1164
      %v1166 = vpop.f32.mrf.mxu0
      %v1167 = vadd.f32 %v1138, %v1166
      %1168 = vmatmul.bf16.gmra.mxu0 %v492
      %v1169 = vpop.f32.mrf.mxu0
      %v1170 = vadd.f32 %v1141, %v1169
      %v1171 = vpop.f32.mrf.mxu0
      %v1172 = vadd.f32 %v1143, %v1171
      %1173 = vmatmul.bf16.gmra.mxu0 %v501
      %v1174 = vpop.f32.mrf.mxu0
      %v1175 = vadd.f32 %v1146, %v1174
      %v1176 = vpop.f32.mrf.mxu0
      %v1177 = vadd.f32 %v1148, %v1176
      %1178 = vmatmul.bf16.gmra.mxu0 %v510
      %v1179 = vpop.f32.mrf.mxu0
      %v1180 = vadd.f32 %v1151, %v1179
      %v1181 = vpop.f32.mrf.mxu0
      %v1182 = vadd.f32 %v1153, %v1181
      %1183 = vdwg.mxu0
      %1184 = vmatpush.bf16.msra.mxu0 %v900
      %1185 = vmatpush.bf16.msra.mxu0 %v899
      %1186 = vmatpush.bf16.msra.mxu0 %v898
      %1187 = vmatpush.bf16.msra.mxu0 %v897
      %1188 = vmatpush.bf16.msra.mxu0 %v896
      %1189 = vmatpush.bf16.msra.mxu0 %v895
      %1190 = vmatpush.bf16.msra.mxu0 %v894
      %1191 = vmatpush.bf16.msra.mxu0 %v893
      %1192 = vmatmul.bf16.gmra.mxu0 %v484
      %v1193 = vpop.f32.mrf.mxu0
      %v1194 = vadd.f32 %v1165, %v1193
      %v1195 = vpop.f32.mrf.mxu0
      %v1196 = vadd.f32 %v1167, %v1195
      %1197 = vmatmul.bf16.gmra.mxu0 %v493
      %v1198 = vpop.f32.mrf.mxu0
      %v1199 = vadd.f32 %v1170, %v1198
      %v1200 = vpop.f32.mrf.mxu0
      %v1201 = vadd.f32 %v1172, %v1200
      %1202 = vmatmul.bf16.gmra.mxu0 %v502
      %v1203 = vpop.f32.mrf.mxu0
      %v1204 = vadd.f32 %v1175, %v1203
      %v1205 = vpop.f32.mrf.mxu0
      %v1206 = vadd.f32 %v1177, %v1205
      %1207 = vmatmul.bf16.gmra.mxu0 %v511
      %v1208 = vpop.f32.mrf.mxu0
      %v1209 = vadd.f32 %v1180, %v1208
      %v1210 = vpop.f32.mrf.mxu0
      %v1211 = vadd.f32 %v1182, %v1210
      %1212 = vdwg.mxu0
      %1213 = vmatpush.bf16.msra.mxu0 %v908
      %1214 = vmatpush.bf16.msra.mxu0 %v907
      %1215 = vmatpush.bf16.msra.mxu0 %v906
      %1216 = vmatpush.bf16.msra.mxu0 %v905
      %1217 = vmatpush.bf16.msra.mxu0 %v904
      %1218 = vmatpush.bf16.msra.mxu0 %v903
      %1219 = vmatpush.bf16.msra.mxu0 %v902
      %1220 = vmatpush.bf16.msra.mxu0 %v901
      %1221 = vmatmul.bf16.gmra.mxu0 %v485
      %v1222 = vpop.f32.mrf.mxu0
      %v1223 = vadd.f32 %v1194, %v1222
      %v1224 = vpop.f32.mrf.mxu0
      %v1225 = vadd.f32 %v1196, %v1224
      %1226 = vmatmul.bf16.gmra.mxu0 %v494
      %v1227 = vpop.f32.mrf.mxu0
      %v1228 = vadd.f32 %v1199, %v1227
      %v1229 = vpop.f32.mrf.mxu0
      %v1230 = vadd.f32 %v1201, %v1229
      %1231 = vmatmul.bf16.gmra.mxu0 %v503
      %v1232 = vpop.f32.mrf.mxu0
      %v1233 = vadd.f32 %v1204, %v1232
      %v1234 = vpop.f32.mrf.mxu0
      %v1235 = vadd.f32 %v1206, %v1234
      %1236 = vmatmul.bf16.gmra.mxu0 %v512
      %v1237 = vpop.f32.mrf.mxu0
      %v1238 = vadd.f32 %v1209, %v1237
      %v1239 = vpop.f32.mrf.mxu0
      %v1240 = vadd.f32 %v1211, %v1239
      %1241 = vdwg.mxu0
      %v1242 = vmax.f32 %v1223, 0.0
      %v1243 = vmax.f32 %v1225, 0.0
      %v1244 = vmax.f32 %v1228, 0.0
      %v1245 = vmax.f32 %v1230, 0.0
      %v1246 = vmax.f32 %v1233, 0.0
      %v1247 = vmax.f32 %v1235, 0.0
      %v1248 = vmax.f32 %v1238, 0.0
      %v1249 = vmax.f32 %v1240, 0.0
      %v1250 = vpack.c.bf16 %v1242, %v1242
      %v1251 = vpack.c.bf16 %v1243, %v1243
      %v1252 = vpack.c.bf16 %v1244, %v1244
      %v1253 = vpack.c.bf16 %v1245, %v1245
      %v1254 = vpack.c.bf16 %v1246, %v1246
      %v1255 = vpack.c.bf16 %v1247, %v1247
      %v1256 = vpack.c.bf16 %v1248, %v1248
      %v1257 = vpack.c.bf16 %v1249, %v1249
      %1258 = vst [vmem:[%s175] sm:$0xf] %v1250
      %1259 = vst [vmem:[%s175 + $0x4] sm:$0xf] %v1251
      %1260 = vst [vmem:[%s175 + $0x8] sm:$0xf] %v1252
      %1261 = vst [vmem:[%s175 + $0xc] sm:$0xf] %v1253
      %1262 = vst [vmem:[%s175 + $0x10] sm:$0xf] %v1254
      %1263 = vst [vmem:[%s175 + $0x14] sm:$0xf] %v1255
      %1264 = vst [vmem:[%s175 + $0x18] sm:$0xf] %v1256
      %1265 = vst [vmem:[%s175 + $0x1c] sm:$0xf] %v1257
      %s1266 = smul.u32 8, %s14
      %p1267 = scmp.lt.s32.totalorder %s1266, 15
      %s1268 = scalar_select %p1267, %s1266, 15
      %s1269 = smul.addr %s1268, 4
      %s1270 = scalar_lea.vmem %s3, %s1269
      // Predicated region
      $region33: #{_lambda_.11} parent=31 // pred_check
        %p1271 = pneg %p100
      $region34: #{_lambda_.11} parent=31 // pred_check_branch
        %1273 = sbr.rel (%p1271) target = $region36
      $region35: #{_lambda_.11} parent=31 // pred_region
        %s1274 = smul.u32 8, %s14
      $region36: #{_lambda_.11} parent=31 // pred_fallthru
        _
    $region32: #{_lambda_.11} parent=5 // pred_fallthru
      _
    %p1275 = scmp.le.s32.totalorder 2, %s9
    // Predicated region
    $region37: #{_lambda_.11} parent=5 // pred_check
      %p1276 = pneg %p1275
    $region38: #{_lambda_.11} parent=5 // pred_check_branch
      %1278 = sbr.rel (%p1276) target = $region40
    $region39: #{_lambda_.11} parent=5 // pred_region
      %s1279 = ssub.s32 %s9, 2
      // Predicated region
      $region41: #{_lambda_.11} parent=39 // pred_check
        %p1280 = pneg %p106
      $region42: #{_lambda_.11} parent=39 // pred_check_branch
        %1282 = sbr.rel (%p1280) target = $region44
      $region43: #{_lambda_.11} parent=39 // pred_region
        %s1283 = smul.u32 8, %s15
        %p1284 = scmp.lt.s32.totalorder %s1283, 15
        %s1285 = scalar_select %p1284, %s1283, 15
        %s1286 = smul.addr %s1285, 4
        %s1287 = scalar_lea.vmem %s3, %s1286
      $region44: #{_lambda_.11} parent=39 // pred_fallthru
        _
    $region40: #{_lambda_.11} parent=5 // pred_fallthru
      _
  $region6: #{_lambda_.11} parent=0 // loop_footer
    %s13 = sadd.s32 1, %s9
  $region7: #{_lambda_.11} parent=0 // loop_footer_branch
    %8 = sbr.rel target = $region3
  $region8: #{_lambda_.11} parent=0 // loop_exit
    _

// kernel: _lambda_.12
$region0: #{_lambda_.12}
  #allocation0 [shape = 'u32[]', space=smem, size = 0x4, offset = 0x4, fixed_abs, tag = 'smem constant byte address 0x4 - core index']
  #allocation1 [shape = 'u32[72,128]{1,0:T(1,128)}', space=vmem, size = 0x9000, scoped, tag = 'internal scratch']
  %s0 = inlined_call_operand.vmem [shape: bf16[128,1152], index: 0, kind: input, shape index: {}]
  %s1 = inlined_call_operand.vmem [shape: bf16[1152,128], index: 1, kind: input, shape index: {}]
  %s2 = inlined_call_operand.vmem [shape: f32[1,128], index: 2, kind: input, shape index: {}]
  %s3 = inlined_call_operand.vmem [shape: bf16[128,128], index: 3, kind: input, shape index: {}]
  %s4 = inlined_call_operand.vmem [shape: bf16[128,128], index: 4, kind: input, shape index: {}]
  %s5 = inlined_call_operand.vmem [shape: f32[1,128], index: 5, kind: input, shape index: {}]
  %s6 = inlined_call_operand.vmem [shape: bf16[128,128], index: 6, kind: output, shape index: {}]
  %s7 = sld [smem:[#allocation0]]
  $region57: #{_lambda_.12} parent=0
    _
  %s9 = ssub.s32 1, %s7
  %s10 = scalar_select 0, %s9, %s7
  loop: start=0, step=1, limit=4
  $region2: #{_lambda_.12} parent=0 // loop_pre_header
    _
  $region3: #{_lambda_.12} parent=0 // loop_header
    %s12 = sphi 0, %s16
    %p13 = scmp.ge.s32.totalorder %s12, 4
    %s22 = sphi 0, %s24
    %s25 = sphi 0, %s22
    %s26 = sphi 0, %s25
    %s42 = sphi 0, %s26
    %s46 = sphi 0, %s46
    %s48 = sphi 0, %s46
    %s49 = sphi 0, %s48
    %s63 = sphi 0, %s49
    %s67 = sphi 0, %s67
    %s69 = sphi 0, %s67
    %s70 = sphi 0, %s69
    %s84 = sphi 0, %s70
    %s90 = sphi 0, %s92
    %s93 = sphi 0, %s90
    %s94 = sphi 0, %s93
    %s110 = sphi 0, %s94
    %s114 = sphi 0, %s114
    %s116 = sphi 0, %s114
    %s117 = sphi 0, %s116
    %s131 = sphi 0, %s117
    %s135 = sphi 0, %s135
    %s137 = sphi 0, %s135
    %s138 = sphi 0, %s137
    %s152 = sphi 0, %s138
    %s158 = sphi 0, %s160
    %s161 = sphi 0, %s158
    %s162 = sphi 0, %s161
    %s178 = sphi 0, %s162
  $region4: #{_lambda_.12} parent=0 // loop_header_branch
    %15 = sbr.rel (%p13) target = $region8
  $region5: #{_lambda_.12} parent=0 // loop_body
    %s17 = ssub.s32 %s12, 1
    %s18 = ssub.s32 %s12, 2
    %s19 = sadd.s32 %s12, 1
    %s20 = ssub.s32 %s12, %s19
    %p21 = scmp.eq.s32.totalorder %s20, 0
    %s23 = sadd.s32 %s22, 1
    %s24 = scalar_select %p21, %s22, %s23
    %p27 = pneg %p21
    %p28 = scmp.eq.s32.totalorder %s12, 1
    %p29 = por %p27, %p28
    %p30 = scmp.ne.s32.totalorder %s22, %s25
    %p31 = scmp.eq.s32.totalorder %s12, 0
    %p32 = por %p30, %p31
    %p33 = scmp.ne.s32.totalorder %s22, %s25
    %p34 = scmp.eq.s32.totalorder %s17, 1
    %p35 = por %p33, %p34
    %p36 = scmp.ne.s32.totalorder %s25, %s26
    %p37 = scmp.eq.s32.totalorder %s17, 0
    %p38 = por %p36, %p37
    %p39 = scmp.ne.s32.totalorder %s25, %s26
    %p40 = scmp.eq.s32.totalorder %s18, 1
    %p41 = por %p39, %p40
    %p43 = scmp.ne.s32.totalorder %s26, %s42
    %p44 = scmp.eq.s32.totalorder %s18, 0
    %p45 = por %p43, %p44
    %s47 = sadd.s32 %s46, 1
    %p50 = scmp.eq.s32.totalorder %s12, 1
    %p51 = scmp.ne.s32.totalorder %s46, %s48
    %p52 = scmp.eq.s32.totalorder %s12, 0
    %p53 = por %p51, %p52
    %p54 = scmp.ne.s32.totalorder %s46, %s48
    %p55 = scmp.eq.s32.totalorder %s17, 1
    %p56 = por %p54, %p55
    %p57 = scmp.ne.s32.totalorder %s48, %s49
    %p58 = scmp.eq.s32.totalorder %s17, 0
    %p59 = por %p57, %p58
    %p60 = scmp.ne.s32.totalorder %s48, %s49
    %p61 = scmp.eq.s32.totalorder %s18, 1
    %p62 = por %p60, %p61
    %p64 = scmp.ne.s32.totalorder %s49, %s63
    %p65 = scmp.eq.s32.totalorder %s18, 0
    %p66 = por %p64, %p65
    %s68 = sadd.s32 %s67, 1
    %p71 = scmp.eq.s32.totalorder %s12, 1
    %p72 = scmp.ne.s32.totalorder %s67, %s69
    %p73 = scmp.eq.s32.totalorder %s12, 0
    %p74 = por %p72, %p73
    %p75 = scmp.ne.s32.totalorder %s67, %s69
    %p76 = scmp.eq.s32.totalorder %s17, 1
    %p77 = por %p75, %p76
    %p78 = scmp.ne.s32.totalorder %s69, %s70
    %p79 = scmp.eq.s32.totalorder %s17, 0
    %p80 = por %p78, %p79
    %p81 = scmp.ne.s32.totalorder %s69, %s70
    %p82 = scmp.eq.s32.totalorder %s18, 1
    %p83 = por %p81, %p82
    %p85 = scmp.ne.s32.totalorder %s70, %s84
    %p86 = scmp.eq.s32.totalorder %s18, 0
    %p87 = por %p85, %p86
    %s88 = ssub.s32 %s12, %s19
    %p89 = scmp.eq.s32.totalorder %s88, 0
    %s91 = sadd.s32 %s90, 1
    %s92 = scalar_select %p89, %s90, %s91
    %p95 = pneg %p89
    %p96 = scmp.eq.s32.totalorder %s12, 1
    %p97 = por %p95, %p96
    %p98 = scmp.ne.s32.totalorder %s90, %s93
    %p99 = scmp.eq.s32.totalorder %s12, 0
    %p100 = por %p98, %p99
    %p101 = scmp.ne.s32.totalorder %s90, %s93
    %p102 = scmp.eq.s32.totalorder %s17, 1
    %p103 = por %p101, %p102
    %p104 = scmp.ne.s32.totalorder %s93, %s94
    %p105 = scmp.eq.s32.totalorder %s17, 0
    %p106 = por %p104, %p105
    %p107 = scmp.ne.s32.totalorder %s93, %s94
    %p108 = scmp.eq.s32.totalorder %s18, 1
    %p109 = por %p107, %p108
    %p111 = scmp.ne.s32.totalorder %s94, %s110
    %p112 = scmp.eq.s32.totalorder %s18, 0
    %p113 = por %p111, %p112
    %s115 = sadd.s32 %s114, 1
    %p118 = scmp.eq.s32.totalorder %s12, 1
    %p119 = scmp.ne.s32.totalorder %s114, %s116
    %p120 = scmp.eq.s32.totalorder %s12, 0
    %p121 = por %p119, %p120
    %p122 = scmp.ne.s32.totalorder %s114, %s116
    %p123 = scmp.eq.s32.totalorder %s17, 1
    %p124 = por %p122, %p123
    %p125 = scmp.ne.s32.totalorder %s116, %s117
    %p126 = scmp.eq.s32.totalorder %s17, 0
    %p127 = por %p125, %p126
    %p128 = scmp.ne.s32.totalorder %s116, %s117
    %p129 = scmp.eq.s32.totalorder %s18, 1
    %p130 = por %p128, %p129
    %p132 = scmp.ne.s32.totalorder %s117, %s131
    %p133 = scmp.eq.s32.totalorder %s18, 0
    %p134 = por %p132, %p133
    %s136 = sadd.s32 %s135, 1
    %p139 = scmp.eq.s32.totalorder %s12, 1
    %p140 = scmp.ne.s32.totalorder %s135, %s137
    %p141 = scmp.eq.s32.totalorder %s12, 0
    %p142 = por %p140, %p141
    %p143 = scmp.ne.s32.totalorder %s135, %s137
    %p144 = scmp.eq.s32.totalorder %s17, 1
    %p145 = por %p143, %p144
    %p146 = scmp.ne.s32.totalorder %s137, %s138
    %p147 = scmp.eq.s32.totalorder %s17, 0
    %p148 = por %p146, %p147
    %p149 = scmp.ne.s32.totalorder %s137, %s138
    %p150 = scmp.eq.s32.totalorder %s18, 1
    %p151 = por %p149, %p150
    %p153 = scmp.ne.s32.totalorder %s138, %s152
    %p154 = scmp.eq.s32.totalorder %s18, 0
    %p155 = por %p153, %p154
    %s156 = ssub.s32 %s12, %s19
    %p157 = scmp.eq.s32.totalorder %s156, 0
    %s159 = sadd.s32 %s158, 1
    %s160 = scalar_select %p157, %s158, %s159
    %p163 = pneg %p157
    %p164 = scmp.eq.s32.totalorder %s12, 1
    %p165 = por %p163, %p164
    %p166 = scmp.ne.s32.totalorder %s158, %s161
    %p167 = scmp.eq.s32.totalorder %s12, 0
    %p168 = por %p166, %p167
    %p169 = scmp.ne.s32.totalorder %s158, %s161
    %p170 = scmp.eq.s32.totalorder %s17, 1
    %p171 = por %p169, %p170
    %p172 = scmp.ne.s32.totalorder %s161, %s162
    %p173 = scmp.eq.s32.totalorder %s17, 0
    %p174 = por %p172, %p173
    %p175 = scmp.ne.s32.totalorder %s161, %s162
    %p176 = scmp.eq.s32.totalorder %s18, 1
    %p177 = por %p175, %p176
    %p179 = scmp.ne.s32.totalorder %s162, %s178
    %p180 = scmp.eq.s32.totalorder %s18, 0
    %p181 = por %p179, %p180
    %p182 = scmp.le.s32.totalorder 1, %s12
    %p183 = scmp.lt.s32.totalorder %s12, 3
    %p184 = pnand %p182, %p183
    %p185 = pneg %p184
    // Predicated region
    $region9: #{_lambda_.12} parent=5 // pred_check
      _
    $region10: #{_lambda_.12} parent=5 // pred_check_branch
      %187 = sbr.rel (%p184) target = $region12
    $region11: #{_lambda_.12} parent=5 // pred_region
      %s188 = ssub.s32 %s12, 1
      // Predicated region
      $region13: #{_lambda_.12} parent=11 // pred_check
        %p189 = pneg %p59
      $region14: #{_lambda_.12} parent=11 // pred_check_branch
        %191 = sbr.rel (%p189) target = $region16
      $region15: #{_lambda_.12} parent=11 // pred_region
        _
      $region16: #{_lambda_.12} parent=11 // pred_fallthru
        _
      // Predicated region
      $region17: #{_lambda_.12} parent=11 // pred_check
        %p192 = pneg %p80
      $region18: #{_lambda_.12} parent=11 // pred_check_branch
        %194 = sbr.rel (%p192) target = $region20
      $region19: #{_lambda_.12} parent=11 // pred_region
        _
      $region20: #{_lambda_.12} parent=11 // pred_fallthru
        _
      // Predicated region
      $region21: #{_lambda_.12} parent=11 // pred_check
        %p195 = pneg %p127
      $region22: #{_lambda_.12} parent=11 // pred_check_branch
        %197 = sbr.rel (%p195) target = $region24
      $region23: #{_lambda_.12} parent=11 // pred_region
        _
      $region24: #{_lambda_.12} parent=11 // pred_fallthru
        _
      // Predicated region
      $region25: #{_lambda_.12} parent=11 // pred_check
        %p198 = pneg %p148
      $region26: #{_lambda_.12} parent=11 // pred_check_branch
        %200 = sbr.rel (%p198) target = $region28
      $region27: #{_lambda_.12} parent=11 // pred_region
        _
      $region28: #{_lambda_.12} parent=11 // pred_fallthru
        _
    $region12: #{_lambda_.12} parent=5 // pred_fallthru
      _
    %p201 = scmp.lt.s32.totalorder %s12, 2
    // Predicated region
    $region29: #{_lambda_.12} parent=5 // pred_check
      %p202 = pneg %p201
    $region30: #{_lambda_.12} parent=5 // pred_check_branch
      %204 = sbr.rel (%p202) target = $region32
    $region31: #{_lambda_.12} parent=5 // pred_region
      // Predicated region
      $region33: #{_lambda_.12} parent=31 // pred_check
        %p205 = pneg %p32
      $region34: #{_lambda_.12} parent=31 // pred_check_branch
        %207 = sbr.rel (%p205) target = $region36
      $region35: #{_lambda_.12} parent=31 // pred_region
        %s208 = smul.u32 8, %s12
        %p209 = scmp.lt.s32.totalorder %s208, 15
        %s210 = scalar_select %p209, %s208, 15
        %s211 = smul.addr %s210, 9
        %s212 = smul.addr %s211, 4
        %s213 = scalar_lea.vmem %s0, %s212
        %s214 = smul.u32 8, %s12
      $region36: #{_lambda_.12} parent=31 // pred_fallthru
        _
      // Predicated region
      $region37: #{_lambda_.12} parent=31 // pred_check
        %p215 = pneg %p100
      $region38: #{_lambda_.12} parent=31 // pred_check_branch
        %217 = sbr.rel (%p215) target = $region40
      $region39: #{_lambda_.12} parent=31 // pred_region
        %s218 = smul.u32 8, %s12
        %p219 = scmp.lt.s32.totalorder %s218, 15
        %s220 = scalar_select %p219, %s218, 15
        %s221 = smul.addr %s220, 4
        %s222 = scalar_lea.vmem %s3, %s221
        %s223 = smul.u32 8, %s12
      $region40: #{_lambda_.12} parent=31 // pred_fallthru
        _
    $region32: #{_lambda_.12} parent=5 // pred_fallthru
      _
    %p224 = scmp.le.s32.totalorder 1, %s12
    %p225 = scmp.lt.s32.totalorder %s12, 3
    %p226 = pnand %p224, %p225
    %p227 = pneg %p226
    // Predicated region
    $region41: #{_lambda_.12} parent=5 // pred_check
      _
    $region42: #{_lambda_.12} parent=5 // pred_check_branch
      %229 = sbr.rel (%p226) target = $region44
    $region43: #{_lambda_.12} parent=5 // pred_region
      %s230 = ssub.s32 %s12, 1
      %s231 = smul.u32 8, %s17
      %p232 = scmp.lt.s32.totalorder %s231, 15
      %s233 = scalar_select %p232, %s231, 15
      %s234 = smul.addr %s233, 9
      %s235 = smul.addr %s234, 4
      %s236 = scalar_lea.vmem %s0, %s235
      %p237 = pneg %p38
      %p238 = pneg %p35
      %p239 = pneg %p59
      %p240 = pneg %p56
      %p241 = pneg %p80
      %p242 = pneg %p77
      %s243 = smul.u32 8, %s17
      %p244 = scmp.lt.s32.totalorder %s243, 15
      %s245 = scalar_select %p244, %s243, 15
      %s246 = smul.addr %s245, 4
      %s247 = scalar_lea.vmem %s3, %s246
      %p248 = pneg %p106
      %p249 = pneg %p103
      %p250 = pneg %p127
      %p251 = pneg %p124
      %p252 = pneg %p148
      %p253 = pneg %p145
      %p254 = pneg %p174
      %p255 = pneg %p171
      %s256 = smul.u32 8, %s17
      %p257 = scmp.lt.s32.totalorder %s256, 15
      %s258 = scalar_select %p257, %s256, 15
      %s259 = smul.addr %s258, 4
      %s260 = scalar_lea.vmem %s6, %s259
      %s261 = smul.u32 8, %s17
      %p262 = scmp.lt.s32.totalorder %s261, 15
      %s263 = scalar_select %p262, %s261, 15
      %s264 = smul.addr %s263, 9
      %s265 = smul.addr %s264, 4
      %s266 = scalar_lea.vmem %s0, %s265
      %s267 = smul.u32 8, %s17
      %s268 = smul.u32 8, %s17
      %p269 = scmp.lt.s32.totalorder %s268, 15
      %s270 = scalar_select %p269, %s268, 15
      %s271 = smul.addr %s270, 4
      %s272 = scalar_lea.vmem %s3, %s271
      %s273 = smul.u32 8, %s17
      %s274 = smul.u32 8, %s17
      %p275 = scmp.lt.s32.totalorder %s274, 15
      %s276 = scalar_select %p275, %s274, 15
      %s277 = smul.addr %s276, 4
      %s278 = scalar_lea.vmem %s6, %s277
      %s279 = smul.u32 8, %s17
      %v280 = vld [vmem:[%s266] sm:$0xff]
      %v281 = vld [vmem:[%s266 + $0x8] sm:$0xff]
      %v282 = vld [vmem:[%s266 + $0x10] sm:$0xff]
      %v283 = vld [vmem:[%s266 + $0x18] sm:$0xff]
      %v284 = vld [vmem:[%s266 + $0x20] sm:$0xf]
      %v285 = vld [vmem:[%s266 + $0x24] sm:$0xff]
      %v286 = vld [vmem:[%s266 + $0x2c] sm:$0xff]
      %v287 = vld [vmem:[%s266 + $0x34] sm:$0xff]
      %v288 = vld [vmem:[%s266 + $0x3c] sm:$0xff]
      %v289 = vld [vmem:[%s266 + $0x44] sm:$0xf]
      %v290 = vld [vmem:[%s266 + $0x48] sm:$0xff]
      %v291 = vld [vmem:[%s266 + $0x50] sm:$0xff]
      %v292 = vld [vmem:[%s266 + $0x58] sm:$0xff]
      %v293 = vld [vmem:[%s266 + $0x60] sm:$0xff]
      %v294 = vld [vmem:[%s266 + $0x68] sm:$0xf]
      %v295 = vld [vmem:[%s266 + $0x6c] sm:$0xff]
      %v296 = vld [vmem:[%s266 + $0x74] sm:$0xff]
      %v297 = vld [vmem:[%s266 + $0x7c] sm:$0xff]
      %v298 = vld [vmem:[%s266 + $0x84] sm:$0xff]
      %v299 = vld [vmem:[%s266 + $0x8c] sm:$0xf]
      %v300 = vld [vmem:[%s266 + $0x90] sm:$0xff]
      %v301 = vld [vmem:[%s266 + $0x98] sm:$0xff]
      %v302 = vld [vmem:[%s266 + $0xa0] sm:$0xff]
      %v303 = vld [vmem:[%s266 + $0xa8] sm:$0xff]
      %v304 = vld [vmem:[%s266 + $0xb0] sm:$0xf]
      %v305 = vld [vmem:[%s266 + $0xb4] sm:$0xff]
      %v306 = vld [vmem:[%s266 + $0xbc] sm:$0xff]
      %v307 = vld [vmem:[%s266 + $0xc4] sm:$0xff]
      %v308 = vld [vmem:[%s266 + $0xcc] sm:$0xff]
      %v309 = vld [vmem:[%s266 + $0xd4] sm:$0xf]
      %v310 = vld [vmem:[%s266 + $0xd8] sm:$0xff]
      %v311 = vld [vmem:[%s266 + $0xe0] sm:$0xff]
      %v312 = vld [vmem:[%s266 + $0xe8] sm:$0xff]
      %v313 = vld [vmem:[%s266 + $0xf0] sm:$0xff]
      %v314 = vld [vmem:[%s266 + $0xf8] sm:$0xf]
      %v315 = vld [vmem:[%s266 + $0xfc] sm:$0xff]
      %v316 = vld [vmem:[%s266 + $0x104] sm:$0xff]
      %v317 = vld [vmem:[%s266 + $0x10c] sm:$0xff]
      %v318 = vld [vmem:[%s266 + $0x114] sm:$0xff]
      %v319 = vld [vmem:[%s266 + $0x11c] sm:$0xf]
      %v320 = vld [vmem:[%s1] sm:$0xf]
      %v321 = vld [vmem:[%s1 + $0x4] sm:$0xf]
      %v322 = vld [vmem:[%s1 + $0x8] sm:$0xf]
      %v323 = vld [vmem:[%s1 + $0xc] sm:$0xf]
      %v324 = vld [vmem:[%s1 + $0x10] sm:$0xf]
      %v325 = vld [vmem:[%s1 + $0x14] sm:$0xf]
      %v326 = vld [vmem:[%s1 + $0x18] sm:$0xf]
      %v327 = vld [vmem:[%s1 + $0x1c] sm:$0xf]
      %v328 = vld [vmem:[%s1 + $0x20] sm:$0xf]
      %v329 = vld [vmem:[%s1 + $0x24] sm:$0xf]
      %v330 = vld [vmem:[%s1 + $0x28] sm:$0xf]
      %v331 = vld [vmem:[%s1 + $0x2c] sm:$0xf]
      %v332 = vld [vmem:[%s1 + $0x30] sm:$0xf]
      %v333 = vld [vmem:[%s1 + $0x34] sm:$0xf]
      %v334 = vld [vmem:[%s1 + $0x38] sm:$0xf]
      %v335 = vld [vmem:[%s1 + $0x3c] sm:$0xf]
      %v336 = vld [vmem:[%s1 + $0x40] sm:$0xf]
      %v337 = vld [vmem:[%s1 + $0x44] sm:$0xf]
      %v338 = vld [vmem:[%s1 + $0x48] sm:$0xf]
      %v339 = vld [vmem:[%s1 + $0x4c] sm:$0xf]
      %v340 = vld [vmem:[%s1 + $0x50] sm:$0xf]
      %v341 = vld [vmem:[%s1 + $0x54] sm:$0xf]
      %v342 = vld [vmem:[%s1 + $0x58] sm:$0xf]
      %v343 = vld [vmem:[%s1 + $0x5c] sm:$0xf]
      %v344 = vld [vmem:[%s1 + $0x60] sm:$0xf]
      %v345 = vld [vmem:[%s1 + $0x64] sm:$0xf]
      %v346 = vld [vmem:[%s1 + $0x68] sm:$0xf]
      %v347 = vld [vmem:[%s1 + $0x6c] sm:$0xf]
      %v348 = vld [vmem:[%s1 + $0x70] sm:$0xf]
      %v349 = vld [vmem:[%s1 + $0x74] sm:$0xf]
      %v350 = vld [vmem:[%s1 + $0x78] sm:$0xf]
      %v351 = vld [vmem:[%s1 + $0x7c] sm:$0xf]
      %v352 = vld [vmem:[%s1 + $0x80] sm:$0xf]
      %v353 = vld [vmem:[%s1 + $0x84] sm:$0xf]
      %v354 = vld [vmem:[%s1 + $0x88] sm:$0xf]
      %v355 = vld [vmem:[%s1 + $0x8c] sm:$0xf]
      %v356 = vld [vmem:[%s1 + $0x90] sm:$0xf]
      %v357 = vld [vmem:[%s1 + $0x94] sm:$0xf]
      %v358 = vld [vmem:[%s1 + $0x98] sm:$0xf]
      %v359 = vld [vmem:[%s1 + $0x9c] sm:$0xf]
      %v360 = vld [vmem:[%s1 + $0xa0] sm:$0xf]
      %v361 = vld [vmem:[%s1 + $0xa4] sm:$0xf]
      %v362 = vld [vmem:[%s1 + $0xa8] sm:$0xf]
      %v363 = vld [vmem:[%s1 + $0xac] sm:$0xf]
      %v364 = vld [vmem:[%s1 + $0xb0] sm:$0xf]
      %v365 = vld [vmem:[%s1 + $0xb4] sm:$0xf]
      %v366 = vld [vmem:[%s1 + $0xb8] sm:$0xf]
      %v367 = vld [vmem:[%s1 + $0xbc] sm:$0xf]
      %v368 = vld [vmem:[%s1 + $0xc0] sm:$0xf]
      %v369 = vld [vmem:[%s1 + $0xc4] sm:$0xf]
      %v370 = vld [vmem:[%s1 + $0xc8] sm:$0xf]
      %v371 = vld [vmem:[%s1 + $0xcc] sm:$0xf]
      %v372 = vld [vmem:[%s1 + $0xd0] sm:$0xf]
      %v373 = vld [vmem:[%s1 + $0xd4] sm:$0xf]
      %v374 = vld [vmem:[%s1 + $0xd8] sm:$0xf]
      %v375 = vld [vmem:[%s1 + $0xdc] sm:$0xf]
      %v376 = vld [vmem:[%s1 + $0xe0] sm:$0xf]
      %v377 = vld [vmem:[%s1 + $0xe4] sm:$0xf]
      %v378 = vld [vmem:[%s1 + $0xe8] sm:$0xf]
      %v379 = vld [vmem:[%s1 + $0xec] sm:$0xf]
      %v380 = vld [vmem:[%s1 + $0xf0] sm:$0xf]
      %v381 = vld [vmem:[%s1 + $0xf4] sm:$0xf]
      %v382 = vld [vmem:[%s1 + $0xf8] sm:$0xf]
      %v383 = vld [vmem:[%s1 + $0xfc] sm:$0xf]
      %v384 = vld [vmem:[%s1 + $0x100] sm:$0xf]
      %v385 = vld [vmem:[%s1 + $0x104] sm:$0xf]
      %v386 = vld [vmem:[%s1 + $0x108] sm:$0xf]
      %v387 = vld [vmem:[%s1 + $0x10c] sm:$0xf]
      %v388 = vld [vmem:[%s1 + $0x110] sm:$0xf]
      %v389 = vld [vmem:[%s1 + $0x114] sm:$0xf]
      %v390 = vld [vmem:[%s1 + $0x118] sm:$0xf]
      %v391 = vld [vmem:[%s1 + $0x11c] sm:$0xf]
      %v392 = vld [vmem:[%s1 + $0x120] sm:$0xf]
      %v393 = vld [vmem:[%s1 + $0x124] sm:$0xf]
      %v394 = vld [vmem:[%s1 + $0x128] sm:$0xf]
      %v395 = vld [vmem:[%s1 + $0x12c] sm:$0xf]
      %v396 = vld [vmem:[%s1 + $0x130] sm:$0xf]
      %v397 = vld [vmem:[%s1 + $0x134] sm:$0xf]
      %v398 = vld [vmem:[%s1 + $0x138] sm:$0xf]
      %v399 = vld [vmem:[%s1 + $0x13c] sm:$0xf]
      %v400 = vld [vmem:[%s1 + $0x140] sm:$0xf]
      %v401 = vld [vmem:[%s1 + $0x144] sm:$0xf]
      %v402 = vld [vmem:[%s1 + $0x148] sm:$0xf]
      %v403 = vld [vmem:[%s1 + $0x14c] sm:$0xf]
      %v404 = vld [vmem:[%s1 + $0x150] sm:$0xf]
      %v405 = vld [vmem:[%s1 + $0x154] sm:$0xf]
      %v406 = vld [vmem:[%s1 + $0x158] sm:$0xf]
      %v407 = vld [vmem:[%s1 + $0x15c] sm:$0xf]
      %v408 = vld [vmem:[%s1 + $0x160] sm:$0xf]
      %v409 = vld [vmem:[%s1 + $0x164] sm:$0xf]
      %v410 = vld [vmem:[%s1 + $0x168] sm:$0xf]
      %v411 = vld [vmem:[%s1 + $0x16c] sm:$0xf]
      %v412 = vld [vmem:[%s1 + $0x170] sm:$0xf]
      %v413 = vld [vmem:[%s1 + $0x174] sm:$0xf]
      %v414 = vld [vmem:[%s1 + $0x178] sm:$0xf]
      %v415 = vld [vmem:[%s1 + $0x17c] sm:$0xf]
      %v416 = vld [vmem:[%s1 + $0x180] sm:$0xf]
      %v417 = vld [vmem:[%s1 + $0x184] sm:$0xf]
      %v418 = vld [vmem:[%s1 + $0x188] sm:$0xf]
      %v419 = vld [vmem:[%s1 + $0x18c] sm:$0xf]
      %v420 = vld [vmem:[%s1 + $0x190] sm:$0xf]
      %v421 = vld [vmem:[%s1 + $0x194] sm:$0xf]
      %v422 = vld [vmem:[%s1 + $0x198] sm:$0xf]
      %v423 = vld [vmem:[%s1 + $0x19c] sm:$0xf]
      %v424 = vld [vmem:[%s1 + $0x1a0] sm:$0xf]
      %v425 = vld [vmem:[%s1 + $0x1a4] sm:$0xf]
      %v426 = vld [vmem:[%s1 + $0x1a8] sm:$0xf]
      %v427 = vld [vmem:[%s1 + $0x1ac] sm:$0xf]
      %v428 = vld [vmem:[%s1 + $0x1b0] sm:$0xf]
      %v429 = vld [vmem:[%s1 + $0x1b4] sm:$0xf]
      %v430 = vld [vmem:[%s1 + $0x1b8] sm:$0xf]
      %v431 = vld [vmem:[%s1 + $0x1bc] sm:$0xf]
      %v432 = vld [vmem:[%s1 + $0x1c0] sm:$0xf]
      %v433 = vld [vmem:[%s1 + $0x1c4] sm:$0xf]
      %v434 = vld [vmem:[%s1 + $0x1c8] sm:$0xf]
      %v435 = vld [vmem:[%s1 + $0x1cc] sm:$0xf]
      %v436 = vld [vmem:[%s1 + $0x1d0] sm:$0xf]
      %v437 = vld [vmem:[%s1 + $0x1d4] sm:$0xf]
      %v438 = vld [vmem:[%s1 + $0x1d8] sm:$0xf]
      %v439 = vld [vmem:[%s1 + $0x1dc] sm:$0xf]
      %v440 = vld [vmem:[%s1 + $0x1e0] sm:$0xf]
      %v441 = vld [vmem:[%s1 + $0x1e4] sm:$0xf]
      %v442 = vld [vmem:[%s1 + $0x1e8] sm:$0xf]
      %v443 = vld [vmem:[%s1 + $0x1ec] sm:$0xf]
      %v444 = vld [vmem:[%s1 + $0x1f0] sm:$0xf]
      %v445 = vld [vmem:[%s1 + $0x1f4] sm:$0xf]
      %v446 = vld [vmem:[%s1 + $0x1f8] sm:$0xf]
      %v447 = vld [vmem:[%s1 + $0x1fc] sm:$0xf]
      %v448 = vld [vmem:[%s1 + $0x200] sm:$0xf]
      %v449 = vld [vmem:[%s1 + $0x204] sm:$0xf]
      %v450 = vld [vmem:[%s1 + $0x208] sm:$0xf]
      %v451 = vld [vmem:[%s1 + $0x20c] sm:$0xf]
      %v452 = vld [vmem:[%s1 + $0x210] sm:$0xf]
      %v453 = vld [vmem:[%s1 + $0x214] sm:$0xf]
      %v454 = vld [vmem:[%s1 + $0x218] sm:$0xf]
      %v455 = vld [vmem:[%s1 + $0x21c] sm:$0xf]
      %v456 = vld [vmem:[%s1 + $0x220] sm:$0xf]
      %v457 = vld [vmem:[%s1 + $0x224] sm:$0xf]
      %v458 = vld [vmem:[%s1 + $0x228] sm:$0xf]
      %v459 = vld [vmem:[%s1 + $0x22c] sm:$0xf]
      %v460 = vld [vmem:[%s1 + $0x230] sm:$0xf]
      %v461 = vld [vmem:[%s1 + $0x234] sm:$0xf]
      %v462 = vld [vmem:[%s1 + $0x238] sm:$0xf]
      %v463 = vld [vmem:[%s1 + $0x23c] sm:$0xf]
      %v464 = vld [vmem:[%s2] sm:$0x1]
      %v466 = vperm.slane %v464, 0
      %v508 = vunpack.c.l.b16 %v280
      %v509 = vunpack.c.h.b16 %v280
      %v510 = vunpack.c.l.b16 %v281
      %v511 = vunpack.c.h.b16 %v281
      %v512 = vunpack.c.l.b16 %v282
      %v513 = vunpack.c.h.b16 %v282
      %v514 = vunpack.c.l.b16 %v283
      %v515 = vunpack.c.h.b16 %v283
      %v516 = vunpack.c.l.b16 %v284
      %v517 = vunpack.c.l.b16 %v285
      %v518 = vunpack.c.h.b16 %v285
      %v519 = vunpack.c.l.b16 %v286
      %v520 = vunpack.c.h.b16 %v286
      %v521 = vunpack.c.l.b16 %v287
      %v522 = vunpack.c.h.b16 %v287
      %v523 = vunpack.c.l.b16 %v288
      %v524 = vunpack.c.h.b16 %v288
      %v525 = vunpack.c.l.b16 %v289
      %v526 = vunpack.c.l.b16 %v290
      %v527 = vunpack.c.h.b16 %v290
      %v528 = vunpack.c.l.b16 %v291
      %v529 = vunpack.c.h.b16 %v291
      %v530 = vunpack.c.l.b16 %v292
      %v531 = vunpack.c.h.b16 %v292
      %v532 = vunpack.c.l.b16 %v293
      %v533 = vunpack.c.h.b16 %v293
      %v534 = vunpack.c.l.b16 %v294
      %v535 = vunpack.c.l.b16 %v295
      %v536 = vunpack.c.h.b16 %v295
      %v537 = vunpack.c.l.b16 %v296
      %v538 = vunpack.c.h.b16 %v296
      %v539 = vunpack.c.l.b16 %v297
      %v540 = vunpack.c.h.b16 %v297
      %v541 = vunpack.c.l.b16 %v298
      %v542 = vunpack.c.h.b16 %v298
      %v543 = vunpack.c.l.b16 %v299
      %v544 = vunpack.c.l.b16 %v300
      %v545 = vunpack.c.h.b16 %v300
      %v546 = vunpack.c.l.b16 %v301
      %v547 = vunpack.c.h.b16 %v301
      %v548 = vunpack.c.l.b16 %v302
      %v549 = vunpack.c.h.b16 %v302
      %v550 = vunpack.c.l.b16 %v303
      %v551 = vunpack.c.h.b16 %v303
      %v552 = vunpack.c.l.b16 %v304
      %v553 = vunpack.c.l.b16 %v305
      %v554 = vunpack.c.h.b16 %v305
      %v555 = vunpack.c.l.b16 %v306
      %v556 = vunpack.c.h.b16 %v306
      %v557 = vunpack.c.l.b16 %v307
      %v558 = vunpack.c.h.b16 %v307
      %v559 = vunpack.c.l.b16 %v308
      %v560 = vunpack.c.h.b16 %v308
      %v561 = vunpack.c.l.b16 %v309
      %v562 = vunpack.c.l.b16 %v310
      %v563 = vunpack.c.h.b16 %v310
      %v564 = vunpack.c.l.b16 %v311
      %v565 = vunpack.c.h.b16 %v311
      %v566 = vunpack.c.l.b16 %v312
      %v567 = vunpack.c.h.b16 %v312
      %v568 = vunpack.c.l.b16 %v313
      %v569 = vunpack.c.h.b16 %v313
      %v570 = vunpack.c.l.b16 %v314
      %v571 = vunpack.c.l.b16 %v315
      %v572 = vunpack.c.h.b16 %v315
      %v573 = vunpack.c.l.b16 %v316
      %v574 = vunpack.c.h.b16 %v316
      %v575 = vunpack.c.l.b16 %v317
      %v576 = vunpack.c.h.b16 %v317
      %v577 = vunpack.c.l.b16 %v318
      %v578 = vunpack.c.h.b16 %v318
      %v579 = vunpack.c.l.b16 %v319
      %v580 = vpack.c.b16 %v517, %v508
      %v581 = vpack.c.b16 %v518, %v509
      %v582 = vpack.c.b16 %v519, %v510
      %v583 = vpack.c.b16 %v520, %v511
      %v584 = vpack.c.b16 %v521, %v512
      %v585 = vpack.c.b16 %v522, %v513
      %v586 = vpack.c.b16 %v523, %v514
      %v587 = vpack.c.b16 %v524, %v515
      %v588 = vpack.c.b16 %v525, %v516
      %v589 = vpack.c.b16 %v535, %v526
      %v590 = vpack.c.b16 %v536, %v527
      %v591 = vpack.c.b16 %v537, %v528
      %v592 = vpack.c.b16 %v538, %v529
      %v593 = vpack.c.b16 %v539, %v530
      %v594 = vpack.c.b16 %v540, %v531
      %v595 = vpack.c.b16 %v541, %v532
      %v596 = vpack.c.b16 %v542, %v533
      %v597 = vpack.c.b16 %v543, %v534
      %v598 = vpack.c.b16 %v553, %v544
      %v599 = vpack.c.b16 %v554, %v545
      %v600 = vpack.c.b16 %v555, %v546
      %v601 = vpack.c.b16 %v556, %v547
      %v602 = vpack.c.b16 %v557, %v548
      %v603 = vpack.c.b16 %v558, %v549
      %v604 = vpack.c.b16 %v559, %v550
      %v605 = vpack.c.b16 %v560, %v551
      %v606 = vpack.c.b16 %v561, %v552
      %v607 = vpack.c.b16 %v571, %v562
      %v608 = vpack.c.b16 %v572, %v563
      %v609 = vpack.c.b16 %v573, %v564
      %v610 = vpack.c.b16 %v574, %v565
      %v611 = vpack.c.b16 %v575, %v566
      %v612 = vpack.c.b16 %v576, %v567
      %v613 = vpack.c.b16 %v577, %v568
      %v614 = vpack.c.b16 %v578, %v569
      %v615 = vpack.c.b16 %v579, %v570
      %v796 = vunpack.c.l.b16 %v320
      %v797 = vunpack.c.l.b16 %v321
      %v798 = vunpack.c.l.b16 %v322
      %v799 = vunpack.c.l.b16 %v323
      %v800 = vunpack.c.l.b16 %v324
      %v801 = vunpack.c.l.b16 %v325
      %v802 = vunpack.c.l.b16 %v326
      %v803 = vunpack.c.l.b16 %v327
      %v804 = vunpack.c.l.b16 %v328
      %v805 = vunpack.c.l.b16 %v329
      %v806 = vunpack.c.l.b16 %v330
      %v807 = vunpack.c.l.b16 %v331
      %v808 = vunpack.c.l.b16 %v332
      %v809 = vunpack.c.l.b16 %v333
      %v810 = vunpack.c.l.b16 %v334
      %v811 = vunpack.c.l.b16 %v335
      %v812 = vunpack.c.l.b16 %v336
      %v813 = vunpack.c.l.b16 %v337
      %v814 = vunpack.c.l.b16 %v338
      %v815 = vunpack.c.l.b16 %v339
      %v816 = vunpack.c.l.b16 %v340
      %v817 = vunpack.c.l.b16 %v341
      %v818 = vunpack.c.l.b16 %v342
      %v819 = vunpack.c.l.b16 %v343
      %v820 = vunpack.c.l.b16 %v344
      %v821 = vunpack.c.l.b16 %v345
      %v822 = vunpack.c.l.b16 %v346
      %v823 = vunpack.c.l.b16 %v347
      %v824 = vunpack.c.l.b16 %v348
      %v825 = vunpack.c.l.b16 %v349
      %v826 = vunpack.c.l.b16 %v350
      %v827 = vunpack.c.l.b16 %v351
      %v828 = vunpack.c.l.b16 %v352
      %v829 = vunpack.c.l.b16 %v353
      %v830 = vunpack.c.l.b16 %v354
      %v831 = vunpack.c.l.b16 %v355
      %v832 = vunpack.c.l.b16 %v356
      %v833 = vunpack.c.l.b16 %v357
      %v834 = vunpack.c.l.b16 %v358
      %v835 = vunpack.c.l.b16 %v359
      %v836 = vunpack.c.l.b16 %v360
      %v837 = vunpack.c.l.b16 %v361
      %v838 = vunpack.c.l.b16 %v362
      %v839 = vunpack.c.l.b16 %v363
      %v840 = vunpack.c.l.b16 %v364
      %v841 = vunpack.c.l.b16 %v365
      %v842 = vunpack.c.l.b16 %v366
      %v843 = vunpack.c.l.b16 %v367
      %v844 = vunpack.c.l.b16 %v368
      %v845 = vunpack.c.l.b16 %v369
      %v846 = vunpack.c.l.b16 %v370
      %v847 = vunpack.c.l.b16 %v371
      %v848 = vunpack.c.l.b16 %v372
      %v849 = vunpack.c.l.b16 %v373
      %v850 = vunpack.c.l.b16 %v374
      %v851 = vunpack.c.l.b16 %v375
      %v852 = vunpack.c.l.b16 %v376
      %v853 = vunpack.c.l.b16 %v377
      %v854 = vunpack.c.l.b16 %v378
      %v855 = vunpack.c.l.b16 %v379
      %v856 = vunpack.c.l.b16 %v380
      %v857 = vunpack.c.l.b16 %v381
      %v858 = vunpack.c.l.b16 %v382
      %v859 = vunpack.c.l.b16 %v383
      %v860 = vunpack.c.l.b16 %v384
      %v861 = vunpack.c.l.b16 %v385
      %v862 = vunpack.c.l.b16 %v386
      %v863 = vunpack.c.l.b16 %v387
      %v864 = vunpack.c.l.b16 %v388
      %v865 = vunpack.c.l.b16 %v389
      %v866 = vunpack.c.l.b16 %v390
      %v867 = vunpack.c.l.b16 %v391
      %v868 = vunpack.c.l.b16 %v392
      %v869 = vunpack.c.l.b16 %v393
      %v870 = vunpack.c.l.b16 %v394
      %v871 = vunpack.c.l.b16 %v395
      %v872 = vunpack.c.l.b16 %v396
      %v873 = vunpack.c.l.b16 %v397
      %v874 = vunpack.c.l.b16 %v398
      %v875 = vunpack.c.l.b16 %v399
      %v876 = vunpack.c.l.b16 %v400
      %v877 = vunpack.c.l.b16 %v401
      %v878 = vunpack.c.l.b16 %v402
      %v879 = vunpack.c.l.b16 %v403
      %v880 = vunpack.c.l.b16 %v404
      %v881 = vunpack.c.l.b16 %v405
      %v882 = vunpack.c.l.b16 %v406
      %v883 = vunpack.c.l.b16 %v407
      %v884 = vunpack.c.l.b16 %v408
      %v885 = vunpack.c.l.b16 %v409
      %v886 = vunpack.c.l.b16 %v410
      %v887 = vunpack.c.l.b16 %v411
      %v888 = vunpack.c.l.b16 %v412
      %v889 = vunpack.c.l.b16 %v413
      %v890 = vunpack.c.l.b16 %v414
      %v891 = vunpack.c.l.b16 %v415
      %v892 = vunpack.c.l.b16 %v416
      %v893 = vunpack.c.l.b16 %v417
      %v894 = vunpack.c.l.b16 %v418
      %v895 = vunpack.c.l.b16 %v419
      %v896 = vunpack.c.l.b16 %v420
      %v897 = vunpack.c.l.b16 %v421
      %v898 = vunpack.c.l.b16 %v422
      %v899 = vunpack.c.l.b16 %v423
      %v900 = vunpack.c.l.b16 %v424
      %v901 = vunpack.c.l.b16 %v425
      %v902 = vunpack.c.l.b16 %v426
      %v903 = vunpack.c.l.b16 %v427
      %v904 = vunpack.c.l.b16 %v428
      %v905 = vunpack.c.l.b16 %v429
      %v906 = vunpack.c.l.b16 %v430
      %v907 = vunpack.c.l.b16 %v431
      %v908 = vunpack.c.l.b16 %v432
      %v909 = vunpack.c.l.b16 %v433
      %v910 = vunpack.c.l.b16 %v434
      %v911 = vunpack.c.l.b16 %v435
      %v912 = vunpack.c.l.b16 %v436
      %v913 = vunpack.c.l.b16 %v437
      %v914 = vunpack.c.l.b16 %v438
      %v915 = vunpack.c.l.b16 %v439
      %v916 = vunpack.c.l.b16 %v440
      %v917 = vunpack.c.l.b16 %v441
      %v918 = vunpack.c.l.b16 %v442
      %v919 = vunpack.c.l.b16 %v443
      %v920 = vunpack.c.l.b16 %v444
      %v921 = vunpack.c.l.b16 %v445
      %v922 = vunpack.c.l.b16 %v446
      %v923 = vunpack.c.l.b16 %v447
      %v924 = vunpack.c.l.b16 %v448
      %v925 = vunpack.c.l.b16 %v449
      %v926 = vunpack.c.l.b16 %v450
      %v927 = vunpack.c.l.b16 %v451
      %v928 = vunpack.c.l.b16 %v452
      %v929 = vunpack.c.l.b16 %v453
      %v930 = vunpack.c.l.b16 %v454
      %v931 = vunpack.c.l.b16 %v455
      %v932 = vunpack.c.l.b16 %v456
      %v933 = vunpack.c.l.b16 %v457
      %v934 = vunpack.c.l.b16 %v458
      %v935 = vunpack.c.l.b16 %v459
      %v936 = vunpack.c.l.b16 %v460
      %v937 = vunpack.c.l.b16 %v461
      %v938 = vunpack.c.l.b16 %v462
      %v939 = vunpack.c.l.b16 %v463
      %v940 = vpack.c.b16 %v797, %v796
      %v941 = vpack.c.b16 %v799, %v798
      %v942 = vpack.c.b16 %v801, %v800
      %v943 = vpack.c.b16 %v803, %v802
      %v944 = vpack.c.b16 %v805, %v804
      %v945 = vpack.c.b16 %v807, %v806
      %v946 = vpack.c.b16 %v809, %v808
      %v947 = vpack.c.b16 %v811, %v810
      %v948 = vpack.c.b16 %v813, %v812
      %v949 = vpack.c.b16 %v815, %v814
      %v950 = vpack.c.b16 %v817, %v816
      %v951 = vpack.c.b16 %v819, %v818
      %v952 = vpack.c.b16 %v821, %v820
      %v953 = vpack.c.b16 %v823, %v822
      %v954 = vpack.c.b16 %v825, %v824
      %v955 = vpack.c.b16 %v827, %v826
      %v956 = vpack.c.b16 %v829, %v828
      %v957 = vpack.c.b16 %v831, %v830
      %v958 = vpack.c.b16 %v833, %v832
      %v959 = vpack.c.b16 %v835, %v834
      %v960 = vpack.c.b16 %v837, %v836
      %v961 = vpack.c.b16 %v839, %v838
      %v962 = vpack.c.b16 %v841, %v840
      %v963 = vpack.c.b16 %v843, %v842
      %v964 = vpack.c.b16 %v845, %v844
      %v965 = vpack.c.b16 %v847, %v846
      %v966 = vpack.c.b16 %v849, %v848
      %v967 = vpack.c.b16 %v851, %v850
      %v968 = vpack.c.b16 %v853, %v852
      %v969 = vpack.c.b16 %v855, %v854
      %v970 = vpack.c.b16 %v857, %v856
      %v971 = vpack.c.b16 %v859, %v858
      %v972 = vpack.c.b16 %v861, %v860
      %v973 = vpack.c.b16 %v863, %v862
      %v974 = vpack.c.b16 %v865, %v864
      %v975 = vpack.c.b16 %v867, %v866
      %v976 = vpack.c.b16 %v869, %v868
      %v977 = vpack.c.b16 %v871, %v870
      %v978 = vpack.c.b16 %v873, %v872
      %v979 = vpack.c.b16 %v875, %v874
      %v980 = vpack.c.b16 %v877, %v876
      %v981 = vpack.c.b16 %v879, %v878
      %v982 = vpack.c.b16 %v881, %v880
      %v983 = vpack.c.b16 %v883, %v882
      %v984 = vpack.c.b16 %v885, %v884
      %v985 = vpack.c.b16 %v887, %v886
      %v986 = vpack.c.b16 %v889, %v888
      %v987 = vpack.c.b16 %v891, %v890
      %v988 = vpack.c.b16 %v893, %v892
      %v989 = vpack.c.b16 %v895, %v894
      %v990 = vpack.c.b16 %v897, %v896
      %v991 = vpack.c.b16 %v899, %v898
      %v992 = vpack.c.b16 %v901, %v900
      %v993 = vpack.c.b16 %v903, %v902
      %v994 = vpack.c.b16 %v905, %v904
      %v995 = vpack.c.b16 %v907, %v906
      %v996 = vpack.c.b16 %v909, %v908
      %v997 = vpack.c.b16 %v911, %v910
      %v998 = vpack.c.b16 %v913, %v912
      %v999 = vpack.c.b16 %v915, %v914
      %v1000 = vpack.c.b16 %v917, %v916
      %v1001 = vpack.c.b16 %v919, %v918
      %v1002 = vpack.c.b16 %v921, %v920
      %v1003 = vpack.c.b16 %v923, %v922
      %v1004 = vpack.c.b16 %v925, %v924
      %v1005 = vpack.c.b16 %v927, %v926
      %v1006 = vpack.c.b16 %v929, %v928
      %v1007 = vpack.c.b16 %v931, %v930
      %v1008 = vpack.c.b16 %v933, %v932
      %v1009 = vpack.c.b16 %v935, %v934
      %v1010 = vpack.c.b16 %v937, %v936
      %v1011 = vpack.c.b16 %v939, %v938
      %1084 = vmatpush.bf16.msra.mxu0 %v947
      %1085 = vmatpush.bf16.msra.mxu0 %v946
      %1086 = vmatpush.bf16.msra.mxu0 %v945
      %1087 = vmatpush.bf16.msra.mxu0 %v944
      %1088 = vmatpush.bf16.msra.mxu0 %v943
      %1089 = vmatpush.bf16.msra.mxu0 %v942
      %1090 = vmatpush.bf16.msra.mxu0 %v941
      %1091 = vmatpush.bf16.msra.mxu0 %v940
      %1092 = vmatmul.bf16.gmra.mxu0 %v580
      %v1093 = vpop.f32.mrf.mxu0
      %v1094 = vadd.f32 %v466, %v1093
      %v1095 = vpop.f32.mrf.mxu0
      %v1096 = vadd.f32 %v466, %v1095
      %1097 = vmatmul.bf16.gmra.mxu0 %v589
      %v1098 = vpop.f32.mrf.mxu0
      %v1099 = vadd.f32 %v466, %v1098
      %v1100 = vpop.f32.mrf.mxu0
      %v1101 = vadd.f32 %v466, %v1100
      %1102 = vmatmul.bf16.gmra.mxu0 %v598
      %v1103 = vpop.f32.mrf.mxu0
      %v1104 = vadd.f32 %v466, %v1103
      %v1105 = vpop.f32.mrf.mxu0
      %v1106 = vadd.f32 %v466, %v1105
      %1107 = vmatmul.bf16.gmra.mxu0 %v607
      %v1108 = vpop.f32.mrf.mxu0
      %v1109 = vadd.f32 %v466, %v1108
      %v1110 = vpop.f32.mrf.mxu0
      %v1111 = vadd.f32 %v466, %v1110
      %1112 = vdwg.mxu0
      %1113 = vmatpush.bf16.msra.mxu0 %v955
      %1114 = vmatpush.bf16.msra.mxu0 %v954
      %1115 = vmatpush.bf16.msra.mxu0 %v953
      %1116 = vmatpush.bf16.msra.mxu0 %v952
      %1117 = vmatpush.bf16.msra.mxu0 %v951
      %1118 = vmatpush.bf16.msra.mxu0 %v950
      %1119 = vmatpush.bf16.msra.mxu0 %v949
      %1120 = vmatpush.bf16.msra.mxu0 %v948
      %1121 = vmatmul.bf16.gmra.mxu0 %v581
      %v1122 = vpop.f32.mrf.mxu0
      %v1123 = vadd.f32 %v1094, %v1122
      %v1124 = vpop.f32.mrf.mxu0
      %v1125 = vadd.f32 %v1096, %v1124
      %1126 = vmatmul.bf16.gmra.mxu0 %v590
      %v1127 = vpop.f32.mrf.mxu0
      %v1128 = vadd.f32 %v1099, %v1127
      %v1129 = vpop.f32.mrf.mxu0
      %v1130 = vadd.f32 %v1101, %v1129
      %1131 = vmatmul.bf16.gmra.mxu0 %v599
      %v1132 = vpop.f32.mrf.mxu0
      %v1133 = vadd.f32 %v1104, %v1132
      %v1134 = vpop.f32.mrf.mxu0
      %v1135 = vadd.f32 %v1106, %v1134
      %1136 = vmatmul.bf16.gmra.mxu0 %v608
      %v1137 = vpop.f32.mrf.mxu0
      %v1138 = vadd.f32 %v1109, %v1137
      %v1139 = vpop.f32.mrf.mxu0
      %v1140 = vadd.f32 %v1111, %v1139
      %1141 = vdwg.mxu0
      %1142 = vmatpush.bf16.msra.mxu0 %v963
      %1143 = vmatpush.bf16.msra.mxu0 %v962
      %1144 = vmatpush.bf16.msra.mxu0 %v961
      %1145 = vmatpush.bf16.msra.mxu0 %v960
      %1146 = vmatpush.bf16.msra.mxu0 %v959
      %1147 = vmatpush.bf16.msra.mxu0 %v958
      %1148 = vmatpush.bf16.msra.mxu0 %v957
      %1149 = vmatpush.bf16.msra.mxu0 %v956
      %1150 = vmatmul.bf16.gmra.mxu0 %v582
      %v1151 = vpop.f32.mrf.mxu0
      %v1152 = vadd.f32 %v1123, %v1151
      %v1153 = vpop.f32.mrf.mxu0
      %v1154 = vadd.f32 %v1125, %v1153
      %1155 = vmatmul.bf16.gmra.mxu0 %v591
      %v1156 = vpop.f32.mrf.mxu0
      %v1157 = vadd.f32 %v1128, %v1156
      %v1158 = vpop.f32.mrf.mxu0
      %v1159 = vadd.f32 %v1130, %v1158
      %1160 = vmatmul.bf16.gmra.mxu0 %v600
      %v1161 = vpop.f32.mrf.mxu0
      %v1162 = vadd.f32 %v1133, %v1161
      %v1163 = vpop.f32.mrf.mxu0
      %v1164 = vadd.f32 %v1135, %v1163
      %1165 = vmatmul.bf16.gmra.mxu0 %v609
      %v1166 = vpop.f32.mrf.mxu0
      %v1167 = vadd.f32 %v1138, %v1166
      %v1168 = vpop.f32.mrf.mxu0
      %v1169 = vadd.f32 %v1140, %v1168
      %1170 = vdwg.mxu0
      %1171 = vmatpush.bf16.msra.mxu0 %v971
      %1172 = vmatpush.bf16.msra.mxu0 %v970
      %1173 = vmatpush.bf16.msra.mxu0 %v969
      %1174 = vmatpush.bf16.msra.mxu0 %v968
      %1175 = vmatpush.bf16.msra.mxu0 %v967
      %1176 = vmatpush.bf16.msra.mxu0 %v966
      %1177 = vmatpush.bf16.msra.mxu0 %v965
      %1178 = vmatpush.bf16.msra.mxu0 %v964
      %1179 = vmatmul.bf16.gmra.mxu0 %v583
      %v1180 = vpop.f32.mrf.mxu0
      %v1181 = vadd.f32 %v1152, %v1180
      %v1182 = vpop.f32.mrf.mxu0
      %v1183 = vadd.f32 %v1154, %v1182
      %1184 = vmatmul.bf16.gmra.mxu0 %v592
      %v1185 = vpop.f32.mrf.mxu0
      %v1186 = vadd.f32 %v1157, %v1185
      %v1187 = vpop.f32.mrf.mxu0
      %v1188 = vadd.f32 %v1159, %v1187
      %1189 = vmatmul.bf16.gmra.mxu0 %v601
      %v1190 = vpop.f32.mrf.mxu0
      %v1191 = vadd.f32 %v1162, %v1190
      %v1192 = vpop.f32.mrf.mxu0
      %v1193 = vadd.f32 %v1164, %v1192
      %1194 = vmatmul.bf16.gmra.mxu0 %v610
      %v1195 = vpop.f32.mrf.mxu0
      %v1196 = vadd.f32 %v1167, %v1195
      %v1197 = vpop.f32.mrf.mxu0
      %v1198 = vadd.f32 %v1169, %v1197
      %1199 = vdwg.mxu0
      %1200 = vmatpush.bf16.msra.mxu0 %v979
      %1201 = vmatpush.bf16.msra.mxu0 %v978
      %1202 = vmatpush.bf16.msra.mxu0 %v977
      %1203 = vmatpush.bf16.msra.mxu0 %v976
      %1204 = vmatpush.bf16.msra.mxu0 %v975
      %1205 = vmatpush.bf16.msra.mxu0 %v974
      %1206 = vmatpush.bf16.msra.mxu0 %v973
      %1207 = vmatpush.bf16.msra.mxu0 %v972
      %1208 = vmatmul.bf16.gmra.mxu0 %v584
      %v1209 = vpop.f32.mrf.mxu0
      %v1210 = vadd.f32 %v1181, %v1209
      %v1211 = vpop.f32.mrf.mxu0
      %v1212 = vadd.f32 %v1183, %v1211
      %1213 = vmatmul.bf16.gmra.mxu0 %v593
      %v1214 = vpop.f32.mrf.mxu0
      %v1215 = vadd.f32 %v1186, %v1214
      %v1216 = vpop.f32.mrf.mxu0
      %v1217 = vadd.f32 %v1188, %v1216
      %1218 = vmatmul.bf16.gmra.mxu0 %v602
      %v1219 = vpop.f32.mrf.mxu0
      %v1220 = vadd.f32 %v1191, %v1219
      %v1221 = vpop.f32.mrf.mxu0
      %v1222 = vadd.f32 %v1193, %v1221
      %1223 = vmatmul.bf16.gmra.mxu0 %v611
      %v1224 = vpop.f32.mrf.mxu0
      %v1225 = vadd.f32 %v1196, %v1224
      %v1226 = vpop.f32.mrf.mxu0
      %v1227 = vadd.f32 %v1198, %v1226
      %1228 = vdwg.mxu0
      %1229 = vmatpush.bf16.msra.mxu0 %v987
      %1230 = vmatpush.bf16.msra.mxu0 %v986
      %1231 = vmatpush.bf16.msra.mxu0 %v985
      %1232 = vmatpush.bf16.msra.mxu0 %v984
      %1233 = vmatpush.bf16.msra.mxu0 %v983
      %1234 = vmatpush.bf16.msra.mxu0 %v982
      %1235 = vmatpush.bf16.msra.mxu0 %v981
      %1236 = vmatpush.bf16.msra.mxu0 %v980
      %1237 = vmatmul.bf16.gmra.mxu0 %v585
      %v1238 = vpop.f32.mrf.mxu0
      %v1239 = vadd.f32 %v1210, %v1238
      %v1240 = vpop.f32.mrf.mxu0
      %v1241 = vadd.f32 %v1212, %v1240
      %1242 = vmatmul.bf16.gmra.mxu0 %v594
      %v1243 = vpop.f32.mrf.mxu0
      %v1244 = vadd.f32 %v1215, %v1243
      %v1245 = vpop.f32.mrf.mxu0
      %v1246 = vadd.f32 %v1217, %v1245
      %1247 = vmatmul.bf16.gmra.mxu0 %v603
      %v1248 = vpop.f32.mrf.mxu0
      %v1249 = vadd.f32 %v1220, %v1248
      %v1250 = vpop.f32.mrf.mxu0
      %v1251 = vadd.f32 %v1222, %v1250
      %1252 = vmatmul.bf16.gmra.mxu0 %v612
      %v1253 = vpop.f32.mrf.mxu0
      %v1254 = vadd.f32 %v1225, %v1253
      %v1255 = vpop.f32.mrf.mxu0
      %v1256 = vadd.f32 %v1227, %v1255
      %1257 = vdwg.mxu0
      %1258 = vmatpush.bf16.msra.mxu0 %v995
      %1259 = vmatpush.bf16.msra.mxu0 %v994
      %1260 = vmatpush.bf16.msra.mxu0 %v993
      %1261 = vmatpush.bf16.msra.mxu0 %v992
      %1262 = vmatpush.bf16.msra.mxu0 %v991
      %1263 = vmatpush.bf16.msra.mxu0 %v990
      %1264 = vmatpush.bf16.msra.mxu0 %v989
      %1265 = vmatpush.bf16.msra.mxu0 %v988
      %1266 = vmatmul.bf16.gmra.mxu0 %v586
      %v1267 = vpop.f32.mrf.mxu0
      %v1268 = vadd.f32 %v1239, %v1267
      %v1269 = vpop.f32.mrf.mxu0
      %v1270 = vadd.f32 %v1241, %v1269
      %1271 = vmatmul.bf16.gmra.mxu0 %v595
      %v1272 = vpop.f32.mrf.mxu0
      %v1273 = vadd.f32 %v1244, %v1272
      %v1274 = vpop.f32.mrf.mxu0
      %v1275 = vadd.f32 %v1246, %v1274
      %1276 = vmatmul.bf16.gmra.mxu0 %v604
      %v1277 = vpop.f32.mrf.mxu0
      %v1278 = vadd.f32 %v1249, %v1277
      %v1279 = vpop.f32.mrf.mxu0
      %v1280 = vadd.f32 %v1251, %v1279
      %1281 = vmatmul.bf16.gmra.mxu0 %v613
      %v1282 = vpop.f32.mrf.mxu0
      %v1283 = vadd.f32 %v1254, %v1282
      %v1284 = vpop.f32.mrf.mxu0
      %v1285 = vadd.f32 %v1256, %v1284
      %1286 = vdwg.mxu0
      %1287 = vmatpush.bf16.msra.mxu0 %v1003
      %1288 = vmatpush.bf16.msra.mxu0 %v1002
      %1289 = vmatpush.bf16.msra.mxu0 %v1001
      %1290 = vmatpush.bf16.msra.mxu0 %v1000
      %1291 = vmatpush.bf16.msra.mxu0 %v999
      %1292 = vmatpush.bf16.msra.mxu0 %v998
      %1293 = vmatpush.bf16.msra.mxu0 %v997
      %1294 = vmatpush.bf16.msra.mxu0 %v996
      %1295 = vmatmul.bf16.gmra.mxu0 %v587
      %v1296 = vpop.f32.mrf.mxu0
      %v1297 = vadd.f32 %v1268, %v1296
      %v1298 = vpop.f32.mrf.mxu0
      %v1299 = vadd.f32 %v1270, %v1298
      %1300 = vmatmul.bf16.gmra.mxu0 %v596
      %v1301 = vpop.f32.mrf.mxu0
      %v1302 = vadd.f32 %v1273, %v1301
      %v1303 = vpop.f32.mrf.mxu0
      %v1304 = vadd.f32 %v1275, %v1303
      %1305 = vmatmul.bf16.gmra.mxu0 %v605
      %v1306 = vpop.f32.mrf.mxu0
      %v1307 = vadd.f32 %v1278, %v1306
      %v1308 = vpop.f32.mrf.mxu0
      %v1309 = vadd.f32 %v1280, %v1308
      %1310 = vmatmul.bf16.gmra.mxu0 %v614
      %v1311 = vpop.f32.mrf.mxu0
      %v1312 = vadd.f32 %v1283, %v1311
      %v1313 = vpop.f32.mrf.mxu0
      %v1314 = vadd.f32 %v1285, %v1313
      %1315 = vdwg.mxu0
      %1316 = vmatpush.bf16.msra.mxu0 %v1011
      %1317 = vmatpush.bf16.msra.mxu0 %v1010
      %1318 = vmatpush.bf16.msra.mxu0 %v1009
      %1319 = vmatpush.bf16.msra.mxu0 %v1008
      %1320 = vmatpush.bf16.msra.mxu0 %v1007
      %1321 = vmatpush.bf16.msra.mxu0 %v1006
      %1322 = vmatpush.bf16.msra.mxu0 %v1005
      %1323 = vmatpush.bf16.msra.mxu0 %v1004
      %1324 = vmatmul.bf16.gmra.mxu0 %v588
      %v1325 = vpop.f32.mrf.mxu0
      %v1326 = vadd.f32 %v1297, %v1325
      %v1327 = vpop.f32.mrf.mxu0
      %v1328 = vadd.f32 %v1299, %v1327
      %1329 = vmatmul.bf16.gmra.mxu0 %v597
      %v1330 = vpop.f32.mrf.mxu0
      %v1331 = vadd.f32 %v1302, %v1330
      %v1332 = vpop.f32.mrf.mxu0
      %v1333 = vadd.f32 %v1304, %v1332
      %1334 = vmatmul.bf16.gmra.mxu0 %v606
      %v1335 = vpop.f32.mrf.mxu0
      %v1336 = vadd.f32 %v1307, %v1335
      %v1337 = vpop.f32.mrf.mxu0
      %v1338 = vadd.f32 %v1309, %v1337
      %1339 = vmatmul.bf16.gmra.mxu0 %v615
      %v1340 = vpop.f32.mrf.mxu0
      %v1341 = vadd.f32 %v1312, %v1340
      %v1342 = vpop.f32.mrf.mxu0
      %v1343 = vadd.f32 %v1314, %v1342
      %1344 = vdwg.mxu0
      %v1345 = vld [vmem:[%s272] sm:$0xf]
      %v1346 = vld [vmem:[%s272 + $0x4] sm:$0xf]
      %v1347 = vld [vmem:[%s272 + $0x8] sm:$0xf]
      %v1348 = vld [vmem:[%s272 + $0xc] sm:$0xf]
      %v1349 = vld [vmem:[%s272 + $0x10] sm:$0xf]
      %v1350 = vld [vmem:[%s272 + $0x14] sm:$0xf]
      %v1351 = vld [vmem:[%s272 + $0x18] sm:$0xf]
      %v1352 = vld [vmem:[%s272 + $0x1c] sm:$0xf]
      %v1353 = vld [vmem:[%s4] sm:$0xf]
      %v1354 = vld [vmem:[%s4 + $0x4] sm:$0xf]
      %v1355 = vld [vmem:[%s4 + $0x8] sm:$0xf]
      %v1356 = vld [vmem:[%s4 + $0xc] sm:$0xf]
      %v1357 = vld [vmem:[%s4 + $0x10] sm:$0xf]
      %v1358 = vld [vmem:[%s4 + $0x14] sm:$0xf]
      %v1359 = vld [vmem:[%s4 + $0x18] sm:$0xf]
      %v1360 = vld [vmem:[%s4 + $0x1c] sm:$0xf]
      %v1361 = vld [vmem:[%s4 + $0x20] sm:$0xf]
      %v1362 = vld [vmem:[%s4 + $0x24] sm:$0xf]
      %v1363 = vld [vmem:[%s4 + $0x28] sm:$0xf]
      %v1364 = vld [vmem:[%s4 + $0x2c] sm:$0xf]
      %v1365 = vld [vmem:[%s4 + $0x30] sm:$0xf]
      %v1366 = vld [vmem:[%s4 + $0x34] sm:$0xf]
      %v1367 = vld [vmem:[%s4 + $0x38] sm:$0xf]
      %v1368 = vld [vmem:[%s4 + $0x3c] sm:$0xf]
      %v1377 = vunpack.c.l.b16 %v1345
      %v1378 = vunpack.c.l.b16 %v1346
      %v1379 = vunpack.c.l.b16 %v1347
      %v1380 = vunpack.c.l.b16 %v1348
      %v1381 = vunpack.c.l.b16 %v1349
      %v1382 = vunpack.c.l.b16 %v1350
      %v1383 = vunpack.c.l.b16 %v1351
      %v1384 = vunpack.c.l.b16 %v1352
      %v1385 = vpack.c.b16 %v1378, %v1377
      %v1386 = vpack.c.b16 %v1380, %v1379
      %v1387 = vpack.c.b16 %v1382, %v1381
      %v1388 = vpack.c.b16 %v1384, %v1383
      %v1409 = vunpack.c.l.b16 %v1353
      %v1410 = vunpack.c.l.b16 %v1354
      %v1411 = vunpack.c.l.b16 %v1355
      %v1412 = vunpack.c.l.b16 %v1356
      %v1413 = vunpack.c.l.b16 %v1357
      %v1414 = vunpack.c.l.b16 %v1358
      %v1415 = vunpack.c.l.b16 %v1359
      %v1416 = vunpack.c.l.b16 %v1360
      %v1417 = vunpack.c.l.b16 %v1361
      %v1418 = vunpack.c.l.b16 %v1362
      %v1419 = vunpack.c.l.b16 %v1363
      %v1420 = vunpack.c.l.b16 %v1364
      %v1421 = vunpack.c.l.b16 %v1365
      %v1422 = vunpack.c.l.b16 %v1366
      %v1423 = vunpack.c.l.b16 %v1367
      %v1424 = vunpack.c.l.b16 %v1368
      %v1425 = vpack.c.b16 %v1410, %v1409
      %v1426 = vpack.c.b16 %v1412, %v1411
      %v1427 = vpack.c.b16 %v1414, %v1413
      %v1428 = vpack.c.b16 %v1416, %v1415
      %v1429 = vpack.c.b16 %v1418, %v1417
      %v1430 = vpack.c.b16 %v1420, %v1419
      %v1431 = vpack.c.b16 %v1422, %v1421
      %v1432 = vpack.c.b16 %v1424, %v1423
      %1441 = vmatpush.bf16.msra.mxu0 %v1432
      %1442 = vmatpush.bf16.msra.mxu0 %v1431
      %1443 = vmatpush.bf16.msra.mxu0 %v1430
      %1444 = vmatpush.bf16.msra.mxu0 %v1429
      %1445 = vmatpush.bf16.msra.mxu0 %v1428
      %1446 = vmatpush.bf16.msra.mxu0 %v1427
      %1447 = vmatpush.bf16.msra.mxu0 %v1426
      %1448 = vmatpush.bf16.msra.mxu0 %v1425
      %1449 = vmatmul.bf16.gmra.mxu0 %v1385
      %v1450 = vpop.f32.mrf.mxu0
      %v1451 = vadd.f32 0.0, %v1450
      %v1452 = vpop.f32.mrf.mxu0
      %v1453 = vadd.f32 0.0, %v1452
      %1454 = vmatmul.bf16.gmra.mxu0 %v1386
      %v1455 = vpop.f32.mrf.mxu0
      %v1456 = vadd.f32 0.0, %v1455
      %v1457 = vpop.f32.mrf.mxu0
      %v1458 = vadd.f32 0.0, %v1457
      %1459 = vmatmul.bf16.gmra.mxu0 %v1387
      %v1460 = vpop.f32.mrf.mxu0
      %v1461 = vadd.f32 0.0, %v1460
      %v1462 = vpop.f32.mrf.mxu0
      %v1463 = vadd.f32 0.0, %v1462
      %1464 = vmatmul.bf16.gmra.mxu0 %v1388
      %v1465 = vpop.f32.mrf.mxu0
      %v1466 = vadd.f32 0.0, %v1465
      %v1467 = vpop.f32.mrf.mxu0
      %v1468 = vadd.f32 0.0, %v1467
      %1469 = vdwg.mxu0
      %v1470 = vadd.f32 %v1326, %v1451
      %v1471 = vadd.f32 %v1328, %v1453
      %v1472 = vadd.f32 %v1331, %v1456
      %v1473 = vadd.f32 %v1333, %v1458
      %v1474 = vadd.f32 %v1336, %v1461
      %v1475 = vadd.f32 %v1338, %v1463
      %v1476 = vadd.f32 %v1341, %v1466
      %v1477 = vadd.f32 %v1343, %v1468
      %v1478 = vld [vmem:[%s5] sm:$0x1]
      %v1480 = vperm.slane %v1478, 0
      %v1482 = vadd.f32 %v1470, %v1480
      %v1483 = vadd.f32 %v1471, %v1480
      %v1484 = vadd.f32 %v1472, %v1480
      %v1485 = vadd.f32 %v1473, %v1480
      %v1486 = vadd.f32 %v1474, %v1480
      %v1487 = vadd.f32 %v1475, %v1480
      %v1488 = vadd.f32 %v1476, %v1480
      %v1489 = vadd.f32 %v1477, %v1480
      %v1490 = vmax.f32 %v1482, 0.0
      %v1491 = vmax.f32 %v1483, 0.0
      %v1492 = vmax.f32 %v1484, 0.0
      %v1493 = vmax.f32 %v1485, 0.0
      %v1494 = vmax.f32 %v1486, 0.0
      %v1495 = vmax.f32 %v1487, 0.0
      %v1496 = vmax.f32 %v1488, 0.0
      %v1497 = vmax.f32 %v1489, 0.0
      %v1498 = vpack.c.bf16 %v1490, %v1490
      %v1499 = vpack.c.bf16 %v1491, %v1491
      %v1500 = vpack.c.bf16 %v1492, %v1492
      %v1501 = vpack.c.bf16 %v1493, %v1493
      %v1502 = vpack.c.bf16 %v1494, %v1494
      %v1503 = vpack.c.bf16 %v1495, %v1495
      %v1504 = vpack.c.bf16 %v1496, %v1496
      %v1505 = vpack.c.bf16 %v1497, %v1497
      %1506 = vst [vmem:[%s278] sm:$0xf] %v1498
      %1507 = vst [vmem:[%s278 + $0x4] sm:$0xf] %v1499
      %1508 = vst [vmem:[%s278 + $0x8] sm:$0xf] %v1500
      %1509 = vst [vmem:[%s278 + $0xc] sm:$0xf] %v1501
      %1510 = vst [vmem:[%s278 + $0x10] sm:$0xf] %v1502
      %1511 = vst [vmem:[%s278 + $0x14] sm:$0xf] %v1503
      %1512 = vst [vmem:[%s278 + $0x18] sm:$0xf] %v1504
      %1513 = vst [vmem:[%s278 + $0x1c] sm:$0xf] %v1505
      %s1514 = smul.u32 8, %s17
      %p1515 = scmp.lt.s32.totalorder %s1514, 15
      %s1516 = scalar_select %p1515, %s1514, 15
      %s1517 = smul.addr %s1516, 4
      %s1518 = scalar_lea.vmem %s6, %s1517
      // Predicated region
      $region45: #{_lambda_.12} parent=43 // pred_check
        %p1519 = pneg %p171
      $region46: #{_lambda_.12} parent=43 // pred_check_branch
        %1521 = sbr.rel (%p1519) target = $region48
      $region47: #{_lambda_.12} parent=43 // pred_region
        %s1522 = smul.u32 8, %s17
      $region48: #{_lambda_.12} parent=43 // pred_fallthru
        _
    $region44: #{_lambda_.12} parent=5 // pred_fallthru
      _
    %p1523 = scmp.le.s32.totalorder 2, %s12
    // Predicated region
    $region49: #{_lambda_.12} parent=5 // pred_check
      %p1524 = pneg %p1523
    $region50: #{_lambda_.12} parent=5 // pred_check_branch
      %1526 = sbr.rel (%p1524) target = $region52
    $region51: #{_lambda_.12} parent=5 // pred_region
      %s1527 = ssub.s32 %s12, 2
      // Predicated region
      $region53: #{_lambda_.12} parent=51 // pred_check
        %p1528 = pneg %p177
      $region54: #{_lambda_.12} parent=51 // pred_check_branch
        %1530 = sbr.rel (%p1528) target = $region56
      $region55: #{_lambda_.12} parent=51 // pred_region
        %s1531 = smul.u32 8, %s18
        %p1532 = scmp.lt.s32.totalorder %s1531, 15
        %s1533 = scalar_select %p1532, %s1531, 15
        %s1534 = smul.addr %s1533, 4
        %s1535 = scalar_lea.vmem %s6, %s1534
      $region56: #{_lambda_.12} parent=51 // pred_fallthru
        _
    $region52: #{_lambda_.12} parent=5 // pred_fallthru
      _
  $region6: #{_lambda_.12} parent=0 // loop_footer
    %s16 = sadd.s32 1, %s12
  $region7: #{_lambda_.12} parent=0 // loop_footer_branch
    %11 = sbr.rel target = $region3
  $region8: #{_lambda_.12} parent=0 // loop_exit
    _

// kernel: _lambda_.13
$region0: #{_lambda_.13}
  #allocation0 [shape = 'u32[]', space=smem, size = 0x4, offset = 0x4, fixed_abs, tag = 'smem constant byte address 0x4 - core index']
  #allocation1 [shape = 'u32[72,128]{1,0:T(1,128)}', space=vmem, size = 0x9000, scoped, tag = 'internal scratch']
  %s0 = inlined_call_operand.vmem [shape: bf16[32,1152], index: 0, kind: input, shape index: {}]
  %s1 = inlined_call_operand.vmem [shape: bf16[1152,128], index: 1, kind: input, shape index: {}]
  %s2 = inlined_call_operand.vmem [shape: f32[1,128], index: 2, kind: input, shape index: {}]
  %s3 = inlined_call_operand.vmem [shape: bf16[32,128], index: 3, kind: output, shape index: {}]
  %s4 = sld [smem:[#allocation0]]
  $region45: #{_lambda_.13} parent=0
    _
  %s6 = ssub.s32 1, %s4
  %s7 = scalar_select 0, %s6, %s4
  loop: start=0, step=1, limit=4
  $region2: #{_lambda_.13} parent=0 // loop_pre_header
    _
  $region3: #{_lambda_.13} parent=0 // loop_header
    %s9 = sphi 0, %s13
    %p10 = scmp.ge.s32.totalorder %s9, 4
    %s19 = sphi 0, %s21
    %s22 = sphi 0, %s19
    %s23 = sphi 0, %s22
    %s39 = sphi 0, %s23
    %s43 = sphi 0, %s43
    %s45 = sphi 0, %s43
    %s46 = sphi 0, %s45
    %s60 = sphi 0, %s46
    %s64 = sphi 0, %s64
    %s66 = sphi 0, %s64
    %s67 = sphi 0, %s66
    %s81 = sphi 0, %s67
    %s87 = sphi 0, %s89
    %s90 = sphi 0, %s87
    %s91 = sphi 0, %s90
    %s107 = sphi 0, %s91
  $region4: #{_lambda_.13} parent=0 // loop_header_branch
    %12 = sbr.rel (%p10) target = $region8
  $region5: #{_lambda_.13} parent=0 // loop_body
    %s14 = ssub.s32 %s9, 1
    %s15 = ssub.s32 %s9, 2
    %s16 = sadd.s32 %s9, 1
    %s17 = ssub.s32 %s9, %s16
    %p18 = scmp.eq.s32.totalorder %s17, 0
    %s20 = sadd.s32 %s19, 1
    %s21 = scalar_select %p18, %s19, %s20
    %p24 = pneg %p18
    %p25 = scmp.eq.s32.totalorder %s9, 1
    %p26 = por %p24, %p25
    %p27 = scmp.ne.s32.totalorder %s19, %s22
    %p28 = scmp.eq.s32.totalorder %s9, 0
    %p29 = por %p27, %p28
    %p30 = scmp.ne.s32.totalorder %s19, %s22
    %p31 = scmp.eq.s32.totalorder %s14, 1
    %p32 = por %p30, %p31
    %p33 = scmp.ne.s32.totalorder %s22, %s23
    %p34 = scmp.eq.s32.totalorder %s14, 0
    %p35 = por %p33, %p34
    %p36 = scmp.ne.s32.totalorder %s22, %s23
    %p37 = scmp.eq.s32.totalorder %s15, 1
    %p38 = por %p36, %p37
    %p40 = scmp.ne.s32.totalorder %s23, %s39
    %p41 = scmp.eq.s32.totalorder %s15, 0
    %p42 = por %p40, %p41
    %s44 = sadd.s32 %s43, 1
    %p47 = scmp.eq.s32.totalorder %s9, 1
    %p48 = scmp.ne.s32.totalorder %s43, %s45
    %p49 = scmp.eq.s32.totalorder %s9, 0
    %p50 = por %p48, %p49
    %p51 = scmp.ne.s32.totalorder %s43, %s45
    %p52 = scmp.eq.s32.totalorder %s14, 1
    %p53 = por %p51, %p52
    %p54 = scmp.ne.s32.totalorder %s45, %s46
    %p55 = scmp.eq.s32.totalorder %s14, 0
    %p56 = por %p54, %p55
    %p57 = scmp.ne.s32.totalorder %s45, %s46
    %p58 = scmp.eq.s32.totalorder %s15, 1
    %p59 = por %p57, %p58
    %p61 = scmp.ne.s32.totalorder %s46, %s60
    %p62 = scmp.eq.s32.totalorder %s15, 0
    %p63 = por %p61, %p62
    %s65 = sadd.s32 %s64, 1
    %p68 = scmp.eq.s32.totalorder %s9, 1
    %p69 = scmp.ne.s32.totalorder %s64, %s66
    %p70 = scmp.eq.s32.totalorder %s9, 0
    %p71 = por %p69, %p70
    %p72 = scmp.ne.s32.totalorder %s64, %s66
    %p73 = scmp.eq.s32.totalorder %s14, 1
    %p74 = por %p72, %p73
    %p75 = scmp.ne.s32.totalorder %s66, %s67
    %p76 = scmp.eq.s32.totalorder %s14, 0
    %p77 = por %p75, %p76
    %p78 = scmp.ne.s32.totalorder %s66, %s67
    %p79 = scmp.eq.s32.totalorder %s15, 1
    %p80 = por %p78, %p79
    %p82 = scmp.ne.s32.totalorder %s67, %s81
    %p83 = scmp.eq.s32.totalorder %s15, 0
    %p84 = por %p82, %p83
    %s85 = ssub.s32 %s9, %s16
    %p86 = scmp.eq.s32.totalorder %s85, 0
    %s88 = sadd.s32 %s87, 1
    %s89 = scalar_select %p86, %s87, %s88
    %p92 = pneg %p86
    %p93 = scmp.eq.s32.totalorder %s9, 1
    %p94 = por %p92, %p93
    %p95 = scmp.ne.s32.totalorder %s87, %s90
    %p96 = scmp.eq.s32.totalorder %s9, 0
    %p97 = por %p95, %p96
    %p98 = scmp.ne.s32.totalorder %s87, %s90
    %p99 = scmp.eq.s32.totalorder %s14, 1
    %p100 = por %p98, %p99
    %p101 = scmp.ne.s32.totalorder %s90, %s91
    %p102 = scmp.eq.s32.totalorder %s14, 0
    %p103 = por %p101, %p102
    %p104 = scmp.ne.s32.totalorder %s90, %s91
    %p105 = scmp.eq.s32.totalorder %s15, 1
    %p106 = por %p104, %p105
    %p108 = scmp.ne.s32.totalorder %s91, %s107
    %p109 = scmp.eq.s32.totalorder %s15, 0
    %p110 = por %p108, %p109
    %p111 = scmp.le.s32.totalorder 1, %s9
    %p112 = scmp.lt.s32.totalorder %s9, 3
    %p113 = pnand %p111, %p112
    %p114 = pneg %p113
    // Predicated region
    $region9: #{_lambda_.13} parent=5 // pred_check
      _
    $region10: #{_lambda_.13} parent=5 // pred_check_branch
      %116 = sbr.rel (%p113) target = $region12
    $region11: #{_lambda_.13} parent=5 // pred_region
      %s117 = ssub.s32 %s9, 1
      // Predicated region
      $region13: #{_lambda_.13} parent=11 // pred_check
        %p118 = pneg %p56
      $region14: #{_lambda_.13} parent=11 // pred_check_branch
        %120 = sbr.rel (%p118) target = $region16
      $region15: #{_lambda_.13} parent=11 // pred_region
        _
      $region16: #{_lambda_.13} parent=11 // pred_fallthru
        _
      // Predicated region
      $region17: #{_lambda_.13} parent=11 // pred_check
        %p121 = pneg %p77
      $region18: #{_lambda_.13} parent=11 // pred_check_branch
        %123 = sbr.rel (%p121) target = $region20
      $region19: #{_lambda_.13} parent=11 // pred_region
        _
      $region20: #{_lambda_.13} parent=11 // pred_fallthru
        _
    $region12: #{_lambda_.13} parent=5 // pred_fallthru
      _
    %p124 = scmp.lt.s32.totalorder %s9, 2
    // Predicated region
    $region21: #{_lambda_.13} parent=5 // pred_check
      %p125 = pneg %p124
    $region22: #{_lambda_.13} parent=5 // pred_check_branch
      %127 = sbr.rel (%p125) target = $region24
    $region23: #{_lambda_.13} parent=5 // pred_region
      // Predicated region
      $region25: #{_lambda_.13} parent=23 // pred_check
        %p128 = pneg %p29
      $region26: #{_lambda_.13} parent=23 // pred_check_branch
        %130 = sbr.rel (%p128) target = $region28
      $region27: #{_lambda_.13} parent=23 // pred_region
        %s131 = smul.u32 2, %s9
        %p132 = scmp.lt.s32.totalorder %s131, 3
        %s133 = scalar_select %p132, %s131, 3
        %s134 = smul.addr %s133, 9
        %s135 = smul.addr %s134, 4
        %s136 = scalar_lea.vmem %s0, %s135
        %s137 = smul.u32 2, %s9
      $region28: #{_lambda_.13} parent=23 // pred_fallthru
        _
    $region24: #{_lambda_.13} parent=5 // pred_fallthru
      _
    %p138 = scmp.le.s32.totalorder 1, %s9
    %p139 = scmp.lt.s32.totalorder %s9, 3
    %p140 = pnand %p138, %p139
    %p141 = pneg %p140
    // Predicated region
    $region29: #{_lambda_.13} parent=5 // pred_check
      _
    $region30: #{_lambda_.13} parent=5 // pred_check_branch
      %143 = sbr.rel (%p140) target = $region32
    $region31: #{_lambda_.13} parent=5 // pred_region
      %s144 = ssub.s32 %s9, 1
      %s145 = smul.u32 2, %s14
      %p146 = scmp.lt.s32.totalorder %s145, 3
      %s147 = scalar_select %p146, %s145, 3
      %s148 = smul.addr %s147, 9
      %s149 = smul.addr %s148, 4
      %s150 = scalar_lea.vmem %s0, %s149
      %p151 = pneg %p35
      %p152 = pneg %p32
      %p153 = pneg %p56
      %p154 = pneg %p53
      %p155 = pneg %p77
      %p156 = pneg %p74
      %p157 = pneg %p103
      %p158 = pneg %p100
      %s159 = smul.u32 2, %s14
      %p160 = scmp.lt.s32.totalorder %s159, 3
      %s161 = scalar_select %p160, %s159, 3
      %s162 = smul.addr %s161, 4
      %s163 = scalar_lea.vmem %s3, %s162
      %s164 = smul.u32 2, %s14
      %p165 = scmp.lt.s32.totalorder %s164, 3
      %s166 = scalar_select %p165, %s164, 3
      %s167 = smul.addr %s166, 9
      %s168 = smul.addr %s167, 4
      %s169 = scalar_lea.vmem %s0, %s168
      %s170 = smul.u32 2, %s14
      %s171 = smul.u32 2, %s14
      %p172 = scmp.lt.s32.totalorder %s171, 3
      %s173 = scalar_select %p172, %s171, 3
      %s174 = smul.addr %s173, 4
      %s175 = scalar_lea.vmem %s3, %s174
      %s176 = smul.u32 2, %s14
      %v177 = vld [vmem:[%s169] sm:$0xff]
      %v178 = vld [vmem:[%s169 + $0x8] sm:$0xff]
      %v179 = vld [vmem:[%s169 + $0x10] sm:$0xff]
      %v180 = vld [vmem:[%s169 + $0x18] sm:$0xff]
      %v181 = vld [vmem:[%s169 + $0x20] sm:$0xf]
      %v182 = vld [vmem:[%s169 + $0x24] sm:$0xff]
      %v183 = vld [vmem:[%s169 + $0x2c] sm:$0xff]
      %v184 = vld [vmem:[%s169 + $0x34] sm:$0xff]
      %v185 = vld [vmem:[%s169 + $0x3c] sm:$0xff]
      %v186 = vld [vmem:[%s169 + $0x44] sm:$0xf]
      %v187 = vld [vmem:[%s1] sm:$0xf]
      %v188 = vld [vmem:[%s1 + $0x4] sm:$0xf]
      %v189 = vld [vmem:[%s1 + $0x8] sm:$0xf]
      %v190 = vld [vmem:[%s1 + $0xc] sm:$0xf]
      %v191 = vld [vmem:[%s1 + $0x10] sm:$0xf]
      %v192 = vld [vmem:[%s1 + $0x14] sm:$0xf]
      %v193 = vld [vmem:[%s1 + $0x18] sm:$0xf]
      %v194 = vld [vmem:[%s1 + $0x1c] sm:$0xf]
      %v195 = vld [vmem:[%s1 + $0x20] sm:$0xf]
      %v196 = vld [vmem:[%s1 + $0x24] sm:$0xf]
      %v197 = vld [vmem:[%s1 + $0x28] sm:$0xf]
      %v198 = vld [vmem:[%s1 + $0x2c] sm:$0xf]
      %v199 = vld [vmem:[%s1 + $0x30] sm:$0xf]
      %v200 = vld [vmem:[%s1 + $0x34] sm:$0xf]
      %v201 = vld [vmem:[%s1 + $0x38] sm:$0xf]
      %v202 = vld [vmem:[%s1 + $0x3c] sm:$0xf]
      %v203 = vld [vmem:[%s1 + $0x40] sm:$0xf]
      %v204 = vld [vmem:[%s1 + $0x44] sm:$0xf]
      %v205 = vld [vmem:[%s1 + $0x48] sm:$0xf]
      %v206 = vld [vmem:[%s1 + $0x4c] sm:$0xf]
      %v207 = vld [vmem:[%s1 + $0x50] sm:$0xf]
      %v208 = vld [vmem:[%s1 + $0x54] sm:$0xf]
      %v209 = vld [vmem:[%s1 + $0x58] sm:$0xf]
      %v210 = vld [vmem:[%s1 + $0x5c] sm:$0xf]
      %v211 = vld [vmem:[%s1 + $0x60] sm:$0xf]
      %v212 = vld [vmem:[%s1 + $0x64] sm:$0xf]
      %v213 = vld [vmem:[%s1 + $0x68] sm:$0xf]
      %v214 = vld [vmem:[%s1 + $0x6c] sm:$0xf]
      %v215 = vld [vmem:[%s1 + $0x70] sm:$0xf]
      %v216 = vld [vmem:[%s1 + $0x74] sm:$0xf]
      %v217 = vld [vmem:[%s1 + $0x78] sm:$0xf]
      %v218 = vld [vmem:[%s1 + $0x7c] sm:$0xf]
      %v219 = vld [vmem:[%s1 + $0x80] sm:$0xf]
      %v220 = vld [vmem:[%s1 + $0x84] sm:$0xf]
      %v221 = vld [vmem:[%s1 + $0x88] sm:$0xf]
      %v222 = vld [vmem:[%s1 + $0x8c] sm:$0xf]
      %v223 = vld [vmem:[%s1 + $0x90] sm:$0xf]
      %v224 = vld [vmem:[%s1 + $0x94] sm:$0xf]
      %v225 = vld [vmem:[%s1 + $0x98] sm:$0xf]
      %v226 = vld [vmem:[%s1 + $0x9c] sm:$0xf]
      %v227 = vld [vmem:[%s1 + $0xa0] sm:$0xf]
      %v228 = vld [vmem:[%s1 + $0xa4] sm:$0xf]
      %v229 = vld [vmem:[%s1 + $0xa8] sm:$0xf]
      %v230 = vld [vmem:[%s1 + $0xac] sm:$0xf]
      %v231 = vld [vmem:[%s1 + $0xb0] sm:$0xf]
      %v232 = vld [vmem:[%s1 + $0xb4] sm:$0xf]
      %v233 = vld [vmem:[%s1 + $0xb8] sm:$0xf]
      %v234 = vld [vmem:[%s1 + $0xbc] sm:$0xf]
      %v235 = vld [vmem:[%s1 + $0xc0] sm:$0xf]
      %v236 = vld [vmem:[%s1 + $0xc4] sm:$0xf]
      %v237 = vld [vmem:[%s1 + $0xc8] sm:$0xf]
      %v238 = vld [vmem:[%s1 + $0xcc] sm:$0xf]
      %v239 = vld [vmem:[%s1 + $0xd0] sm:$0xf]
      %v240 = vld [vmem:[%s1 + $0xd4] sm:$0xf]
      %v241 = vld [vmem:[%s1 + $0xd8] sm:$0xf]
      %v242 = vld [vmem:[%s1 + $0xdc] sm:$0xf]
      %v243 = vld [vmem:[%s1 + $0xe0] sm:$0xf]
      %v244 = vld [vmem:[%s1 + $0xe4] sm:$0xf]
      %v245 = vld [vmem:[%s1 + $0xe8] sm:$0xf]
      %v246 = vld [vmem:[%s1 + $0xec] sm:$0xf]
      %v247 = vld [vmem:[%s1 + $0xf0] sm:$0xf]
      %v248 = vld [vmem:[%s1 + $0xf4] sm:$0xf]
      %v249 = vld [vmem:[%s1 + $0xf8] sm:$0xf]
      %v250 = vld [vmem:[%s1 + $0xfc] sm:$0xf]
      %v251 = vld [vmem:[%s1 + $0x100] sm:$0xf]
      %v252 = vld [vmem:[%s1 + $0x104] sm:$0xf]
      %v253 = vld [vmem:[%s1 + $0x108] sm:$0xf]
      %v254 = vld [vmem:[%s1 + $0x10c] sm:$0xf]
      %v255 = vld [vmem:[%s1 + $0x110] sm:$0xf]
      %v256 = vld [vmem:[%s1 + $0x114] sm:$0xf]
      %v257 = vld [vmem:[%s1 + $0x118] sm:$0xf]
      %v258 = vld [vmem:[%s1 + $0x11c] sm:$0xf]
      %v259 = vld [vmem:[%s1 + $0x120] sm:$0xf]
      %v260 = vld [vmem:[%s1 + $0x124] sm:$0xf]
      %v261 = vld [vmem:[%s1 + $0x128] sm:$0xf]
      %v262 = vld [vmem:[%s1 + $0x12c] sm:$0xf]
      %v263 = vld [vmem:[%s1 + $0x130] sm:$0xf]
      %v264 = vld [vmem:[%s1 + $0x134] sm:$0xf]
      %v265 = vld [vmem:[%s1 + $0x138] sm:$0xf]
      %v266 = vld [vmem:[%s1 + $0x13c] sm:$0xf]
      %v267 = vld [vmem:[%s1 + $0x140] sm:$0xf]
      %v268 = vld [vmem:[%s1 + $0x144] sm:$0xf]
      %v269 = vld [vmem:[%s1 + $0x148] sm:$0xf]
      %v270 = vld [vmem:[%s1 + $0x14c] sm:$0xf]
      %v271 = vld [vmem:[%s1 + $0x150] sm:$0xf]
      %v272 = vld [vmem:[%s1 + $0x154] sm:$0xf]
      %v273 = vld [vmem:[%s1 + $0x158] sm:$0xf]
      %v274 = vld [vmem:[%s1 + $0x15c] sm:$0xf]
      %v275 = vld [vmem:[%s1 + $0x160] sm:$0xf]
      %v276 = vld [vmem:[%s1 + $0x164] sm:$0xf]
      %v277 = vld [vmem:[%s1 + $0x168] sm:$0xf]
      %v278 = vld [vmem:[%s1 + $0x16c] sm:$0xf]
      %v279 = vld [vmem:[%s1 + $0x170] sm:$0xf]
      %v280 = vld [vmem:[%s1 + $0x174] sm:$0xf]
      %v281 = vld [vmem:[%s1 + $0x178] sm:$0xf]
      %v282 = vld [vmem:[%s1 + $0x17c] sm:$0xf]
      %v283 = vld [vmem:[%s1 + $0x180] sm:$0xf]
      %v284 = vld [vmem:[%s1 + $0x184] sm:$0xf]
      %v285 = vld [vmem:[%s1 + $0x188] sm:$0xf]
      %v286 = vld [vmem:[%s1 + $0x18c] sm:$0xf]
      %v287 = vld [vmem:[%s1 + $0x190] sm:$0xf]
      %v288 = vld [vmem:[%s1 + $0x194] sm:$0xf]
      %v289 = vld [vmem:[%s1 + $0x198] sm:$0xf]
      %v290 = vld [vmem:[%s1 + $0x19c] sm:$0xf]
      %v291 = vld [vmem:[%s1 + $0x1a0] sm:$0xf]
      %v292 = vld [vmem:[%s1 + $0x1a4] sm:$0xf]
      %v293 = vld [vmem:[%s1 + $0x1a8] sm:$0xf]
      %v294 = vld [vmem:[%s1 + $0x1ac] sm:$0xf]
      %v295 = vld [vmem:[%s1 + $0x1b0] sm:$0xf]
      %v296 = vld [vmem:[%s1 + $0x1b4] sm:$0xf]
      %v297 = vld [vmem:[%s1 + $0x1b8] sm:$0xf]
      %v298 = vld [vmem:[%s1 + $0x1bc] sm:$0xf]
      %v299 = vld [vmem:[%s1 + $0x1c0] sm:$0xf]
      %v300 = vld [vmem:[%s1 + $0x1c4] sm:$0xf]
      %v301 = vld [vmem:[%s1 + $0x1c8] sm:$0xf]
      %v302 = vld [vmem:[%s1 + $0x1cc] sm:$0xf]
      %v303 = vld [vmem:[%s1 + $0x1d0] sm:$0xf]
      %v304 = vld [vmem:[%s1 + $0x1d4] sm:$0xf]
      %v305 = vld [vmem:[%s1 + $0x1d8] sm:$0xf]
      %v306 = vld [vmem:[%s1 + $0x1dc] sm:$0xf]
      %v307 = vld [vmem:[%s1 + $0x1e0] sm:$0xf]
      %v308 = vld [vmem:[%s1 + $0x1e4] sm:$0xf]
      %v309 = vld [vmem:[%s1 + $0x1e8] sm:$0xf]
      %v310 = vld [vmem:[%s1 + $0x1ec] sm:$0xf]
      %v311 = vld [vmem:[%s1 + $0x1f0] sm:$0xf]
      %v312 = vld [vmem:[%s1 + $0x1f4] sm:$0xf]
      %v313 = vld [vmem:[%s1 + $0x1f8] sm:$0xf]
      %v314 = vld [vmem:[%s1 + $0x1fc] sm:$0xf]
      %v315 = vld [vmem:[%s1 + $0x200] sm:$0xf]
      %v316 = vld [vmem:[%s1 + $0x204] sm:$0xf]
      %v317 = vld [vmem:[%s1 + $0x208] sm:$0xf]
      %v318 = vld [vmem:[%s1 + $0x20c] sm:$0xf]
      %v319 = vld [vmem:[%s1 + $0x210] sm:$0xf]
      %v320 = vld [vmem:[%s1 + $0x214] sm:$0xf]
      %v321 = vld [vmem:[%s1 + $0x218] sm:$0xf]
      %v322 = vld [vmem:[%s1 + $0x21c] sm:$0xf]
      %v323 = vld [vmem:[%s1 + $0x220] sm:$0xf]
      %v324 = vld [vmem:[%s1 + $0x224] sm:$0xf]
      %v325 = vld [vmem:[%s1 + $0x228] sm:$0xf]
      %v326 = vld [vmem:[%s1 + $0x22c] sm:$0xf]
      %v327 = vld [vmem:[%s1 + $0x230] sm:$0xf]
      %v328 = vld [vmem:[%s1 + $0x234] sm:$0xf]
      %v329 = vld [vmem:[%s1 + $0x238] sm:$0xf]
      %v330 = vld [vmem:[%s1 + $0x23c] sm:$0xf]
      %v331 = vld [vmem:[%s2] sm:$0x1]
      %v333 = vperm.slane %v331, 0
      %v345 = vunpack.c.l.b16 %v177
      %v346 = vunpack.c.h.b16 %v177
      %v347 = vunpack.c.l.b16 %v178
      %v348 = vunpack.c.h.b16 %v178
      %v349 = vunpack.c.l.b16 %v179
      %v350 = vunpack.c.h.b16 %v179
      %v351 = vunpack.c.l.b16 %v180
      %v352 = vunpack.c.h.b16 %v180
      %v353 = vunpack.c.l.b16 %v181
      %v354 = vunpack.c.l.b16 %v182
      %v355 = vunpack.c.h.b16 %v182
      %v356 = vunpack.c.l.b16 %v183
      %v357 = vunpack.c.h.b16 %v183
      %v358 = vunpack.c.l.b16 %v184
      %v359 = vunpack.c.h.b16 %v184
      %v360 = vunpack.c.l.b16 %v185
      %v361 = vunpack.c.h.b16 %v185
      %v362 = vunpack.c.l.b16 %v186
      %v363 = vpack.c.b16 %v354, %v345
      %v364 = vpack.c.b16 %v355, %v346
      %v365 = vpack.c.b16 %v356, %v347
      %v366 = vpack.c.b16 %v357, %v348
      %v367 = vpack.c.b16 %v358, %v349
      %v368 = vpack.c.b16 %v359, %v350
      %v369 = vpack.c.b16 %v360, %v351
      %v370 = vpack.c.b16 %v361, %v352
      %v371 = vpack.c.b16 %v362, %v353
      %v525 = vunpack.c.l.b16 %v187
      %v526 = vunpack.c.l.b16 %v188
      %v527 = vunpack.c.l.b16 %v189
      %v528 = vunpack.c.l.b16 %v190
      %v529 = vunpack.c.l.b16 %v191
      %v530 = vunpack.c.l.b16 %v192
      %v531 = vunpack.c.l.b16 %v193
      %v532 = vunpack.c.l.b16 %v194
      %v533 = vunpack.c.l.b16 %v195
      %v534 = vunpack.c.l.b16 %v196
      %v535 = vunpack.c.l.b16 %v197
      %v536 = vunpack.c.l.b16 %v198
      %v537 = vunpack.c.l.b16 %v199
      %v538 = vunpack.c.l.b16 %v200
      %v539 = vunpack.c.l.b16 %v201
      %v540 = vunpack.c.l.b16 %v202
      %v541 = vunpack.c.l.b16 %v203
      %v542 = vunpack.c.l.b16 %v204
      %v543 = vunpack.c.l.b16 %v205
      %v544 = vunpack.c.l.b16 %v206
      %v545 = vunpack.c.l.b16 %v207
      %v546 = vunpack.c.l.b16 %v208
      %v547 = vunpack.c.l.b16 %v209
      %v548 = vunpack.c.l.b16 %v210
      %v549 = vunpack.c.l.b16 %v211
      %v550 = vunpack.c.l.b16 %v212
      %v551 = vunpack.c.l.b16 %v213
      %v552 = vunpack.c.l.b16 %v214
      %v553 = vunpack.c.l.b16 %v215
      %v554 = vunpack.c.l.b16 %v216
      %v555 = vunpack.c.l.b16 %v217
      %v556 = vunpack.c.l.b16 %v218
      %v557 = vunpack.c.l.b16 %v219
      %v558 = vunpack.c.l.b16 %v220
      %v559 = vunpack.c.l.b16 %v221
      %v560 = vunpack.c.l.b16 %v222
      %v561 = vunpack.c.l.b16 %v223
      %v562 = vunpack.c.l.b16 %v224
      %v563 = vunpack.c.l.b16 %v225
      %v564 = vunpack.c.l.b16 %v226
      %v565 = vunpack.c.l.b16 %v227
      %v566 = vunpack.c.l.b16 %v228
      %v567 = vunpack.c.l.b16 %v229
      %v568 = vunpack.c.l.b16 %v230
      %v569 = vunpack.c.l.b16 %v231
      %v570 = vunpack.c.l.b16 %v232
      %v571 = vunpack.c.l.b16 %v233
      %v572 = vunpack.c.l.b16 %v234
      %v573 = vunpack.c.l.b16 %v235
      %v574 = vunpack.c.l.b16 %v236
      %v575 = vunpack.c.l.b16 %v237
      %v576 = vunpack.c.l.b16 %v238
      %v577 = vunpack.c.l.b16 %v239
      %v578 = vunpack.c.l.b16 %v240
      %v579 = vunpack.c.l.b16 %v241
      %v580 = vunpack.c.l.b16 %v242
      %v581 = vunpack.c.l.b16 %v243
      %v582 = vunpack.c.l.b16 %v244
      %v583 = vunpack.c.l.b16 %v245
      %v584 = vunpack.c.l.b16 %v246
      %v585 = vunpack.c.l.b16 %v247
      %v586 = vunpack.c.l.b16 %v248
      %v587 = vunpack.c.l.b16 %v249
      %v588 = vunpack.c.l.b16 %v250
      %v589 = vunpack.c.l.b16 %v251
      %v590 = vunpack.c.l.b16 %v252
      %v591 = vunpack.c.l.b16 %v253
      %v592 = vunpack.c.l.b16 %v254
      %v593 = vunpack.c.l.b16 %v255
      %v594 = vunpack.c.l.b16 %v256
      %v595 = vunpack.c.l.b16 %v257
      %v596 = vunpack.c.l.b16 %v258
      %v597 = vunpack.c.l.b16 %v259
      %v598 = vunpack.c.l.b16 %v260
      %v599 = vunpack.c.l.b16 %v261
      %v600 = vunpack.c.l.b16 %v262
      %v601 = vunpack.c.l.b16 %v263
      %v602 = vunpack.c.l.b16 %v264
      %v603 = vunpack.c.l.b16 %v265
      %v604 = vunpack.c.l.b16 %v266
      %v605 = vunpack.c.l.b16 %v267
      %v606 = vunpack.c.l.b16 %v268
      %v607 = vunpack.c.l.b16 %v269
      %v608 = vunpack.c.l.b16 %v270
      %v609 = vunpack.c.l.b16 %v271
      %v610 = vunpack.c.l.b16 %v272
      %v611 = vunpack.c.l.b16 %v273
      %v612 = vunpack.c.l.b16 %v274
      %v613 = vunpack.c.l.b16 %v275
      %v614 = vunpack.c.l.b16 %v276
      %v615 = vunpack.c.l.b16 %v277
      %v616 = vunpack.c.l.b16 %v278
      %v617 = vunpack.c.l.b16 %v279
      %v618 = vunpack.c.l.b16 %v280
      %v619 = vunpack.c.l.b16 %v281
      %v620 = vunpack.c.l.b16 %v282
      %v621 = vunpack.c.l.b16 %v283
      %v622 = vunpack.c.l.b16 %v284
      %v623 = vunpack.c.l.b16 %v285
      %v624 = vunpack.c.l.b16 %v286
      %v625 = vunpack.c.l.b16 %v287
      %v626 = vunpack.c.l.b16 %v288
      %v627 = vunpack.c.l.b16 %v289
      %v628 = vunpack.c.l.b16 %v290
      %v629 = vunpack.c.l.b16 %v291
      %v630 = vunpack.c.l.b16 %v292
      %v631 = vunpack.c.l.b16 %v293
      %v632 = vunpack.c.l.b16 %v294
      %v633 = vunpack.c.l.b16 %v295
      %v634 = vunpack.c.l.b16 %v296
      %v635 = vunpack.c.l.b16 %v297
      %v636 = vunpack.c.l.b16 %v298
      %v637 = vunpack.c.l.b16 %v299
      %v638 = vunpack.c.l.b16 %v300
      %v639 = vunpack.c.l.b16 %v301
      %v640 = vunpack.c.l.b16 %v302
      %v641 = vunpack.c.l.b16 %v303
      %v642 = vunpack.c.l.b16 %v304
      %v643 = vunpack.c.l.b16 %v305
      %v644 = vunpack.c.l.b16 %v306
      %v645 = vunpack.c.l.b16 %v307
      %v646 = vunpack.c.l.b16 %v308
      %v647 = vunpack.c.l.b16 %v309
      %v648 = vunpack.c.l.b16 %v310
      %v649 = vunpack.c.l.b16 %v311
      %v650 = vunpack.c.l.b16 %v312
      %v651 = vunpack.c.l.b16 %v313
      %v652 = vunpack.c.l.b16 %v314
      %v653 = vunpack.c.l.b16 %v315
      %v654 = vunpack.c.l.b16 %v316
      %v655 = vunpack.c.l.b16 %v317
      %v656 = vunpack.c.l.b16 %v318
      %v657 = vunpack.c.l.b16 %v319
      %v658 = vunpack.c.l.b16 %v320
      %v659 = vunpack.c.l.b16 %v321
      %v660 = vunpack.c.l.b16 %v322
      %v661 = vunpack.c.l.b16 %v323
      %v662 = vunpack.c.l.b16 %v324
      %v663 = vunpack.c.l.b16 %v325
      %v664 = vunpack.c.l.b16 %v326
      %v665 = vunpack.c.l.b16 %v327
      %v666 = vunpack.c.l.b16 %v328
      %v667 = vunpack.c.l.b16 %v329
      %v668 = vunpack.c.l.b16 %v330
      %v669 = vpack.c.b16 %v526, %v525
      %v670 = vpack.c.b16 %v528, %v527
      %v671 = vpack.c.b16 %v530, %v529
      %v672 = vpack.c.b16 %v532, %v531
      %v673 = vpack.c.b16 %v534, %v533
      %v674 = vpack.c.b16 %v536, %v535
      %v675 = vpack.c.b16 %v538, %v537
      %v676 = vpack.c.b16 %v540, %v539
      %v677 = vpack.c.b16 %v542, %v541
      %v678 = vpack.c.b16 %v544, %v543
      %v679 = vpack.c.b16 %v546, %v545
      %v680 = vpack.c.b16 %v548, %v547
      %v681 = vpack.c.b16 %v550, %v549
      %v682 = vpack.c.b16 %v552, %v551
      %v683 = vpack.c.b16 %v554, %v553
      %v684 = vpack.c.b16 %v556, %v555
      %v685 = vpack.c.b16 %v558, %v557
      %v686 = vpack.c.b16 %v560, %v559
      %v687 = vpack.c.b16 %v562, %v561
      %v688 = vpack.c.b16 %v564, %v563
      %v689 = vpack.c.b16 %v566, %v565
      %v690 = vpack.c.b16 %v568, %v567
      %v691 = vpack.c.b16 %v570, %v569
      %v692 = vpack.c.b16 %v572, %v571
      %v693 = vpack.c.b16 %v574, %v573
      %v694 = vpack.c.b16 %v576, %v575
      %v695 = vpack.c.b16 %v578, %v577
      %v696 = vpack.c.b16 %v580, %v579
      %v697 = vpack.c.b16 %v582, %v581
      %v698 = vpack.c.b16 %v584, %v583
      %v699 = vpack.c.b16 %v586, %v585
      %v700 = vpack.c.b16 %v588, %v587
      %v701 = vpack.c.b16 %v590, %v589
      %v702 = vpack.c.b16 %v592, %v591
      %v703 = vpack.c.b16 %v594, %v593
      %v704 = vpack.c.b16 %v596, %v595
      %v705 = vpack.c.b16 %v598, %v597
      %v706 = vpack.c.b16 %v600, %v599
      %v707 = vpack.c.b16 %v602, %v601
      %v708 = vpack.c.b16 %v604, %v603
      %v709 = vpack.c.b16 %v606, %v605
      %v710 = vpack.c.b16 %v608, %v607
      %v711 = vpack.c.b16 %v610, %v609
      %v712 = vpack.c.b16 %v612, %v611
      %v713 = vpack.c.b16 %v614, %v613
      %v714 = vpack.c.b16 %v616, %v615
      %v715 = vpack.c.b16 %v618, %v617
      %v716 = vpack.c.b16 %v620, %v619
      %v717 = vpack.c.b16 %v622, %v621
      %v718 = vpack.c.b16 %v624, %v623
      %v719 = vpack.c.b16 %v626, %v625
      %v720 = vpack.c.b16 %v628, %v627
      %v721 = vpack.c.b16 %v630, %v629
      %v722 = vpack.c.b16 %v632, %v631
      %v723 = vpack.c.b16 %v634, %v633
      %v724 = vpack.c.b16 %v636, %v635
      %v725 = vpack.c.b16 %v638, %v637
      %v726 = vpack.c.b16 %v640, %v639
      %v727 = vpack.c.b16 %v642, %v641
      %v728 = vpack.c.b16 %v644, %v643
      %v729 = vpack.c.b16 %v646, %v645
      %v730 = vpack.c.b16 %v648, %v647
      %v731 = vpack.c.b16 %v650, %v649
      %v732 = vpack.c.b16 %v652, %v651
      %v733 = vpack.c.b16 %v654, %v653
      %v734 = vpack.c.b16 %v656, %v655
      %v735 = vpack.c.b16 %v658, %v657
      %v736 = vpack.c.b16 %v660, %v659
      %v737 = vpack.c.b16 %v662, %v661
      %v738 = vpack.c.b16 %v664, %v663
      %v739 = vpack.c.b16 %v666, %v665
      %v740 = vpack.c.b16 %v668, %v667
      %813 = vmatpush.bf16.msra.mxu0 %v676
      %814 = vmatpush.bf16.msra.mxu0 %v675
      %815 = vmatpush.bf16.msra.mxu0 %v674
      %816 = vmatpush.bf16.msra.mxu0 %v673
      %817 = vmatpush.bf16.msra.mxu0 %v672
      %818 = vmatpush.bf16.msra.mxu0 %v671
      %819 = vmatpush.bf16.msra.mxu0 %v670
      %820 = vmatpush.bf16.msra.mxu0 %v669
      %821 = vmatmul.bf16.gmra.mxu0 %v363
      %v822 = vpop.f32.mrf.mxu0
      %v823 = vadd.f32 %v333, %v822
      %v824 = vpop.f32.mrf.mxu0
      %v825 = vadd.f32 %v333, %v824
      %826 = vdwg.mxu0
      %827 = vmatpush.bf16.msra.mxu0 %v684
      %828 = vmatpush.bf16.msra.mxu0 %v683
      %829 = vmatpush.bf16.msra.mxu0 %v682
      %830 = vmatpush.bf16.msra.mxu0 %v681
      %831 = vmatpush.bf16.msra.mxu0 %v680
      %832 = vmatpush.bf16.msra.mxu0 %v679
      %833 = vmatpush.bf16.msra.mxu0 %v678
      %834 = vmatpush.bf16.msra.mxu0 %v677
      %835 = vmatmul.bf16.gmra.mxu0 %v364
      %v836 = vpop.f32.mrf.mxu0
      %v837 = vadd.f32 %v823, %v836
      %v838 = vpop.f32.mrf.mxu0
      %v839 = vadd.f32 %v825, %v838
      %840 = vdwg.mxu0
      %841 = vmatpush.bf16.msra.mxu0 %v692
      %842 = vmatpush.bf16.msra.mxu0 %v691
      %843 = vmatpush.bf16.msra.mxu0 %v690
      %844 = vmatpush.bf16.msra.mxu0 %v689
      %845 = vmatpush.bf16.msra.mxu0 %v688
      %846 = vmatpush.bf16.msra.mxu0 %v687
      %847 = vmatpush.bf16.msra.mxu0 %v686
      %848 = vmatpush.bf16.msra.mxu0 %v685
      %849 = vmatmul.bf16.gmra.mxu0 %v365
      %v850 = vpop.f32.mrf.mxu0
      %v851 = vadd.f32 %v837, %v850
      %v852 = vpop.f32.mrf.mxu0
      %v853 = vadd.f32 %v839, %v852
      %854 = vdwg.mxu0
      %855 = vmatpush.bf16.msra.mxu0 %v700
      %856 = vmatpush.bf16.msra.mxu0 %v699
      %857 = vmatpush.bf16.msra.mxu0 %v698
      %858 = vmatpush.bf16.msra.mxu0 %v697
      %859 = vmatpush.bf16.msra.mxu0 %v696
      %860 = vmatpush.bf16.msra.mxu0 %v695
      %861 = vmatpush.bf16.msra.mxu0 %v694
      %862 = vmatpush.bf16.msra.mxu0 %v693
      %863 = vmatmul.bf16.gmra.mxu0 %v366
      %v864 = vpop.f32.mrf.mxu0
      %v865 = vadd.f32 %v851, %v864
      %v866 = vpop.f32.mrf.mxu0
      %v867 = vadd.f32 %v853, %v866
      %868 = vdwg.mxu0
      %869 = vmatpush.bf16.msra.mxu0 %v708
      %870 = vmatpush.bf16.msra.mxu0 %v707
      %871 = vmatpush.bf16.msra.mxu0 %v706
      %872 = vmatpush.bf16.msra.mxu0 %v705
      %873 = vmatpush.bf16.msra.mxu0 %v704
      %874 = vmatpush.bf16.msra.mxu0 %v703
      %875 = vmatpush.bf16.msra.mxu0 %v702
      %876 = vmatpush.bf16.msra.mxu0 %v701
      %877 = vmatmul.bf16.gmra.mxu0 %v367
      %v878 = vpop.f32.mrf.mxu0
      %v879 = vadd.f32 %v865, %v878
      %v880 = vpop.f32.mrf.mxu0
      %v881 = vadd.f32 %v867, %v880
      %882 = vdwg.mxu0
      %883 = vmatpush.bf16.msra.mxu0 %v716
      %884 = vmatpush.bf16.msra.mxu0 %v715
      %885 = vmatpush.bf16.msra.mxu0 %v714
      %886 = vmatpush.bf16.msra.mxu0 %v713
      %887 = vmatpush.bf16.msra.mxu0 %v712
      %888 = vmatpush.bf16.msra.mxu0 %v711
      %889 = vmatpush.bf16.msra.mxu0 %v710
      %890 = vmatpush.bf16.msra.mxu0 %v709
      %891 = vmatmul.bf16.gmra.mxu0 %v368
      %v892 = vpop.f32.mrf.mxu0
      %v893 = vadd.f32 %v879, %v892
      %v894 = vpop.f32.mrf.mxu0
      %v895 = vadd.f32 %v881, %v894
      %896 = vdwg.mxu0
      %897 = vmatpush.bf16.msra.mxu0 %v724
      %898 = vmatpush.bf16.msra.mxu0 %v723
      %899 = vmatpush.bf16.msra.mxu0 %v722
      %900 = vmatpush.bf16.msra.mxu0 %v721
      %901 = vmatpush.bf16.msra.mxu0 %v720
      %902 = vmatpush.bf16.msra.mxu0 %v719
      %903 = vmatpush.bf16.msra.mxu0 %v718
      %904 = vmatpush.bf16.msra.mxu0 %v717
      %905 = vmatmul.bf16.gmra.mxu0 %v369
      %v906 = vpop.f32.mrf.mxu0
      %v907 = vadd.f32 %v893, %v906
      %v908 = vpop.f32.mrf.mxu0
      %v909 = vadd.f32 %v895, %v908
      %910 = vdwg.mxu0
      %911 = vmatpush.bf16.msra.mxu0 %v732
      %912 = vmatpush.bf16.msra.mxu0 %v731
      %913 = vmatpush.bf16.msra.mxu0 %v730
      %914 = vmatpush.bf16.msra.mxu0 %v729
      %915 = vmatpush.bf16.msra.mxu0 %v728
      %916 = vmatpush.bf16.msra.mxu0 %v727
      %917 = vmatpush.bf16.msra.mxu0 %v726
      %918 = vmatpush.bf16.msra.mxu0 %v725
      %919 = vmatmul.bf16.gmra.mxu0 %v370
      %v920 = vpop.f32.mrf.mxu0
      %v921 = vadd.f32 %v907, %v920
      %v922 = vpop.f32.mrf.mxu0
      %v923 = vadd.f32 %v909, %v922
      %924 = vdwg.mxu0
      %925 = vmatpush.bf16.msra.mxu0 %v740
      %926 = vmatpush.bf16.msra.mxu0 %v739
      %927 = vmatpush.bf16.msra.mxu0 %v738
      %928 = vmatpush.bf16.msra.mxu0 %v737
      %929 = vmatpush.bf16.msra.mxu0 %v736
      %930 = vmatpush.bf16.msra.mxu0 %v735
      %931 = vmatpush.bf16.msra.mxu0 %v734
      %932 = vmatpush.bf16.msra.mxu0 %v733
      %933 = vmatmul.bf16.gmra.mxu0 %v371
      %v934 = vpop.f32.mrf.mxu0
      %v935 = vadd.f32 %v921, %v934
      %v936 = vpop.f32.mrf.mxu0
      %v937 = vadd.f32 %v923, %v936
      %938 = vdwg.mxu0
      %v939 = vmax.f32 %v935, 0.0
      %v940 = vmax.f32 %v937, 0.0
      %v941 = vpack.c.bf16 %v939, %v939
      %v942 = vpack.c.bf16 %v940, %v940
      %943 = vst [vmem:[%s175] sm:$0xf] %v941
      %944 = vst [vmem:[%s175 + $0x4] sm:$0xf] %v942
      %s945 = smul.u32 2, %s14
      %p946 = scmp.lt.s32.totalorder %s945, 3
      %s947 = scalar_select %p946, %s945, 3
      %s948 = smul.addr %s947, 4
      %s949 = scalar_lea.vmem %s3, %s948
      // Predicated region
      $region33: #{_lambda_.13} parent=31 // pred_check
        %p950 = pneg %p100
      $region34: #{_lambda_.13} parent=31 // pred_check_branch
        %952 = sbr.rel (%p950) target = $region36
      $region35: #{_lambda_.13} parent=31 // pred_region
        %s953 = smul.u32 2, %s14
      $region36: #{_lambda_.13} parent=31 // pred_fallthru
        _
    $region32: #{_lambda_.13} parent=5 // pred_fallthru
      _
    %p954 = scmp.le.s32.totalorder 2, %s9
    // Predicated region
    $region37: #{_lambda_.13} parent=5 // pred_check
      %p955 = pneg %p954
    $region38: #{_lambda_.13} parent=5 // pred_check_branch
      %957 = sbr.rel (%p955) target = $region40
    $region39: #{_lambda_.13} parent=5 // pred_region
      %s958 = ssub.s32 %s9, 2
      // Predicated region
      $region41: #{_lambda_.13} parent=39 // pred_check
        %p959 = pneg %p106
      $region42: #{_lambda_.13} parent=39 // pred_check_branch
        %961 = sbr.rel (%p959) target = $region44
      $region43: #{_lambda_.13} parent=39 // pred_region
        %s962 = smul.u32 2, %s15
        %p963 = scmp.lt.s32.totalorder %s962, 3
        %s964 = scalar_select %p963, %s962, 3
        %s965 = smul.addr %s964, 4
        %s966 = scalar_lea.vmem %s3, %s965
      $region44: #{_lambda_.13} parent=39 // pred_fallthru
        _
    $region40: #{_lambda_.13} parent=5 // pred_fallthru
      _
  $region6: #{_lambda_.13} parent=0 // loop_footer
    %s13 = sadd.s32 1, %s9
  $region7: #{_lambda_.13} parent=0 // loop_footer_branch
    %8 = sbr.rel target = $region3
  $region8: #{_lambda_.13} parent=0 // loop_exit
    _

// kernel: _lambda_.15
$region0: #{_lambda_.15}
  #allocation0 [shape = 'u32[]', space=smem, size = 0x4, offset = 0x4, fixed_abs, tag = 'smem constant byte address 0x4 - core index']
  #allocation1 [shape = 'u32[72,128]{1,0:T(1,128)}', space=vmem, size = 0x9000, scoped, tag = 'internal scratch']
  %s0 = inlined_call_operand.vmem [shape: bf16[2,16,128], index: 0, kind: input, shape index: {}]
  %s1 = inlined_call_operand.vmem [shape: bf16[128,128], index: 1, kind: input, shape index: {}]
  %s2 = inlined_call_operand.vmem [shape: f32[1,128], index: 2, kind: input, shape index: {}]
  %s3 = inlined_call_operand.hbm [shape: f32[2,128], index: 3, kind: output, shape index: {}]
  %s4 = sld [smem:[#allocation0]]
  $region22: #{_lambda_.15} parent=0
    _
  %s6 = ssub.s32 1, %s4
  %s7 = scalar_select 0, %s6, %s4
  $region1: #{_lambda_.15} parent=0
    #allocation2 [shape = 'u8[1024]{0}', space=vmem, size = 0x400, scoped, tag = 'output window, operand 0, single buffered']
    #allocation3 [shape = 's32[1]{0}', space=sflag, size = 0x4, scoped, tag = 'scoped memory for _lambda_.15']
    %8 = vsyncpa [#allocation3], 0
    // Predicated region
    $region2: #{_lambda_.15} parent=1 // pred_check
      _
    $region3: #{_lambda_.15} parent=1 // pred_check_branch
      %10 = sbr.rel (0) target = $region5
    $region4: #{_lambda_.15} parent=1 // pred_region
      _
    $region5: #{_lambda_.15} parent=1 // pred_fallthru
      _
    // Predicated region
    $region6: #{_lambda_.15} parent=1 // pred_check
      _
    $region7: #{_lambda_.15} parent=1 // pred_check_branch
      %12 = sbr.rel (0) target = $region9
    $region8: #{_lambda_.15} parent=1 // pred_region
      _
    $region9: #{_lambda_.15} parent=1 // pred_fallthru
      _
    // Predicated region
    $region10: #{_lambda_.15} parent=1 // pred_check
      _
    $region11: #{_lambda_.15} parent=1 // pred_check_branch
      %14 = sbr.rel (0) target = $region13
    $region12: #{_lambda_.15} parent=1 // pred_region
      _
    $region13: #{_lambda_.15} parent=1 // pred_fallthru
      _
    %v15 = vld [vmem:[%s0] sm:$0xf]
    %v16 = vld [vmem:[%s0 + $0x4] sm:$0xf]
    %v17 = vld [vmem:[%s0 + $0x8] sm:$0xf]
    %v18 = vld [vmem:[%s0 + $0xc] sm:$0xf]
    %v19 = vunpack.c.l.bf16 %v15
    %v20 = vunpack.c.l.bf16 %v16
    %v21 = vunpack.c.l.bf16 %v17
    %v22 = vunpack.c.l.bf16 %v18
    %v23 = vadd.f32 %v19, %v20
    %v24 = vrot.slane %v23, 4
    %v25 = vadd.f32 %v23, %v24
    %v26 = vrot.slane %v25, 2
    %v27 = vadd.f32 %v25, %v26
    %v28 = vrot.slane %v27, 1
    %v29 = vadd.f32 %v27, %v28
    %v30 = vadd.f32 %v21, %v22
    %v31 = vrot.slane %v30, 4
    %v32 = vadd.f32 %v30, %v31
    %v33 = vrot.slane %v32, 2
    %v34 = vadd.f32 %v32, %v33
    %v35 = vrot.slane %v34, 1
    %v36 = vadd.f32 %v34, %v35
    %v37 = vrcp.pop 16.0
    %v38 = vmul.f32 16.0, %v37
    %v39 = vsub.f32 1.0, %v38
    %v40 = vmul.f32 %v37, %v39
    %v41 = vadd.f32 %v37, %v40
    %vm42 = vweird.f32 %v37
    %v43 = vsel %vm42, %v37, %v41
    %v44 = vmul.f32 %v29, %v43
    %v45 = vmul.f32 %v36, %v43
    %v46 = vpack.c.bf16 %v44, %v44
    %v47 = vpack.c.bf16 %v45, %v45
    %v48 = vld [vmem:[%s1] sm:$0xf]
    %v49 = vld [vmem:[%s1 + $0x4] sm:$0xf]
    %v50 = vld [vmem:[%s1 + $0x8] sm:$0xf]
    %v51 = vld [vmem:[%s1 + $0xc] sm:$0xf]
    %v52 = vld [vmem:[%s1 + $0x10] sm:$0xf]
    %v53 = vld [vmem:[%s1 + $0x14] sm:$0xf]
    %v54 = vld [vmem:[%s1 + $0x18] sm:$0xf]
    %v55 = vld [vmem:[%s1 + $0x1c] sm:$0xf]
    %v56 = vld [vmem:[%s1 + $0x20] sm:$0xf]
    %v57 = vld [vmem:[%s1 + $0x24] sm:$0xf]
    %v58 = vld [vmem:[%s1 + $0x28] sm:$0xf]
    %v59 = vld [vmem:[%s1 + $0x2c] sm:$0xf]
    %v60 = vld [vmem:[%s1 + $0x30] sm:$0xf]
    %v61 = vld [vmem:[%s1 + $0x34] sm:$0xf]
    %v62 = vld [vmem:[%s1 + $0x38] sm:$0xf]
    %v63 = vld [vmem:[%s1 + $0x3c] sm:$0xf]
    %v64 = vld [vmem:[%s2] sm:$0x1]
    %v66 = vperm.slane %v64, 0
    %v70 = vunpack.c.l.b16 %v46
    %v71 = vunpack.c.l.b16 %v47
    %vm72 = vcmask 1041409
    %v73 = vsel %vm72, %v71, %v70
    %v74 = vpack.c.b16 %v73, %v73
    %v92 = vunpack.c.l.b16 %v48
    %v93 = vunpack.c.l.b16 %v49
    %v94 = vunpack.c.l.b16 %v50
    %v95 = vunpack.c.l.b16 %v51
    %v96 = vunpack.c.l.b16 %v52
    %v97 = vunpack.c.l.b16 %v53
    %v98 = vunpack.c.l.b16 %v54
    %v99 = vunpack.c.l.b16 %v55
    %v100 = vunpack.c.l.b16 %v56
    %v101 = vunpack.c.l.b16 %v57
    %v102 = vunpack.c.l.b16 %v58
    %v103 = vunpack.c.l.b16 %v59
    %v104 = vunpack.c.l.b16 %v60
    %v105 = vunpack.c.l.b16 %v61
    %v106 = vunpack.c.l.b16 %v62
    %v107 = vunpack.c.l.b16 %v63
    %v108 = vpack.c.b16 %v93, %v92
    %v109 = vpack.c.b16 %v95, %v94
    %v110 = vpack.c.b16 %v97, %v96
    %v111 = vpack.c.b16 %v99, %v98
    %v112 = vpack.c.b16 %v101, %v100
    %v113 = vpack.c.b16 %v103, %v102
    %v114 = vpack.c.b16 %v105, %v104
    %v115 = vpack.c.b16 %v107, %v106
    %124 = vmatpush.bf16.msra.mxu0 %v115
    %125 = vmatpush.bf16.msra.mxu0 %v114
    %126 = vmatpush.bf16.msra.mxu0 %v113
    %127 = vmatpush.bf16.msra.mxu0 %v112
    %128 = vmatpush.bf16.msra.mxu0 %v111
    %129 = vmatpush.bf16.msra.mxu0 %v110
    %130 = vmatpush.bf16.msra.mxu0 %v109
    %131 = vmatpush.bf16.msra.mxu0 %v108
    %132 = vmatmul.bf16.gmra.mxu0 %v74
    %v133 = vpop.f32.mrf.mxu0
    %v134 = vadd.f32 %v66, %v133
    %v135 = vpop.f32.mrf.mxu0
    %136 = vdwg.mxu0
    %137 = vst [vmem:[#allocation2] sm:$0x3] %v134
    // Predicated region
    $region14: #{_lambda_.15} parent=1 // pred_check
      _
    $region15: #{_lambda_.15} parent=1 // pred_check_branch
      %139 = sbr.rel (0) target = $region17
    $region16: #{_lambda_.15} parent=1 // pred_region
      %141 = vsyncadd [#allocation3], 0
      %s143 = sshll.u32 [#allocation2], 4
      %s144 = int_to_ptr.vmem [resolvable:$true] %s143
      %s145 = sshll.u32 %s3, 4
      %s146 = int_to_ptr.hbm [resolvable:$true] %s145
      %148 = dma.vmem_to_hbm [thread:$0]  %s144, 32, %s146, [#allocation3]
    $region17: #{_lambda_.15} parent=1 // pred_fallthru
      _
    // Predicated region
    $region18: #{_lambda_.15} parent=1 // pred_check
      _
    $region19: #{_lambda_.15} parent=1 // pred_check_branch
      %150 = sbr.rel (0) target = $region21
    $region20: #{_lambda_.15} parent=1 // pred_region
      %152 = dma.done [#allocation3], 32
    $region21: #{_lambda_.15} parent=1 // pred_fallthru
      _
    %153 = vsyncpa [#allocation3], 1

// kernel: _lambda_.14
$region0: #{_lambda_.14}
  #allocation0 [shape = 'u32[]', space=smem, size = 0x4, offset = 0x4, fixed_abs, tag = 'smem constant byte address 0x4 - core index']
  #allocation1 [shape = 'u32[72,128]{1,0:T(1,128)}', space=vmem, size = 0x9000, scoped, tag = 'internal scratch']
  %s0 = inlined_call_operand.vmem [shape: bf16[32,1152], index: 0, kind: input, shape index: {}]
  %s1 = inlined_call_operand.vmem [shape: bf16[1152,128], index: 1, kind: input, shape index: {}]
  %s2 = inlined_call_operand.vmem [shape: f32[1,128], index: 2, kind: input, shape index: {}]
  %s3 = inlined_call_operand.vmem [shape: bf16[32,128], index: 3, kind: input, shape index: {}]
  %s4 = inlined_call_operand.vmem [shape: bf16[128,128], index: 4, kind: input, shape index: {}]
  %s5 = inlined_call_operand.vmem [shape: f32[1,128], index: 5, kind: input, shape index: {}]
  %s6 = inlined_call_operand.vmem [shape: bf16[32,128], index: 6, kind: output, shape index: {}]
  %s7 = sld [smem:[#allocation0]]
  $region57: #{_lambda_.14} parent=0
    _
  %s9 = ssub.s32 1, %s7
  %s10 = scalar_select 0, %s9, %s7
  loop: start=0, step=1, limit=4
  $region2: #{_lambda_.14} parent=0 // loop_pre_header
    _
  $region3: #{_lambda_.14} parent=0 // loop_header
    %s12 = sphi 0, %s16
    %p13 = scmp.ge.s32.totalorder %s12, 4
    %s22 = sphi 0, %s24
    %s25 = sphi 0, %s22
    %s26 = sphi 0, %s25
    %s42 = sphi 0, %s26
    %s46 = sphi 0, %s46
    %s48 = sphi 0, %s46
    %s49 = sphi 0, %s48
    %s63 = sphi 0, %s49
    %s67 = sphi 0, %s67
    %s69 = sphi 0, %s67
    %s70 = sphi 0, %s69
    %s84 = sphi 0, %s70
    %s90 = sphi 0, %s92
    %s93 = sphi 0, %s90
    %s94 = sphi 0, %s93
    %s110 = sphi 0, %s94
    %s114 = sphi 0, %s114
    %s116 = sphi 0, %s114
    %s117 = sphi 0, %s116
    %s131 = sphi 0, %s117
    %s135 = sphi 0, %s135
    %s137 = sphi 0, %s135
    %s138 = sphi 0, %s137
    %s152 = sphi 0, %s138
    %s158 = sphi 0, %s160
    %s161 = sphi 0, %s158
    %s162 = sphi 0, %s161
    %s178 = sphi 0, %s162
  $region4: #{_lambda_.14} parent=0 // loop_header_branch
    %15 = sbr.rel (%p13) target = $region8
  $region5: #{_lambda_.14} parent=0 // loop_body
    %s17 = ssub.s32 %s12, 1
    %s18 = ssub.s32 %s12, 2
    %s19 = sadd.s32 %s12, 1
    %s20 = ssub.s32 %s12, %s19
    %p21 = scmp.eq.s32.totalorder %s20, 0
    %s23 = sadd.s32 %s22, 1
    %s24 = scalar_select %p21, %s22, %s23
    %p27 = pneg %p21
    %p28 = scmp.eq.s32.totalorder %s12, 1
    %p29 = por %p27, %p28
    %p30 = scmp.ne.s32.totalorder %s22, %s25
    %p31 = scmp.eq.s32.totalorder %s12, 0
    %p32 = por %p30, %p31
    %p33 = scmp.ne.s32.totalorder %s22, %s25
    %p34 = scmp.eq.s32.totalorder %s17, 1
    %p35 = por %p33, %p34
    %p36 = scmp.ne.s32.totalorder %s25, %s26
    %p37 = scmp.eq.s32.totalorder %s17, 0
    %p38 = por %p36, %p37
    %p39 = scmp.ne.s32.totalorder %s25, %s26
    %p40 = scmp.eq.s32.totalorder %s18, 1
    %p41 = por %p39, %p40
    %p43 = scmp.ne.s32.totalorder %s26, %s42
    %p44 = scmp.eq.s32.totalorder %s18, 0
    %p45 = por %p43, %p44
    %s47 = sadd.s32 %s46, 1
    %p50 = scmp.eq.s32.totalorder %s12, 1
    %p51 = scmp.ne.s32.totalorder %s46, %s48
    %p52 = scmp.eq.s32.totalorder %s12, 0
    %p53 = por %p51, %p52
    %p54 = scmp.ne.s32.totalorder %s46, %s48
    %p55 = scmp.eq.s32.totalorder %s17, 1
    %p56 = por %p54, %p55
    %p57 = scmp.ne.s32.totalorder %s48, %s49
    %p58 = scmp.eq.s32.totalorder %s17, 0
    %p59 = por %p57, %p58
    %p60 = scmp.ne.s32.totalorder %s48, %s49
    %p61 = scmp.eq.s32.totalorder %s18, 1
    %p62 = por %p60, %p61
    %p64 = scmp.ne.s32.totalorder %s49, %s63
    %p65 = scmp.eq.s32.totalorder %s18, 0
    %p66 = por %p64, %p65
    %s68 = sadd.s32 %s67, 1
    %p71 = scmp.eq.s32.totalorder %s12, 1
    %p72 = scmp.ne.s32.totalorder %s67, %s69
    %p73 = scmp.eq.s32.totalorder %s12, 0
    %p74 = por %p72, %p73
    %p75 = scmp.ne.s32.totalorder %s67, %s69
    %p76 = scmp.eq.s32.totalorder %s17, 1
    %p77 = por %p75, %p76
    %p78 = scmp.ne.s32.totalorder %s69, %s70
    %p79 = scmp.eq.s32.totalorder %s17, 0
    %p80 = por %p78, %p79
    %p81 = scmp.ne.s32.totalorder %s69, %s70
    %p82 = scmp.eq.s32.totalorder %s18, 1
    %p83 = por %p81, %p82
    %p85 = scmp.ne.s32.totalorder %s70, %s84
    %p86 = scmp.eq.s32.totalorder %s18, 0
    %p87 = por %p85, %p86
    %s88 = ssub.s32 %s12, %s19
    %p89 = scmp.eq.s32.totalorder %s88, 0
    %s91 = sadd.s32 %s90, 1
    %s92 = scalar_select %p89, %s90, %s91
    %p95 = pneg %p89
    %p96 = scmp.eq.s32.totalorder %s12, 1
    %p97 = por %p95, %p96
    %p98 = scmp.ne.s32.totalorder %s90, %s93
    %p99 = scmp.eq.s32.totalorder %s12, 0
    %p100 = por %p98, %p99
    %p101 = scmp.ne.s32.totalorder %s90, %s93
    %p102 = scmp.eq.s32.totalorder %s17, 1
    %p103 = por %p101, %p102
    %p104 = scmp.ne.s32.totalorder %s93, %s94
    %p105 = scmp.eq.s32.totalorder %s17, 0
    %p106 = por %p104, %p105
    %p107 = scmp.ne.s32.totalorder %s93, %s94
    %p108 = scmp.eq.s32.totalorder %s18, 1
    %p109 = por %p107, %p108
    %p111 = scmp.ne.s32.totalorder %s94, %s110
    %p112 = scmp.eq.s32.totalorder %s18, 0
    %p113 = por %p111, %p112
    %s115 = sadd.s32 %s114, 1
    %p118 = scmp.eq.s32.totalorder %s12, 1
    %p119 = scmp.ne.s32.totalorder %s114, %s116
    %p120 = scmp.eq.s32.totalorder %s12, 0
    %p121 = por %p119, %p120
    %p122 = scmp.ne.s32.totalorder %s114, %s116
    %p123 = scmp.eq.s32.totalorder %s17, 1
    %p124 = por %p122, %p123
    %p125 = scmp.ne.s32.totalorder %s116, %s117
    %p126 = scmp.eq.s32.totalorder %s17, 0
    %p127 = por %p125, %p126
    %p128 = scmp.ne.s32.totalorder %s116, %s117
    %p129 = scmp.eq.s32.totalorder %s18, 1
    %p130 = por %p128, %p129
    %p132 = scmp.ne.s32.totalorder %s117, %s131
    %p133 = scmp.eq.s32.totalorder %s18, 0
    %p134 = por %p132, %p133
    %s136 = sadd.s32 %s135, 1
    %p139 = scmp.eq.s32.totalorder %s12, 1
    %p140 = scmp.ne.s32.totalorder %s135, %s137
    %p141 = scmp.eq.s32.totalorder %s12, 0
    %p142 = por %p140, %p141
    %p143 = scmp.ne.s32.totalorder %s135, %s137
    %p144 = scmp.eq.s32.totalorder %s17, 1
    %p145 = por %p143, %p144
    %p146 = scmp.ne.s32.totalorder %s137, %s138
    %p147 = scmp.eq.s32.totalorder %s17, 0
    %p148 = por %p146, %p147
    %p149 = scmp.ne.s32.totalorder %s137, %s138
    %p150 = scmp.eq.s32.totalorder %s18, 1
    %p151 = por %p149, %p150
    %p153 = scmp.ne.s32.totalorder %s138, %s152
    %p154 = scmp.eq.s32.totalorder %s18, 0
    %p155 = por %p153, %p154
    %s156 = ssub.s32 %s12, %s19
    %p157 = scmp.eq.s32.totalorder %s156, 0
    %s159 = sadd.s32 %s158, 1
    %s160 = scalar_select %p157, %s158, %s159
    %p163 = pneg %p157
    %p164 = scmp.eq.s32.totalorder %s12, 1
    %p165 = por %p163, %p164
    %p166 = scmp.ne.s32.totalorder %s158, %s161
    %p167 = scmp.eq.s32.totalorder %s12, 0
    %p168 = por %p166, %p167
    %p169 = scmp.ne.s32.totalorder %s158, %s161
    %p170 = scmp.eq.s32.totalorder %s17, 1
    %p171 = por %p169, %p170
    %p172 = scmp.ne.s32.totalorder %s161, %s162
    %p173 = scmp.eq.s32.totalorder %s17, 0
    %p174 = por %p172, %p173
    %p175 = scmp.ne.s32.totalorder %s161, %s162
    %p176 = scmp.eq.s32.totalorder %s18, 1
    %p177 = por %p175, %p176
    %p179 = scmp.ne.s32.totalorder %s162, %s178
    %p180 = scmp.eq.s32.totalorder %s18, 0
    %p181 = por %p179, %p180
    %p182 = scmp.le.s32.totalorder 1, %s12
    %p183 = scmp.lt.s32.totalorder %s12, 3
    %p184 = pnand %p182, %p183
    %p185 = pneg %p184
    // Predicated region
    $region9: #{_lambda_.14} parent=5 // pred_check
      _
    $region10: #{_lambda_.14} parent=5 // pred_check_branch
      %187 = sbr.rel (%p184) target = $region12
    $region11: #{_lambda_.14} parent=5 // pred_region
      %s188 = ssub.s32 %s12, 1
      // Predicated region
      $region13: #{_lambda_.14} parent=11 // pred_check
        %p189 = pneg %p59
      $region14: #{_lambda_.14} parent=11 // pred_check_branch
        %191 = sbr.rel (%p189) target = $region16
      $region15: #{_lambda_.14} parent=11 // pred_region
        _
      $region16: #{_lambda_.14} parent=11 // pred_fallthru
        _
      // Predicated region
      $region17: #{_lambda_.14} parent=11 // pred_check
        %p192 = pneg %p80
      $region18: #{_lambda_.14} parent=11 // pred_check_branch
        %194 = sbr.rel (%p192) target = $region20
      $region19: #{_lambda_.14} parent=11 // pred_region
        _
      $region20: #{_lambda_.14} parent=11 // pred_fallthru
        _
      // Predicated region
      $region21: #{_lambda_.14} parent=11 // pred_check
        %p195 = pneg %p127
      $region22: #{_lambda_.14} parent=11 // pred_check_branch
        %197 = sbr.rel (%p195) target = $region24
      $region23: #{_lambda_.14} parent=11 // pred_region
        _
      $region24: #{_lambda_.14} parent=11 // pred_fallthru
        _
      // Predicated region
      $region25: #{_lambda_.14} parent=11 // pred_check
        %p198 = pneg %p148
      $region26: #{_lambda_.14} parent=11 // pred_check_branch
        %200 = sbr.rel (%p198) target = $region28
      $region27: #{_lambda_.14} parent=11 // pred_region
        _
      $region28: #{_lambda_.14} parent=11 // pred_fallthru
        _
    $region12: #{_lambda_.14} parent=5 // pred_fallthru
      _
    %p201 = scmp.lt.s32.totalorder %s12, 2
    // Predicated region
    $region29: #{_lambda_.14} parent=5 // pred_check
      %p202 = pneg %p201
    $region30: #{_lambda_.14} parent=5 // pred_check_branch
      %204 = sbr.rel (%p202) target = $region32
    $region31: #{_lambda_.14} parent=5 // pred_region
      // Predicated region
      $region33: #{_lambda_.14} parent=31 // pred_check
        %p205 = pneg %p32
      $region34: #{_lambda_.14} parent=31 // pred_check_branch
        %207 = sbr.rel (%p205) target = $region36
      $region35: #{_lambda_.14} parent=31 // pred_region
        %s208 = smul.u32 2, %s12
        %p209 = scmp.lt.s32.totalorder %s208, 3
        %s210 = scalar_select %p209, %s208, 3
        %s211 = smul.addr %s210, 9
        %s212 = smul.addr %s211, 4
        %s213 = scalar_lea.vmem %s0, %s212
        %s214 = smul.u32 2, %s12
      $region36: #{_lambda_.14} parent=31 // pred_fallthru
        _
      // Predicated region
      $region37: #{_lambda_.14} parent=31 // pred_check
        %p215 = pneg %p100
      $region38: #{_lambda_.14} parent=31 // pred_check_branch
        %217 = sbr.rel (%p215) target = $region40
      $region39: #{_lambda_.14} parent=31 // pred_region
        %s218 = smul.u32 2, %s12
        %p219 = scmp.lt.s32.totalorder %s218, 3
        %s220 = scalar_select %p219, %s218, 3
        %s221 = smul.addr %s220, 4
        %s222 = scalar_lea.vmem %s3, %s221
        %s223 = smul.u32 2, %s12
      $region40: #{_lambda_.14} parent=31 // pred_fallthru
        _
    $region32: #{_lambda_.14} parent=5 // pred_fallthru
      _
    %p224 = scmp.le.s32.totalorder 1, %s12
    %p225 = scmp.lt.s32.totalorder %s12, 3
    %p226 = pnand %p224, %p225
    %p227 = pneg %p226
    // Predicated region
    $region41: #{_lambda_.14} parent=5 // pred_check
      _
    $region42: #{_lambda_.14} parent=5 // pred_check_branch
      %229 = sbr.rel (%p226) target = $region44
    $region43: #{_lambda_.14} parent=5 // pred_region
      %s230 = ssub.s32 %s12, 1
      %s231 = smul.u32 2, %s17
      %p232 = scmp.lt.s32.totalorder %s231, 3
      %s233 = scalar_select %p232, %s231, 3
      %s234 = smul.addr %s233, 9
      %s235 = smul.addr %s234, 4
      %s236 = scalar_lea.vmem %s0, %s235
      %p237 = pneg %p38
      %p238 = pneg %p35
      %p239 = pneg %p59
      %p240 = pneg %p56
      %p241 = pneg %p80
      %p242 = pneg %p77
      %s243 = smul.u32 2, %s17
      %p244 = scmp.lt.s32.totalorder %s243, 3
      %s245 = scalar_select %p244, %s243, 3
      %s246 = smul.addr %s245, 4
      %s247 = scalar_lea.vmem %s3, %s246
      %p248 = pneg %p106
      %p249 = pneg %p103
      %p250 = pneg %p127
      %p251 = pneg %p124
      %p252 = pneg %p148
      %p253 = pneg %p145
      %p254 = pneg %p174
      %p255 = pneg %p171
      %s256 = smul.u32 2, %s17
      %p257 = scmp.lt.s32.totalorder %s256, 3
      %s258 = scalar_select %p257, %s256, 3
      %s259 = smul.addr %s258, 4
      %s260 = scalar_lea.vmem %s6, %s259
      %s261 = smul.u32 2, %s17
      %p262 = scmp.lt.s32.totalorder %s261, 3
      %s263 = scalar_select %p262, %s261, 3
      %s264 = smul.addr %s263, 9
      %s265 = smul.addr %s264, 4
      %s266 = scalar_lea.vmem %s0, %s265
      %s267 = smul.u32 2, %s17
      %s268 = smul.u32 2, %s17
      %p269 = scmp.lt.s32.totalorder %s268, 3
      %s270 = scalar_select %p269, %s268, 3
      %s271 = smul.addr %s270, 4
      %s272 = scalar_lea.vmem %s3, %s271
      %s273 = smul.u32 2, %s17
      %s274 = smul.u32 2, %s17
      %p275 = scmp.lt.s32.totalorder %s274, 3
      %s276 = scalar_select %p275, %s274, 3
      %s277 = smul.addr %s276, 4
      %s278 = scalar_lea.vmem %s6, %s277
      %s279 = smul.u32 2, %s17
      %v280 = vld [vmem:[%s266] sm:$0xff]
      %v281 = vld [vmem:[%s266 + $0x8] sm:$0xff]
      %v282 = vld [vmem:[%s266 + $0x10] sm:$0xff]
      %v283 = vld [vmem:[%s266 + $0x18] sm:$0xff]
      %v284 = vld [vmem:[%s266 + $0x20] sm:$0xf]
      %v285 = vld [vmem:[%s266 + $0x24] sm:$0xff]
      %v286 = vld [vmem:[%s266 + $0x2c] sm:$0xff]
      %v287 = vld [vmem:[%s266 + $0x34] sm:$0xff]
      %v288 = vld [vmem:[%s266 + $0x3c] sm:$0xff]
      %v289 = vld [vmem:[%s266 + $0x44] sm:$0xf]
      %v290 = vld [vmem:[%s1] sm:$0xf]
      %v291 = vld [vmem:[%s1 + $0x4] sm:$0xf]
      %v292 = vld [vmem:[%s1 + $0x8] sm:$0xf]
      %v293 = vld [vmem:[%s1 + $0xc] sm:$0xf]
      %v294 = vld [vmem:[%s1 + $0x10] sm:$0xf]
      %v295 = vld [vmem:[%s1 + $0x14] sm:$0xf]
      %v296 = vld [vmem:[%s1 + $0x18] sm:$0xf]
      %v297 = vld [vmem:[%s1 + $0x1c] sm:$0xf]
      %v298 = vld [vmem:[%s1 + $0x20] sm:$0xf]
      %v299 = vld [vmem:[%s1 + $0x24] sm:$0xf]
      %v300 = vld [vmem:[%s1 + $0x28] sm:$0xf]
      %v301 = vld [vmem:[%s1 + $0x2c] sm:$0xf]
      %v302 = vld [vmem:[%s1 + $0x30] sm:$0xf]
      %v303 = vld [vmem:[%s1 + $0x34] sm:$0xf]
      %v304 = vld [vmem:[%s1 + $0x38] sm:$0xf]
      %v305 = vld [vmem:[%s1 + $0x3c] sm:$0xf]
      %v306 = vld [vmem:[%s1 + $0x40] sm:$0xf]
      %v307 = vld [vmem:[%s1 + $0x44] sm:$0xf]
      %v308 = vld [vmem:[%s1 + $0x48] sm:$0xf]
      %v309 = vld [vmem:[%s1 + $0x4c] sm:$0xf]
      %v310 = vld [vmem:[%s1 + $0x50] sm:$0xf]
      %v311 = vld [vmem:[%s1 + $0x54] sm:$0xf]
      %v312 = vld [vmem:[%s1 + $0x58] sm:$0xf]
      %v313 = vld [vmem:[%s1 + $0x5c] sm:$0xf]
      %v314 = vld [vmem:[%s1 + $0x60] sm:$0xf]
      %v315 = vld [vmem:[%s1 + $0x64] sm:$0xf]
      %v316 = vld [vmem:[%s1 + $0x68] sm:$0xf]
      %v317 = vld [vmem:[%s1 + $0x6c] sm:$0xf]
      %v318 = vld [vmem:[%s1 + $0x70] sm:$0xf]
      %v319 = vld [vmem:[%s1 + $0x74] sm:$0xf]
      %v320 = vld [vmem:[%s1 + $0x78] sm:$0xf]
      %v321 = vld [vmem:[%s1 + $0x7c] sm:$0xf]
      %v322 = vld [vmem:[%s1 + $0x80] sm:$0xf]
      %v323 = vld [vmem:[%s1 + $0x84] sm:$0xf]
      %v324 = vld [vmem:[%s1 + $0x88] sm:$0xf]
      %v325 = vld [vmem:[%s1 + $0x8c] sm:$0xf]
      %v326 = vld [vmem:[%s1 + $0x90] sm:$0xf]
      %v327 = vld [vmem:[%s1 + $0x94] sm:$0xf]
      %v328 = vld [vmem:[%s1 + $0x98] sm:$0xf]
      %v329 = vld [vmem:[%s1 + $0x9c] sm:$0xf]
      %v330 = vld [vmem:[%s1 + $0xa0] sm:$0xf]
      %v331 = vld [vmem:[%s1 + $0xa4] sm:$0xf]
      %v332 = vld [vmem:[%s1 + $0xa8] sm:$0xf]
      %v333 = vld [vmem:[%s1 + $0xac] sm:$0xf]
      %v334 = vld [vmem:[%s1 + $0xb0] sm:$0xf]
      %v335 = vld [vmem:[%s1 + $0xb4] sm:$0xf]
      %v336 = vld [vmem:[%s1 + $0xb8] sm:$0xf]
      %v337 = vld [vmem:[%s1 + $0xbc] sm:$0xf]
      %v338 = vld [vmem:[%s1 + $0xc0] sm:$0xf]
      %v339 = vld [vmem:[%s1 + $0xc4] sm:$0xf]
      %v340 = vld [vmem:[%s1 + $0xc8] sm:$0xf]
      %v341 = vld [vmem:[%s1 + $0xcc] sm:$0xf]
      %v342 = vld [vmem:[%s1 + $0xd0] sm:$0xf]
      %v343 = vld [vmem:[%s1 + $0xd4] sm:$0xf]
      %v344 = vld [vmem:[%s1 + $0xd8] sm:$0xf]
      %v345 = vld [vmem:[%s1 + $0xdc] sm:$0xf]
      %v346 = vld [vmem:[%s1 + $0xe0] sm:$0xf]
      %v347 = vld [vmem:[%s1 + $0xe4] sm:$0xf]
      %v348 = vld [vmem:[%s1 + $0xe8] sm:$0xf]
      %v349 = vld [vmem:[%s1 + $0xec] sm:$0xf]
      %v350 = vld [vmem:[%s1 + $0xf0] sm:$0xf]
      %v351 = vld [vmem:[%s1 + $0xf4] sm:$0xf]
      %v352 = vld [vmem:[%s1 + $0xf8] sm:$0xf]
      %v353 = vld [vmem:[%s1 + $0xfc] sm:$0xf]
      %v354 = vld [vmem:[%s1 + $0x100] sm:$0xf]
      %v355 = vld [vmem:[%s1 + $0x104] sm:$0xf]
      %v356 = vld [vmem:[%s1 + $0x108] sm:$0xf]
      %v357 = vld [vmem:[%s1 + $0x10c] sm:$0xf]
      %v358 = vld [vmem:[%s1 + $0x110] sm:$0xf]
      %v359 = vld [vmem:[%s1 + $0x114] sm:$0xf]
      %v360 = vld [vmem:[%s1 + $0x118] sm:$0xf]
      %v361 = vld [vmem:[%s1 + $0x11c] sm:$0xf]
      %v362 = vld [vmem:[%s1 + $0x120] sm:$0xf]
      %v363 = vld [vmem:[%s1 + $0x124] sm:$0xf]
      %v364 = vld [vmem:[%s1 + $0x128] sm:$0xf]
      %v365 = vld [vmem:[%s1 + $0x12c] sm:$0xf]
      %v366 = vld [vmem:[%s1 + $0x130] sm:$0xf]
      %v367 = vld [vmem:[%s1 + $0x134] sm:$0xf]
      %v368 = vld [vmem:[%s1 + $0x138] sm:$0xf]
      %v369 = vld [vmem:[%s1 + $0x13c] sm:$0xf]
      %v370 = vld [vmem:[%s1 + $0x140] sm:$0xf]
      %v371 = vld [vmem:[%s1 + $0x144] sm:$0xf]
      %v372 = vld [vmem:[%s1 + $0x148] sm:$0xf]
      %v373 = vld [vmem:[%s1 + $0x14c] sm:$0xf]
      %v374 = vld [vmem:[%s1 + $0x150] sm:$0xf]
      %v375 = vld [vmem:[%s1 + $0x154] sm:$0xf]
      %v376 = vld [vmem:[%s1 + $0x158] sm:$0xf]
      %v377 = vld [vmem:[%s1 + $0x15c] sm:$0xf]
      %v378 = vld [vmem:[%s1 + $0x160] sm:$0xf]
      %v379 = vld [vmem:[%s1 + $0x164] sm:$0xf]
      %v380 = vld [vmem:[%s1 + $0x168] sm:$0xf]
      %v381 = vld [vmem:[%s1 + $0x16c] sm:$0xf]
      %v382 = vld [vmem:[%s1 + $0x170] sm:$0xf]
      %v383 = vld [vmem:[%s1 + $0x174] sm:$0xf]
      %v384 = vld [vmem:[%s1 + $0x178] sm:$0xf]
      %v385 = vld [vmem:[%s1 + $0x17c] sm:$0xf]
      %v386 = vld [vmem:[%s1 + $0x180] sm:$0xf]
      %v387 = vld [vmem:[%s1 + $0x184] sm:$0xf]
      %v388 = vld [vmem:[%s1 + $0x188] sm:$0xf]
      %v389 = vld [vmem:[%s1 + $0x18c] sm:$0xf]
      %v390 = vld [vmem:[%s1 + $0x190] sm:$0xf]
      %v391 = vld [vmem:[%s1 + $0x194] sm:$0xf]
      %v392 = vld [vmem:[%s1 + $0x198] sm:$0xf]
      %v393 = vld [vmem:[%s1 + $0x19c] sm:$0xf]
      %v394 = vld [vmem:[%s1 + $0x1a0] sm:$0xf]
      %v395 = vld [vmem:[%s1 + $0x1a4] sm:$0xf]
      %v396 = vld [vmem:[%s1 + $0x1a8] sm:$0xf]
      %v397 = vld [vmem:[%s1 + $0x1ac] sm:$0xf]
      %v398 = vld [vmem:[%s1 + $0x1b0] sm:$0xf]
      %v399 = vld [vmem:[%s1 + $0x1b4] sm:$0xf]
      %v400 = vld [vmem:[%s1 + $0x1b8] sm:$0xf]
      %v401 = vld [vmem:[%s1 + $0x1bc] sm:$0xf]
      %v402 = vld [vmem:[%s1 + $0x1c0] sm:$0xf]
      %v403 = vld [vmem:[%s1 + $0x1c4] sm:$0xf]
      %v404 = vld [vmem:[%s1 + $0x1c8] sm:$0xf]
      %v405 = vld [vmem:[%s1 + $0x1cc] sm:$0xf]
      %v406 = vld [vmem:[%s1 + $0x1d0] sm:$0xf]
      %v407 = vld [vmem:[%s1 + $0x1d4] sm:$0xf]
      %v408 = vld [vmem:[%s1 + $0x1d8] sm:$0xf]
      %v409 = vld [vmem:[%s1 + $0x1dc] sm:$0xf]
      %v410 = vld [vmem:[%s1 + $0x1e0] sm:$0xf]
      %v411 = vld [vmem:[%s1 + $0x1e4] sm:$0xf]
      %v412 = vld [vmem:[%s1 + $0x1e8] sm:$0xf]
      %v413 = vld [vmem:[%s1 + $0x1ec] sm:$0xf]
      %v414 = vld [vmem:[%s1 + $0x1f0] sm:$0xf]
      %v415 = vld [vmem:[%s1 + $0x1f4] sm:$0xf]
      %v416 = vld [vmem:[%s1 + $0x1f8] sm:$0xf]
      %v417 = vld [vmem:[%s1 + $0x1fc] sm:$0xf]
      %v418 = vld [vmem:[%s1 + $0x200] sm:$0xf]
      %v419 = vld [vmem:[%s1 + $0x204] sm:$0xf]
      %v420 = vld [vmem:[%s1 + $0x208] sm:$0xf]
      %v421 = vld [vmem:[%s1 + $0x20c] sm:$0xf]
      %v422 = vld [vmem:[%s1 + $0x210] sm:$0xf]
      %v423 = vld [vmem:[%s1 + $0x214] sm:$0xf]
      %v424 = vld [vmem:[%s1 + $0x218] sm:$0xf]
      %v425 = vld [vmem:[%s1 + $0x21c] sm:$0xf]
      %v426 = vld [vmem:[%s1 + $0x220] sm:$0xf]
      %v427 = vld [vmem:[%s1 + $0x224] sm:$0xf]
      %v428 = vld [vmem:[%s1 + $0x228] sm:$0xf]
      %v429 = vld [vmem:[%s1 + $0x22c] sm:$0xf]
      %v430 = vld [vmem:[%s1 + $0x230] sm:$0xf]
      %v431 = vld [vmem:[%s1 + $0x234] sm:$0xf]
      %v432 = vld [vmem:[%s1 + $0x238] sm:$0xf]
      %v433 = vld [vmem:[%s1 + $0x23c] sm:$0xf]
      %v434 = vld [vmem:[%s2] sm:$0x1]
      %v436 = vperm.slane %v434, 0
      %v448 = vunpack.c.l.b16 %v280
      %v449 = vunpack.c.h.b16 %v280
      %v450 = vunpack.c.l.b16 %v281
      %v451 = vunpack.c.h.b16 %v281
      %v452 = vunpack.c.l.b16 %v282
      %v453 = vunpack.c.h.b16 %v282
      %v454 = vunpack.c.l.b16 %v283
      %v455 = vunpack.c.h.b16 %v283
      %v456 = vunpack.c.l.b16 %v284
      %v457 = vunpack.c.l.b16 %v285
      %v458 = vunpack.c.h.b16 %v285
      %v459 = vunpack.c.l.b16 %v286
      %v460 = vunpack.c.h.b16 %v286
      %v461 = vunpack.c.l.b16 %v287
      %v462 = vunpack.c.h.b16 %v287
      %v463 = vunpack.c.l.b16 %v288
      %v464 = vunpack.c.h.b16 %v288
      %v465 = vunpack.c.l.b16 %v289
      %v466 = vpack.c.b16 %v457, %v448
      %v467 = vpack.c.b16 %v458, %v449
      %v468 = vpack.c.b16 %v459, %v450
      %v469 = vpack.c.b16 %v460, %v451
      %v470 = vpack.c.b16 %v461, %v452
      %v471 = vpack.c.b16 %v462, %v453
      %v472 = vpack.c.b16 %v463, %v454
      %v473 = vpack.c.b16 %v464, %v455
      %v474 = vpack.c.b16 %v465, %v456
      %v628 = vunpack.c.l.b16 %v290
      %v629 = vunpack.c.l.b16 %v291
      %v630 = vunpack.c.l.b16 %v292
      %v631 = vunpack.c.l.b16 %v293
      %v632 = vunpack.c.l.b16 %v294
      %v633 = vunpack.c.l.b16 %v295
      %v634 = vunpack.c.l.b16 %v296
      %v635 = vunpack.c.l.b16 %v297
      %v636 = vunpack.c.l.b16 %v298
      %v637 = vunpack.c.l.b16 %v299
      %v638 = vunpack.c.l.b16 %v300
      %v639 = vunpack.c.l.b16 %v301
      %v640 = vunpack.c.l.b16 %v302
      %v641 = vunpack.c.l.b16 %v303
      %v642 = vunpack.c.l.b16 %v304
      %v643 = vunpack.c.l.b16 %v305
      %v644 = vunpack.c.l.b16 %v306
      %v645 = vunpack.c.l.b16 %v307
      %v646 = vunpack.c.l.b16 %v308
      %v647 = vunpack.c.l.b16 %v309
      %v648 = vunpack.c.l.b16 %v310
      %v649 = vunpack.c.l.b16 %v311
      %v650 = vunpack.c.l.b16 %v312
      %v651 = vunpack.c.l.b16 %v313
      %v652 = vunpack.c.l.b16 %v314
      %v653 = vunpack.c.l.b16 %v315
      %v654 = vunpack.c.l.b16 %v316
      %v655 = vunpack.c.l.b16 %v317
      %v656 = vunpack.c.l.b16 %v318
      %v657 = vunpack.c.l.b16 %v319
      %v658 = vunpack.c.l.b16 %v320
      %v659 = vunpack.c.l.b16 %v321
      %v660 = vunpack.c.l.b16 %v322
      %v661 = vunpack.c.l.b16 %v323
      %v662 = vunpack.c.l.b16 %v324
      %v663 = vunpack.c.l.b16 %v325
      %v664 = vunpack.c.l.b16 %v326
      %v665 = vunpack.c.l.b16 %v327
      %v666 = vunpack.c.l.b16 %v328
      %v667 = vunpack.c.l.b16 %v329
      %v668 = vunpack.c.l.b16 %v330
      %v669 = vunpack.c.l.b16 %v331
      %v670 = vunpack.c.l.b16 %v332
      %v671 = vunpack.c.l.b16 %v333
      %v672 = vunpack.c.l.b16 %v334
      %v673 = vunpack.c.l.b16 %v335
      %v674 = vunpack.c.l.b16 %v336
      %v675 = vunpack.c.l.b16 %v337
      %v676 = vunpack.c.l.b16 %v338
      %v677 = vunpack.c.l.b16 %v339
      %v678 = vunpack.c.l.b16 %v340
      %v679 = vunpack.c.l.b16 %v341
      %v680 = vunpack.c.l.b16 %v342
      %v681 = vunpack.c.l.b16 %v343
      %v682 = vunpack.c.l.b16 %v344
      %v683 = vunpack.c.l.b16 %v345
      %v684 = vunpack.c.l.b16 %v346
      %v685 = vunpack.c.l.b16 %v347
      %v686 = vunpack.c.l.b16 %v348
      %v687 = vunpack.c.l.b16 %v349
      %v688 = vunpack.c.l.b16 %v350
      %v689 = vunpack.c.l.b16 %v351
      %v690 = vunpack.c.l.b16 %v352
      %v691 = vunpack.c.l.b16 %v353
      %v692 = vunpack.c.l.b16 %v354
      %v693 = vunpack.c.l.b16 %v355
      %v694 = vunpack.c.l.b16 %v356
      %v695 = vunpack.c.l.b16 %v357
      %v696 = vunpack.c.l.b16 %v358
      %v697 = vunpack.c.l.b16 %v359
      %v698 = vunpack.c.l.b16 %v360
      %v699 = vunpack.c.l.b16 %v361
      %v700 = vunpack.c.l.b16 %v362
      %v701 = vunpack.c.l.b16 %v363
      %v702 = vunpack.c.l.b16 %v364
      %v703 = vunpack.c.l.b16 %v365
      %v704 = vunpack.c.l.b16 %v366
      %v705 = vunpack.c.l.b16 %v367
      %v706 = vunpack.c.l.b16 %v368
      %v707 = vunpack.c.l.b16 %v369
      %v708 = vunpack.c.l.b16 %v370
      %v709 = vunpack.c.l.b16 %v371
      %v710 = vunpack.c.l.b16 %v372
      %v711 = vunpack.c.l.b16 %v373
      %v712 = vunpack.c.l.b16 %v374
      %v713 = vunpack.c.l.b16 %v375
      %v714 = vunpack.c.l.b16 %v376
      %v715 = vunpack.c.l.b16 %v377
      %v716 = vunpack.c.l.b16 %v378
      %v717 = vunpack.c.l.b16 %v379
      %v718 = vunpack.c.l.b16 %v380
      %v719 = vunpack.c.l.b16 %v381
      %v720 = vunpack.c.l.b16 %v382
      %v721 = vunpack.c.l.b16 %v383
      %v722 = vunpack.c.l.b16 %v384
      %v723 = vunpack.c.l.b16 %v385
      %v724 = vunpack.c.l.b16 %v386
      %v725 = vunpack.c.l.b16 %v387
      %v726 = vunpack.c.l.b16 %v388
      %v727 = vunpack.c.l.b16 %v389
      %v728 = vunpack.c.l.b16 %v390
      %v729 = vunpack.c.l.b16 %v391
      %v730 = vunpack.c.l.b16 %v392
      %v731 = vunpack.c.l.b16 %v393
      %v732 = vunpack.c.l.b16 %v394
      %v733 = vunpack.c.l.b16 %v395
      %v734 = vunpack.c.l.b16 %v396
      %v735 = vunpack.c.l.b16 %v397
      %v736 = vunpack.c.l.b16 %v398
      %v737 = vunpack.c.l.b16 %v399
      %v738 = vunpack.c.l.b16 %v400
      %v739 = vunpack.c.l.b16 %v401
      %v740 = vunpack.c.l.b16 %v402
      %v741 = vunpack.c.l.b16 %v403
      %v742 = vunpack.c.l.b16 %v404
      %v743 = vunpack.c.l.b16 %v405
      %v744 = vunpack.c.l.b16 %v406
      %v745 = vunpack.c.l.b16 %v407
      %v746 = vunpack.c.l.b16 %v408
      %v747 = vunpack.c.l.b16 %v409
      %v748 = vunpack.c.l.b16 %v410
      %v749 = vunpack.c.l.b16 %v411
      %v750 = vunpack.c.l.b16 %v412
      %v751 = vunpack.c.l.b16 %v413
      %v752 = vunpack.c.l.b16 %v414
      %v753 = vunpack.c.l.b16 %v415
      %v754 = vunpack.c.l.b16 %v416
      %v755 = vunpack.c.l.b16 %v417
      %v756 = vunpack.c.l.b16 %v418
      %v757 = vunpack.c.l.b16 %v419
      %v758 = vunpack.c.l.b16 %v420
      %v759 = vunpack.c.l.b16 %v421
      %v760 = vunpack.c.l.b16 %v422
      %v761 = vunpack.c.l.b16 %v423
      %v762 = vunpack.c.l.b16 %v424
      %v763 = vunpack.c.l.b16 %v425
      %v764 = vunpack.c.l.b16 %v426
      %v765 = vunpack.c.l.b16 %v427
      %v766 = vunpack.c.l.b16 %v428
      %v767 = vunpack.c.l.b16 %v429
      %v768 = vunpack.c.l.b16 %v430
      %v769 = vunpack.c.l.b16 %v431
      %v770 = vunpack.c.l.b16 %v432
      %v771 = vunpack.c.l.b16 %v433
      %v772 = vpack.c.b16 %v629, %v628
      %v773 = vpack.c.b16 %v631, %v630
      %v774 = vpack.c.b16 %v633, %v632
      %v775 = vpack.c.b16 %v635, %v634
      %v776 = vpack.c.b16 %v637, %v636
      %v777 = vpack.c.b16 %v639, %v638
      %v778 = vpack.c.b16 %v641, %v640
      %v779 = vpack.c.b16 %v643, %v642
      %v780 = vpack.c.b16 %v645, %v644
      %v781 = vpack.c.b16 %v647, %v646
      %v782 = vpack.c.b16 %v649, %v648
      %v783 = vpack.c.b16 %v651, %v650
      %v784 = vpack.c.b16 %v653, %v652
      %v785 = vpack.c.b16 %v655, %v654
      %v786 = vpack.c.b16 %v657, %v656
      %v787 = vpack.c.b16 %v659, %v658
      %v788 = vpack.c.b16 %v661, %v660
      %v789 = vpack.c.b16 %v663, %v662
      %v790 = vpack.c.b16 %v665, %v664
      %v791 = vpack.c.b16 %v667, %v666
      %v792 = vpack.c.b16 %v669, %v668
      %v793 = vpack.c.b16 %v671, %v670
      %v794 = vpack.c.b16 %v673, %v672
      %v795 = vpack.c.b16 %v675, %v674
      %v796 = vpack.c.b16 %v677, %v676
      %v797 = vpack.c.b16 %v679, %v678
      %v798 = vpack.c.b16 %v681, %v680
      %v799 = vpack.c.b16 %v683, %v682
      %v800 = vpack.c.b16 %v685, %v684
      %v801 = vpack.c.b16 %v687, %v686
      %v802 = vpack.c.b16 %v689, %v688
      %v803 = vpack.c.b16 %v691, %v690
      %v804 = vpack.c.b16 %v693, %v692
      %v805 = vpack.c.b16 %v695, %v694
      %v806 = vpack.c.b16 %v697, %v696
      %v807 = vpack.c.b16 %v699, %v698
      %v808 = vpack.c.b16 %v701, %v700
      %v809 = vpack.c.b16 %v703, %v702
      %v810 = vpack.c.b16 %v705, %v704
      %v811 = vpack.c.b16 %v707, %v706
      %v812 = vpack.c.b16 %v709, %v708
      %v813 = vpack.c.b16 %v711, %v710
      %v814 = vpack.c.b16 %v713, %v712
      %v815 = vpack.c.b16 %v715, %v714
      %v816 = vpack.c.b16 %v717, %v716
      %v817 = vpack.c.b16 %v719, %v718
      %v818 = vpack.c.b16 %v721, %v720
      %v819 = vpack.c.b16 %v723, %v722
      %v820 = vpack.c.b16 %v725, %v724
      %v821 = vpack.c.b16 %v727, %v726
      %v822 = vpack.c.b16 %v729, %v728
      %v823 = vpack.c.b16 %v731, %v730
      %v824 = vpack.c.b16 %v733, %v732
      %v825 = vpack.c.b16 %v735, %v734
      %v826 = vpack.c.b16 %v737, %v736
      %v827 = vpack.c.b16 %v739, %v738
      %v828 = vpack.c.b16 %v741, %v740
      %v829 = vpack.c.b16 %v743, %v742
      %v830 = vpack.c.b16 %v745, %v744
      %v831 = vpack.c.b16 %v747, %v746
      %v832 = vpack.c.b16 %v749, %v748
      %v833 = vpack.c.b16 %v751, %v750
      %v834 = vpack.c.b16 %v753, %v752
      %v835 = vpack.c.b16 %v755, %v754
      %v836 = vpack.c.b16 %v757, %v756
      %v837 = vpack.c.b16 %v759, %v758
      %v838 = vpack.c.b16 %v761, %v760
      %v839 = vpack.c.b16 %v763, %v762
      %v840 = vpack.c.b16 %v765, %v764
      %v841 = vpack.c.b16 %v767, %v766
      %v842 = vpack.c.b16 %v769, %v768
      %v843 = vpack.c.b16 %v771, %v770
      %916 = vmatpush.bf16.msra.mxu0 %v779
      %917 = vmatpush.bf16.msra.mxu0 %v778
      %918 = vmatpush.bf16.msra.mxu0 %v777
      %919 = vmatpush.bf16.msra.mxu0 %v776
      %920 = vmatpush.bf16.msra.mxu0 %v775
      %921 = vmatpush.bf16.msra.mxu0 %v774
      %922 = vmatpush.bf16.msra.mxu0 %v773
      %923 = vmatpush.bf16.msra.mxu0 %v772
      %924 = vmatmul.bf16.gmra.mxu0 %v466
      %v925 = vpop.f32.mrf.mxu0
      %v926 = vadd.f32 %v436, %v925
      %v927 = vpop.f32.mrf.mxu0
      %v928 = vadd.f32 %v436, %v927
      %929 = vdwg.mxu0
      %930 = vmatpush.bf16.msra.mxu0 %v787
      %931 = vmatpush.bf16.msra.mxu0 %v786
      %932 = vmatpush.bf16.msra.mxu0 %v785
      %933 = vmatpush.bf16.msra.mxu0 %v784
      %934 = vmatpush.bf16.msra.mxu0 %v783
      %935 = vmatpush.bf16.msra.mxu0 %v782
      %936 = vmatpush.bf16.msra.mxu0 %v781
      %937 = vmatpush.bf16.msra.mxu0 %v780
      %938 = vmatmul.bf16.gmra.mxu0 %v467
      %v939 = vpop.f32.mrf.mxu0
      %v940 = vadd.f32 %v926, %v939
      %v941 = vpop.f32.mrf.mxu0
      %v942 = vadd.f32 %v928, %v941
      %943 = vdwg.mxu0
      %944 = vmatpush.bf16.msra.mxu0 %v795
      %945 = vmatpush.bf16.msra.mxu0 %v794
      %946 = vmatpush.bf16.msra.mxu0 %v793
      %947 = vmatpush.bf16.msra.mxu0 %v792
      %948 = vmatpush.bf16.msra.mxu0 %v791
      %949 = vmatpush.bf16.msra.mxu0 %v790
      %950 = vmatpush.bf16.msra.mxu0 %v789
      %951 = vmatpush.bf16.msra.mxu0 %v788
      %952 = vmatmul.bf16.gmra.mxu0 %v468
      %v953 = vpop.f32.mrf.mxu0
      %v954 = vadd.f32 %v940, %v953
      %v955 = vpop.f32.mrf.mxu0
      %v956 = vadd.f32 %v942, %v955
      %957 = vdwg.mxu0
      %958 = vmatpush.bf16.msra.mxu0 %v803
      %959 = vmatpush.bf16.msra.mxu0 %v802
      %960 = vmatpush.bf16.msra.mxu0 %v801
      %961 = vmatpush.bf16.msra.mxu0 %v800
      %962 = vmatpush.bf16.msra.mxu0 %v799
      %963 = vmatpush.bf16.msra.mxu0 %v798
      %964 = vmatpush.bf16.msra.mxu0 %v797
      %965 = vmatpush.bf16.msra.mxu0 %v796
      %966 = vmatmul.bf16.gmra.mxu0 %v469
      %v967 = vpop.f32.mrf.mxu0
      %v968 = vadd.f32 %v954, %v967
      %v969 = vpop.f32.mrf.mxu0
      %v970 = vadd.f32 %v956, %v969
      %971 = vdwg.mxu0
      %972 = vmatpush.bf16.msra.mxu0 %v811
      %973 = vmatpush.bf16.msra.mxu0 %v810
      %974 = vmatpush.bf16.msra.mxu0 %v809
      %975 = vmatpush.bf16.msra.mxu0 %v808
      %976 = vmatpush.bf16.msra.mxu0 %v807
      %977 = vmatpush.bf16.msra.mxu0 %v806
      %978 = vmatpush.bf16.msra.mxu0 %v805
      %979 = vmatpush.bf16.msra.mxu0 %v804
      %980 = vmatmul.bf16.gmra.mxu0 %v470
      %v981 = vpop.f32.mrf.mxu0
      %v982 = vadd.f32 %v968, %v981
      %v983 = vpop.f32.mrf.mxu0
      %v984 = vadd.f32 %v970, %v983
      %985 = vdwg.mxu0
      %986 = vmatpush.bf16.msra.mxu0 %v819
      %987 = vmatpush.bf16.msra.mxu0 %v818
      %988 = vmatpush.bf16.msra.mxu0 %v817
      %989 = vmatpush.bf16.msra.mxu0 %v816
      %990 = vmatpush.bf16.msra.mxu0 %v815
      %991 = vmatpush.bf16.msra.mxu0 %v814
      %992 = vmatpush.bf16.msra.mxu0 %v813
      %993 = vmatpush.bf16.msra.mxu0 %v812
      %994 = vmatmul.bf16.gmra.mxu0 %v471
      %v995 = vpop.f32.mrf.mxu0
      %v996 = vadd.f32 %v982, %v995
      %v997 = vpop.f32.mrf.mxu0
      %v998 = vadd.f32 %v984, %v997
      %999 = vdwg.mxu0
      %1000 = vmatpush.bf16.msra.mxu0 %v827
      %1001 = vmatpush.bf16.msra.mxu0 %v826
      %1002 = vmatpush.bf16.msra.mxu0 %v825
      %1003 = vmatpush.bf16.msra.mxu0 %v824
      %1004 = vmatpush.bf16.msra.mxu0 %v823
      %1005 = vmatpush.bf16.msra.mxu0 %v822
      %1006 = vmatpush.bf16.msra.mxu0 %v821
      %1007 = vmatpush.bf16.msra.mxu0 %v820
      %1008 = vmatmul.bf16.gmra.mxu0 %v472
      %v1009 = vpop.f32.mrf.mxu0
      %v1010 = vadd.f32 %v996, %v1009
      %v1011 = vpop.f32.mrf.mxu0
      %v1012 = vadd.f32 %v998, %v1011
      %1013 = vdwg.mxu0
      %1014 = vmatpush.bf16.msra.mxu0 %v835
      %1015 = vmatpush.bf16.msra.mxu0 %v834
      %1016 = vmatpush.bf16.msra.mxu0 %v833
      %1017 = vmatpush.bf16.msra.mxu0 %v832
      %1018 = vmatpush.bf16.msra.mxu0 %v831
      %1019 = vmatpush.bf16.msra.mxu0 %v830
      %1020 = vmatpush.bf16.msra.mxu0 %v829
      %1021 = vmatpush.bf16.msra.mxu0 %v828
      %1022 = vmatmul.bf16.gmra.mxu0 %v473
      %v1023 = vpop.f32.mrf.mxu0
      %v1024 = vadd.f32 %v1010, %v1023
      %v1025 = vpop.f32.mrf.mxu0
      %v1026 = vadd.f32 %v1012, %v1025
      %1027 = vdwg.mxu0
      %1028 = vmatpush.bf16.msra.mxu0 %v843
      %1029 = vmatpush.bf16.msra.mxu0 %v842
      %1030 = vmatpush.bf16.msra.mxu0 %v841
      %1031 = vmatpush.bf16.msra.mxu0 %v840
      %1032 = vmatpush.bf16.msra.mxu0 %v839
      %1033 = vmatpush.bf16.msra.mxu0 %v838
      %1034 = vmatpush.bf16.msra.mxu0 %v837
      %1035 = vmatpush.bf16.msra.mxu0 %v836
      %1036 = vmatmul.bf16.gmra.mxu0 %v474
      %v1037 = vpop.f32.mrf.mxu0
      %v1038 = vadd.f32 %v1024, %v1037
      %v1039 = vpop.f32.mrf.mxu0
      %v1040 = vadd.f32 %v1026, %v1039
      %1041 = vdwg.mxu0
      %v1042 = vld [vmem:[%s272] sm:$0xf]
      %v1043 = vld [vmem:[%s272 + $0x4] sm:$0xf]
      %v1044 = vld [vmem:[%s4] sm:$0xf]
      %v1045 = vld [vmem:[%s4 + $0x4] sm:$0xf]
      %v1046 = vld [vmem:[%s4 + $0x8] sm:$0xf]
      %v1047 = vld [vmem:[%s4 + $0xc] sm:$0xf]
      %v1048 = vld [vmem:[%s4 + $0x10] sm:$0xf]
      %v1049 = vld [vmem:[%s4 + $0x14] sm:$0xf]
      %v1050 = vld [vmem:[%s4 + $0x18] sm:$0xf]
      %v1051 = vld [vmem:[%s4 + $0x1c] sm:$0xf]
      %v1052 = vld [vmem:[%s4 + $0x20] sm:$0xf]
      %v1053 = vld [vmem:[%s4 + $0x24] sm:$0xf]
      %v1054 = vld [vmem:[%s4 + $0x28] sm:$0xf]
      %v1055 = vld [vmem:[%s4 + $0x2c] sm:$0xf]
      %v1056 = vld [vmem:[%s4 + $0x30] sm:$0xf]
      %v1057 = vld [vmem:[%s4 + $0x34] sm:$0xf]
      %v1058 = vld [vmem:[%s4 + $0x38] sm:$0xf]
      %v1059 = vld [vmem:[%s4 + $0x3c] sm:$0xf]
      %v1062 = vunpack.c.l.b16 %v1042
      %v1063 = vunpack.c.l.b16 %v1043
      %v1064 = vpack.c.b16 %v1063, %v1062
      %v1082 = vunpack.c.l.b16 %v1044
      %v1083 = vunpack.c.l.b16 %v1045
      %v1084 = vunpack.c.l.b16 %v1046
      %v1085 = vunpack.c.l.b16 %v1047
      %v1086 = vunpack.c.l.b16 %v1048
      %v1087 = vunpack.c.l.b16 %v1049
      %v1088 = vunpack.c.l.b16 %v1050
      %v1089 = vunpack.c.l.b16 %v1051
      %v1090 = vunpack.c.l.b16 %v1052
      %v1091 = vunpack.c.l.b16 %v1053
      %v1092 = vunpack.c.l.b16 %v1054
      %v1093 = vunpack.c.l.b16 %v1055
      %v1094 = vunpack.c.l.b16 %v1056
      %v1095 = vunpack.c.l.b16 %v1057
      %v1096 = vunpack.c.l.b16 %v1058
      %v1097 = vunpack.c.l.b16 %v1059
      %v1098 = vpack.c.b16 %v1083, %v1082
      %v1099 = vpack.c.b16 %v1085, %v1084
      %v1100 = vpack.c.b16 %v1087, %v1086
      %v1101 = vpack.c.b16 %v1089, %v1088
      %v1102 = vpack.c.b16 %v1091, %v1090
      %v1103 = vpack.c.b16 %v1093, %v1092
      %v1104 = vpack.c.b16 %v1095, %v1094
      %v1105 = vpack.c.b16 %v1097, %v1096
      %1114 = vmatpush.bf16.msra.mxu0 %v1105
      %1115 = vmatpush.bf16.msra.mxu0 %v1104
      %1116 = vmatpush.bf16.msra.mxu0 %v1103
      %1117 = vmatpush.bf16.msra.mxu0 %v1102
      %1118 = vmatpush.bf16.msra.mxu0 %v1101
      %1119 = vmatpush.bf16.msra.mxu0 %v1100
      %1120 = vmatpush.bf16.msra.mxu0 %v1099
      %1121 = vmatpush.bf16.msra.mxu0 %v1098
      %1122 = vmatmul.bf16.gmra.mxu0 %v1064
      %v1123 = vpop.f32.mrf.mxu0
      %v1124 = vadd.f32 0.0, %v1123
      %v1125 = vpop.f32.mrf.mxu0
      %v1126 = vadd.f32 0.0, %v1125
      %1127 = vdwg.mxu0
      %v1128 = vadd.f32 %v1038, %v1124
      %v1129 = vadd.f32 %v1040, %v1126
      %v1130 = vld [vmem:[%s5] sm:$0x1]
      %v1132 = vperm.slane %v1130, 0
      %v1134 = vadd.f32 %v1128, %v1132
      %v1135 = vadd.f32 %v1129, %v1132
      %v1136 = vmax.f32 %v1134, 0.0
      %v1137 = vmax.f32 %v1135, 0.0
      %v1138 = vpack.c.bf16 %v1136, %v1136
      %v1139 = vpack.c.bf16 %v1137, %v1137
      %1140 = vst [vmem:[%s278] sm:$0xf] %v1138
      %1141 = vst [vmem:[%s278 + $0x4] sm:$0xf] %v1139
      %s1142 = smul.u32 2, %s17
      %p1143 = scmp.lt.s32.totalorder %s1142, 3
      %s1144 = scalar_select %p1143, %s1142, 3
      %s1145 = smul.addr %s1144, 4
      %s1146 = scalar_lea.vmem %s6, %s1145
      // Predicated region
      $region45: #{_lambda_.14} parent=43 // pred_check
        %p1147 = pneg %p171
      $region46: #{_lambda_.14} parent=43 // pred_check_branch
        %1149 = sbr.rel (%p1147) target = $region48
      $region47: #{_lambda_.14} parent=43 // pred_region
        %s1150 = smul.u32 2, %s17
      $region48: #{_lambda_.14} parent=43 // pred_fallthru
        _
    $region44: #{_lambda_.14} parent=5 // pred_fallthru
      _
    %p1151 = scmp.le.s32.totalorder 2, %s12
    // Predicated region
    $region49: #{_lambda_.14} parent=5 // pred_check
      %p1152 = pneg %p1151
    $region50: #{_lambda_.14} parent=5 // pred_check_branch
      %1154 = sbr.rel (%p1152) target = $region52
    $region51: #{_lambda_.14} parent=5 // pred_region
      %s1155 = ssub.s32 %s12, 2
      // Predicated region
      $region53: #{_lambda_.14} parent=51 // pred_check
        %p1156 = pneg %p177
      $region54: #{_lambda_.14} parent=51 // pred_check_branch
        %1158 = sbr.rel (%p1156) target = $region56
      $region55: #{_lambda_.14} parent=51 // pred_region
        %s1159 = smul.u32 2, %s18
        %p1160 = scmp.lt.s32.totalorder %s1159, 3
        %s1161 = scalar_select %p1160, %s1159, 3
        %s1162 = smul.addr %s1161, 4
        %s1163 = scalar_lea.vmem %s6, %s1162
      $region56: #{_lambda_.14} parent=51 // pred_fallthru
        _
    $region52: #{_lambda_.14} parent=5 // pred_fallthru
      _
  $region6: #{_lambda_.14} parent=0 // loop_footer
    %s16 = sadd.s32 1, %s12
  $region7: #{_lambda_.14} parent=0 // loop_footer_branch
    %11 = sbr.rel target = $region3
  $region8: #{_lambda_.14} parent=0 // loop_exit
    _

</llo_original>
